<compile_context>
chip_gen: v5e
topology: v5e:2x2
jax: 0.10.0
libtpu: 0.0.40
codegen_flags: <defaults>
</compile_context>

<pallas_src>
import jax
import jax.numpy as jnp
from jax.experimental import pallas as pl
from jax.experimental.pallas import tpu as pltpu  # noqa: F401  (kept for parity with other kernels)

# ---- small, module-consistent configuration ----------------------------------
IMAGE_SIZE = 16
PATCH_SIZE = 4
CHANNELS = 3
NUM_CLASSES = 10
DIM = 32
DEPTH = 2
HEADS = 4
DIM_HEAD = 8
MLP_DIM = 64
BATCH = 2

NUM_PATCHES = (IMAGE_SIZE // PATCH_SIZE) ** 2            # 16
PATCH_DIM = PATCH_SIZE * PATCH_SIZE * 5 * CHANNELS       # 240 (SPT -> 5x channels)
INNER_DIM = HEADS * DIM_HEAD                             # 32
SEQ = NUM_PATCHES + 1                                    # 17 (with cls token)

_EPS = 1e-5
_NEG_MAX = -3.4028235e38        # -torch.finfo(torch.float32).max (reference only)
_MASK_NEG = -1e30               # finite additive mask value used in the kernel
_SQRT_2_OVER_PI = 0.7978845608028654


# ---- in-kernel helpers --------------------------------------------------------
def _layernorm(x, gamma, beta):
    mu = jnp.mean(x, axis=-1, keepdims=True)
    var = jnp.mean(jnp.square(x - mu), axis=-1, keepdims=True)
    return (x - mu) * jax.lax.rsqrt(var + _EPS) * gamma + beta


def _gelu(x):
    # TODO(synk): torch nn.GELU() is exact-erf GELU; the tanh approximation is
    # used here (EUP tanh, ~1e-3 abs error).
    return 0.5 * x * (1.0 + jnp.tanh(_SQRT_2_OVER_PI * (x + 0.044715 * x * x * x)))


# ---- the single fused kernel --------------------------------------------------
def _vit_fused_kernel(tok_ref, peg_ref, peb_ref, pew_ref, pebias_ref,
                      clspos_ref, posr_ref,
                      ln1g_ref, ln1b_ref, wqkv_ref, wo_ref, bo_ref,
                      ln2g_ref, ln2b_ref, w1_ref, b1_ref, w2_ref, b2_ref,
                      hg_ref, hb_ref, hw_ref, hbias_ref,
                      o_ref):
    f32 = jnp.float32
    B = tok_ref.shape[0]

    # --- SPT patch embedding: LayerNorm(patch_dim) + Linear(patch_dim, dim) ---
    tok = tok_ref[...].astype(f32)                                # (B, NP, PATCH_DIM)
    tokn = _layernorm(tok, peg_ref[...], peb_ref[...])
    emb = jnp.dot(tokn.reshape(B * NUM_PATCHES, PATCH_DIM), pew_ref[...],
                  preferred_element_type=f32) + pebias_ref[...]   # (B*NP, DIM)
    emb = emb.reshape(B, NUM_PATCHES, DIM)

    # --- cls token + positional embedding (built as a value; no VMEM scratch) --
    cls = jnp.broadcast_to(clspos_ref[...], (B, 1, DIM))          # (B, 1, DIM)
    x = jnp.concatenate([cls, emb + posr_ref[...]], axis=1)       # (B, SEQ, DIM)
    x = x.reshape(B * SEQ, DIM)                                   # batch-flattened carrier

    # --- additive diagonal self-attention mask, built once --------------------
    rows = jax.lax.broadcasted_iota(jnp.int32, (SEQ, SEQ), 0)
    cols = jax.lax.broadcasted_iota(jnp.int32, (SEQ, SEQ), 1)
    diag_mask = jnp.where(rows == cols, _MASK_NEG, 0.0).astype(f32)

    for l in range(DEPTH):                                        # static unroll
        # --- PreNorm + LSA attention (scale already folded into q columns) ---
        xn = _layernorm(x, ln1g_ref[l], ln1b_ref[l])              # (B*SEQ, DIM)
        qkv = jnp.dot(xn, wqkv_ref[l], preferred_element_type=f32)   # (B*SEQ, 96)
        qkv = qkv.reshape(B, SEQ, 3 * INNER_DIM)

        outs = []
        for h in range(HEADS):                                    # static unroll
            qh = qkv[:, :, h * DIM_HEAD:(h + 1) * DIM_HEAD]
            kh = qkv[:, :, INNER_DIM + h * DIM_HEAD:
                           INNER_DIM + (h + 1) * DIM_HEAD]
            vh = qkv[:, :, 2 * INNER_DIM + h * DIM_HEAD:
                           2 * INNER_DIM + (h + 1) * DIM_HEAD]
            dots = jnp.einsum('bqd,bkd->bqk', qh, kh,
                              preferred_element_type=f32) + diag_mask
            dots = dots - jnp.max(dots, axis=-1, keepdims=True)
            e = jnp.exp(dots)
            attn = e * pl.reciprocal(jnp.sum(e, axis=-1, keepdims=True),
                                     approx=True)
            outs.append(jnp.einsum('bqk,bkd->bqd', attn, vh,
                                   preferred_element_type=f32))   # (B, SEQ, Dh)

        # head-major concat matches torch's 'b h n d -> b n (h d)' row order of wo
        o_cat = jnp.concatenate(outs, axis=-1).reshape(B * SEQ, INNER_DIM)
        x = x + jnp.dot(o_cat, wo_ref[l], preferred_element_type=f32) + bo_ref[l]

        # --- PreNorm + FeedForward ---
        xn2 = _layernorm(x, ln2g_ref[l], ln2b_ref[l])
        h1 = _gelu(jnp.dot(xn2, w1_ref[l], preferred_element_type=f32) + b1_ref[l])
        x = x + jnp.dot(h1, w2_ref[l], preferred_element_type=f32) + b2_ref[l]

    # --- pool='cls' + MLP head (LayerNorm + Linear) ----------------------------
    xc = x.reshape(B, SEQ, DIM)[:, 0, :]                          # (B, DIM)
    xcn = _layernorm(xc, hg_ref[...], hb_ref[...])
    logits = jnp.dot(xcn, hw_ref[...], preferred_element_type=f32) + hbias_ref[...]
    o_ref[...] = logits.astype(o_ref.dtype)


# ---- SPT shift/pad/rearrange glue (pure JAX) ----------------------------------
def spt_tokens(img):
    # img: (B, C, H, W).  F.pad 4-tuple = (left, right, top, bottom) on (W, H).
    B, C, H, W = img.shape

    def shift(pad):
        l, r, t, b = pad
        y = jnp.pad(img, ((0, 0), (0, 0),
                          (max(t, 0), max(b, 0)),
                          (max(l, 0), max(r, 0))))
        H2, W2 = y.shape[2], y.shape[3]
        return y[:, :, max(-t, 0):H2 - max(-b, 0), max(-l, 0):W2 - max(-r, 0)]

    shifts = ((1, -1, 0, 0), (-1, 1, 0, 0), (0, 0, 1, -1), (0, 0, -1, 1))
    x = jnp.concatenate([img] + [shift(s) for s in shifts], axis=1)   # (B, 5C, H, W)
    c5 = 5 * C
    h, w = H // PATCH_SIZE, W // PATCH_SIZE
    # 'b c (h p1) (w p2) -> b (h w) (p1 p2 c)'
    x = x.reshape(B, c5, h, PATCH_SIZE, w, PATCH_SIZE)
    x = x.transpose(0, 2, 4, 3, 5, 1)                                 # b h w p1 p2 c
    return x.reshape(B, h * w, PATCH_SIZE * PATCH_SIZE * c5)


# ---- wrapper-side parameter packing (QKV fusion, scale folding) ---------------
def _pack_params(params):
    layers = params['layers']

    def stack(key):
        return jnp.stack([lp[key] for lp in layers], axis=0)

    def stack_vec(key):                       # (1, D) per layer -> (DEPTH, D)
        return jnp.concatenate([lp[key] for lp in layers], axis=0)

    # Fused QKV weight (DEPTH, DIM, 3*INNER_DIM); the multiplicative LSA scale
    # (= exp(temperature) = dim_head**-0.5 as stored in params['layers'][i]['scale'])
    # is folded into the q columns so no per-attention scaling is needed in-kernel.
    wqkv = stack('wqkv')                                              # (DEPTH, 32, 96)
    scales = jnp.stack([lp['scale'].reshape(()) for lp in layers])    # (DEPTH,)
    wqkv = jnp.concatenate(
        [wqkv[:, :, :INNER_DIM] * scales[:, None, None],
         wqkv[:, :, INNER_DIM:]], axis=-1)

    cls_pos0 = params['cls_token'][0] + params['pos_emb'][0, 0:1]     # (1, DIM)
    pos_rest = params['pos_emb'][0, 1:SEQ]                            # (NP, DIM)

    return dict(
        pe_g=params['patch_ln_g'], pe_b=params['patch_ln_b'],
        pe_w=params['patch_w'], pe_bias=params['patch_b'],
        cls_pos0=cls_pos0, pos_rest=pos_rest,
        ln1_g=stack_vec('ln1_g'), ln1_b=stack_vec('ln1_b'),
        wqkv=wqkv,
        wo=stack('wo'),                       # (DEPTH, INNER_DIM, DIM), head-major rows
        bo=stack_vec('bo'),
        ln2_g=stack_vec('ln2_g'), ln2_b=stack_vec('ln2_b'),
        w1=stack('w1'), b1=stack_vec('b1'), w2=stack('w2'), b2=stack_vec('b2'),
        head_ln_g=params['head_ln_g'], head_ln_b=params['head_ln_b'],
        head_w=params['head_w'], head_b=params['head_b'],
    )


# ---- full forward pass (single fused pallas_call) -----------------------------
def vit_forward(img, params):
    tokens = spt_tokens(img)                                          # (B, NP, 240)
    B = tokens.shape[0]
    p = _pack_params(params)
    return pl.pallas_call(
        _vit_fused_kernel,
        out_shape=jax.ShapeDtypeStruct((B, NUM_CLASSES), jnp.float32),
    )(tokens, p['pe_g'], p['pe_b'], p['pe_w'], p['pe_bias'],
      p['cls_pos0'], p['pos_rest'],
      p['ln1_g'], p['ln1_b'], p['wqkv'], p['wo'], p['bo'],
      p['ln2_g'], p['ln2_b'], p['w1'], p['b1'], p['w2'], p['b2'],
      p['head_ln_g'], p['head_ln_b'], p['head_w'], p['head_b'])


# ---- pure-JAX reference (mirrors the torch module; tanh GELU for parity) ------
def _vit_reference(img, params):
    def ln(x, g, b):
        mu = x.mean(-1, keepdims=True)
        var = jnp.mean(jnp.square(x - mu), -1, keepdims=True)
        return (x - mu) / jnp.sqrt(var + _EPS) * g + b

    tokens = spt_tokens(img)
    x = ln(tokens, params['patch_ln_g'], params['patch_ln_b']) @ params['patch_w'] \
        + params['patch_b']
    B = x.shape[0]
    cls = jnp.broadcast_to(params['cls_token'], (B, 1, DIM))
    x = jnp.concatenate([cls, x], axis=1) + params['pos_emb'][:, :SEQ]
    eye = jnp.eye(SEQ, dtype=bool)
    for lp in params['layers']:
        xn = ln(x, lp['ln1_g'], lp['ln1_b'])
        q, k, v = jnp.split(xn @ lp['wqkv'], 3, axis=-1)
        heads = lambda t: t.reshape(B, SEQ, HEADS, DIM_HEAD).transpose(0, 2, 1, 3)
        q, k, v = heads(q), heads(k), heads(v)
        dots = jnp.einsum('bhqd,bhkd->bhqk', q, k) * lp['scale'][0, 0]
        dots = jnp.where(eye, _NEG_MAX, dots)
        attn = jax.nn.softmax(dots, axis=-1)
        out = jnp.einsum('bhqk,bhkd->bhqd', attn, v)
        out = out.transpose(0, 2, 1, 3).reshape(B, SEQ, INNER_DIM)
        x = x + out @ lp['wo'] + lp['bo']
        xn2 = ln(x, lp['ln2_g'], lp['ln2_b'])
        x = x + _gelu(xn2 @ lp['w1'] + lp['b1']) @ lp['w2'] + lp['b2']
    xc = x[:, 0]
    return ln(xc, params['head_ln_g'], params['head_ln_b']) @ params['head_w'] \
        + params['head_b']


# ---- parameters (deterministic synthetic init) --------------------------------
def init_params(key):
    keys = iter(jax.random.split(key, 32))

    def nrm(shape, scale=0.02):
        return (scale * jax.random.normal(next(keys), shape)).astype(jnp.float32)

    params = {
        'patch_ln_g': jnp.ones((1, PATCH_DIM), jnp.float32),
        'patch_ln_b': jnp.zeros((1, PATCH_DIM), jnp.float32),
        'patch_w': nrm((PATCH_DIM, DIM)),
        'patch_b': nrm((1, DIM)),
        'pos_emb': nrm((1, SEQ, DIM), scale=1.0),     # ~ torch.randn
        'cls_token': nrm((1, 1, DIM), scale=1.0),
        'head_ln_g': jnp.ones((1, DIM), jnp.float32),
        'head_ln_b': jnp.zeros((1, DIM), jnp.float32),
        'head_w': nrm((DIM, NUM_CLASSES)),
        'head_b': nrm((1, NUM_CLASSES)),
    }
    layers = []
    for _ in range(DEPTH):
        layers.append({
            'ln1_g': jnp.ones((1, DIM), jnp.float32),
            'ln1_b': jnp.zeros((1, DIM), jnp.float32),
            'wqkv': nrm((DIM, 3 * INNER_DIM)),                        # bias=False
            # 'scale' already holds exp(temperature) = dim_head**-0.5 (multiplicative);
            # both the kernel packing and the reference consume it as-is.
            'scale': jnp.full((1, 1), DIM_HEAD ** -0.5, jnp.float32),
            'wo': nrm((INNER_DIM, DIM)),
            'bo': nrm((1, DIM)),
            'ln2_g': jnp.ones((1, DIM), jnp.float32),
            'ln2_b': jnp.zeros((1, DIM), jnp.float32),
            'w1': nrm((DIM, MLP_DIM)),
            'b1': nrm((1, MLP_DIM)),
            'w2': nrm((MLP_DIM, DIM)),
            'b2': nrm((1, DIM)),
        })
    params['layers'] = layers
    return params


if __name__ == "__main__":
    key = jax.random.PRNGKey(0)
    k_img, k_par = jax.random.split(key)
    img = jax.random.normal(k_img, (BATCH, CHANNELS, IMAGE_SIZE, IMAGE_SIZE),
                            dtype=jnp.float32)
    params = init_params(k_par)

    logits = jax.jit(vit_forward)(img, params)
    logits = jax.block_until_ready(logits)
    assert logits.shape == (BATCH, NUM_CLASSES)
    assert bool(jnp.all(jnp.isfinite(logits)))

    ref = jax.block_until_ready(_vit_reference(img, params))
    assert bool(jnp.max(jnp.abs(logits - ref)) < 3e-3), "mismatch vs pure-JAX reference"

    print("KERNEL_OK")
</pallas_src>

<mosaic_0001>
module attributes {stable_mosaic.version = 11 : i64} {
  func.func @_vit_fused_kernel(%arg0: memref<2x16x240xf32, #tpu.memory_space<vmem>>, %arg1: memref<1x240xf32, #tpu.memory_space<vmem>>, %arg2: memref<1x240xf32, #tpu.memory_space<vmem>>, %arg3: memref<240x32xf32, #tpu.memory_space<vmem>>, %arg4: memref<1x32xf32, #tpu.memory_space<vmem>>, %arg5: memref<1x32xf32, #tpu.memory_space<vmem>>, %arg6: memref<16x32xf32, #tpu.memory_space<vmem>>, %arg7: memref<2x32xf32, #tpu.memory_space<vmem>>, %arg8: memref<2x32xf32, #tpu.memory_space<vmem>>, %arg9: memref<2x32x96xf32, #tpu.memory_space<vmem>>, %arg10: memref<2x32x32xf32, #tpu.memory_space<vmem>>, %arg11: memref<2x32xf32, #tpu.memory_space<vmem>>, %arg12: memref<2x32xf32, #tpu.memory_space<vmem>>, %arg13: memref<2x32xf32, #tpu.memory_space<vmem>>, %arg14: memref<2x32x64xf32, #tpu.memory_space<vmem>>, %arg15: memref<2x64xf32, #tpu.memory_space<vmem>>, %arg16: memref<2x64x32xf32, #tpu.memory_space<vmem>>, %arg17: memref<2x32xf32, #tpu.memory_space<vmem>>, %arg18: memref<1x32xf32, #tpu.memory_space<vmem>>, %arg19: memref<1x32xf32, #tpu.memory_space<vmem>>, %arg20: memref<32x10xf32, #tpu.memory_space<vmem>>, %arg21: memref<1x10xf32, #tpu.memory_space<vmem>>, %arg22: memref<2x10xf32, #tpu.memory_space<vmem>>) attributes {dimension_semantics = [], scalar_prefetch = 0 : i64, scratch_operands = 0 : i64, tpu.core_type = #tpu.core_type<tc>} {
    %c0 = arith.constant 0 : index
    %c0_0 = arith.constant 0 : index
    %c0_1 = arith.constant 0 : index
    %0 = vector.load %arg0[%c0, %c0_0, %c0_1] : memref<2x16x240xf32, #tpu.memory_space<vmem>>, vector<2x16x240xf32>
    %c0_2 = arith.constant 0 : index
    %c0_3 = arith.constant 0 : index
    %1 = vector.load %arg1[%c0_2, %c0_3] : memref<1x240xf32, #tpu.memory_space<vmem>>, vector<1x240xf32>
    %c0_4 = arith.constant 0 : index
    %c0_5 = arith.constant 0 : index
    %2 = vector.load %arg2[%c0_4, %c0_5] : memref<1x240xf32, #tpu.memory_space<vmem>>, vector<1x240xf32>
    %cst = arith.constant dense<0.000000e+00> : vector<2x16xf32>
    %3 = vector.multi_reduction <add>, %0, %cst [2] : vector<2x16x240xf32> to vector<2x16xf32>
    %4 = vector.shape_cast %3 : vector<2x16xf32> to vector<2x16x1xf32>
    %cst_6 = arith.constant 2.400000e+02 : f32
    %5 = vector.broadcast %cst_6 : f32 to vector<2x16x1xf32>
    %6 = arith.divf %4, %5 : vector<2x16x1xf32>
    %7 = vector.broadcast %6 : vector<2x16x1xf32> to vector<2x16x240xf32>
    %8 = arith.subf %0, %7 : vector<2x16x240xf32>
    %9 = arith.mulf %8, %8 : vector<2x16x240xf32>
    %cst_7 = arith.constant dense<0.000000e+00> : vector<2x16xf32>
    %10 = vector.multi_reduction <add>, %9, %cst_7 [2] : vector<2x16x240xf32> to vector<2x16xf32>
    %11 = vector.shape_cast %10 : vector<2x16xf32> to vector<2x16x1xf32>
    %cst_8 = arith.constant 2.400000e+02 : f32
    %12 = vector.broadcast %cst_8 : f32 to vector<2x16x1xf32>
    %13 = arith.divf %11, %12 : vector<2x16x1xf32>
    %14 = vector.broadcast %6 : vector<2x16x1xf32> to vector<2x16x240xf32>
    %15 = arith.subf %0, %14 : vector<2x16x240xf32>
    %cst_9 = arith.constant 9.99999974E-6 : f32
    %16 = vector.broadcast %cst_9 : f32 to vector<2x16x1xf32>
    %17 = arith.addf %13, %16 : vector<2x16x1xf32>
    %18 = math.rsqrt %17 : vector<2x16x1xf32>
    %19 = vector.broadcast %18 : vector<2x16x1xf32> to vector<2x16x240xf32>
    %20 = arith.mulf %15, %19 : vector<2x16x240xf32>
    %21 = vector.shape_cast %1 : vector<1x240xf32> to vector<1x1x240xf32>
    %22 = vector.broadcast %21 : vector<1x1x240xf32> to vector<2x16x240xf32>
    %23 = arith.mulf %20, %22 : vector<2x16x240xf32>
    %24 = vector.shape_cast %2 : vector<1x240xf32> to vector<1x1x240xf32>
    %25 = vector.broadcast %24 : vector<1x1x240xf32> to vector<2x16x240xf32>
    %26 = arith.addf %23, %25 : vector<2x16x240xf32>
    %27 = vector.shape_cast %26 : vector<2x16x240xf32> to vector<32x240xf32>
    %c0_10 = arith.constant 0 : index
    %c0_11 = arith.constant 0 : index
    %28 = vector.load %arg3[%c0_10, %c0_11] : memref<240x32xf32, #tpu.memory_space<vmem>>, vector<240x32xf32>
    %cst_12 = arith.constant dense<0.000000e+00> : vector<32x32xf32>
    %29 = tpu.matmul %27, %28, %cst_12 {dimension_numbers = #tpu.dot_dimension_numbers<[1], [0], [0], [1], [0, 0, 1, 1], [], []>} : vector<32x240xf32>, vector<240x32xf32>, vector<32x32xf32> -> vector<32x32xf32>
    %c0_13 = arith.constant 0 : index
    %c0_14 = arith.constant 0 : index
    %30 = vector.load %arg4[%c0_13, %c0_14] : memref<1x32xf32, #tpu.memory_space<vmem>>, vector<1x32xf32>
    %31 = vector.broadcast %30 : vector<1x32xf32> to vector<32x32xf32>
    %32 = arith.addf %29, %31 : vector<32x32xf32>
    %33 = vector.shape_cast %32 : vector<32x32xf32> to vector<2x16x32xf32>
    %c0_15 = arith.constant 0 : index
    %c0_16 = arith.constant 0 : index
    %34 = vector.load %arg5[%c0_15, %c0_16] : memref<1x32xf32, #tpu.memory_space<vmem>>, vector<1x32xf32>
    %35 = vector.shape_cast %34 : vector<1x32xf32> to vector<1x1x32xf32>
    %36 = vector.broadcast %35 : vector<1x1x32xf32> to vector<2x1x32xf32>
    %c0_17 = arith.constant 0 : index
    %c0_18 = arith.constant 0 : index
    %37 = vector.load %arg6[%c0_17, %c0_18] : memref<16x32xf32, #tpu.memory_space<vmem>>, vector<16x32xf32>
    %38 = vector.shape_cast %37 : vector<16x32xf32> to vector<1x16x32xf32>
    %39 = vector.broadcast %38 : vector<1x16x32xf32> to vector<2x16x32xf32>
    %40 = arith.addf %33, %39 : vector<2x16x32xf32>
    %41 = tpu.concatenate %36, %40 in 1 : vector<2x1x32xf32>, vector<2x16x32xf32> -> vector<2x17x32xf32>
    %42 = vector.shape_cast %41 : vector<2x17x32xf32> to vector<34x32xf32>
    %43 = tpu.iota {dimensions = array<i32: 0>} : vector<17x17xi32>
    %44 = tpu.iota {dimensions = array<i32: 1>} : vector<17x17xi32>
    %45 = arith.cmpi eq, %43, %44 : vector<17x17xi32>
    %cst_19 = arith.constant -1.000000e+30 : f32
    %cst_20 = arith.constant 0.000000e+00 : f32
    %46 = vector.broadcast %cst_19 : f32 to vector<17x17xf32>
    %47 = vector.broadcast %cst_20 : f32 to vector<17x17xf32>
    %48 = arith.select %45, %46, %47 : vector<17x17xi1>, vector<17x17xf32>
    %c0_21 = arith.constant 0 : index
    %c0_22 = arith.constant 0 : index
    %49 = vector.load %arg7[%c0_21, %c0_22] : memref<2x32xf32, #tpu.memory_space<vmem>>, vector<1x32xf32>
    %50 = vector.shape_cast %49 : vector<1x32xf32> to vector<32xf32>
    %c0_23 = arith.constant 0 : index
    %c0_24 = arith.constant 0 : index
    %51 = vector.load %arg8[%c0_23, %c0_24] : memref<2x32xf32, #tpu.memory_space<vmem>>, vector<1x32xf32>
    %52 = vector.shape_cast %51 : vector<1x32xf32> to vector<32xf32>
    %cst_25 = arith.constant dense<0.000000e+00> : vector<34xf32>
    %53 = vector.multi_reduction <add>, %42, %cst_25 [1] : vector<34x32xf32> to vector<34xf32>
    %54 = vector.shape_cast %53 : vector<34xf32> to vector<34x1xf32>
    %cst_26 = arith.constant 3.200000e+01 : f32
    %55 = vector.broadcast %cst_26 : f32 to vector<34x1xf32>
    %56 = arith.divf %54, %55 : vector<34x1xf32>
    %57 = vector.broadcast %56 : vector<34x1xf32> to vector<34x32xf32>
    %58 = arith.subf %42, %57 : vector<34x32xf32>
    %59 = arith.mulf %58, %58 : vector<34x32xf32>
    %cst_27 = arith.constant dense<0.000000e+00> : vector<34xf32>
    %60 = vector.multi_reduction <add>, %59, %cst_27 [1] : vector<34x32xf32> to vector<34xf32>
    %61 = vector.shape_cast %60 : vector<34xf32> to vector<34x1xf32>
    %cst_28 = arith.constant 3.200000e+01 : f32
    %62 = vector.broadcast %cst_28 : f32 to vector<34x1xf32>
    %63 = arith.divf %61, %62 : vector<34x1xf32>
    %64 = vector.broadcast %56 : vector<34x1xf32> to vector<34x32xf32>
    %65 = arith.subf %42, %64 : vector<34x32xf32>
    %cst_29 = arith.constant 9.99999974E-6 : f32
    %66 = vector.broadcast %cst_29 : f32 to vector<34x1xf32>
    %67 = arith.addf %63, %66 : vector<34x1xf32>
    %68 = math.rsqrt %67 : vector<34x1xf32>
    %69 = vector.broadcast %68 : vector<34x1xf32> to vector<34x32xf32>
    %70 = arith.mulf %65, %69 : vector<34x32xf32>
    %71 = vector.shape_cast %50 : vector<32xf32> to vector<1x32xf32>
    %72 = vector.broadcast %71 : vector<1x32xf32> to vector<34x32xf32>
    %73 = arith.mulf %70, %72 : vector<34x32xf32>
    %74 = vector.shape_cast %52 : vector<32xf32> to vector<1x32xf32>
    %75 = vector.broadcast %74 : vector<1x32xf32> to vector<34x32xf32>
    %76 = arith.addf %73, %75 : vector<34x32xf32>
    %c0_30 = arith.constant 0 : index
    %c0_31 = arith.constant 0 : index
    %c0_32 = arith.constant 0 : index
    %77 = vector.load %arg9[%c0_30, %c0_31, %c0_32] : memref<2x32x96xf32, #tpu.memory_space<vmem>>, vector<1x32x96xf32>
    %78 = vector.shape_cast %77 : vector<1x32x96xf32> to vector<32x96xf32>
    %cst_33 = arith.constant dense<0.000000e+00> : vector<34x96xf32>
    %79 = tpu.matmul %76, %78, %cst_33 {dimension_numbers = #tpu.dot_dimension_numbers<[1], [0], [0], [1], [0, 0, 1, 1], [], []>} : vector<34x32xf32>, vector<32x96xf32>, vector<34x96xf32> -> vector<34x96xf32>
    %80 = vector.shape_cast %79 : vector<34x96xf32> to vector<2x17x96xf32>
    %81 = vector.extract_strided_slice %80 {offsets = [0, 0, 0], sizes = [2, 17, 8], strides = [1, 1, 1]} : vector<2x17x96xf32> to vector<2x17x8xf32>
    %82 = vector.extract_strided_slice %80 {offsets = [0, 0, 32], sizes = [2, 17, 8], strides = [1, 1, 1]} : vector<2x17x96xf32> to vector<2x17x8xf32>
    %83 = vector.extract_strided_slice %80 {offsets = [0, 0, 64], sizes = [2, 17, 8], strides = [1, 1, 1]} : vector<2x17x96xf32> to vector<2x17x8xf32>
    "tpu.trace_start"() <{level = 10 : i32, message = "bqd,bkd->bqk"}> : () -> ()
    %cst_34 = arith.constant dense<0.000000e+00> : vector<2x17x17xf32>
    %84 = tpu.matmul %81, %82, %cst_34 {dimension_numbers = #tpu.dot_dimension_numbers<[2], [2], [1], [1], [0, 0, 0, 1, 1, 1], [0], [0]>} : vector<2x17x8xf32>, vector<2x17x8xf32>, vector<2x17x17xf32> -> vector<2x17x17xf32>
    "tpu.trace_stop"() : () -> ()
    %85 = vector.shape_cast %48 : vector<17x17xf32> to vector<1x17x17xf32>
    %86 = vector.broadcast %85 : vector<1x17x17xf32> to vector<2x17x17xf32>
    %87 = arith.addf %84, %86 : vector<2x17x17xf32>
    %cst_35 = arith.constant dense<0xFF800000> : vector<2x17xf32>
    %88 = vector.multi_reduction <maximumf>, %87, %cst_35 [2] : vector<2x17x17xf32> to vector<2x17xf32>
    %89 = vector.shape_cast %88 : vector<2x17xf32> to vector<2x17x1xf32>
    %90 = vector.broadcast %89 : vector<2x17x1xf32> to vector<2x17x17xf32>
    %91 = arith.subf %87, %90 : vector<2x17x17xf32>
    %92 = math.exp %91 : vector<2x17x17xf32>
    %cst_36 = arith.constant dense<0.000000e+00> : vector<2x17xf32>
    %93 = vector.multi_reduction <add>, %92, %cst_36 [2] : vector<2x17x17xf32> to vector<2x17xf32>
    %94 = vector.shape_cast %93 : vector<2x17xf32> to vector<2x17x1xf32>
    %95 = tpu.reciprocal %94 {approx = true} : vector<2x17x1xf32> -> vector<2x17x1xf32>
    %96 = vector.broadcast %95 : vector<2x17x1xf32> to vector<2x17x17xf32>
    %97 = arith.mulf %92, %96 : vector<2x17x17xf32>
    "tpu.trace_start"() <{level = 10 : i32, message = "bqk,bkd->bqd"}> : () -> ()
    %cst_37 = arith.constant dense<0.000000e+00> : vector<2x17x8xf32>
    %98 = tpu.matmul %97, %83, %cst_37 {dimension_numbers = #tpu.dot_dimension_numbers<[2], [1], [1], [2], [0, 0, 0, 1, 1, 2], [0], [0]>} : vector<2x17x17xf32>, vector<2x17x8xf32>, vector<2x17x8xf32> -> vector<2x17x8xf32>
    "tpu.trace_stop"() : () -> ()
    %99 = vector.extract_strided_slice %80 {offsets = [0, 0, 8], sizes = [2, 17, 8], strides = [1, 1, 1]} : vector<2x17x96xf32> to vector<2x17x8xf32>
    %100 = vector.extract_strided_slice %80 {offsets = [0, 0, 40], sizes = [2, 17, 8], strides = [1, 1, 1]} : vector<2x17x96xf32> to vector<2x17x8xf32>
    %101 = vector.extract_strided_slice %80 {offsets = [0, 0, 72], sizes = [2, 17, 8], strides = [1, 1, 1]} : vector<2x17x96xf32> to vector<2x17x8xf32>
    "tpu.trace_start"() <{level = 10 : i32, message = "bqd,bkd->bqk"}> : () -> ()
    %cst_38 = arith.constant dense<0.000000e+00> : vector<2x17x17xf32>
    %102 = tpu.matmul %99, %100, %cst_38 {dimension_numbers = #tpu.dot_dimension_numbers<[2], [2], [1], [1], [0, 0, 0, 1, 1, 1], [0], [0]>} : vector<2x17x8xf32>, vector<2x17x8xf32>, vector<2x17x17xf32> -> vector<2x17x17xf32>
    "tpu.trace_stop"() : () -> ()
    %103 = vector.shape_cast %48 : vector<17x17xf32> to vector<1x17x17xf32>
    %104 = vector.broadcast %103 : vector<1x17x17xf32> to vector<2x17x17xf32>
    %105 = arith.addf %102, %104 : vector<2x17x17xf32>
    %cst_39 = arith.constant dense<0xFF800000> : vector<2x17xf32>
    %106 = vector.multi_reduction <maximumf>, %105, %cst_39 [2] : vector<2x17x17xf32> to vector<2x17xf32>
    %107 = vector.shape_cast %106 : vector<2x17xf32> to vector<2x17x1xf32>
    %108 = vector.broadcast %107 : vector<2x17x1xf32> to vector<2x17x17xf32>
    %109 = arith.subf %105, %108 : vector<2x17x17xf32>
    %110 = math.exp %109 : vector<2x17x17xf32>
    %cst_40 = arith.constant dense<0.000000e+00> : vector<2x17xf32>
    %111 = vector.multi_reduction <add>, %110, %cst_40 [2] : vector<2x17x17xf32> to vector<2x17xf32>
    %112 = vector.shape_cast %111 : vector<2x17xf32> to vector<2x17x1xf32>
    %113 = tpu.reciprocal %112 {approx = true} : vector<2x17x1xf32> -> vector<2x17x1xf32>
    %114 = vector.broadcast %113 : vector<2x17x1xf32> to vector<2x17x17xf32>
    %115 = arith.mulf %110, %114 : vector<2x17x17xf32>
    "tpu.trace_start"() <{level = 10 : i32, message = "bqk,bkd->bqd"}> : () -> ()
    %cst_41 = arith.constant dense<0.000000e+00> : vector<2x17x8xf32>
    %116 = tpu.matmul %115, %101, %cst_41 {dimension_numbers = #tpu.dot_dimension_numbers<[2], [1], [1], [2], [0, 0, 0, 1, 1, 2], [0], [0]>} : vector<2x17x17xf32>, vector<2x17x8xf32>, vector<2x17x8xf32> -> vector<2x17x8xf32>
    "tpu.trace_stop"() : () -> ()
    %117 = vector.extract_strided_slice %80 {offsets = [0, 0, 16], sizes = [2, 17, 8], strides = [1, 1, 1]} : vector<2x17x96xf32> to vector<2x17x8xf32>
    %118 = vector.extract_strided_slice %80 {offsets = [0, 0, 48], sizes = [2, 17, 8], strides = [1, 1, 1]} : vector<2x17x96xf32> to vector<2x17x8xf32>
    %119 = vector.extract_strided_slice %80 {offsets = [0, 0, 80], sizes = [2, 17, 8], strides = [1, 1, 1]} : vector<2x17x96xf32> to vector<2x17x8xf32>
    "tpu.trace_start"() <{level = 10 : i32, message = "bqd,bkd->bqk"}> : () -> ()
    %cst_42 = arith.constant dense<0.000000e+00> : vector<2x17x17xf32>
    %120 = tpu.matmul %117, %118, %cst_42 {dimension_numbers = #tpu.dot_dimension_numbers<[2], [2], [1], [1], [0, 0, 0, 1, 1, 1], [0], [0]>} : vector<2x17x8xf32>, vector<2x17x8xf32>, vector<2x17x17xf32> -> vector<2x17x17xf32>
    "tpu.trace_stop"() : () -> ()
    %121 = vector.shape_cast %48 : vector<17x17xf32> to vector<1x17x17xf32>
    %122 = vector.broadcast %121 : vector<1x17x17xf32> to vector<2x17x17xf32>
    %123 = arith.addf %120, %122 : vector<2x17x17xf32>
    %cst_43 = arith.constant dense<0xFF800000> : vector<2x17xf32>
    %124 = vector.multi_reduction <maximumf>, %123, %cst_43 [2] : vector<2x17x17xf32> to vector<2x17xf32>
    %125 = vector.shape_cast %124 : vector<2x17xf32> to vector<2x17x1xf32>
    %126 = vector.broadcast %125 : vector<2x17x1xf32> to vector<2x17x17xf32>
    %127 = arith.subf %123, %126 : vector<2x17x17xf32>
    %128 = math.exp %127 : vector<2x17x17xf32>
    %cst_44 = arith.constant dense<0.000000e+00> : vector<2x17xf32>
    %129 = vector.multi_reduction <add>, %128, %cst_44 [2] : vector<2x17x17xf32> to vector<2x17xf32>
    %130 = vector.shape_cast %129 : vector<2x17xf32> to vector<2x17x1xf32>
    %131 = tpu.reciprocal %130 {approx = true} : vector<2x17x1xf32> -> vector<2x17x1xf32>
    %132 = vector.broadcast %131 : vector<2x17x1xf32> to vector<2x17x17xf32>
    %133 = arith.mulf %128, %132 : vector<2x17x17xf32>
    "tpu.trace_start"() <{level = 10 : i32, message = "bqk,bkd->bqd"}> : () -> ()
    %cst_45 = arith.constant dense<0.000000e+00> : vector<2x17x8xf32>
    %134 = tpu.matmul %133, %119, %cst_45 {dimension_numbers = #tpu.dot_dimension_numbers<[2], [1], [1], [2], [0, 0, 0, 1, 1, 2], [0], [0]>} : vector<2x17x17xf32>, vector<2x17x8xf32>, vector<2x17x8xf32> -> vector<2x17x8xf32>
    "tpu.trace_stop"() : () -> ()
    %135 = vector.extract_strided_slice %80 {offsets = [0, 0, 24], sizes = [2, 17, 8], strides = [1, 1, 1]} : vector<2x17x96xf32> to vector<2x17x8xf32>
    %136 = vector.extract_strided_slice %80 {offsets = [0, 0, 56], sizes = [2, 17, 8], strides = [1, 1, 1]} : vector<2x17x96xf32> to vector<2x17x8xf32>
    %137 = vector.extract_strided_slice %80 {offsets = [0, 0, 88], sizes = [2, 17, 8], strides = [1, 1, 1]} : vector<2x17x96xf32> to vector<2x17x8xf32>
    "tpu.trace_start"() <{level = 10 : i32, message = "bqd,bkd->bqk"}> : () -> ()
    %cst_46 = arith.constant dense<0.000000e+00> : vector<2x17x17xf32>
    %138 = tpu.matmul %135, %136, %cst_46 {dimension_numbers = #tpu.dot_dimension_numbers<[2], [2], [1], [1], [0, 0, 0, 1, 1, 1], [0], [0]>} : vector<2x17x8xf32>, vector<2x17x8xf32>, vector<2x17x17xf32> -> vector<2x17x17xf32>
    "tpu.trace_stop"() : () -> ()
    %139 = vector.shape_cast %48 : vector<17x17xf32> to vector<1x17x17xf32>
    %140 = vector.broadcast %139 : vector<1x17x17xf32> to vector<2x17x17xf32>
    %141 = arith.addf %138, %140 : vector<2x17x17xf32>
    %cst_47 = arith.constant dense<0xFF800000> : vector<2x17xf32>
    %142 = vector.multi_reduction <maximumf>, %141, %cst_47 [2] : vector<2x17x17xf32> to vector<2x17xf32>
    %143 = vector.shape_cast %142 : vector<2x17xf32> to vector<2x17x1xf32>
    %144 = vector.broadcast %143 : vector<2x17x1xf32> to vector<2x17x17xf32>
    %145 = arith.subf %141, %144 : vector<2x17x17xf32>
    %146 = math.exp %145 : vector<2x17x17xf32>
    %cst_48 = arith.constant dense<0.000000e+00> : vector<2x17xf32>
    %147 = vector.multi_reduction <add>, %146, %cst_48 [2] : vector<2x17x17xf32> to vector<2x17xf32>
    %148 = vector.shape_cast %147 : vector<2x17xf32> to vector<2x17x1xf32>
    %149 = tpu.reciprocal %148 {approx = true} : vector<2x17x1xf32> -> vector<2x17x1xf32>
    %150 = vector.broadcast %149 : vector<2x17x1xf32> to vector<2x17x17xf32>
    %151 = arith.mulf %146, %150 : vector<2x17x17xf32>
    "tpu.trace_start"() <{level = 10 : i32, message = "bqk,bkd->bqd"}> : () -> ()
    %cst_49 = arith.constant dense<0.000000e+00> : vector<2x17x8xf32>
    %152 = tpu.matmul %151, %137, %cst_49 {dimension_numbers = #tpu.dot_dimension_numbers<[2], [1], [1], [2], [0, 0, 0, 1, 1, 2], [0], [0]>} : vector<2x17x17xf32>, vector<2x17x8xf32>, vector<2x17x8xf32> -> vector<2x17x8xf32>
    "tpu.trace_stop"() : () -> ()
    %153 = tpu.concatenate %98, %116, %134, %152 in 2 : vector<2x17x8xf32>, vector<2x17x8xf32>, vector<2x17x8xf32>, vector<2x17x8xf32> -> vector<2x17x32xf32>
    %154 = vector.shape_cast %153 : vector<2x17x32xf32> to vector<34x32xf32>
    %c0_50 = arith.constant 0 : index
    %c0_51 = arith.constant 0 : index
    %c0_52 = arith.constant 0 : index
    %155 = vector.load %arg10[%c0_50, %c0_51, %c0_52] : memref<2x32x32xf32, #tpu.memory_space<vmem>>, vector<1x32x32xf32>
    %156 = vector.shape_cast %155 : vector<1x32x32xf32> to vector<32x32xf32>
    %cst_53 = arith.constant dense<0.000000e+00> : vector<34x32xf32>
    %157 = tpu.matmul %154, %156, %cst_53 {dimension_numbers = #tpu.dot_dimension_numbers<[1], [0], [0], [1], [0, 0, 1, 1], [], []>} : vector<34x32xf32>, vector<32x32xf32>, vector<34x32xf32> -> vector<34x32xf32>
    %158 = arith.addf %42, %157 : vector<34x32xf32>
    %c0_54 = arith.constant 0 : index
    %c0_55 = arith.constant 0 : index
    %159 = vector.load %arg11[%c0_54, %c0_55] : memref<2x32xf32, #tpu.memory_space<vmem>>, vector<1x32xf32>
    %160 = vector.shape_cast %159 : vector<1x32xf32> to vector<32xf32>
    %161 = vector.shape_cast %160 : vector<32xf32> to vector<1x32xf32>
    %162 = vector.broadcast %161 : vector<1x32xf32> to vector<34x32xf32>
    %163 = arith.addf %158, %162 : vector<34x32xf32>
    %c0_56 = arith.constant 0 : index
    %c0_57 = arith.constant 0 : index
    %164 = vector.load %arg12[%c0_56, %c0_57] : memref<2x32xf32, #tpu.memory_space<vmem>>, vector<1x32xf32>
    %165 = vector.shape_cast %164 : vector<1x32xf32> to vector<32xf32>
    %c0_58 = arith.constant 0 : index
    %c0_59 = arith.constant 0 : index
    %166 = vector.load %arg13[%c0_58, %c0_59] : memref<2x32xf32, #tpu.memory_space<vmem>>, vector<1x32xf32>
    %167 = vector.shape_cast %166 : vector<1x32xf32> to vector<32xf32>
    %cst_60 = arith.constant dense<0.000000e+00> : vector<34xf32>
    %168 = vector.multi_reduction <add>, %163, %cst_60 [1] : vector<34x32xf32> to vector<34xf32>
    %169 = vector.shape_cast %168 : vector<34xf32> to vector<34x1xf32>
    %cst_61 = arith.constant 3.200000e+01 : f32
    %170 = vector.broadcast %cst_61 : f32 to vector<34x1xf32>
    %171 = arith.divf %169, %170 : vector<34x1xf32>
    %172 = vector.broadcast %171 : vector<34x1xf32> to vector<34x32xf32>
    %173 = arith.subf %163, %172 : vector<34x32xf32>
    %174 = arith.mulf %173, %173 : vector<34x32xf32>
    %cst_62 = arith.constant dense<0.000000e+00> : vector<34xf32>
    %175 = vector.multi_reduction <add>, %174, %cst_62 [1] : vector<34x32xf32> to vector<34xf32>
    %176 = vector.shape_cast %175 : vector<34xf32> to vector<34x1xf32>
    %cst_63 = arith.constant 3.200000e+01 : f32
    %177 = vector.broadcast %cst_63 : f32 to vector<34x1xf32>
    %178 = arith.divf %176, %177 : vector<34x1xf32>
    %179 = vector.broadcast %171 : vector<34x1xf32> to vector<34x32xf32>
    %180 = arith.subf %163, %179 : vector<34x32xf32>
    %cst_64 = arith.constant 9.99999974E-6 : f32
    %181 = vector.broadcast %cst_64 : f32 to vector<34x1xf32>
    %182 = arith.addf %178, %181 : vector<34x1xf32>
    %183 = math.rsqrt %182 : vector<34x1xf32>
    %184 = vector.broadcast %183 : vector<34x1xf32> to vector<34x32xf32>
    %185 = arith.mulf %180, %184 : vector<34x32xf32>
    %186 = vector.shape_cast %165 : vector<32xf32> to vector<1x32xf32>
    %187 = vector.broadcast %186 : vector<1x32xf32> to vector<34x32xf32>
    %188 = arith.mulf %185, %187 : vector<34x32xf32>
    %189 = vector.shape_cast %167 : vector<32xf32> to vector<1x32xf32>
    %190 = vector.broadcast %189 : vector<1x32xf32> to vector<34x32xf32>
    %191 = arith.addf %188, %190 : vector<34x32xf32>
    %c0_65 = arith.constant 0 : index
    %c0_66 = arith.constant 0 : index
    %c0_67 = arith.constant 0 : index
    %192 = vector.load %arg14[%c0_65, %c0_66, %c0_67] : memref<2x32x64xf32, #tpu.memory_space<vmem>>, vector<1x32x64xf32>
    %193 = vector.shape_cast %192 : vector<1x32x64xf32> to vector<32x64xf32>
    %cst_68 = arith.constant dense<0.000000e+00> : vector<34x64xf32>
    %194 = tpu.matmul %191, %193, %cst_68 {dimension_numbers = #tpu.dot_dimension_numbers<[1], [0], [0], [1], [0, 0, 1, 1], [], []>} : vector<34x32xf32>, vector<32x64xf32>, vector<34x64xf32> -> vector<34x64xf32>
    %c0_69 = arith.constant 0 : index
    %c0_70 = arith.constant 0 : index
    %195 = vector.load %arg15[%c0_69, %c0_70] : memref<2x64xf32, #tpu.memory_space<vmem>>, vector<1x64xf32>
    %196 = vector.shape_cast %195 : vector<1x64xf32> to vector<64xf32>
    %197 = vector.shape_cast %196 : vector<64xf32> to vector<1x64xf32>
    %198 = vector.broadcast %197 : vector<1x64xf32> to vector<34x64xf32>
    %199 = arith.addf %194, %198 : vector<34x64xf32>
    %cst_71 = arith.constant 5.000000e-01 : f32
    %200 = vector.broadcast %cst_71 : f32 to vector<34x64xf32>
    %201 = arith.mulf %200, %199 : vector<34x64xf32>
    %cst_72 = arith.constant 4.471500e-02 : f32
    %202 = vector.broadcast %cst_72 : f32 to vector<34x64xf32>
    %203 = arith.mulf %202, %199 : vector<34x64xf32>
    %204 = arith.mulf %203, %199 : vector<34x64xf32>
    %205 = arith.mulf %204, %199 : vector<34x64xf32>
    %206 = arith.addf %199, %205 : vector<34x64xf32>
    %cst_73 = arith.constant 0.797884583 : f32
    %207 = vector.broadcast %cst_73 : f32 to vector<34x64xf32>
    %208 = arith.mulf %207, %206 : vector<34x64xf32>
    %209 = math.tanh %208 : vector<34x64xf32>
    %cst_74 = arith.constant 1.000000e+00 : f32
    %210 = vector.broadcast %cst_74 : f32 to vector<34x64xf32>
    %211 = arith.addf %210, %209 : vector<34x64xf32>
    %212 = arith.mulf %201, %211 : vector<34x64xf32>
    %c0_75 = arith.constant 0 : index
    %c0_76 = arith.constant 0 : index
    %c0_77 = arith.constant 0 : index
    %213 = vector.load %arg16[%c0_75, %c0_76, %c0_77] : memref<2x64x32xf32, #tpu.memory_space<vmem>>, vector<1x64x32xf32>
    %214 = vector.shape_cast %213 : vector<1x64x32xf32> to vector<64x32xf32>
    %cst_78 = arith.constant dense<0.000000e+00> : vector<34x32xf32>
    %215 = tpu.matmul %212, %214, %cst_78 {dimension_numbers = #tpu.dot_dimension_numbers<[1], [0], [0], [1], [0, 0, 1, 1], [], []>} : vector<34x64xf32>, vector<64x32xf32>, vector<34x32xf32> -> vector<34x32xf32>
    %216 = arith.addf %163, %215 : vector<34x32xf32>
    %c0_79 = arith.constant 0 : index
    %c0_80 = arith.constant 0 : index
    %217 = vector.load %arg17[%c0_79, %c0_80] : memref<2x32xf32, #tpu.memory_space<vmem>>, vector<1x32xf32>
    %218 = vector.shape_cast %217 : vector<1x32xf32> to vector<32xf32>
    %219 = vector.shape_cast %218 : vector<32xf32> to vector<1x32xf32>
    %220 = vector.broadcast %219 : vector<1x32xf32> to vector<34x32xf32>
    %221 = arith.addf %216, %220 : vector<34x32xf32>
    %c1 = arith.constant 1 : index
    %c0_81 = arith.constant 0 : index
    %222 = vector.load %arg7[%c1, %c0_81] : memref<2x32xf32, #tpu.memory_space<vmem>>, vector<1x32xf32>
    %223 = vector.shape_cast %222 : vector<1x32xf32> to vector<32xf32>
    %c1_82 = arith.constant 1 : index
    %c0_83 = arith.constant 0 : index
    %224 = vector.load %arg8[%c1_82, %c0_83] : memref<2x32xf32, #tpu.memory_space<vmem>>, vector<1x32xf32>
    %225 = vector.shape_cast %224 : vector<1x32xf32> to vector<32xf32>
    %cst_84 = arith.constant dense<0.000000e+00> : vector<34xf32>
    %226 = vector.multi_reduction <add>, %221, %cst_84 [1] : vector<34x32xf32> to vector<34xf32>
    %227 = vector.shape_cast %226 : vector<34xf32> to vector<34x1xf32>
    %cst_85 = arith.constant 3.200000e+01 : f32
    %228 = vector.broadcast %cst_85 : f32 to vector<34x1xf32>
    %229 = arith.divf %227, %228 : vector<34x1xf32>
    %230 = vector.broadcast %229 : vector<34x1xf32> to vector<34x32xf32>
    %231 = arith.subf %221, %230 : vector<34x32xf32>
    %232 = arith.mulf %231, %231 : vector<34x32xf32>
    %cst_86 = arith.constant dense<0.000000e+00> : vector<34xf32>
    %233 = vector.multi_reduction <add>, %232, %cst_86 [1] : vector<34x32xf32> to vector<34xf32>
    %234 = vector.shape_cast %233 : vector<34xf32> to vector<34x1xf32>
    %cst_87 = arith.constant 3.200000e+01 : f32
    %235 = vector.broadcast %cst_87 : f32 to vector<34x1xf32>
    %236 = arith.divf %234, %235 : vector<34x1xf32>
    %237 = vector.broadcast %229 : vector<34x1xf32> to vector<34x32xf32>
    %238 = arith.subf %221, %237 : vector<34x32xf32>
    %cst_88 = arith.constant 9.99999974E-6 : f32
    %239 = vector.broadcast %cst_88 : f32 to vector<34x1xf32>
    %240 = arith.addf %236, %239 : vector<34x1xf32>
    %241 = math.rsqrt %240 : vector<34x1xf32>
    %242 = vector.broadcast %241 : vector<34x1xf32> to vector<34x32xf32>
    %243 = arith.mulf %238, %242 : vector<34x32xf32>
    %244 = vector.shape_cast %223 : vector<32xf32> to vector<1x32xf32>
    %245 = vector.broadcast %244 : vector<1x32xf32> to vector<34x32xf32>
    %246 = arith.mulf %243, %245 : vector<34x32xf32>
    %247 = vector.shape_cast %225 : vector<32xf32> to vector<1x32xf32>
    %248 = vector.broadcast %247 : vector<1x32xf32> to vector<34x32xf32>
    %249 = arith.addf %246, %248 : vector<34x32xf32>
    %c1_89 = arith.constant 1 : index
    %c0_90 = arith.constant 0 : index
    %c0_91 = arith.constant 0 : index
    %250 = vector.load %arg9[%c1_89, %c0_90, %c0_91] : memref<2x32x96xf32, #tpu.memory_space<vmem>>, vector<1x32x96xf32>
    %251 = vector.shape_cast %250 : vector<1x32x96xf32> to vector<32x96xf32>
    %cst_92 = arith.constant dense<0.000000e+00> : vector<34x96xf32>
    %252 = tpu.matmul %249, %251, %cst_92 {dimension_numbers = #tpu.dot_dimension_numbers<[1], [0], [0], [1], [0, 0, 1, 1], [], []>} : vector<34x32xf32>, vector<32x96xf32>, vector<34x96xf32> -> vector<34x96xf32>
    %253 = vector.shape_cast %252 : vector<34x96xf32> to vector<2x17x96xf32>
    %254 = vector.extract_strided_slice %253 {offsets = [0, 0, 0], sizes = [2, 17, 8], strides = [1, 1, 1]} : vector<2x17x96xf32> to vector<2x17x8xf32>
    %255 = vector.extract_strided_slice %253 {offsets = [0, 0, 32], sizes = [2, 17, 8], strides = [1, 1, 1]} : vector<2x17x96xf32> to vector<2x17x8xf32>
    %256 = vector.extract_strided_slice %253 {offsets = [0, 0, 64], sizes = [2, 17, 8], strides = [1, 1, 1]} : vector<2x17x96xf32> to vector<2x17x8xf32>
    "tpu.trace_start"() <{level = 10 : i32, message = "bqd,bkd->bqk"}> : () -> ()
    %cst_93 = arith.constant dense<0.000000e+00> : vector<2x17x17xf32>
    %257 = tpu.matmul %254, %255, %cst_93 {dimension_numbers = #tpu.dot_dimension_numbers<[2], [2], [1], [1], [0, 0, 0, 1, 1, 1], [0], [0]>} : vector<2x17x8xf32>, vector<2x17x8xf32>, vector<2x17x17xf32> -> vector<2x17x17xf32>
    "tpu.trace_stop"() : () -> ()
    %258 = vector.shape_cast %48 : vector<17x17xf32> to vector<1x17x17xf32>
    %259 = vector.broadcast %258 : vector<1x17x17xf32> to vector<2x17x17xf32>
    %260 = arith.addf %257, %259 : vector<2x17x17xf32>
    %cst_94 = arith.constant dense<0xFF800000> : vector<2x17xf32>
    %261 = vector.multi_reduction <maximumf>, %260, %cst_94 [2] : vector<2x17x17xf32> to vector<2x17xf32>
    %262 = vector.shape_cast %261 : vector<2x17xf32> to vector<2x17x1xf32>
    %263 = vector.broadcast %262 : vector<2x17x1xf32> to vector<2x17x17xf32>
    %264 = arith.subf %260, %263 : vector<2x17x17xf32>
    %265 = math.exp %264 : vector<2x17x17xf32>
    %cst_95 = arith.constant dense<0.000000e+00> : vector<2x17xf32>
    %266 = vector.multi_reduction <add>, %265, %cst_95 [2] : vector<2x17x17xf32> to vector<2x17xf32>
    %267 = vector.shape_cast %266 : vector<2x17xf32> to vector<2x17x1xf32>
    %268 = tpu.reciprocal %267 {approx = true} : vector<2x17x1xf32> -> vector<2x17x1xf32>
    %269 = vector.broadcast %268 : vector<2x17x1xf32> to vector<2x17x17xf32>
    %270 = arith.mulf %265, %269 : vector<2x17x17xf32>
    "tpu.trace_start"() <{level = 10 : i32, message = "bqk,bkd->bqd"}> : () -> ()
    %cst_96 = arith.constant dense<0.000000e+00> : vector<2x17x8xf32>
    %271 = tpu.matmul %270, %256, %cst_96 {dimension_numbers = #tpu.dot_dimension_numbers<[2], [1], [1], [2], [0, 0, 0, 1, 1, 2], [0], [0]>} : vector<2x17x17xf32>, vector<2x17x8xf32>, vector<2x17x8xf32> -> vector<2x17x8xf32>
    "tpu.trace_stop"() : () -> ()
    %272 = vector.extract_strided_slice %253 {offsets = [0, 0, 8], sizes = [2, 17, 8], strides = [1, 1, 1]} : vector<2x17x96xf32> to vector<2x17x8xf32>
    %273 = vector.extract_strided_slice %253 {offsets = [0, 0, 40], sizes = [2, 17, 8], strides = [1, 1, 1]} : vector<2x17x96xf32> to vector<2x17x8xf32>
    %274 = vector.extract_strided_slice %253 {offsets = [0, 0, 72], sizes = [2, 17, 8], strides = [1, 1, 1]} : vector<2x17x96xf32> to vector<2x17x8xf32>
    "tpu.trace_start"() <{level = 10 : i32, message = "bqd,bkd->bqk"}> : () -> ()
    %cst_97 = arith.constant dense<0.000000e+00> : vector<2x17x17xf32>
    %275 = tpu.matmul %272, %273, %cst_97 {dimension_numbers = #tpu.dot_dimension_numbers<[2], [2], [1], [1], [0, 0, 0, 1, 1, 1], [0], [0]>} : vector<2x17x8xf32>, vector<2x17x8xf32>, vector<2x17x17xf32> -> vector<2x17x17xf32>
    "tpu.trace_stop"() : () -> ()
    %276 = vector.shape_cast %48 : vector<17x17xf32> to vector<1x17x17xf32>
    %277 = vector.broadcast %276 : vector<1x17x17xf32> to vector<2x17x17xf32>
    %278 = arith.addf %275, %277 : vector<2x17x17xf32>
    %cst_98 = arith.constant dense<0xFF800000> : vector<2x17xf32>
    %279 = vector.multi_reduction <maximumf>, %278, %cst_98 [2] : vector<2x17x17xf32> to vector<2x17xf32>
    %280 = vector.shape_cast %279 : vector<2x17xf32> to vector<2x17x1xf32>
    %281 = vector.broadcast %280 : vector<2x17x1xf32> to vector<2x17x17xf32>
    %282 = arith.subf %278, %281 : vector<2x17x17xf32>
    %283 = math.exp %282 : vector<2x17x17xf32>
    %cst_99 = arith.constant dense<0.000000e+00> : vector<2x17xf32>
    %284 = vector.multi_reduction <add>, %283, %cst_99 [2] : vector<2x17x17xf32> to vector<2x17xf32>
    %285 = vector.shape_cast %284 : vector<2x17xf32> to vector<2x17x1xf32>
    %286 = tpu.reciprocal %285 {approx = true} : vector<2x17x1xf32> -> vector<2x17x1xf32>
    %287 = vector.broadcast %286 : vector<2x17x1xf32> to vector<2x17x17xf32>
    %288 = arith.mulf %283, %287 : vector<2x17x17xf32>
    "tpu.trace_start"() <{level = 10 : i32, message = "bqk,bkd->bqd"}> : () -> ()
    %cst_100 = arith.constant dense<0.000000e+00> : vector<2x17x8xf32>
    %289 = tpu.matmul %288, %274, %cst_100 {dimension_numbers = #tpu.dot_dimension_numbers<[2], [1], [1], [2], [0, 0, 0, 1, 1, 2], [0], [0]>} : vector<2x17x17xf32>, vector<2x17x8xf32>, vector<2x17x8xf32> -> vector<2x17x8xf32>
    "tpu.trace_stop"() : () -> ()
    %290 = vector.extract_strided_slice %253 {offsets = [0, 0, 16], sizes = [2, 17, 8], strides = [1, 1, 1]} : vector<2x17x96xf32> to vector<2x17x8xf32>
    %291 = vector.extract_strided_slice %253 {offsets = [0, 0, 48], sizes = [2, 17, 8], strides = [1, 1, 1]} : vector<2x17x96xf32> to vector<2x17x8xf32>
    %292 = vector.extract_strided_slice %253 {offsets = [0, 0, 80], sizes = [2, 17, 8], strides = [1, 1, 1]} : vector<2x17x96xf32> to vector<2x17x8xf32>
    "tpu.trace_start"() <{level = 10 : i32, message = "bqd,bkd->bqk"}> : () -> ()
    %cst_101 = arith.constant dense<0.000000e+00> : vector<2x17x17xf32>
    %293 = tpu.matmul %290, %291, %cst_101 {dimension_numbers = #tpu.dot_dimension_numbers<[2], [2], [1], [1], [0, 0, 0, 1, 1, 1], [0], [0]>} : vector<2x17x8xf32>, vector<2x17x8xf32>, vector<2x17x17xf32> -> vector<2x17x17xf32>
    "tpu.trace_stop"() : () -> ()
    %294 = vector.shape_cast %48 : vector<17x17xf32> to vector<1x17x17xf32>
    %295 = vector.broadcast %294 : vector<1x17x17xf32> to vector<2x17x17xf32>
    %296 = arith.addf %293, %295 : vector<2x17x17xf32>
    %cst_102 = arith.constant dense<0xFF800000> : vector<2x17xf32>
    %297 = vector.multi_reduction <maximumf>, %296, %cst_102 [2] : vector<2x17x17xf32> to vector<2x17xf32>
    %298 = vector.shape_cast %297 : vector<2x17xf32> to vector<2x17x1xf32>
    %299 = vector.broadcast %298 : vector<2x17x1xf32> to vector<2x17x17xf32>
    %300 = arith.subf %296, %299 : vector<2x17x17xf32>
    %301 = math.exp %300 : vector<2x17x17xf32>
    %cst_103 = arith.constant dense<0.000000e+00> : vector<2x17xf32>
    %302 = vector.multi_reduction <add>, %301, %cst_103 [2] : vector<2x17x17xf32> to vector<2x17xf32>
    %303 = vector.shape_cast %302 : vector<2x17xf32> to vector<2x17x1xf32>
    %304 = tpu.reciprocal %303 {approx = true} : vector<2x17x1xf32> -> vector<2x17x1xf32>
    %305 = vector.broadcast %304 : vector<2x17x1xf32> to vector<2x17x17xf32>
    %306 = arith.mulf %301, %305 : vector<2x17x17xf32>
    "tpu.trace_start"() <{level = 10 : i32, message = "bqk,bkd->bqd"}> : () -> ()
    %cst_104 = arith.constant dense<0.000000e+00> : vector<2x17x8xf32>
    %307 = tpu.matmul %306, %292, %cst_104 {dimension_numbers = #tpu.dot_dimension_numbers<[2], [1], [1], [2], [0, 0, 0, 1, 1, 2], [0], [0]>} : vector<2x17x17xf32>, vector<2x17x8xf32>, vector<2x17x8xf32> -> vector<2x17x8xf32>
    "tpu.trace_stop"() : () -> ()
    %308 = vector.extract_strided_slice %253 {offsets = [0, 0, 24], sizes = [2, 17, 8], strides = [1, 1, 1]} : vector<2x17x96xf32> to vector<2x17x8xf32>
    %309 = vector.extract_strided_slice %253 {offsets = [0, 0, 56], sizes = [2, 17, 8], strides = [1, 1, 1]} : vector<2x17x96xf32> to vector<2x17x8xf32>
    %310 = vector.extract_strided_slice %253 {offsets = [0, 0, 88], sizes = [2, 17, 8], strides = [1, 1, 1]} : vector<2x17x96xf32> to vector<2x17x8xf32>
    "tpu.trace_start"() <{level = 10 : i32, message = "bqd,bkd->bqk"}> : () -> ()
    %cst_105 = arith.constant dense<0.000000e+00> : vector<2x17x17xf32>
    %311 = tpu.matmul %308, %309, %cst_105 {dimension_numbers = #tpu.dot_dimension_numbers<[2], [2], [1], [1], [0, 0, 0, 1, 1, 1], [0], [0]>} : vector<2x17x8xf32>, vector<2x17x8xf32>, vector<2x17x17xf32> -> vector<2x17x17xf32>
    "tpu.trace_stop"() : () -> ()
    %312 = vector.shape_cast %48 : vector<17x17xf32> to vector<1x17x17xf32>
    %313 = vector.broadcast %312 : vector<1x17x17xf32> to vector<2x17x17xf32>
    %314 = arith.addf %311, %313 : vector<2x17x17xf32>
    %cst_106 = arith.constant dense<0xFF800000> : vector<2x17xf32>
    %315 = vector.multi_reduction <maximumf>, %314, %cst_106 [2] : vector<2x17x17xf32> to vector<2x17xf32>
    %316 = vector.shape_cast %315 : vector<2x17xf32> to vector<2x17x1xf32>
    %317 = vector.broadcast %316 : vector<2x17x1xf32> to vector<2x17x17xf32>
    %318 = arith.subf %314, %317 : vector<2x17x17xf32>
    %319 = math.exp %318 : vector<2x17x17xf32>
    %cst_107 = arith.constant dense<0.000000e+00> : vector<2x17xf32>
    %320 = vector.multi_reduction <add>, %319, %cst_107 [2] : vector<2x17x17xf32> to vector<2x17xf32>
    %321 = vector.shape_cast %320 : vector<2x17xf32> to vector<2x17x1xf32>
    %322 = tpu.reciprocal %321 {approx = true} : vector<2x17x1xf32> -> vector<2x17x1xf32>
    %323 = vector.broadcast %322 : vector<2x17x1xf32> to vector<2x17x17xf32>
    %324 = arith.mulf %319, %323 : vector<2x17x17xf32>
    "tpu.trace_start"() <{level = 10 : i32, message = "bqk,bkd->bqd"}> : () -> ()
    %cst_108 = arith.constant dense<0.000000e+00> : vector<2x17x8xf32>
    %325 = tpu.matmul %324, %310, %cst_108 {dimension_numbers = #tpu.dot_dimension_numbers<[2], [1], [1], [2], [0, 0, 0, 1, 1, 2], [0], [0]>} : vector<2x17x17xf32>, vector<2x17x8xf32>, vector<2x17x8xf32> -> vector<2x17x8xf32>
    "tpu.trace_stop"() : () -> ()
    %326 = tpu.concatenate %271, %289, %307, %325 in 2 : vector<2x17x8xf32>, vector<2x17x8xf32>, vector<2x17x8xf32>, vector<2x17x8xf32> -> vector<2x17x32xf32>
    %327 = vector.shape_cast %326 : vector<2x17x32xf32> to vector<34x32xf32>
    %c1_109 = arith.constant 1 : index
    %c0_110 = arith.constant 0 : index
    %c0_111 = arith.constant 0 : index
    %328 = vector.load %arg10[%c1_109, %c0_110, %c0_111] : memref<2x32x32xf32, #tpu.memory_space<vmem>>, vector<1x32x32xf32>
    %329 = vector.shape_cast %328 : vector<1x32x32xf32> to vector<32x32xf32>
    %cst_112 = arith.constant dense<0.000000e+00> : vector<34x32xf32>
    %330 = tpu.matmul %327, %329, %cst_112 {dimension_numbers = #tpu.dot_dimension_numbers<[1], [0], [0], [1], [0, 0, 1, 1], [], []>} : vector<34x32xf32>, vector<32x32xf32>, vector<34x32xf32> -> vector<34x32xf32>
    %331 = arith.addf %221, %330 : vector<34x32xf32>
    %c1_113 = arith.constant 1 : index
    %c0_114 = arith.constant 0 : index
    %332 = vector.load %arg11[%c1_113, %c0_114] : memref<2x32xf32, #tpu.memory_space<vmem>>, vector<1x32xf32>
    %333 = vector.shape_cast %332 : vector<1x32xf32> to vector<32xf32>
    %334 = vector.shape_cast %333 : vector<32xf32> to vector<1x32xf32>
    %335 = vector.broadcast %334 : vector<1x32xf32> to vector<34x32xf32>
    %336 = arith.addf %331, %335 : vector<34x32xf32>
    %c1_115 = arith.constant 1 : index
    %c0_116 = arith.constant 0 : index
    %337 = vector.load %arg12[%c1_115, %c0_116] : memref<2x32xf32, #tpu.memory_space<vmem>>, vector<1x32xf32>
    %338 = vector.shape_cast %337 : vector<1x32xf32> to vector<32xf32>
    %c1_117 = arith.constant 1 : index
    %c0_118 = arith.constant 0 : index
    %339 = vector.load %arg13[%c1_117, %c0_118] : memref<2x32xf32, #tpu.memory_space<vmem>>, vector<1x32xf32>
    %340 = vector.shape_cast %339 : vector<1x32xf32> to vector<32xf32>
    %cst_119 = arith.constant dense<0.000000e+00> : vector<34xf32>
    %341 = vector.multi_reduction <add>, %336, %cst_119 [1] : vector<34x32xf32> to vector<34xf32>
    %342 = vector.shape_cast %341 : vector<34xf32> to vector<34x1xf32>
    %cst_120 = arith.constant 3.200000e+01 : f32
    %343 = vector.broadcast %cst_120 : f32 to vector<34x1xf32>
    %344 = arith.divf %342, %343 : vector<34x1xf32>
    %345 = vector.broadcast %344 : vector<34x1xf32> to vector<34x32xf32>
    %346 = arith.subf %336, %345 : vector<34x32xf32>
    %347 = arith.mulf %346, %346 : vector<34x32xf32>
    %cst_121 = arith.constant dense<0.000000e+00> : vector<34xf32>
    %348 = vector.multi_reduction <add>, %347, %cst_121 [1] : vector<34x32xf32> to vector<34xf32>
    %349 = vector.shape_cast %348 : vector<34xf32> to vector<34x1xf32>
    %cst_122 = arith.constant 3.200000e+01 : f32
    %350 = vector.broadcast %cst_122 : f32 to vector<34x1xf32>
    %351 = arith.divf %349, %350 : vector<34x1xf32>
    %352 = vector.broadcast %344 : vector<34x1xf32> to vector<34x32xf32>
    %353 = arith.subf %336, %352 : vector<34x32xf32>
    %cst_123 = arith.constant 9.99999974E-6 : f32
    %354 = vector.broadcast %cst_123 : f32 to vector<34x1xf32>
    %355 = arith.addf %351, %354 : vector<34x1xf32>
    %356 = math.rsqrt %355 : vector<34x1xf32>
    %357 = vector.broadcast %356 : vector<34x1xf32> to vector<34x32xf32>
    %358 = arith.mulf %353, %357 : vector<34x32xf32>
    %359 = vector.shape_cast %338 : vector<32xf32> to vector<1x32xf32>
    %360 = vector.broadcast %359 : vector<1x32xf32> to vector<34x32xf32>
    %361 = arith.mulf %358, %360 : vector<34x32xf32>
    %362 = vector.shape_cast %340 : vector<32xf32> to vector<1x32xf32>
    %363 = vector.broadcast %362 : vector<1x32xf32> to vector<34x32xf32>
    %364 = arith.addf %361, %363 : vector<34x32xf32>
    %c1_124 = arith.constant 1 : index
    %c0_125 = arith.constant 0 : index
    %c0_126 = arith.constant 0 : index
    %365 = vector.load %arg14[%c1_124, %c0_125, %c0_126] : memref<2x32x64xf32, #tpu.memory_space<vmem>>, vector<1x32x64xf32>
    %366 = vector.shape_cast %365 : vector<1x32x64xf32> to vector<32x64xf32>
    %cst_127 = arith.constant dense<0.000000e+00> : vector<34x64xf32>
    %367 = tpu.matmul %364, %366, %cst_127 {dimension_numbers = #tpu.dot_dimension_numbers<[1], [0], [0], [1], [0, 0, 1, 1], [], []>} : vector<34x32xf32>, vector<32x64xf32>, vector<34x64xf32> -> vector<34x64xf32>
    %c1_128 = arith.constant 1 : index
    %c0_129 = arith.constant 0 : index
    %368 = vector.load %arg15[%c1_128, %c0_129] : memref<2x64xf32, #tpu.memory_space<vmem>>, vector<1x64xf32>
    %369 = vector.shape_cast %368 : vector<1x64xf32> to vector<64xf32>
    %370 = vector.shape_cast %369 : vector<64xf32> to vector<1x64xf32>
    %371 = vector.broadcast %370 : vector<1x64xf32> to vector<34x64xf32>
    %372 = arith.addf %367, %371 : vector<34x64xf32>
    %cst_130 = arith.constant 5.000000e-01 : f32
    %373 = vector.broadcast %cst_130 : f32 to vector<34x64xf32>
    %374 = arith.mulf %373, %372 : vector<34x64xf32>
    %cst_131 = arith.constant 4.471500e-02 : f32
    %375 = vector.broadcast %cst_131 : f32 to vector<34x64xf32>
    %376 = arith.mulf %375, %372 : vector<34x64xf32>
    %377 = arith.mulf %376, %372 : vector<34x64xf32>
    %378 = arith.mulf %377, %372 : vector<34x64xf32>
    %379 = arith.addf %372, %378 : vector<34x64xf32>
    %cst_132 = arith.constant 0.797884583 : f32
    %380 = vector.broadcast %cst_132 : f32 to vector<34x64xf32>
    %381 = arith.mulf %380, %379 : vector<34x64xf32>
    %382 = math.tanh %381 : vector<34x64xf32>
    %cst_133 = arith.constant 1.000000e+00 : f32
    %383 = vector.broadcast %cst_133 : f32 to vector<34x64xf32>
    %384 = arith.addf %383, %382 : vector<34x64xf32>
    %385 = arith.mulf %374, %384 : vector<34x64xf32>
    %c1_134 = arith.constant 1 : index
    %c0_135 = arith.constant 0 : index
    %c0_136 = arith.constant 0 : index
    %386 = vector.load %arg16[%c1_134, %c0_135, %c0_136] : memref<2x64x32xf32, #tpu.memory_space<vmem>>, vector<1x64x32xf32>
    %387 = vector.shape_cast %386 : vector<1x64x32xf32> to vector<64x32xf32>
    %cst_137 = arith.constant dense<0.000000e+00> : vector<34x32xf32>
    %388 = tpu.matmul %385, %387, %cst_137 {dimension_numbers = #tpu.dot_dimension_numbers<[1], [0], [0], [1], [0, 0, 1, 1], [], []>} : vector<34x64xf32>, vector<64x32xf32>, vector<34x32xf32> -> vector<34x32xf32>
    %389 = arith.addf %336, %388 : vector<34x32xf32>
    %c1_138 = arith.constant 1 : index
    %c0_139 = arith.constant 0 : index
    %390 = vector.load %arg17[%c1_138, %c0_139] : memref<2x32xf32, #tpu.memory_space<vmem>>, vector<1x32xf32>
    %391 = vector.shape_cast %390 : vector<1x32xf32> to vector<32xf32>
    %392 = vector.shape_cast %391 : vector<32xf32> to vector<1x32xf32>
    %393 = vector.broadcast %392 : vector<1x32xf32> to vector<34x32xf32>
    %394 = arith.addf %389, %393 : vector<34x32xf32>
    %395 = vector.shape_cast %394 : vector<34x32xf32> to vector<2x17x32xf32>
    %396 = vector.extract_strided_slice %395 {offsets = [0, 0, 0], sizes = [2, 1, 32], strides = [1, 1, 1]} : vector<2x17x32xf32> to vector<2x1x32xf32>
    %397 = vector.shape_cast %396 : vector<2x1x32xf32> to vector<2x32xf32>
    %c0_140 = arith.constant 0 : index
    %c0_141 = arith.constant 0 : index
    %398 = vector.load %arg18[%c0_140, %c0_141] : memref<1x32xf32, #tpu.memory_space<vmem>>, vector<1x32xf32>
    %c0_142 = arith.constant 0 : index
    %c0_143 = arith.constant 0 : index
    %399 = vector.load %arg19[%c0_142, %c0_143] : memref<1x32xf32, #tpu.memory_space<vmem>>, vector<1x32xf32>
    %cst_144 = arith.constant dense<0.000000e+00> : vector<2xf32>
    %400 = vector.multi_reduction <add>, %397, %cst_144 [1] : vector<2x32xf32> to vector<2xf32>
    %401 = vector.shape_cast %400 : vector<2xf32> to vector<2x1xf32>
    %cst_145 = arith.constant 3.200000e+01 : f32
    %402 = vector.broadcast %cst_145 : f32 to vector<2x1xf32>
    %403 = arith.divf %401, %402 : vector<2x1xf32>
    %404 = vector.broadcast %403 : vector<2x1xf32> to vector<2x32xf32>
    %405 = arith.subf %397, %404 : vector<2x32xf32>
    %406 = arith.mulf %405, %405 : vector<2x32xf32>
    %cst_146 = arith.constant dense<0.000000e+00> : vector<2xf32>
    %407 = vector.multi_reduction <add>, %406, %cst_146 [1] : vector<2x32xf32> to vector<2xf32>
    %408 = vector.shape_cast %407 : vector<2xf32> to vector<2x1xf32>
    %cst_147 = arith.constant 3.200000e+01 : f32
    %409 = vector.broadcast %cst_147 : f32 to vector<2x1xf32>
    %410 = arith.divf %408, %409 : vector<2x1xf32>
    %411 = vector.broadcast %403 : vector<2x1xf32> to vector<2x32xf32>
    %412 = arith.subf %397, %411 : vector<2x32xf32>
    %cst_148 = arith.constant 9.99999974E-6 : f32
    %413 = vector.broadcast %cst_148 : f32 to vector<2x1xf32>
    %414 = arith.addf %410, %413 : vector<2x1xf32>
    %415 = math.rsqrt %414 : vector<2x1xf32>
    %416 = vector.broadcast %415 : vector<2x1xf32> to vector<2x32xf32>
    %417 = arith.mulf %412, %416 : vector<2x32xf32>
    %418 = vector.broadcast %398 : vector<1x32xf32> to vector<2x32xf32>
    %419 = arith.mulf %417, %418 : vector<2x32xf32>
    %420 = vector.broadcast %399 : vector<1x32xf32> to vector<2x32xf32>
    %421 = arith.addf %419, %420 : vector<2x32xf32>
    %c0_149 = arith.constant 0 : index
    %c0_150 = arith.constant 0 : index
    %422 = vector.load %arg20[%c0_149, %c0_150] : memref<32x10xf32, #tpu.memory_space<vmem>>, vector<32x10xf32>
    %cst_151 = arith.constant dense<0.000000e+00> : vector<2x10xf32>
    %423 = tpu.matmul %421, %422, %cst_151 {dimension_numbers = #tpu.dot_dimension_numbers<[1], [0], [0], [1], [0, 0, 1, 1], [], []>} : vector<2x32xf32>, vector<32x10xf32>, vector<2x10xf32> -> vector<2x10xf32>
    %c0_152 = arith.constant 0 : index
    %c0_153 = arith.constant 0 : index
    %424 = vector.load %arg21[%c0_152, %c0_153] : memref<1x10xf32, #tpu.memory_space<vmem>>, vector<1x10xf32>
    %425 = vector.broadcast %424 : vector<1x10xf32> to vector<2x10xf32>
    %426 = arith.addf %423, %425 : vector<2x10xf32>
    %c0_154 = arith.constant 0 : index
    %c0_155 = arith.constant 0 : index
    %427 = vector.load %arg22[%c0_154, %c0_155] : memref<2x10xf32, #tpu.memory_space<vmem>>, vector<2x10xf32>
    tpu.vector_store %arg22[%c0_154, %c0_155], %426 {strides = array<i32>} : memref<2x10xf32, #tpu.memory_space<vmem>>, vector<2x10xf32>,
    return
  }
}

</mosaic_0001>

<llo_original>
// kernel: vit_forward.1
$region0: #{vit_forward.1}
  #allocation0 [shape = 'u32[]', space=smem, size = 0x4, offset = 0x4, fixed_abs, tag = 'smem constant byte address 0x4 - core index']
  #allocation1 [shape = 'u32[72,128]{1,0:T(1,128)}', space=vmem, size = 0x9000, scoped, tag = 'internal scratch']
  %s0 = inlined_call_operand.vmem [shape: f32[2,16,240], index: 0, kind: input, shape index: {}]
  %s1 = inlined_call_operand.vmem [shape: f32[1,240], index: 1, kind: input, shape index: {}]
  %s2 = inlined_call_operand.vmem [shape: f32[1,240], index: 2, kind: input, shape index: {}]
  %s3 = inlined_call_operand.vmem [shape: f32[240,32], index: 3, kind: input, shape index: {}]
  %s4 = inlined_call_operand.vmem [shape: f32[1,32], index: 4, kind: input, shape index: {}]
  %s5 = inlined_call_operand.vmem [shape: f32[1,32], index: 5, kind: input, shape index: {}]
  %s6 = inlined_call_operand.vmem [shape: f32[16,32], index: 6, kind: input, shape index: {}]
  %s7 = inlined_call_operand.vmem [shape: f32[2,32], index: 7, kind: input, shape index: {}]
  %s8 = inlined_call_operand.vmem [shape: f32[2,32], index: 8, kind: input, shape index: {}]
  %s9 = inlined_call_operand.vmem [shape: f32[2,32,96], index: 9, kind: input, shape index: {}]
  %s10 = inlined_call_operand.vmem [shape: f32[2,32,32], index: 10, kind: input, shape index: {}]
  %s11 = inlined_call_operand.vmem [shape: f32[2,32], index: 11, kind: input, shape index: {}]
  %s12 = inlined_call_operand.vmem [shape: f32[2,32], index: 12, kind: input, shape index: {}]
  %s13 = inlined_call_operand.vmem [shape: f32[2,32], index: 13, kind: input, shape index: {}]
  %s14 = inlined_call_operand.vmem [shape: f32[2,32,64], index: 14, kind: input, shape index: {}]
  %s15 = inlined_call_operand.vmem [shape: f32[2,64], index: 15, kind: input, shape index: {}]
  %s16 = inlined_call_operand.vmem [shape: f32[2,64,32], index: 16, kind: input, shape index: {}]
  %s17 = inlined_call_operand.vmem [shape: f32[2,32], index: 17, kind: input, shape index: {}]
  %s18 = inlined_call_operand.vmem [shape: f32[1,32], index: 18, kind: input, shape index: {}]
  %s19 = inlined_call_operand.vmem [shape: f32[1,32], index: 19, kind: input, shape index: {}]
  %s20 = inlined_call_operand.vmem [shape: f32[32,10], index: 20, kind: input, shape index: {}]
  %s21 = inlined_call_operand.vmem [shape: f32[1,10], index: 21, kind: input, shape index: {}]
  %s22 = inlined_call_operand.hbm [shape: f32[2,10], index: 22, kind: output, shape index: {}]
  %s23 = sld [smem:[#allocation0]]
  $region98: #{vit_forward.1} parent=0
    _
  %s25 = ssub.s32 1, %s23
  %s26 = scalar_select 0, %s25, %s23
  $region1: #{vit_forward.1} parent=0
    #allocation2 [shape = 'u8[1024]{0}', space=vmem, size = 0x400, scoped, tag = 'output window, operand 0, single buffered']
    #allocation3 [shape = 's32[1]{0}', space=sflag, size = 0x4, scoped, tag = 'scoped memory for vit_forward.1']
    %27 = vsyncpa [#allocation3], 0
    // Predicated region
    $region2: #{vit_forward.1} parent=1 // pred_check
      _
    $region3: #{vit_forward.1} parent=1 // pred_check_branch
      %29 = sbr.rel (0) target = $region5
    $region4: #{vit_forward.1} parent=1 // pred_region
      _
    $region5: #{vit_forward.1} parent=1 // pred_fallthru
      _
    // Predicated region
    $region6: #{vit_forward.1} parent=1 // pred_check
      _
    $region7: #{vit_forward.1} parent=1 // pred_check_branch
      %31 = sbr.rel (0) target = $region9
    $region8: #{vit_forward.1} parent=1 // pred_region
      _
    $region9: #{vit_forward.1} parent=1 // pred_fallthru
      _
    // Predicated region
    $region10: #{vit_forward.1} parent=1 // pred_check
      _
    $region11: #{vit_forward.1} parent=1 // pred_check_branch
      %33 = sbr.rel (0) target = $region13
    $region12: #{vit_forward.1} parent=1 // pred_region
      _
    $region13: #{vit_forward.1} parent=1 // pred_fallthru
      _
    // Predicated region
    $region14: #{vit_forward.1} parent=1 // pred_check
      _
    $region15: #{vit_forward.1} parent=1 // pred_check_branch
      %35 = sbr.rel (0) target = $region17
    $region16: #{vit_forward.1} parent=1 // pred_region
      _
    $region17: #{vit_forward.1} parent=1 // pred_fallthru
      _
    // Predicated region
    $region18: #{vit_forward.1} parent=1 // pred_check
      _
    $region19: #{vit_forward.1} parent=1 // pred_check_branch
      %37 = sbr.rel (0) target = $region21
    $region20: #{vit_forward.1} parent=1 // pred_region
      _
    $region21: #{vit_forward.1} parent=1 // pred_fallthru
      _
    // Predicated region
    $region22: #{vit_forward.1} parent=1 // pred_check
      _
    $region23: #{vit_forward.1} parent=1 // pred_check_branch
      %39 = sbr.rel (0) target = $region25
    $region24: #{vit_forward.1} parent=1 // pred_region
      _
    $region25: #{vit_forward.1} parent=1 // pred_fallthru
      _
    // Predicated region
    $region26: #{vit_forward.1} parent=1 // pred_check
      _
    $region27: #{vit_forward.1} parent=1 // pred_check_branch
      %41 = sbr.rel (0) target = $region29
    $region28: #{vit_forward.1} parent=1 // pred_region
      _
    $region29: #{vit_forward.1} parent=1 // pred_fallthru
      _
    // Predicated region
    $region30: #{vit_forward.1} parent=1 // pred_check
      _
    $region31: #{vit_forward.1} parent=1 // pred_check_branch
      %43 = sbr.rel (0) target = $region33
    $region32: #{vit_forward.1} parent=1 // pred_region
      _
    $region33: #{vit_forward.1} parent=1 // pred_fallthru
      _
    // Predicated region
    $region34: #{vit_forward.1} parent=1 // pred_check
      _
    $region35: #{vit_forward.1} parent=1 // pred_check_branch
      %45 = sbr.rel (0) target = $region37
    $region36: #{vit_forward.1} parent=1 // pred_region
      _
    $region37: #{vit_forward.1} parent=1 // pred_fallthru
      _
    // Predicated region
    $region38: #{vit_forward.1} parent=1 // pred_check
      _
    $region39: #{vit_forward.1} parent=1 // pred_check_branch
      %47 = sbr.rel (0) target = $region41
    $region40: #{vit_forward.1} parent=1 // pred_region
      _
    $region41: #{vit_forward.1} parent=1 // pred_fallthru
      _
    // Predicated region
    $region42: #{vit_forward.1} parent=1 // pred_check
      _
    $region43: #{vit_forward.1} parent=1 // pred_check_branch
      %49 = sbr.rel (0) target = $region45
    $region44: #{vit_forward.1} parent=1 // pred_region
      _
    $region45: #{vit_forward.1} parent=1 // pred_fallthru
      _
    // Predicated region
    $region46: #{vit_forward.1} parent=1 // pred_check
      _
    $region47: #{vit_forward.1} parent=1 // pred_check_branch
      %51 = sbr.rel (0) target = $region49
    $region48: #{vit_forward.1} parent=1 // pred_region
      _
    $region49: #{vit_forward.1} parent=1 // pred_fallthru
      _
    // Predicated region
    $region50: #{vit_forward.1} parent=1 // pred_check
      _
    $region51: #{vit_forward.1} parent=1 // pred_check_branch
      %53 = sbr.rel (0) target = $region53
    $region52: #{vit_forward.1} parent=1 // pred_region
      _
    $region53: #{vit_forward.1} parent=1 // pred_fallthru
      _
    // Predicated region
    $region54: #{vit_forward.1} parent=1 // pred_check
      _
    $region55: #{vit_forward.1} parent=1 // pred_check_branch
      %55 = sbr.rel (0) target = $region57
    $region56: #{vit_forward.1} parent=1 // pred_region
      _
    $region57: #{vit_forward.1} parent=1 // pred_fallthru
      _
    // Predicated region
    $region58: #{vit_forward.1} parent=1 // pred_check
      _
    $region59: #{vit_forward.1} parent=1 // pred_check_branch
      %57 = sbr.rel (0) target = $region61
    $region60: #{vit_forward.1} parent=1 // pred_region
      _
    $region61: #{vit_forward.1} parent=1 // pred_fallthru
      _
    // Predicated region
    $region62: #{vit_forward.1} parent=1 // pred_check
      _
    $region63: #{vit_forward.1} parent=1 // pred_check_branch
      %59 = sbr.rel (0) target = $region65
    $region64: #{vit_forward.1} parent=1 // pred_region
      _
    $region65: #{vit_forward.1} parent=1 // pred_fallthru
      _
    // Predicated region
    $region66: #{vit_forward.1} parent=1 // pred_check
      _
    $region67: #{vit_forward.1} parent=1 // pred_check_branch
      %61 = sbr.rel (0) target = $region69
    $region68: #{vit_forward.1} parent=1 // pred_region
      _
    $region69: #{vit_forward.1} parent=1 // pred_fallthru
      _
    // Predicated region
    $region70: #{vit_forward.1} parent=1 // pred_check
      _
    $region71: #{vit_forward.1} parent=1 // pred_check_branch
      %63 = sbr.rel (0) target = $region73
    $region72: #{vit_forward.1} parent=1 // pred_region
      _
    $region73: #{vit_forward.1} parent=1 // pred_fallthru
      _
    // Predicated region
    $region74: #{vit_forward.1} parent=1 // pred_check
      _
    $region75: #{vit_forward.1} parent=1 // pred_check_branch
      %65 = sbr.rel (0) target = $region77
    $region76: #{vit_forward.1} parent=1 // pred_region
      _
    $region77: #{vit_forward.1} parent=1 // pred_fallthru
      _
    // Predicated region
    $region78: #{vit_forward.1} parent=1 // pred_check
      _
    $region79: #{vit_forward.1} parent=1 // pred_check_branch
      %67 = sbr.rel (0) target = $region81
    $region80: #{vit_forward.1} parent=1 // pred_region
      _
    $region81: #{vit_forward.1} parent=1 // pred_fallthru
      _
    // Predicated region
    $region82: #{vit_forward.1} parent=1 // pred_check
      _
    $region83: #{vit_forward.1} parent=1 // pred_check_branch
      %69 = sbr.rel (0) target = $region85
    $region84: #{vit_forward.1} parent=1 // pred_region
      _
    $region85: #{vit_forward.1} parent=1 // pred_fallthru
      _
    // Predicated region
    $region86: #{vit_forward.1} parent=1 // pred_check
      _
    $region87: #{vit_forward.1} parent=1 // pred_check_branch
      %71 = sbr.rel (0) target = $region89
    $region88: #{vit_forward.1} parent=1 // pred_region
      _
    $region89: #{vit_forward.1} parent=1 // pred_fallthru
      _
    %v72 = vld [vmem:[%s0] sm:$0xff]
    %v73 = vld [vmem:[%s0 + $0x8] sm:$0xff]
    %v74 = vld [vmem:[%s0 + $0x10] sm:$0xff]
    %v75 = vld [vmem:[%s0 + $0x18] sm:$0xff]
    %v76 = vld [vmem:[%s0 + $0x20] sm:$0xff]
    %v77 = vld [vmem:[%s0 + $0x28] sm:$0xff]
    %v78 = vld [vmem:[%s0 + $0x30] sm:$0xff]
    %v79 = vld [vmem:[%s0 + $0x38] sm:$0xff]
    %v80 = vld [vmem:[%s1] sm:$0x3]
    %v81 = vld [vmem:[%s2] sm:$0x3]
    %vm82 = vcmask 916480
    %v83 = vsel %vm82, %v73, 0.0
    %v84 = vadd.f32 %v72, %v83
    %85 = vadd.xlane.f32.xlu0 %v84
    %v86 = vpop.xlane.xlu0 %85
    %v87 = vsel %vm82, %v75, 0.0
    %v88 = vadd.f32 %v74, %v87
    %89 = vadd.xlane.f32.xlu0 %v88
    %v90 = vpop.xlane.xlu0 %89
    %v91 = vsel %vm82, %v77, 0.0
    %v92 = vadd.f32 %v76, %v91
    %93 = vadd.xlane.f32.xlu0 %v92
    %v94 = vpop.xlane.xlu0 %93
    %v95 = vsel %vm82, %v79, 0.0
    %v96 = vadd.f32 %v78, %v95
    %97 = vadd.xlane.f32.xlu0 %v96
    %v98 = vpop.xlane.xlu0 %97
    %v99 = vrcp.pop 240.0
    %v100 = vmul.f32 240.0, %v99
    %v101 = vsub.f32 1.0, %v100
    %v102 = vmul.f32 %v99, %v101
    %v103 = vadd.f32 %v99, %v102
    %vm104 = vweird.f32 %v99
    %v105 = vsel %vm104, %v99, %v103
    %v106 = vmul.f32 %v86, %v105
    %v107 = vmul.f32 %v90, %v105
    %v108 = vmul.f32 %v94, %v105
    %v109 = vmul.f32 %v98, %v105
    %v110 = vsub.f32 %v72, %v106
    %v111 = vsub.f32 %v73, %v106
    %v112 = vsub.f32 %v74, %v107
    %v113 = vsub.f32 %v75, %v107
    %v114 = vsub.f32 %v76, %v108
    %v115 = vsub.f32 %v77, %v108
    %v116 = vsub.f32 %v78, %v109
    %v117 = vsub.f32 %v79, %v109
    %v118 = vmul.f32 %v110, %v110
    %v119 = vmul.f32 %v111, %v111
    %v120 = vmul.f32 %v112, %v112
    %v121 = vmul.f32 %v113, %v113
    %v122 = vmul.f32 %v114, %v114
    %v123 = vmul.f32 %v115, %v115
    %v124 = vmul.f32 %v116, %v116
    %v125 = vmul.f32 %v117, %v117
    %v126 = vsel %vm82, %v119, 0.0
    %v127 = vadd.f32 %v118, %v126
    %128 = vadd.xlane.f32.xlu0 %v127
    %v129 = vpop.xlane.xlu0 %128
    %v130 = vsel %vm82, %v121, 0.0
    %v131 = vadd.f32 %v120, %v130
    %132 = vadd.xlane.f32.xlu0 %v131
    %v133 = vpop.xlane.xlu0 %132
    %v134 = vsel %vm82, %v123, 0.0
    %v135 = vadd.f32 %v122, %v134
    %136 = vadd.xlane.f32.xlu0 %v135
    %v137 = vpop.xlane.xlu0 %136
    %v138 = vsel %vm82, %v125, 0.0
    %v139 = vadd.f32 %v124, %v138
    %140 = vadd.xlane.f32.xlu0 %v139
    %v141 = vpop.xlane.xlu0 %140
    %v142 = vmul.f32 %v129, %v105
    %v143 = vmul.f32 %v133, %v105
    %v144 = vmul.f32 %v137, %v105
    %v145 = vmul.f32 %v141, %v105
    %v146 = vadd.f32 %v142, 1e-05
    %v147 = vadd.f32 %v143, 1e-05
    %v148 = vadd.f32 %v144, 1e-05
    %v149 = vadd.f32 %v145, 1e-05
    %v150 = vrsqrt.pop %v146
    %v151 = vmul.f32 %v150, %v146
    %v152 = vmul.f32 %v151, %v150
    %v153 = vmul.f32 0.5, %v152
    %v154 = vsub.f32 1.5, %v153
    %v155 = vmul.f32 %v150, %v154
    %vm156 = vweird.f32 %v146
    %vm157 = vweird.f32 %v150
    %vm158 = vmor %vm156, %vm157
    %v159 = vsel %vm158, %v150, %v155
    %v160 = vrsqrt.pop %v147
    %v161 = vmul.f32 %v160, %v147
    %v162 = vmul.f32 %v161, %v160
    %v163 = vmul.f32 0.5, %v162
    %v164 = vsub.f32 1.5, %v163
    %v165 = vmul.f32 %v160, %v164
    %vm166 = vweird.f32 %v147
    %vm167 = vweird.f32 %v160
    %vm168 = vmor %vm166, %vm167
    %v169 = vsel %vm168, %v160, %v165
    %v170 = vrsqrt.pop %v148
    %v171 = vmul.f32 %v170, %v148
    %v172 = vmul.f32 %v171, %v170
    %v173 = vmul.f32 0.5, %v172
    %v174 = vsub.f32 1.5, %v173
    %v175 = vmul.f32 %v170, %v174
    %vm176 = vweird.f32 %v148
    %vm177 = vweird.f32 %v170
    %vm178 = vmor %vm176, %vm177
    %v179 = vsel %vm178, %v170, %v175
    %v180 = vrsqrt.pop %v149
    %v181 = vmul.f32 %v180, %v149
    %v182 = vmul.f32 %v181, %v180
    %v183 = vmul.f32 0.5, %v182
    %v184 = vsub.f32 1.5, %v183
    %v185 = vmul.f32 %v180, %v184
    %vm186 = vweird.f32 %v149
    %vm187 = vweird.f32 %v180
    %vm188 = vmor %vm186, %vm187
    %v189 = vsel %vm188, %v180, %v185
    %v190 = vmul.f32 %v110, %v159
    %v191 = vmul.f32 %v111, %v159
    %v192 = vmul.f32 %v112, %v169
    %v193 = vmul.f32 %v113, %v169
    %v194 = vmul.f32 %v114, %v179
    %v195 = vmul.f32 %v115, %v179
    %v196 = vmul.f32 %v116, %v189
    %v197 = vmul.f32 %v117, %v189
    %v199 = vperm.slane %v80, 0
    %v200 = vperm.slane %v80, 1
    %v203 = vmul.f32 %v190, %v199
    %v204 = vmul.f32 %v191, %v200
    %v205 = vmul.f32 %v192, %v199
    %v206 = vmul.f32 %v193, %v200
    %v207 = vmul.f32 %v194, %v199
    %v208 = vmul.f32 %v195, %v200
    %v209 = vmul.f32 %v196, %v199
    %v210 = vmul.f32 %v197, %v200
    %v212 = vperm.slane %v81, 0
    %v213 = vperm.slane %v81, 1
    %v216 = vadd.f32 %v203, %v212
    %v217 = vadd.f32 %v204, %v213
    %v218 = vadd.f32 %v205, %v212
    %v219 = vadd.f32 %v206, %v213
    %v220 = vadd.f32 %v207, %v212
    %v221 = vadd.f32 %v208, %v213
    %v222 = vadd.f32 %v209, %v212
    %v223 = vadd.f32 %v210, %v213
    %v224 = vld [vmem:[%s3] sm:$0xff]
    %v225 = vld [vmem:[%s3 + $0x8] sm:$0xff]
    %v226 = vld [vmem:[%s3 + $0x10] sm:$0xff]
    %v227 = vld [vmem:[%s3 + $0x18] sm:$0xff]
    %v228 = vld [vmem:[%s3 + $0x20] sm:$0xff]
    %v229 = vld [vmem:[%s3 + $0x28] sm:$0xff]
    %v230 = vld [vmem:[%s3 + $0x30] sm:$0xff]
    %v231 = vld [vmem:[%s3 + $0x38] sm:$0xff]
    %v232 = vld [vmem:[%s3 + $0x40] sm:$0xff]
    %v233 = vld [vmem:[%s3 + $0x48] sm:$0xff]
    %v234 = vld [vmem:[%s3 + $0x50] sm:$0xff]
    %v235 = vld [vmem:[%s3 + $0x58] sm:$0xff]
    %v236 = vld [vmem:[%s3 + $0x60] sm:$0xff]
    %v237 = vld [vmem:[%s3 + $0x68] sm:$0xff]
    %v238 = vld [vmem:[%s3 + $0x70] sm:$0xff]
    %v239 = vld [vmem:[%s3 + $0x78] sm:$0xff]
    %v240 = vld [vmem:[%s3 + $0x80] sm:$0xff]
    %v241 = vld [vmem:[%s3 + $0x88] sm:$0xff]
    %v242 = vld [vmem:[%s3 + $0x90] sm:$0xff]
    %v243 = vld [vmem:[%s3 + $0x98] sm:$0xff]
    %v244 = vld [vmem:[%s3 + $0xa0] sm:$0xff]
    %v245 = vld [vmem:[%s3 + $0xa8] sm:$0xff]
    %v246 = vld [vmem:[%s3 + $0xb0] sm:$0xff]
    %v247 = vld [vmem:[%s3 + $0xb8] sm:$0xff]
    %v248 = vld [vmem:[%s3 + $0xc0] sm:$0xff]
    %v249 = vld [vmem:[%s3 + $0xc8] sm:$0xff]
    %v250 = vld [vmem:[%s3 + $0xd0] sm:$0xff]
    %v251 = vld [vmem:[%s3 + $0xd8] sm:$0xff]
    %v252 = vld [vmem:[%s3 + $0xe0] sm:$0xff]
    %v253 = vld [vmem:[%s3 + $0xe8] sm:$0xff]
    %v254 = vld [vmem:[%s4] sm:$0x1]
    %v256 = vperm.slane %v254, 0
    %v259 = vsel %vm82, %v217, 0
    %v262 = vsel %vm82, %v219, 0
    %v265 = vsel %vm82, %v221, 0
    %v268 = vsel %vm82, %v223, 0
    %270 = vmatpush.msra.mxu0 %v239
    %271 = vmatpush.msra.mxu0 %v238
    %272 = vmatpush.msra.mxu0 %v237
    %273 = vmatpush.msra.mxu0 %v236
    %274 = vmatpush.msra.mxu0 %v235
    %275 = vmatpush.msra.mxu0 %v234
    %276 = vmatpush.msra.mxu0 %v233
    %277 = vmatpush.msra.mxu0 %v232
    %278 = vmatpush.msra.mxu0 %v231
    %279 = vmatpush.msra.mxu0 %v230
    %280 = vmatpush.msra.mxu0 %v229
    %281 = vmatpush.msra.mxu0 %v228
    %282 = vmatpush.msra.mxu0 %v227
    %283 = vmatpush.msra.mxu0 %v226
    %284 = vmatpush.msra.mxu0 %v225
    %285 = vmatpush.msra.mxu0 %v224
    %286 = vmatmul.f32.gmra.mxu0 %v216
    %v287 = vpop.f32.mrf.mxu0
    %v288 = vadd.f32 %v256, %v287
    %289 = vmatmul.f32.gmra.mxu0 %v218
    %v290 = vpop.f32.mrf.mxu0
    %v291 = vadd.f32 %v256, %v290
    %292 = vmatmul.f32.gmra.mxu0 %v220
    %v293 = vpop.f32.mrf.mxu0
    %v294 = vadd.f32 %v256, %v293
    %295 = vmatmul.f32.gmra.mxu0 %v222
    %v296 = vpop.f32.mrf.mxu0
    %v297 = vadd.f32 %v256, %v296
    %298 = vdwg.mxu0
    %299 = vmatpush.msra.mxu0 0.0
    %300 = vmatpush.msra.mxu0 0.0
    %301 = vmatpush.msra.mxu0 %v253
    %302 = vmatpush.msra.mxu0 %v252
    %303 = vmatpush.msra.mxu0 %v251
    %304 = vmatpush.msra.mxu0 %v250
    %305 = vmatpush.msra.mxu0 %v249
    %306 = vmatpush.msra.mxu0 %v248
    %307 = vmatpush.msra.mxu0 %v247
    %308 = vmatpush.msra.mxu0 %v246
    %309 = vmatpush.msra.mxu0 %v245
    %310 = vmatpush.msra.mxu0 %v244
    %311 = vmatpush.msra.mxu0 %v243
    %312 = vmatpush.msra.mxu0 %v242
    %313 = vmatpush.msra.mxu0 %v241
    %314 = vmatpush.msra.mxu0 %v240
    %315 = vmatmul.f32.gmra.mxu0 %v259
    %v316 = vpop.f32.mrf.mxu0
    %v317 = vadd.f32 %v288, %v316
    %318 = vmatmul.f32.gmra.mxu0 %v262
    %v319 = vpop.f32.mrf.mxu0
    %v320 = vadd.f32 %v291, %v319
    %321 = vmatmul.f32.gmra.mxu0 %v265
    %v322 = vpop.f32.mrf.mxu0
    %v323 = vadd.f32 %v294, %v322
    %324 = vmatmul.f32.gmra.mxu0 %v268
    %v325 = vpop.f32.mrf.mxu0
    %v326 = vadd.f32 %v297, %v325
    %327 = vdwg.mxu0
    %v328 = vld [vmem:[%s5] sm:$0x1]
    %v329 = vld [vmem:[%s6] sm:$0xff]
    %v330 = vld [vmem:[%s6 + $0x8] sm:$0xff]
    %v331 = vadd.f32 %v317, %v329
    %v332 = vadd.f32 %v320, %v330
    %v333 = vadd.f32 %v323, %v329
    %v334 = vadd.f32 %v326, %v330
    %vm339 = vcmask 1040384
    %v340 = vrot.slane %v331, 7
    %v341 = vrot.slane %v332, 7
    %v342 = vsel %vm339, %v340, %v341
    %v343 = vrot.slane %v333, 7
    %v344 = vrot.slane %v334, 7
    %v345 = vsel %vm339, %v343, %v344
    %v352 = vsel %vm339, %v328, %v340
    %v353 = vsel %vm339, %v328, %v343
    %v356 = vrot.slane %v352, 1
    %v357 = vrot.slane %v352, 2
    %v358 = vrot.slane %v352, 3
    %v359 = vrot.slane %v352, 4
    %v360 = vrot.slane %v352, 5
    %v361 = vrot.slane %v352, 6
    %v362 = vrot.slane %v352, 7
    %v363 = vrot.slane %v342, 1
    %v364 = vrot.slane %v342, 2
    %v365 = vrot.slane %v342, 3
    %v366 = vrot.slane %v342, 4
    %v367 = vrot.slane %v342, 5
    %v368 = vrot.slane %v342, 6
    %v369 = vrot.slane %v342, 7
    %v370 = vrot.slane %v353, 1
    %v371 = vrot.slane %v353, 2
    %v372 = vrot.slane %v353, 3
    %v373 = vrot.slane %v353, 4
    %v374 = vrot.slane %v353, 5
    %v375 = vrot.slane %v353, 6
    %v376 = vrot.slane %v353, 7
    %v377 = vrot.slane %v345, 1
    %v378 = vrot.slane %v345, 2
    %v379 = vrot.slane %v345, 3
    %v380 = vrot.slane %v345, 4
    %v381 = vrot.slane %v345, 5
    %v382 = vrot.slane %v345, 6
    %v383 = vrot.slane %v345, 7
    %v412 = vlaneseq
    %v413 = vshrl.u32 %v412, 7
    %v414 = vadd.s32 %v413, 8
    %v415 = vadd.s32 %v413, 16
    %v416 = vlaneseq
    %v417 = vand.u32 %v416, 127
    %vm418 = vcmp.eq.s32.totalorder %v413, %v417
    %vm419 = vcmp.eq.s32.totalorder %v414, %v417
    %vm420 = vcmp.eq.s32.totalorder %v415, %v417
    %v421 = vsel %vm418, -1e+30, 0.0
    %v422 = vsel %vm419, -1e+30, 0.0
    %v423 = vsel %vm420, -1e+30, 0.0
    %v424 = vld [vmem:[%s7] sm:$0x1]
    %v425 = vld [vmem:[%s8] sm:$0x1]
    %426 = vst [vmem:[#allocation1] ss:$9 sm:$0xff] %v352
    %s427 = scalar_lea.vmem [#allocation1], 1
    %428 = vst [vmem:[%s427] ss:$9 sm:$0xff] %v356
    %s429 = scalar_lea.vmem [#allocation1], 2
    %430 = vst [vmem:[%s429] ss:$9 sm:$0xff] %v357
    %s431 = scalar_lea.vmem [#allocation1], 3
    %432 = vst [vmem:[%s431] ss:$9 sm:$0xff] %v358
    %s433 = scalar_lea.vmem [#allocation1], 4
    %434 = vst [vmem:[%s433] ss:$9 sm:$0xff] %v359
    %s435 = scalar_lea.vmem [#allocation1], 5
    %436 = vst [vmem:[%s435] ss:$9 sm:$0xff] %v360
    %s437 = scalar_lea.vmem [#allocation1], 6
    %438 = vst [vmem:[%s437] ss:$9 sm:$0xff] %v361
    %s439 = scalar_lea.vmem [#allocation1], 7
    %440 = vst [vmem:[%s439] ss:$9 sm:$0xff] %v362
    %v441 = vld [vmem:[#allocation1] sm:$0xff]
    %442 = vst [vmem:[#allocation1] ss:$9 sm:$0xff] %v342
    %443 = vst [vmem:[%s427] ss:$9 sm:$0xff] %v363
    %444 = vst [vmem:[%s429] ss:$9 sm:$0xff] %v364
    %445 = vst [vmem:[%s431] ss:$9 sm:$0xff] %v365
    %446 = vst [vmem:[%s433] ss:$9 sm:$0xff] %v366
    %447 = vst [vmem:[%s435] ss:$9 sm:$0xff] %v367
    %448 = vst [vmem:[%s437] ss:$9 sm:$0xff] %v368
    %449 = vst [vmem:[%s439] ss:$9 sm:$0xff] %v369
    %v450 = vld [vmem:[#allocation1] sm:$0xff]
    %451 = vst [vmem:[#allocation1] ss:$9 sm:$0xff] %v341
    %452 = vst [vmem:[%s427] ss:$9 sm:$0xff] %v353
    %453 = vst [vmem:[%s429] ss:$9 sm:$0xff] %v370
    %454 = vst [vmem:[%s431] ss:$9 sm:$0xff] %v371
    %455 = vst [vmem:[%s433] ss:$9 sm:$0xff] %v372
    %456 = vst [vmem:[%s435] ss:$9 sm:$0xff] %v373
    %457 = vst [vmem:[%s437] ss:$9 sm:$0xff] %v374
    %458 = vst [vmem:[%s439] ss:$9 sm:$0xff] %v375
    %v459 = vld [vmem:[#allocation1] sm:$0xff]
    %460 = vst [vmem:[#allocation1] ss:$9 sm:$0xff] %v376
    %461 = vst [vmem:[%s427] ss:$9 sm:$0xff] %v345
    %462 = vst [vmem:[%s429] ss:$9 sm:$0xff] %v377
    %463 = vst [vmem:[%s431] ss:$9 sm:$0xff] %v378
    %464 = vst [vmem:[%s433] ss:$9 sm:$0xff] %v379
    %465 = vst [vmem:[%s435] ss:$9 sm:$0xff] %v380
    %466 = vst [vmem:[%s437] ss:$9 sm:$0xff] %v381
    %467 = vst [vmem:[%s439] ss:$9 sm:$0xff] %v382
    %v468 = vld [vmem:[#allocation1] sm:$0xff]
    %469 = vst [vmem:[#allocation1] ss:$9 sm:$0xff] %v383
    %470 = vst [vmem:[%s427] ss:$9 sm:$0xff] %v344
    %v471 = vld [vmem:[#allocation1] sm:$0xff]
    %vm477 = vcmask 261120
    %v478 = vsel %vm477, %v441, 0.0
    %479 = vadd.xlane.f32.xlu0 %v478
    %v480 = vpop.xlane.xlu0 %479
    %v481 = vsel %vm477, %v450, 0.0
    %482 = vadd.xlane.f32.xlu0 %v481
    %v483 = vpop.xlane.xlu0 %482
    %v484 = vsel %vm477, %v459, 0.0
    %485 = vadd.xlane.f32.xlu0 %v484
    %v486 = vpop.xlane.xlu0 %485
    %v487 = vsel %vm477, %v468, 0.0
    %488 = vadd.xlane.f32.xlu0 %v487
    %v489 = vpop.xlane.xlu0 %488
    %vm490 = vcmask 254976
    %v491 = vsel %vm490, %v471, 0.0
    %492 = vadd.xlane.f32.xlu0 %v491
    %v493 = vpop.xlane.xlu0 %492
    %v494 = vrcp.pop 32.0
    %v495 = vmul.f32 32.0, %v494
    %v496 = vsub.f32 1.0, %v495
    %v497 = vmul.f32 %v494, %v496
    %v498 = vadd.f32 %v494, %v497
    %vm499 = vweird.f32 %v494
    %v500 = vsel %vm499, %v494, %v498
    %v501 = vmul.f32 %v480, %v500
    %v502 = vmul.f32 %v483, %v500
    %v503 = vmul.f32 %v486, %v500
    %v504 = vmul.f32 %v489, %v500
    %v505 = vmul.f32 %v493, %v500
    %v511 = vperm.slane %v501, 0
    %v512 = vperm.slane %v501, 1
    %v513 = vperm.slane %v501, 2
    %v514 = vperm.slane %v501, 3
    %v515 = vperm.slane %v501, 4
    %v516 = vperm.slane %v501, 5
    %v517 = vperm.slane %v501, 6
    %v518 = vperm.slane %v501, 7
    %v519 = vperm.slane %v502, 0
    %v520 = vperm.slane %v502, 1
    %v521 = vperm.slane %v502, 2
    %v522 = vperm.slane %v502, 3
    %v523 = vperm.slane %v502, 4
    %v524 = vperm.slane %v502, 5
    %v525 = vperm.slane %v502, 6
    %v526 = vperm.slane %v502, 7
    %v527 = vperm.slane %v503, 0
    %v528 = vperm.slane %v503, 1
    %v529 = vperm.slane %v503, 2
    %v530 = vperm.slane %v503, 3
    %v531 = vperm.slane %v503, 4
    %v532 = vperm.slane %v503, 5
    %v533 = vperm.slane %v503, 6
    %v534 = vperm.slane %v503, 7
    %v535 = vperm.slane %v504, 0
    %v536 = vperm.slane %v504, 1
    %v537 = vperm.slane %v504, 2
    %v538 = vperm.slane %v504, 3
    %v539 = vperm.slane %v504, 4
    %v540 = vperm.slane %v504, 5
    %v541 = vperm.slane %v504, 6
    %v542 = vperm.slane %v504, 7
    %v543 = vperm.slane %v505, 0
    %v544 = vperm.slane %v505, 1
    %v579 = vsub.f32 %v352, %v511
    %v580 = vsub.f32 %v356, %v512
    %v581 = vsub.f32 %v357, %v513
    %v582 = vsub.f32 %v358, %v514
    %v583 = vsub.f32 %v359, %v515
    %v584 = vsub.f32 %v360, %v516
    %v585 = vsub.f32 %v361, %v517
    %v586 = vsub.f32 %v362, %v518
    %v587 = vsub.f32 %v342, %v519
    %v588 = vsub.f32 %v363, %v520
    %v589 = vsub.f32 %v364, %v521
    %v590 = vsub.f32 %v365, %v522
    %v591 = vsub.f32 %v366, %v523
    %v592 = vsub.f32 %v367, %v524
    %v593 = vsub.f32 %v368, %v525
    %v594 = vsub.f32 %v369, %v526
    %v595 = vsub.f32 %v341, %v527
    %v596 = vsub.f32 %v353, %v528
    %v597 = vsub.f32 %v370, %v529
    %v598 = vsub.f32 %v371, %v530
    %v599 = vsub.f32 %v372, %v531
    %v600 = vsub.f32 %v373, %v532
    %v601 = vsub.f32 %v374, %v533
    %v602 = vsub.f32 %v375, %v534
    %v603 = vsub.f32 %v376, %v535
    %v604 = vsub.f32 %v345, %v536
    %v605 = vsub.f32 %v377, %v537
    %v606 = vsub.f32 %v378, %v538
    %v607 = vsub.f32 %v379, %v539
    %v608 = vsub.f32 %v380, %v540
    %v609 = vsub.f32 %v381, %v541
    %v610 = vsub.f32 %v382, %v542
    %v611 = vsub.f32 %v383, %v543
    %v612 = vsub.f32 %v344, %v544
    %v613 = vmul.f32 %v579, %v579
    %v614 = vmul.f32 %v580, %v580
    %v615 = vmul.f32 %v581, %v581
    %v616 = vmul.f32 %v582, %v582
    %v617 = vmul.f32 %v583, %v583
    %v618 = vmul.f32 %v584, %v584
    %v619 = vmul.f32 %v585, %v585
    %v620 = vmul.f32 %v586, %v586
    %v621 = vmul.f32 %v587, %v587
    %v622 = vmul.f32 %v588, %v588
    %v623 = vmul.f32 %v589, %v589
    %v624 = vmul.f32 %v590, %v590
    %v625 = vmul.f32 %v591, %v591
    %v626 = vmul.f32 %v592, %v592
    %v627 = vmul.f32 %v593, %v593
    %v628 = vmul.f32 %v594, %v594
    %v629 = vmul.f32 %v595, %v595
    %v630 = vmul.f32 %v596, %v596
    %v631 = vmul.f32 %v597, %v597
    %v632 = vmul.f32 %v598, %v598
    %v633 = vmul.f32 %v599, %v599
    %v634 = vmul.f32 %v600, %v600
    %v635 = vmul.f32 %v601, %v601
    %v636 = vmul.f32 %v602, %v602
    %v637 = vmul.f32 %v603, %v603
    %v638 = vmul.f32 %v604, %v604
    %v639 = vmul.f32 %v605, %v605
    %v640 = vmul.f32 %v606, %v606
    %v641 = vmul.f32 %v607, %v607
    %v642 = vmul.f32 %v608, %v608
    %v643 = vmul.f32 %v609, %v609
    %v644 = vmul.f32 %v610, %v610
    %v645 = vmul.f32 %v611, %v611
    %v646 = vmul.f32 %v612, %v612
    %681 = vst [vmem:[#allocation1] ss:$9 sm:$0xff] %v613
    %s682 = scalar_lea.vmem [#allocation1], 1
    %683 = vst [vmem:[%s682] ss:$9 sm:$0xff] %v614
    %s684 = scalar_lea.vmem [#allocation1], 2
    %685 = vst [vmem:[%s684] ss:$9 sm:$0xff] %v615
    %s686 = scalar_lea.vmem [#allocation1], 3
    %687 = vst [vmem:[%s686] ss:$9 sm:$0xff] %v616
    %s688 = scalar_lea.vmem [#allocation1], 4
    %689 = vst [vmem:[%s688] ss:$9 sm:$0xff] %v617
    %s690 = scalar_lea.vmem [#allocation1], 5
    %691 = vst [vmem:[%s690] ss:$9 sm:$0xff] %v618
    %s692 = scalar_lea.vmem [#allocation1], 6
    %693 = vst [vmem:[%s692] ss:$9 sm:$0xff] %v619
    %s694 = scalar_lea.vmem [#allocation1], 7
    %695 = vst [vmem:[%s694] ss:$9 sm:$0xff] %v620
    %v696 = vld [vmem:[#allocation1] sm:$0xff]
    %697 = vst [vmem:[#allocation1] ss:$9 sm:$0xff] %v621
    %698 = vst [vmem:[%s682] ss:$9 sm:$0xff] %v622
    %699 = vst [vmem:[%s684] ss:$9 sm:$0xff] %v623
    %700 = vst [vmem:[%s686] ss:$9 sm:$0xff] %v624
    %701 = vst [vmem:[%s688] ss:$9 sm:$0xff] %v625
    %702 = vst [vmem:[%s690] ss:$9 sm:$0xff] %v626
    %703 = vst [vmem:[%s692] ss:$9 sm:$0xff] %v627
    %704 = vst [vmem:[%s694] ss:$9 sm:$0xff] %v628
    %v705 = vld [vmem:[#allocation1] sm:$0xff]
    %706 = vst [vmem:[#allocation1] ss:$9 sm:$0xff] %v629
    %707 = vst [vmem:[%s682] ss:$9 sm:$0xff] %v630
    %708 = vst [vmem:[%s684] ss:$9 sm:$0xff] %v631
    %709 = vst [vmem:[%s686] ss:$9 sm:$0xff] %v632
    %710 = vst [vmem:[%s688] ss:$9 sm:$0xff] %v633
    %711 = vst [vmem:[%s690] ss:$9 sm:$0xff] %v634
    %712 = vst [vmem:[%s692] ss:$9 sm:$0xff] %v635
    %713 = vst [vmem:[%s694] ss:$9 sm:$0xff] %v636
    %v714 = vld [vmem:[#allocation1] sm:$0xff]
    %715 = vst [vmem:[#allocation1] ss:$9 sm:$0xff] %v637
    %716 = vst [vmem:[%s682] ss:$9 sm:$0xff] %v638
    %717 = vst [vmem:[%s684] ss:$9 sm:$0xff] %v639
    %718 = vst [vmem:[%s686] ss:$9 sm:$0xff] %v640
    %719 = vst [vmem:[%s688] ss:$9 sm:$0xff] %v641
    %720 = vst [vmem:[%s690] ss:$9 sm:$0xff] %v642
    %721 = vst [vmem:[%s692] ss:$9 sm:$0xff] %v643
    %722 = vst [vmem:[%s694] ss:$9 sm:$0xff] %v644
    %v723 = vld [vmem:[#allocation1] sm:$0xff]
    %724 = vst [vmem:[#allocation1] ss:$9 sm:$0xff] %v645
    %725 = vst [vmem:[%s682] ss:$9 sm:$0xff] %v646
    %v726 = vld [vmem:[#allocation1] sm:$0xff]
    %v732 = vsel %vm477, %v696, 0.0
    %733 = vadd.xlane.f32.xlu0 %v732
    %v734 = vpop.xlane.xlu0 %733
    %v735 = vsel %vm477, %v705, 0.0
    %736 = vadd.xlane.f32.xlu0 %v735
    %v737 = vpop.xlane.xlu0 %736
    %v738 = vsel %vm477, %v714, 0.0
    %739 = vadd.xlane.f32.xlu0 %v738
    %v740 = vpop.xlane.xlu0 %739
    %v741 = vsel %vm477, %v723, 0.0
    %742 = vadd.xlane.f32.xlu0 %v741
    %v743 = vpop.xlane.xlu0 %742
    %v744 = vsel %vm490, %v726, 0.0
    %745 = vadd.xlane.f32.xlu0 %v744
    %v746 = vpop.xlane.xlu0 %745
    %v747 = vmul.f32 %v734, %v500
    %v748 = vmul.f32 %v737, %v500
    %v749 = vmul.f32 %v740, %v500
    %v750 = vmul.f32 %v743, %v500
    %v751 = vmul.f32 %v746, %v500
    %v752 = vadd.f32 %v747, 1e-05
    %v753 = vadd.f32 %v748, 1e-05
    %v754 = vadd.f32 %v749, 1e-05
    %v755 = vadd.f32 %v750, 1e-05
    %v756 = vadd.f32 %v751, 1e-05
    %v757 = vrsqrt.pop %v752
    %v758 = vmul.f32 %v757, %v752
    %v759 = vmul.f32 %v758, %v757
    %v760 = vmul.f32 0.5, %v759
    %v761 = vsub.f32 1.5, %v760
    %v762 = vmul.f32 %v757, %v761
    %vm763 = vweird.f32 %v752
    %vm764 = vweird.f32 %v757
    %vm765 = vmor %vm763, %vm764
    %v766 = vsel %vm765, %v757, %v762
    %v767 = vrsqrt.pop %v753
    %v768 = vmul.f32 %v767, %v753
    %v769 = vmul.f32 %v768, %v767
    %v770 = vmul.f32 0.5, %v769
    %v771 = vsub.f32 1.5, %v770
    %v772 = vmul.f32 %v767, %v771
    %vm773 = vweird.f32 %v753
    %vm774 = vweird.f32 %v767
    %vm775 = vmor %vm773, %vm774
    %v776 = vsel %vm775, %v767, %v772
    %v777 = vrsqrt.pop %v754
    %v778 = vmul.f32 %v777, %v754
    %v779 = vmul.f32 %v778, %v777
    %v780 = vmul.f32 0.5, %v779
    %v781 = vsub.f32 1.5, %v780
    %v782 = vmul.f32 %v777, %v781
    %vm783 = vweird.f32 %v754
    %vm784 = vweird.f32 %v777
    %vm785 = vmor %vm783, %vm784
    %v786 = vsel %vm785, %v777, %v782
    %v787 = vrsqrt.pop %v755
    %v788 = vmul.f32 %v787, %v755
    %v789 = vmul.f32 %v788, %v787
    %v790 = vmul.f32 0.5, %v789
    %v791 = vsub.f32 1.5, %v790
    %v792 = vmul.f32 %v787, %v791
    %vm793 = vweird.f32 %v755
    %vm794 = vweird.f32 %v787
    %vm795 = vmor %vm793, %vm794
    %v796 = vsel %vm795, %v787, %v792
    %v797 = vrsqrt.pop %v756
    %v798 = vmul.f32 %v797, %v756
    %v799 = vmul.f32 %v798, %v797
    %v800 = vmul.f32 0.5, %v799
    %v801 = vsub.f32 1.5, %v800
    %v802 = vmul.f32 %v797, %v801
    %vm803 = vweird.f32 %v756
    %vm804 = vweird.f32 %v797
    %vm805 = vmor %vm803, %vm804
    %v806 = vsel %vm805, %v797, %v802
    %v812 = vperm.slane %v766, 0
    %v813 = vperm.slane %v766, 1
    %v814 = vperm.slane %v766, 2
    %v815 = vperm.slane %v766, 3
    %v816 = vperm.slane %v766, 4
    %v817 = vperm.slane %v766, 5
    %v818 = vperm.slane %v766, 6
    %v819 = vperm.slane %v766, 7
    %v820 = vperm.slane %v776, 0
    %v821 = vperm.slane %v776, 1
    %v822 = vperm.slane %v776, 2
    %v823 = vperm.slane %v776, 3
    %v824 = vperm.slane %v776, 4
    %v825 = vperm.slane %v776, 5
    %v826 = vperm.slane %v776, 6
    %v827 = vperm.slane %v776, 7
    %v828 = vperm.slane %v786, 0
    %v829 = vperm.slane %v786, 1
    %v830 = vperm.slane %v786, 2
    %v831 = vperm.slane %v786, 3
    %v832 = vperm.slane %v786, 4
    %v833 = vperm.slane %v786, 5
    %v834 = vperm.slane %v786, 6
    %v835 = vperm.slane %v786, 7
    %v836 = vperm.slane %v796, 0
    %v837 = vperm.slane %v796, 1
    %v838 = vperm.slane %v796, 2
    %v839 = vperm.slane %v796, 3
    %v840 = vperm.slane %v796, 4
    %v841 = vperm.slane %v796, 5
    %v842 = vperm.slane %v796, 6
    %v843 = vperm.slane %v796, 7
    %v844 = vperm.slane %v806, 0
    %v845 = vperm.slane %v806, 1
    %v880 = vmul.f32 %v579, %v812
    %v881 = vmul.f32 %v580, %v813
    %v882 = vmul.f32 %v581, %v814
    %v883 = vmul.f32 %v582, %v815
    %v884 = vmul.f32 %v583, %v816
    %v885 = vmul.f32 %v584, %v817
    %v886 = vmul.f32 %v585, %v818
    %v887 = vmul.f32 %v586, %v819
    %v888 = vmul.f32 %v587, %v820
    %v889 = vmul.f32 %v588, %v821
    %v890 = vmul.f32 %v589, %v822
    %v891 = vmul.f32 %v590, %v823
    %v892 = vmul.f32 %v591, %v824
    %v893 = vmul.f32 %v592, %v825
    %v894 = vmul.f32 %v593, %v826
    %v895 = vmul.f32 %v594, %v827
    %v896 = vmul.f32 %v595, %v828
    %v897 = vmul.f32 %v596, %v829
    %v898 = vmul.f32 %v597, %v830
    %v899 = vmul.f32 %v598, %v831
    %v900 = vmul.f32 %v599, %v832
    %v901 = vmul.f32 %v600, %v833
    %v902 = vmul.f32 %v601, %v834
    %v903 = vmul.f32 %v602, %v835
    %v904 = vmul.f32 %v603, %v836
    %v905 = vmul.f32 %v604, %v837
    %v906 = vmul.f32 %v605, %v838
    %v907 = vmul.f32 %v606, %v839
    %v908 = vmul.f32 %v607, %v840
    %v909 = vmul.f32 %v608, %v841
    %v910 = vmul.f32 %v609, %v842
    %v911 = vmul.f32 %v610, %v843
    %v912 = vmul.f32 %v611, %v844
    %v913 = vmul.f32 %v612, %v845
    %v914 = vperm.slane %v424, 0
    %v916 = vrot.slane %v914, 1
    %v917 = vrot.slane %v914, 2
    %v918 = vrot.slane %v914, 3
    %v919 = vrot.slane %v914, 4
    %v920 = vrot.slane %v914, 5
    %v921 = vrot.slane %v914, 6
    %v922 = vrot.slane %v914, 7
    %v930 = vmul.f32 %v880, %v914
    %v931 = vmul.f32 %v881, %v916
    %v932 = vmul.f32 %v882, %v917
    %v933 = vmul.f32 %v883, %v918
    %v934 = vmul.f32 %v884, %v919
    %v935 = vmul.f32 %v885, %v920
    %v936 = vmul.f32 %v886, %v921
    %v937 = vmul.f32 %v887, %v922
    %v938 = vmul.f32 %v888, %v914
    %v939 = vmul.f32 %v889, %v916
    %v940 = vmul.f32 %v890, %v917
    %v941 = vmul.f32 %v891, %v918
    %v942 = vmul.f32 %v892, %v919
    %v943 = vmul.f32 %v893, %v920
    %v944 = vmul.f32 %v894, %v921
    %v945 = vmul.f32 %v895, %v922
    %v946 = vmul.f32 %v896, %v914
    %v947 = vmul.f32 %v897, %v916
    %v948 = vmul.f32 %v898, %v917
    %v949 = vmul.f32 %v899, %v918
    %v950 = vmul.f32 %v900, %v919
    %v951 = vmul.f32 %v901, %v920
    %v952 = vmul.f32 %v902, %v921
    %v953 = vmul.f32 %v903, %v922
    %v954 = vmul.f32 %v904, %v914
    %v955 = vmul.f32 %v905, %v916
    %v956 = vmul.f32 %v906, %v917
    %v957 = vmul.f32 %v907, %v918
    %v958 = vmul.f32 %v908, %v919
    %v959 = vmul.f32 %v909, %v920
    %v960 = vmul.f32 %v910, %v921
    %v961 = vmul.f32 %v911, %v922
    %v962 = vmul.f32 %v912, %v914
    %v963 = vmul.f32 %v913, %v916
    %v964 = vperm.slane %v425, 0
    %v966 = vrot.slane %v964, 1
    %v967 = vrot.slane %v964, 2
    %v968 = vrot.slane %v964, 3
    %v969 = vrot.slane %v964, 4
    %v970 = vrot.slane %v964, 5
    %v971 = vrot.slane %v964, 6
    %v972 = vrot.slane %v964, 7
    %v980 = vadd.f32 %v930, %v964
    %v981 = vadd.f32 %v931, %v966
    %v982 = vadd.f32 %v932, %v967
    %v983 = vadd.f32 %v933, %v968
    %v984 = vadd.f32 %v934, %v969
    %v985 = vadd.f32 %v935, %v970
    %v986 = vadd.f32 %v936, %v971
    %v987 = vadd.f32 %v937, %v972
    %v988 = vadd.f32 %v938, %v964
    %v989 = vadd.f32 %v939, %v966
    %v990 = vadd.f32 %v940, %v967
    %v991 = vadd.f32 %v941, %v968
    %v992 = vadd.f32 %v942, %v969
    %v993 = vadd.f32 %v943, %v970
    %v994 = vadd.f32 %v944, %v971
    %v995 = vadd.f32 %v945, %v972
    %v996 = vadd.f32 %v946, %v964
    %v997 = vadd.f32 %v947, %v966
    %v998 = vadd.f32 %v948, %v967
    %v999 = vadd.f32 %v949, %v968
    %v1000 = vadd.f32 %v950, %v969
    %v1001 = vadd.f32 %v951, %v970
    %v1002 = vadd.f32 %v952, %v971
    %v1003 = vadd.f32 %v953, %v972
    %v1004 = vadd.f32 %v954, %v964
    %v1005 = vadd.f32 %v955, %v966
    %v1006 = vadd.f32 %v956, %v967
    %v1007 = vadd.f32 %v957, %v968
    %v1008 = vadd.f32 %v958, %v969
    %v1009 = vadd.f32 %v959, %v970
    %v1010 = vadd.f32 %v960, %v971
    %v1011 = vadd.f32 %v961, %v972
    %v1012 = vadd.f32 %v962, %v964
    %v1013 = vadd.f32 %v963, %v966
    %v1014 = vld [vmem:[%s9] sm:$0xff]
    %v1015 = vld [vmem:[%s9 + $0x8] sm:$0xff]
    %v1016 = vld [vmem:[%s9 + $0x10] sm:$0xff]
    %v1017 = vld [vmem:[%s9 + $0x18] sm:$0xff]
    %1052 = vst [vmem:[#allocation1] ss:$9 sm:$0xff] %v980
    %s1053 = scalar_lea.vmem [#allocation1], 1
    %1054 = vst [vmem:[%s1053] ss:$9 sm:$0xff] %v981
    %s1055 = scalar_lea.vmem [#allocation1], 2
    %1056 = vst [vmem:[%s1055] ss:$9 sm:$0xff] %v982
    %s1057 = scalar_lea.vmem [#allocation1], 3
    %1058 = vst [vmem:[%s1057] ss:$9 sm:$0xff] %v983
    %s1059 = scalar_lea.vmem [#allocation1], 4
    %1060 = vst [vmem:[%s1059] ss:$9 sm:$0xff] %v984
    %s1061 = scalar_lea.vmem [#allocation1], 5
    %1062 = vst [vmem:[%s1061] ss:$9 sm:$0xff] %v985
    %s1063 = scalar_lea.vmem [#allocation1], 6
    %1064 = vst [vmem:[%s1063] ss:$9 sm:$0xff] %v986
    %s1065 = scalar_lea.vmem [#allocation1], 7
    %1066 = vst [vmem:[%s1065] ss:$9 sm:$0xff] %v987
    %v1067 = vld [vmem:[#allocation1] sm:$0xff]
    %1068 = vst [vmem:[#allocation1] ss:$9 sm:$0xff] %v988
    %1069 = vst [vmem:[%s1053] ss:$9 sm:$0xff] %v989
    %1070 = vst [vmem:[%s1055] ss:$9 sm:$0xff] %v990
    %1071 = vst [vmem:[%s1057] ss:$9 sm:$0xff] %v991
    %1072 = vst [vmem:[%s1059] ss:$9 sm:$0xff] %v992
    %1073 = vst [vmem:[%s1061] ss:$9 sm:$0xff] %v993
    %1074 = vst [vmem:[%s1063] ss:$9 sm:$0xff] %v994
    %1075 = vst [vmem:[%s1065] ss:$9 sm:$0xff] %v995
    %v1076 = vld [vmem:[#allocation1] sm:$0xff]
    %1077 = vst [vmem:[#allocation1] ss:$9 sm:$0xff] %v996
    %1078 = vst [vmem:[%s1053] ss:$9 sm:$0xff] %v997
    %1079 = vst [vmem:[%s1055] ss:$9 sm:$0xff] %v998
    %1080 = vst [vmem:[%s1057] ss:$9 sm:$0xff] %v999
    %1081 = vst [vmem:[%s1059] ss:$9 sm:$0xff] %v1000
    %1082 = vst [vmem:[%s1061] ss:$9 sm:$0xff] %v1001
    %1083 = vst [vmem:[%s1063] ss:$9 sm:$0xff] %v1002
    %1084 = vst [vmem:[%s1065] ss:$9 sm:$0xff] %v1003
    %v1085 = vld [vmem:[#allocation1] sm:$0xff]
    %1086 = vst [vmem:[#allocation1] ss:$9 sm:$0xff] %v1004
    %1087 = vst [vmem:[%s1053] ss:$9 sm:$0xff] %v1005
    %1088 = vst [vmem:[%s1055] ss:$9 sm:$0xff] %v1006
    %1089 = vst [vmem:[%s1057] ss:$9 sm:$0xff] %v1007
    %1090 = vst [vmem:[%s1059] ss:$9 sm:$0xff] %v1008
    %1091 = vst [vmem:[%s1061] ss:$9 sm:$0xff] %v1009
    %1092 = vst [vmem:[%s1063] ss:$9 sm:$0xff] %v1010
    %1093 = vst [vmem:[%s1065] ss:$9 sm:$0xff] %v1011
    %v1094 = vld [vmem:[#allocation1] sm:$0xff]
    %1095 = vst [vmem:[#allocation1] ss:$9 sm:$0xff] %v1012
    %1096 = vst [vmem:[%s1053] ss:$9 sm:$0xff] %v1013
    %v1097 = vld [vmem:[#allocation1] sm:$0xff]
    %v1098 = vsel %vm477, %v1067, 0
    %v1100 = vsel %vm477, %v1076, 0
    %v1102 = vsel %vm477, %v1085, 0
    %v1104 = vsel %vm477, %v1094, 0
    %v1106 = vsel %vm477, %v1097, 0
    %1108 = vmatpush.msra.mxu0 0.0
    %1109 = vmatpush.msra.mxu0 0.0
    %1110 = vmatpush.msra.mxu0 0.0
    %1111 = vmatpush.msra.mxu0 0.0
    %1112 = vmatpush.msra.mxu0 0.0
    %1113 = vmatpush.msra.mxu0 0.0
    %1114 = vmatpush.msra.mxu0 0.0
    %1115 = vmatpush.msra.mxu0 0.0
    %1116 = vmatpush.msra.mxu0 0.0
    %1117 = vmatpush.msra.mxu0 0.0
    %1118 = vmatpush.msra.mxu0 0.0
    %1119 = vmatpush.msra.mxu0 0.0
    %1120 = vmatpush.msra.mxu0 %v1017
    %1121 = vmatpush.msra.mxu0 %v1016
    %1122 = vmatpush.msra.mxu0 %v1015
    %1123 = vmatpush.msra.mxu0 %v1014
    %1124 = vmatmul.f32.gmra.mxu0 %v1098
    %v1125 = vpop.f32.mrf.mxu0
    %v1126 = vadd.f32 0.0, %v1125
    %1127 = vmatmul.f32.gmra.mxu0 %v1100
    %v1128 = vpop.f32.mrf.mxu0
    %v1129 = vadd.f32 0.0, %v1128
    %1130 = vmatmul.f32.gmra.mxu0 %v1102
    %v1131 = vpop.f32.mrf.mxu0
    %v1132 = vadd.f32 0.0, %v1131
    %1133 = vmatmul.f32.gmra.mxu0 %v1104
    %v1134 = vpop.f32.mrf.mxu0
    %v1135 = vadd.f32 0.0, %v1134
    %1136 = vmatmul.f32.gmra.mxu0 %v1106
    %v1137 = vpop.f32.mrf.mxu0
    %v1138 = vadd.f32 0.0, %v1137
    %1139 = vdwg.mxu0
    %v1145 = vrot.slane %v1126, 1
    %v1146 = vrot.slane %v1126, 2
    %v1147 = vrot.slane %v1126, 3
    %v1148 = vrot.slane %v1126, 4
    %v1149 = vrot.slane %v1126, 5
    %v1150 = vrot.slane %v1126, 6
    %v1151 = vrot.slane %v1126, 7
    %v1152 = vrot.slane %v1129, 1
    %v1153 = vrot.slane %v1129, 2
    %v1154 = vrot.slane %v1129, 3
    %v1155 = vrot.slane %v1129, 4
    %v1156 = vrot.slane %v1129, 5
    %v1157 = vrot.slane %v1129, 6
    %v1158 = vrot.slane %v1129, 7
    %v1159 = vrot.slane %v1132, 1
    %v1160 = vrot.slane %v1132, 2
    %v1161 = vrot.slane %v1132, 3
    %v1162 = vrot.slane %v1132, 4
    %v1163 = vrot.slane %v1132, 5
    %v1164 = vrot.slane %v1132, 6
    %v1165 = vrot.slane %v1132, 7
    %v1166 = vrot.slane %v1135, 1
    %v1167 = vrot.slane %v1135, 2
    %v1168 = vrot.slane %v1135, 3
    %v1169 = vrot.slane %v1135, 4
    %v1170 = vrot.slane %v1135, 5
    %v1171 = vrot.slane %v1135, 6
    %v1172 = vrot.slane %v1135, 7
    %v1173 = vrot.slane %v1138, 1
    %1174 = vst [vmem:[#allocation1] ss:$9 sm:$0xff] %v1126
    %s1175 = scalar_lea.vmem [#allocation1], 1
    %1176 = vst [vmem:[%s1175] ss:$9 sm:$0xff] %v1145
    %s1177 = scalar_lea.vmem [#allocation1], 2
    %1178 = vst [vmem:[%s1177] ss:$9 sm:$0xff] %v1146
    %s1179 = scalar_lea.vmem [#allocation1], 3
    %1180 = vst [vmem:[%s1179] ss:$9 sm:$0xff] %v1147
    %s1181 = scalar_lea.vmem [#allocation1], 4
    %1182 = vst [vmem:[%s1181] ss:$9 sm:$0xff] %v1148
    %s1183 = scalar_lea.vmem [#allocation1], 5
    %1184 = vst [vmem:[%s1183] ss:$9 sm:$0xff] %v1149
    %s1185 = scalar_lea.vmem [#allocation1], 6
    %1186 = vst [vmem:[%s1185] ss:$9 sm:$0xff] %v1150
    %s1187 = scalar_lea.vmem [#allocation1], 7
    %1188 = vst [vmem:[%s1187] ss:$9 sm:$0xff] %v1151
    %v1189 = vld [vmem:[#allocation1] sm:$0xff]
    %1190 = vst [vmem:[#allocation1] ss:$9 sm:$0xff] %v1129
    %1191 = vst [vmem:[%s1175] ss:$9 sm:$0xff] %v1152
    %1192 = vst [vmem:[%s1177] ss:$9 sm:$0xff] %v1153
    %1193 = vst [vmem:[%s1179] ss:$9 sm:$0xff] %v1154
    %1194 = vst [vmem:[%s1181] ss:$9 sm:$0xff] %v1155
    %1195 = vst [vmem:[%s1183] ss:$9 sm:$0xff] %v1156
    %1196 = vst [vmem:[%s1185] ss:$9 sm:$0xff] %v1157
    %1197 = vst [vmem:[%s1187] ss:$9 sm:$0xff] %v1158
    %v1198 = vld [vmem:[#allocation1] sm:$0xff]
    %1199 = vst [vmem:[#allocation1] ss:$9 sm:$0xff] %v1132
    %v1200 = vld [vmem:[#allocation1] sm:$0xff]
    %1201 = vst [vmem:[#allocation1] ss:$9 sm:$0xff] %v1126
    %s1202 = scalar_lea.vmem [#allocation1], 1
    %1203 = vst [vmem:[%s1202] ss:$9 sm:$0xff] %v1145
    %s1204 = scalar_lea.vmem [#allocation1], 2
    %1205 = vst [vmem:[%s1204] ss:$9 sm:$0xff] %v1146
    %s1206 = scalar_lea.vmem [#allocation1], 3
    %1207 = vst [vmem:[%s1206] ss:$9 sm:$0xff] %v1147
    %s1208 = scalar_lea.vmem [#allocation1], 4
    %1209 = vst [vmem:[%s1208] ss:$9 sm:$0xff] %v1148
    %s1210 = scalar_lea.vmem [#allocation1], 5
    %1211 = vst [vmem:[%s1210] ss:$9 sm:$0xff] %v1149
    %s1212 = scalar_lea.vmem [#allocation1], 6
    %1213 = vst [vmem:[%s1212] ss:$9 sm:$0xff] %v1150
    %s1214 = scalar_lea.vmem [#allocation1], 7
    %1215 = vst [vmem:[%s1214] ss:$9 sm:$0xff] %v1151
    %v1216 = vld [vmem:[#allocation1] sm:$0xff]
    %1217 = vst [vmem:[#allocation1] ss:$9 sm:$0xff] %v1129
    %1218 = vst [vmem:[%s1202] ss:$9 sm:$0xff] %v1152
    %1219 = vst [vmem:[%s1204] ss:$9 sm:$0xff] %v1153
    %1220 = vst [vmem:[%s1206] ss:$9 sm:$0xff] %v1154
    %1221 = vst [vmem:[%s1208] ss:$9 sm:$0xff] %v1155
    %1222 = vst [vmem:[%s1210] ss:$9 sm:$0xff] %v1156
    %1223 = vst [vmem:[%s1212] ss:$9 sm:$0xff] %v1157
    %1224 = vst [vmem:[%s1214] ss:$9 sm:$0xff] %v1158
    %v1225 = vld [vmem:[#allocation1] sm:$0xff]
    %1226 = vst [vmem:[#allocation1] ss:$9 sm:$0xff] %v1132
    %v1227 = vld [vmem:[#allocation1] sm:$0xff]
    %1228 = vrot.lane.b32.xlu0 %v1216, 96
    %v1229 = vpop.permute.xlu0 %1228
    %1230 = vrot.lane.b32.xlu0 %v1225, 96
    %v1231 = vpop.permute.xlu0 %1230
    %1232 = vrot.lane.b32.xlu0 %v1227, 96
    %v1233 = vpop.permute.xlu0 %1232
    %vm1234 = vcmask 64512
    %v1235 = vsel %vm1234, %v1189, 0
    %v1237 = vsel %vm1234, %v1198, 0
    %v1239 = vsel %vm1234, %v1200, 0
    %v1241 = vsel %vm1234, %v1229, 0
    %v1243 = vsel %vm1234, %v1231, 0
    %v1245 = vsel %vm1234, %v1233, 0
    %1247 = vmatpush.xpose.msra.mxu0 0.0
    %1248 = vmatpush.xpose.msra.mxu0 0.0
    %1249 = vmatpush.xpose.msra.mxu0 0.0
    %1250 = vmatpush.xpose.msra.mxu0 0.0
    %1251 = vmatpush.xpose.msra.mxu0 0.0
    %1252 = vmatpush.xpose.msra.mxu0 0.0
    %1253 = vmatpush.xpose.msra.mxu0 0.0
    %1254 = vmatpush.xpose.msra.mxu0 0.0
    %1255 = vmatpush.xpose.msra.mxu0 0.0
    %1256 = vmatpush.xpose.msra.mxu0 0.0
    %1257 = vmatpush.xpose.msra.mxu0 0.0
    %1258 = vmatpush.xpose.msra.mxu0 0.0
    %1259 = vmatpush.xpose.msra.mxu0 0.0
    %1260 = vmatpush.xpose.msra.mxu0 %v1245
    %1261 = vmatpush.xpose.msra.mxu0 %v1243
    %1262 = vmatpush.xpose.msra.mxu0 %v1241
    %1263 = vmatmul.f32.gmra.mxu0 %v1235
    %v1264 = vpop.f32.mrf.mxu0
    %v1265 = vadd.f32 %v421, %v1264
    %1266 = vmatmul.f32.gmra.mxu0 %v1237
    %v1267 = vpop.f32.mrf.mxu0
    %v1268 = vadd.f32 %v422, %v1267
    %1269 = vmatmul.f32.gmra.mxu0 %v1239
    %v1270 = vpop.f32.mrf.mxu0
    %v1271 = vadd.f32 %v423, %v1270
    %1272 = vdwg.mxu0
    %1273 = vst [vmem:[#allocation1] ss:$9 sm:$0xff] %v1159
    %s1274 = scalar_lea.vmem [#allocation1], 1
    %1275 = vst [vmem:[%s1274] ss:$9 sm:$0xff] %v1160
    %s1276 = scalar_lea.vmem [#allocation1], 2
    %1277 = vst [vmem:[%s1276] ss:$9 sm:$0xff] %v1161
    %s1278 = scalar_lea.vmem [#allocation1], 3
    %1279 = vst [vmem:[%s1278] ss:$9 sm:$0xff] %v1162
    %s1280 = scalar_lea.vmem [#allocation1], 4
    %1281 = vst [vmem:[%s1280] ss:$9 sm:$0xff] %v1163
    %s1282 = scalar_lea.vmem [#allocation1], 5
    %1283 = vst [vmem:[%s1282] ss:$9 sm:$0xff] %v1164
    %s1284 = scalar_lea.vmem [#allocation1], 6
    %1285 = vst [vmem:[%s1284] ss:$9 sm:$0xff] %v1165
    %s1286 = scalar_lea.vmem [#allocation1], 7
    %1287 = vst [vmem:[%s1286] ss:$9 sm:$0xff] %v1135
    %v1288 = vld [vmem:[#allocation1] sm:$0xff]
    %1289 = vst [vmem:[#allocation1] ss:$9 sm:$0xff] %v1166
    %1290 = vst [vmem:[%s1274] ss:$9 sm:$0xff] %v1167
    %1291 = vst [vmem:[%s1276] ss:$9 sm:$0xff] %v1168
    %1292 = vst [vmem:[%s1278] ss:$9 sm:$0xff] %v1169
    %1293 = vst [vmem:[%s1280] ss:$9 sm:$0xff] %v1170
    %1294 = vst [vmem:[%s1282] ss:$9 sm:$0xff] %v1171
    %1295 = vst [vmem:[%s1284] ss:$9 sm:$0xff] %v1172
    %1296 = vst [vmem:[%s1286] ss:$9 sm:$0xff] %v1138
    %v1297 = vld [vmem:[#allocation1] sm:$0xff]
    %1298 = vst [vmem:[#allocation1] ss:$9 sm:$0xff] %v1173
    %v1299 = vld [vmem:[#allocation1] sm:$0xff]
    %1300 = vst [vmem:[#allocation1] ss:$9 sm:$0xff] %v1159
    %s1301 = scalar_lea.vmem [#allocation1], 1
    %1302 = vst [vmem:[%s1301] ss:$9 sm:$0xff] %v1160
    %s1303 = scalar_lea.vmem [#allocation1], 2
    %1304 = vst [vmem:[%s1303] ss:$9 sm:$0xff] %v1161
    %s1305 = scalar_lea.vmem [#allocation1], 3
    %1306 = vst [vmem:[%s1305] ss:$9 sm:$0xff] %v1162
    %s1307 = scalar_lea.vmem [#allocation1], 4
    %1308 = vst [vmem:[%s1307] ss:$9 sm:$0xff] %v1163
    %s1309 = scalar_lea.vmem [#allocation1], 5
    %1310 = vst [vmem:[%s1309] ss:$9 sm:$0xff] %v1164
    %s1311 = scalar_lea.vmem [#allocation1], 6
    %1312 = vst [vmem:[%s1311] ss:$9 sm:$0xff] %v1165
    %s1313 = scalar_lea.vmem [#allocation1], 7
    %1314 = vst [vmem:[%s1313] ss:$9 sm:$0xff] %v1135
    %v1315 = vld [vmem:[#allocation1] sm:$0xff]
    %1316 = vst [vmem:[#allocation1] ss:$9 sm:$0xff] %v1166
    %1317 = vst [vmem:[%s1301] ss:$9 sm:$0xff] %v1167
    %1318 = vst [vmem:[%s1303] ss:$9 sm:$0xff] %v1168
    %1319 = vst [vmem:[%s1305] ss:$9 sm:$0xff] %v1169
    %1320 = vst [vmem:[%s1307] ss:$9 sm:$0xff] %v1170
    %1321 = vst [vmem:[%s1309] ss:$9 sm:$0xff] %v1171
    %1322 = vst [vmem:[%s1311] ss:$9 sm:$0xff] %v1172
    %1323 = vst [vmem:[%s1313] ss:$9 sm:$0xff] %v1138
    %v1324 = vld [vmem:[#allocation1] sm:$0xff]
    %1325 = vst [vmem:[#allocation1] ss:$9 sm:$0xff] %v1173
    %v1326 = vld [vmem:[#allocation1] sm:$0xff]
    %1327 = vrot.lane.b32.xlu0 %v1315, 96
    %v1328 = vpop.permute.xlu0 %1327
    %1329 = vrot.lane.b32.xlu0 %v1324, 96
    %v1330 = vpop.permute.xlu0 %1329
    %1331 = vrot.lane.b32.xlu0 %v1326, 96
    %v1332 = vpop.permute.xlu0 %1331
    %v1333 = vsel %vm1234, %v1288, 0
    %v1335 = vsel %vm1234, %v1297, 0
    %v1337 = vsel %vm1234, %v1299, 0
    %v1339 = vsel %vm1234, %v1328, 0
    %v1341 = vsel %vm1234, %v1330, 0
    %v1343 = vsel %vm1234, %v1332, 0
    %1345 = vmatpush.xpose.msra.mxu0 0.0
    %1346 = vmatpush.xpose.msra.mxu0 0.0
    %1347 = vmatpush.xpose.msra.mxu0 0.0
    %1348 = vmatpush.xpose.msra.mxu0 0.0
    %1349 = vmatpush.xpose.msra.mxu0 0.0
    %1350 = vmatpush.xpose.msra.mxu0 0.0
    %1351 = vmatpush.xpose.msra.mxu0 0.0
    %1352 = vmatpush.xpose.msra.mxu0 0.0
    %1353 = vmatpush.xpose.msra.mxu0 0.0
    %1354 = vmatpush.xpose.msra.mxu0 0.0
    %1355 = vmatpush.xpose.msra.mxu0 0.0
    %1356 = vmatpush.xpose.msra.mxu0 0.0
    %1357 = vmatpush.xpose.msra.mxu0 0.0
    %1358 = vmatpush.xpose.msra.mxu0 %v1343
    %1359 = vmatpush.xpose.msra.mxu0 %v1341
    %1360 = vmatpush.xpose.msra.mxu0 %v1339
    %1361 = vmatmul.f32.gmra.mxu0 %v1333
    %v1362 = vpop.f32.mrf.mxu0
    %v1363 = vadd.f32 %v421, %v1362
    %1364 = vmatmul.f32.gmra.mxu0 %v1335
    %v1365 = vpop.f32.mrf.mxu0
    %v1366 = vadd.f32 %v422, %v1365
    %1367 = vmatmul.f32.gmra.mxu0 %v1337
    %v1368 = vpop.f32.mrf.mxu0
    %v1369 = vadd.f32 %v423, %v1368
    %1370 = vdwg.mxu0
    %vm1371 = vcmask 138240
    %v1372 = vsel %vm1371, %v1265, -inf
    %1373 = vmax.xlane.f32.xlu0 %v1372
    %v1374 = vpop.xlane.xlu0 %1373
    %v1375 = vsel %vm1371, %v1268, -inf
    %1376 = vmax.xlane.f32.xlu0 %v1375
    %v1377 = vpop.xlane.xlu0 %1376
    %vm1378 = vcmask 131072
    %v1379 = vsel %vm1378, %v1271, -inf
    %1380 = vmax.xlane.f32.xlu0 %v1379
    %v1381 = vpop.xlane.xlu0 %1380
    %v1382 = vsel %vm1371, %v1363, -inf
    %1383 = vmax.xlane.f32.xlu0 %v1382
    %v1384 = vpop.xlane.xlu0 %1383
    %v1385 = vsel %vm1371, %v1366, -inf
    %1386 = vmax.xlane.f32.xlu0 %v1385
    %v1387 = vpop.xlane.xlu0 %1386
    %v1388 = vsel %vm1378, %v1369, -inf
    %1389 = vmax.xlane.f32.xlu0 %v1388
    %v1390 = vpop.xlane.xlu0 %1389
    %v1391 = vsub.f32 %v1265, %v1374
    %v1392 = vsub.f32 %v1268, %v1377
    %v1393 = vsub.f32 %v1271, %v1381
    %v1394 = vsub.f32 %v1363, %v1384
    %v1395 = vsub.f32 %v1366, %v1387
    %v1396 = vsub.f32 %v1369, %v1390
    %v1397 = vmul.f32 %v1391, 1.442695
    %v1398 = vpow.pop %v1397
    %v1399 = vmul.f32 %v1392, 1.442695
    %v1400 = vpow.pop %v1399
    %v1401 = vmul.f32 %v1393, 1.442695
    %v1402 = vpow.pop %v1401
    %v1403 = vmul.f32 %v1394, 1.442695
    %v1404 = vpow.pop %v1403
    %v1405 = vmul.f32 %v1395, 1.442695
    %v1406 = vpow.pop %v1405
    %v1407 = vmul.f32 %v1396, 1.442695
    %v1408 = vpow.pop %v1407
    %v1409 = vsel %vm1371, %v1398, 0.0
    %1410 = vadd.xlane.f32.xlu0 %v1409
    %v1411 = vpop.xlane.xlu0 %1410
    %v1412 = vsel %vm1371, %v1400, 0.0
    %1413 = vadd.xlane.f32.xlu0 %v1412
    %v1414 = vpop.xlane.xlu0 %1413
    %v1415 = vsel %vm1378, %v1402, 0.0
    %1416 = vadd.xlane.f32.xlu0 %v1415
    %v1417 = vpop.xlane.xlu0 %1416
    %v1418 = vsel %vm1371, %v1404, 0.0
    %1419 = vadd.xlane.f32.xlu0 %v1418
    %v1420 = vpop.xlane.xlu0 %1419
    %v1421 = vsel %vm1371, %v1406, 0.0
    %1422 = vadd.xlane.f32.xlu0 %v1421
    %v1423 = vpop.xlane.xlu0 %1422
    %v1424 = vsel %vm1378, %v1408, 0.0
    %1425 = vadd.xlane.f32.xlu0 %v1424
    %v1426 = vpop.xlane.xlu0 %1425
    %v1427 = vrcp.pop %v1411
    %v1428 = vrcp.pop %v1414
    %v1429 = vrcp.pop %v1417
    %v1430 = vrcp.pop %v1420
    %v1431 = vrcp.pop %v1423
    %v1432 = vrcp.pop %v1426
    %v1433 = vmul.f32 %v1398, %v1427
    %v1434 = vmul.f32 %v1400, %v1428
    %v1435 = vmul.f32 %v1402, %v1429
    %v1436 = vmul.f32 %v1404, %v1430
    %v1437 = vmul.f32 %v1406, %v1431
    %v1438 = vmul.f32 %v1408, %v1432
    %1439 = vst [vmem:[#allocation1] ss:$9 sm:$0xff] %v1126
    %s1440 = scalar_lea.vmem [#allocation1], 1
    %1441 = vst [vmem:[%s1440] ss:$9 sm:$0xff] %v1145
    %s1442 = scalar_lea.vmem [#allocation1], 2
    %1443 = vst [vmem:[%s1442] ss:$9 sm:$0xff] %v1146
    %s1444 = scalar_lea.vmem [#allocation1], 3
    %1445 = vst [vmem:[%s1444] ss:$9 sm:$0xff] %v1147
    %s1446 = scalar_lea.vmem [#allocation1], 4
    %1447 = vst [vmem:[%s1446] ss:$9 sm:$0xff] %v1148
    %s1448 = scalar_lea.vmem [#allocation1], 5
    %1449 = vst [vmem:[%s1448] ss:$9 sm:$0xff] %v1149
    %s1450 = scalar_lea.vmem [#allocation1], 6
    %1451 = vst [vmem:[%s1450] ss:$9 sm:$0xff] %v1150
    %s1452 = scalar_lea.vmem [#allocation1], 7
    %1453 = vst [vmem:[%s1452] ss:$9 sm:$0xff] %v1151
    %v1454 = vld [vmem:[#allocation1] sm:$0xff]
    %1455 = vst [vmem:[#allocation1] ss:$9 sm:$0xff] %v1129
    %1456 = vst [vmem:[%s1440] ss:$9 sm:$0xff] %v1152
    %1457 = vst [vmem:[%s1442] ss:$9 sm:$0xff] %v1153
    %1458 = vst [vmem:[%s1444] ss:$9 sm:$0xff] %v1154
    %1459 = vst [vmem:[%s1446] ss:$9 sm:$0xff] %v1155
    %1460 = vst [vmem:[%s1448] ss:$9 sm:$0xff] %v1156
    %1461 = vst [vmem:[%s1450] ss:$9 sm:$0xff] %v1157
    %1462 = vst [vmem:[%s1452] ss:$9 sm:$0xff] %v1158
    %v1463 = vld [vmem:[#allocation1] sm:$0xff]
    %1464 = vst [vmem:[#allocation1] ss:$9 sm:$0xff] %v1132
    %v1465 = vld [vmem:[#allocation1] sm:$0xff]
    %1466 = vrot.lane.b32.xlu0 %v1454, 64
    %v1467 = vpop.permute.xlu0 %1466
    %1468 = vrot.lane.b32.xlu0 %v1463, 64
    %v1469 = vpop.permute.xlu0 %1468
    %1470 = vrot.lane.b32.xlu0 %v1465, 64
    %v1471 = vpop.permute.xlu0 %1470
    %v1475 = vsel %vm1371, %v1433, 0
    %v1478 = vsel %vm1371, %v1434, 0
    %v1481 = vsel %vm1371, %v1435, 0
    %v1483 = vsel %vm339, %v1471, 0
    %1485 = vmatpush.msra.mxu0 0.0
    %1486 = vmatpush.msra.mxu0 0.0
    %1487 = vmatpush.msra.mxu0 0.0
    %1488 = vmatpush.msra.mxu0 0.0
    %1489 = vmatpush.msra.mxu0 0.0
    %1490 = vmatpush.msra.mxu0 0.0
    %1491 = vmatpush.msra.mxu0 0.0
    %1492 = vmatpush.msra.mxu0 0.0
    %1493 = vmatpush.msra.mxu0 0.0
    %1494 = vmatpush.msra.mxu0 0.0
    %1495 = vmatpush.msra.mxu0 0.0
    %1496 = vmatpush.msra.mxu0 0.0
    %1497 = vmatpush.msra.mxu0 0.0
    %1498 = vmatpush.msra.mxu0 %v1483
    %1499 = vmatpush.msra.mxu0 %v1469
    %1500 = vmatpush.msra.mxu0 %v1467
    %1501 = vmatmul.f32.gmra.mxu0 %v1475
    %v1502 = vpop.f32.mrf.mxu0
    %v1503 = vadd.f32 0.0, %v1502
    %1504 = vmatmul.f32.gmra.mxu0 %v1478
    %v1505 = vpop.f32.mrf.mxu0
    %v1506 = vadd.f32 0.0, %v1505
    %1507 = vmatmul.f32.gmra.mxu0 %v1481
    %v1508 = vpop.f32.mrf.mxu0
    %v1509 = vadd.f32 0.0, %v1508
    %1510 = vdwg.mxu0
    %1511 = vst [vmem:[#allocation1] ss:$9 sm:$0xff] %v1159
    %s1512 = scalar_lea.vmem [#allocation1], 1
    %1513 = vst [vmem:[%s1512] ss:$9 sm:$0xff] %v1160
    %s1514 = scalar_lea.vmem [#allocation1], 2
    %1515 = vst [vmem:[%s1514] ss:$9 sm:$0xff] %v1161
    %s1516 = scalar_lea.vmem [#allocation1], 3
    %1517 = vst [vmem:[%s1516] ss:$9 sm:$0xff] %v1162
    %s1518 = scalar_lea.vmem [#allocation1], 4
    %1519 = vst [vmem:[%s1518] ss:$9 sm:$0xff] %v1163
    %s1520 = scalar_lea.vmem [#allocation1], 5
    %1521 = vst [vmem:[%s1520] ss:$9 sm:$0xff] %v1164
    %s1522 = scalar_lea.vmem [#allocation1], 6
    %1523 = vst [vmem:[%s1522] ss:$9 sm:$0xff] %v1165
    %s1524 = scalar_lea.vmem [#allocation1], 7
    %1525 = vst [vmem:[%s1524] ss:$9 sm:$0xff] %v1135
    %v1526 = vld [vmem:[#allocation1] sm:$0xff]
    %1527 = vst [vmem:[#allocation1] ss:$9 sm:$0xff] %v1166
    %1528 = vst [vmem:[%s1512] ss:$9 sm:$0xff] %v1167
    %1529 = vst [vmem:[%s1514] ss:$9 sm:$0xff] %v1168
    %1530 = vst [vmem:[%s1516] ss:$9 sm:$0xff] %v1169
    %1531 = vst [vmem:[%s1518] ss:$9 sm:$0xff] %v1170
    %1532 = vst [vmem:[%s1520] ss:$9 sm:$0xff] %v1171
    %1533 = vst [vmem:[%s1522] ss:$9 sm:$0xff] %v1172
    %1534 = vst [vmem:[%s1524] ss:$9 sm:$0xff] %v1138
    %v1535 = vld [vmem:[#allocation1] sm:$0xff]
    %1536 = vst [vmem:[#allocation1] ss:$9 sm:$0xff] %v1173
    %v1537 = vld [vmem:[#allocation1] sm:$0xff]
    %1538 = vrot.lane.b32.xlu0 %v1526, 64
    %v1539 = vpop.permute.xlu0 %1538
    %1540 = vrot.lane.b32.xlu0 %v1535, 64
    %v1541 = vpop.permute.xlu0 %1540
    %1542 = vrot.lane.b32.xlu0 %v1537, 64
    %v1543 = vpop.permute.xlu0 %1542
    %v1547 = vsel %vm1371, %v1436, 0
    %v1550 = vsel %vm1371, %v1437, 0
    %v1553 = vsel %vm1371, %v1438, 0
    %v1555 = vsel %vm339, %v1543, 0
    %1557 = vmatpush.msra.mxu0 0.0
    %1558 = vmatpush.msra.mxu0 0.0
    %1559 = vmatpush.msra.mxu0 0.0
    %1560 = vmatpush.msra.mxu0 0.0
    %1561 = vmatpush.msra.mxu0 0.0
    %1562 = vmatpush.msra.mxu0 0.0
    %1563 = vmatpush.msra.mxu0 0.0
    %1564 = vmatpush.msra.mxu0 0.0
    %1565 = vmatpush.msra.mxu0 0.0
    %1566 = vmatpush.msra.mxu0 0.0
    %1567 = vmatpush.msra.mxu0 0.0
    %1568 = vmatpush.msra.mxu0 0.0
    %1569 = vmatpush.msra.mxu0 0.0
    %1570 = vmatpush.msra.mxu0 %v1555
    %1571 = vmatpush.msra.mxu0 %v1541
    %1572 = vmatpush.msra.mxu0 %v1539
    %1573 = vmatmul.f32.gmra.mxu0 %v1547
    %v1574 = vpop.f32.mrf.mxu0
    %v1575 = vadd.f32 0.0, %v1574
    %1576 = vmatmul.f32.gmra.mxu0 %v1550
    %v1577 = vpop.f32.mrf.mxu0
    %v1578 = vadd.f32 0.0, %v1577
    %1579 = vmatmul.f32.gmra.mxu0 %v1553
    %v1580 = vpop.f32.mrf.mxu0
    %v1581 = vadd.f32 0.0, %v1580
    %1582 = vdwg.mxu0
    %1583 = vst [vmem:[#allocation1] ss:$9 sm:$0xff] %v1126
    %s1584 = scalar_lea.vmem [#allocation1], 1
    %1585 = vst [vmem:[%s1584] ss:$9 sm:$0xff] %v1145
    %s1586 = scalar_lea.vmem [#allocation1], 2
    %1587 = vst [vmem:[%s1586] ss:$9 sm:$0xff] %v1146
    %s1588 = scalar_lea.vmem [#allocation1], 3
    %1589 = vst [vmem:[%s1588] ss:$9 sm:$0xff] %v1147
    %s1590 = scalar_lea.vmem [#allocation1], 4
    %1591 = vst [vmem:[%s1590] ss:$9 sm:$0xff] %v1148
    %s1592 = scalar_lea.vmem [#allocation1], 5
    %1593 = vst [vmem:[%s1592] ss:$9 sm:$0xff] %v1149
    %s1594 = scalar_lea.vmem [#allocation1], 6
    %1595 = vst [vmem:[%s1594] ss:$9 sm:$0xff] %v1150
    %s1596 = scalar_lea.vmem [#allocation1], 7
    %1597 = vst [vmem:[%s1596] ss:$9 sm:$0xff] %v1151
    %v1598 = vld [vmem:[#allocation1] sm:$0xff]
    %1599 = vst [vmem:[#allocation1] ss:$9 sm:$0xff] %v1129
    %1600 = vst [vmem:[%s1584] ss:$9 sm:$0xff] %v1152
    %1601 = vst [vmem:[%s1586] ss:$9 sm:$0xff] %v1153
    %1602 = vst [vmem:[%s1588] ss:$9 sm:$0xff] %v1154
    %1603 = vst [vmem:[%s1590] ss:$9 sm:$0xff] %v1155
    %1604 = vst [vmem:[%s1592] ss:$9 sm:$0xff] %v1156
    %1605 = vst [vmem:[%s1594] ss:$9 sm:$0xff] %v1157
    %1606 = vst [vmem:[%s1596] ss:$9 sm:$0xff] %v1158
    %v1607 = vld [vmem:[#allocation1] sm:$0xff]
    %1608 = vst [vmem:[#allocation1] ss:$9 sm:$0xff] %v1132
    %v1609 = vld [vmem:[#allocation1] sm:$0xff]
    %1610 = vrot.lane.b32.xlu0 %v1598, 120
    %v1611 = vpop.permute.xlu0 %1610
    %1612 = vrot.lane.b32.xlu0 %v1607, 120
    %v1613 = vpop.permute.xlu0 %1612
    %1614 = vrot.lane.b32.xlu0 %v1609, 120
    %v1615 = vpop.permute.xlu0 %1614
    %1616 = vst [vmem:[#allocation1] ss:$9 sm:$0xff] %v1126
    %s1617 = scalar_lea.vmem [#allocation1], 1
    %1618 = vst [vmem:[%s1617] ss:$9 sm:$0xff] %v1145
    %s1619 = scalar_lea.vmem [#allocation1], 2
    %1620 = vst [vmem:[%s1619] ss:$9 sm:$0xff] %v1146
    %s1621 = scalar_lea.vmem [#allocation1], 3
    %1622 = vst [vmem:[%s1621] ss:$9 sm:$0xff] %v1147
    %s1623 = scalar_lea.vmem [#allocation1], 4
    %1624 = vst [vmem:[%s1623] ss:$9 sm:$0xff] %v1148
    %s1625 = scalar_lea.vmem [#allocation1], 5
    %1626 = vst [vmem:[%s1625] ss:$9 sm:$0xff] %v1149
    %s1627 = scalar_lea.vmem [#allocation1], 6
    %1628 = vst [vmem:[%s1627] ss:$9 sm:$0xff] %v1150
    %s1629 = scalar_lea.vmem [#allocation1], 7
    %1630 = vst [vmem:[%s1629] ss:$9 sm:$0xff] %v1151
    %v1631 = vld [vmem:[#allocation1] sm:$0xff]
    %1632 = vst [vmem:[#allocation1] ss:$9 sm:$0xff] %v1129
    %1633 = vst [vmem:[%s1617] ss:$9 sm:$0xff] %v1152
    %1634 = vst [vmem:[%s1619] ss:$9 sm:$0xff] %v1153
    %1635 = vst [vmem:[%s1621] ss:$9 sm:$0xff] %v1154
    %1636 = vst [vmem:[%s1623] ss:$9 sm:$0xff] %v1155
    %1637 = vst [vmem:[%s1625] ss:$9 sm:$0xff] %v1156
    %1638 = vst [vmem:[%s1627] ss:$9 sm:$0xff] %v1157
    %1639 = vst [vmem:[%s1629] ss:$9 sm:$0xff] %v1158
    %v1640 = vld [vmem:[#allocation1] sm:$0xff]
    %1641 = vst [vmem:[#allocation1] ss:$9 sm:$0xff] %v1132
    %v1642 = vld [vmem:[#allocation1] sm:$0xff]
    %1643 = vrot.lane.b32.xlu0 %v1631, 88
    %v1644 = vpop.permute.xlu0 %1643
    %1645 = vrot.lane.b32.xlu0 %v1640, 88
    %v1646 = vpop.permute.xlu0 %1645
    %1647 = vrot.lane.b32.xlu0 %v1642, 88
    %v1648 = vpop.permute.xlu0 %1647
    %v1649 = vsel %vm1234, %v1611, 0
    %v1651 = vsel %vm1234, %v1613, 0
    %v1653 = vsel %vm1234, %v1615, 0
    %v1655 = vsel %vm1234, %v1644, 0
    %v1657 = vsel %vm1234, %v1646, 0
    %v1659 = vsel %vm1234, %v1648, 0
    %1661 = vmatpush.xpose.msra.mxu0 0.0
    %1662 = vmatpush.xpose.msra.mxu0 0.0
    %1663 = vmatpush.xpose.msra.mxu0 0.0
    %1664 = vmatpush.xpose.msra.mxu0 0.0
    %1665 = vmatpush.xpose.msra.mxu0 0.0
    %1666 = vmatpush.xpose.msra.mxu0 0.0
    %1667 = vmatpush.xpose.msra.mxu0 0.0
    %1668 = vmatpush.xpose.msra.mxu0 0.0
    %1669 = vmatpush.xpose.msra.mxu0 0.0
    %1670 = vmatpush.xpose.msra.mxu0 0.0
    %1671 = vmatpush.xpose.msra.mxu0 0.0
    %1672 = vmatpush.xpose.msra.mxu0 0.0
    %1673 = vmatpush.xpose.msra.mxu0 0.0
    %1674 = vmatpush.xpose.msra.mxu0 %v1659
    %1675 = vmatpush.xpose.msra.mxu0 %v1657
    %1676 = vmatpush.xpose.msra.mxu0 %v1655
    %1677 = vmatmul.f32.gmra.mxu0 %v1649
    %v1678 = vpop.f32.mrf.mxu0
    %v1679 = vadd.f32 %v421, %v1678
    %1680 = vmatmul.f32.gmra.mxu0 %v1651
    %v1681 = vpop.f32.mrf.mxu0
    %v1682 = vadd.f32 %v422, %v1681
    %1683 = vmatmul.f32.gmra.mxu0 %v1653
    %v1684 = vpop.f32.mrf.mxu0
    %v1685 = vadd.f32 %v423, %v1684
    %1686 = vdwg.mxu0
    %1687 = vst [vmem:[#allocation1] ss:$9 sm:$0xff] %v1159
    %s1688 = scalar_lea.vmem [#allocation1], 1
    %1689 = vst [vmem:[%s1688] ss:$9 sm:$0xff] %v1160
    %s1690 = scalar_lea.vmem [#allocation1], 2
    %1691 = vst [vmem:[%s1690] ss:$9 sm:$0xff] %v1161
    %s1692 = scalar_lea.vmem [#allocation1], 3
    %1693 = vst [vmem:[%s1692] ss:$9 sm:$0xff] %v1162
    %s1694 = scalar_lea.vmem [#allocation1], 4
    %1695 = vst [vmem:[%s1694] ss:$9 sm:$0xff] %v1163
    %s1696 = scalar_lea.vmem [#allocation1], 5
    %1697 = vst [vmem:[%s1696] ss:$9 sm:$0xff] %v1164
    %s1698 = scalar_lea.vmem [#allocation1], 6
    %1699 = vst [vmem:[%s1698] ss:$9 sm:$0xff] %v1165
    %s1700 = scalar_lea.vmem [#allocation1], 7
    %1701 = vst [vmem:[%s1700] ss:$9 sm:$0xff] %v1135
    %v1702 = vld [vmem:[#allocation1] sm:$0xff]
    %1703 = vst [vmem:[#allocation1] ss:$9 sm:$0xff] %v1166
    %1704 = vst [vmem:[%s1688] ss:$9 sm:$0xff] %v1167
    %1705 = vst [vmem:[%s1690] ss:$9 sm:$0xff] %v1168
    %1706 = vst [vmem:[%s1692] ss:$9 sm:$0xff] %v1169
    %1707 = vst [vmem:[%s1694] ss:$9 sm:$0xff] %v1170
    %1708 = vst [vmem:[%s1696] ss:$9 sm:$0xff] %v1171
    %1709 = vst [vmem:[%s1698] ss:$9 sm:$0xff] %v1172
    %1710 = vst [vmem:[%s1700] ss:$9 sm:$0xff] %v1138
    %v1711 = vld [vmem:[#allocation1] sm:$0xff]
    %1712 = vst [vmem:[#allocation1] ss:$9 sm:$0xff] %v1173
    %v1713 = vld [vmem:[#allocation1] sm:$0xff]
    %1714 = vrot.lane.b32.xlu0 %v1702, 120
    %v1715 = vpop.permute.xlu0 %1714
    %1716 = vrot.lane.b32.xlu0 %v1711, 120
    %v1717 = vpop.permute.xlu0 %1716
    %1718 = vrot.lane.b32.xlu0 %v1713, 120
    %v1719 = vpop.permute.xlu0 %1718
    %1720 = vst [vmem:[#allocation1] ss:$9 sm:$0xff] %v1159
    %s1721 = scalar_lea.vmem [#allocation1], 1
    %1722 = vst [vmem:[%s1721] ss:$9 sm:$0xff] %v1160
    %s1723 = scalar_lea.vmem [#allocation1], 2
    %1724 = vst [vmem:[%s1723] ss:$9 sm:$0xff] %v1161
    %s1725 = scalar_lea.vmem [#allocation1], 3
    %1726 = vst [vmem:[%s1725] ss:$9 sm:$0xff] %v1162
    %s1727 = scalar_lea.vmem [#allocation1], 4
    %1728 = vst [vmem:[%s1727] ss:$9 sm:$0xff] %v1163
    %s1729 = scalar_lea.vmem [#allocation1], 5
    %1730 = vst [vmem:[%s1729] ss:$9 sm:$0xff] %v1164
    %s1731 = scalar_lea.vmem [#allocation1], 6
    %1732 = vst [vmem:[%s1731] ss:$9 sm:$0xff] %v1165
    %s1733 = scalar_lea.vmem [#allocation1], 7
    %1734 = vst [vmem:[%s1733] ss:$9 sm:$0xff] %v1135
    %v1735 = vld [vmem:[#allocation1] sm:$0xff]
    %1736 = vst [vmem:[#allocation1] ss:$9 sm:$0xff] %v1166
    %1737 = vst [vmem:[%s1721] ss:$9 sm:$0xff] %v1167
    %1738 = vst [vmem:[%s1723] ss:$9 sm:$0xff] %v1168
    %1739 = vst [vmem:[%s1725] ss:$9 sm:$0xff] %v1169
    %1740 = vst [vmem:[%s1727] ss:$9 sm:$0xff] %v1170
    %1741 = vst [vmem:[%s1729] ss:$9 sm:$0xff] %v1171
    %1742 = vst [vmem:[%s1731] ss:$9 sm:$0xff] %v1172
    %1743 = vst [vmem:[%s1733] ss:$9 sm:$0xff] %v1138
    %v1744 = vld [vmem:[#allocation1] sm:$0xff]
    %1745 = vst [vmem:[#allocation1] ss:$9 sm:$0xff] %v1173
    %v1746 = vld [vmem:[#allocation1] sm:$0xff]
    %1747 = vrot.lane.b32.xlu0 %v1735, 88
    %v1748 = vpop.permute.xlu0 %1747
    %1749 = vrot.lane.b32.xlu0 %v1744, 88
    %v1750 = vpop.permute.xlu0 %1749
    %1751 = vrot.lane.b32.xlu0 %v1746, 88
    %v1752 = vpop.permute.xlu0 %1751
    %v1753 = vsel %vm1234, %v1715, 0
    %v1755 = vsel %vm1234, %v1717, 0
    %v1757 = vsel %vm1234, %v1719, 0
    %v1759 = vsel %vm1234, %v1748, 0
    %v1761 = vsel %vm1234, %v1750, 0
    %v1763 = vsel %vm1234, %v1752, 0
    %1765 = vmatpush.xpose.msra.mxu0 0.0
    %1766 = vmatpush.xpose.msra.mxu0 0.0
    %1767 = vmatpush.xpose.msra.mxu0 0.0
    %1768 = vmatpush.xpose.msra.mxu0 0.0
    %1769 = vmatpush.xpose.msra.mxu0 0.0
    %1770 = vmatpush.xpose.msra.mxu0 0.0
    %1771 = vmatpush.xpose.msra.mxu0 0.0
    %1772 = vmatpush.xpose.msra.mxu0 0.0
    %1773 = vmatpush.xpose.msra.mxu0 0.0
    %1774 = vmatpush.xpose.msra.mxu0 0.0
    %1775 = vmatpush.xpose.msra.mxu0 0.0
    %1776 = vmatpush.xpose.msra.mxu0 0.0
    %1777 = vmatpush.xpose.msra.mxu0 0.0
    %1778 = vmatpush.xpose.msra.mxu0 %v1763
    %1779 = vmatpush.xpose.msra.mxu0 %v1761
    %1780 = vmatpush.xpose.msra.mxu0 %v1759
    %1781 = vmatmul.f32.gmra.mxu0 %v1753
    %v1782 = vpop.f32.mrf.mxu0
    %v1783 = vadd.f32 %v421, %v1782
    %1784 = vmatmul.f32.gmra.mxu0 %v1755
    %v1785 = vpop.f32.mrf.mxu0
    %v1786 = vadd.f32 %v422, %v1785
    %1787 = vmatmul.f32.gmra.mxu0 %v1757
    %v1788 = vpop.f32.mrf.mxu0
    %v1789 = vadd.f32 %v423, %v1788
    %1790 = vdwg.mxu0
    %v1791 = vsel %vm1371, %v1679, -inf
    %1792 = vmax.xlane.f32.xlu0 %v1791
    %v1793 = vpop.xlane.xlu0 %1792
    %v1794 = vsel %vm1371, %v1682, -inf
    %1795 = vmax.xlane.f32.xlu0 %v1794
    %v1796 = vpop.xlane.xlu0 %1795
    %v1797 = vsel %vm1378, %v1685, -inf
    %1798 = vmax.xlane.f32.xlu0 %v1797
    %v1799 = vpop.xlane.xlu0 %1798
    %v1800 = vsel %vm1371, %v1783, -inf
    %1801 = vmax.xlane.f32.xlu0 %v1800
    %v1802 = vpop.xlane.xlu0 %1801
    %v1803 = vsel %vm1371, %v1786, -inf
    %1804 = vmax.xlane.f32.xlu0 %v1803
    %v1805 = vpop.xlane.xlu0 %1804
    %v1806 = vsel %vm1378, %v1789, -inf
    %1807 = vmax.xlane.f32.xlu0 %v1806
    %v1808 = vpop.xlane.xlu0 %1807
    %v1809 = vsub.f32 %v1679, %v1793
    %v1810 = vsub.f32 %v1682, %v1796
    %v1811 = vsub.f32 %v1685, %v1799
    %v1812 = vsub.f32 %v1783, %v1802
    %v1813 = vsub.f32 %v1786, %v1805
    %v1814 = vsub.f32 %v1789, %v1808
    %v1815 = vmul.f32 %v1809, 1.442695
    %v1816 = vpow.pop %v1815
    %v1817 = vmul.f32 %v1810, 1.442695
    %v1818 = vpow.pop %v1817
    %v1819 = vmul.f32 %v1811, 1.442695
    %v1820 = vpow.pop %v1819
    %v1821 = vmul.f32 %v1812, 1.442695
    %v1822 = vpow.pop %v1821
    %v1823 = vmul.f32 %v1813, 1.442695
    %v1824 = vpow.pop %v1823
    %v1825 = vmul.f32 %v1814, 1.442695
    %v1826 = vpow.pop %v1825
    %v1827 = vsel %vm1371, %v1816, 0.0
    %1828 = vadd.xlane.f32.xlu0 %v1827
    %v1829 = vpop.xlane.xlu0 %1828
    %v1830 = vsel %vm1371, %v1818, 0.0
    %1831 = vadd.xlane.f32.xlu0 %v1830
    %v1832 = vpop.xlane.xlu0 %1831
    %v1833 = vsel %vm1378, %v1820, 0.0
    %1834 = vadd.xlane.f32.xlu0 %v1833
    %v1835 = vpop.xlane.xlu0 %1834
    %v1836 = vsel %vm1371, %v1822, 0.0
    %1837 = vadd.xlane.f32.xlu0 %v1836
    %v1838 = vpop.xlane.xlu0 %1837
    %v1839 = vsel %vm1371, %v1824, 0.0
    %1840 = vadd.xlane.f32.xlu0 %v1839
    %v1841 = vpop.xlane.xlu0 %1840
    %v1842 = vsel %vm1378, %v1826, 0.0
    %1843 = vadd.xlane.f32.xlu0 %v1842
    %v1844 = vpop.xlane.xlu0 %1843
    %v1845 = vrcp.pop %v1829
    %v1846 = vrcp.pop %v1832
    %v1847 = vrcp.pop %v1835
    %v1848 = vrcp.pop %v1838
    %v1849 = vrcp.pop %v1841
    %v1850 = vrcp.pop %v1844
    %v1851 = vmul.f32 %v1816, %v1845
    %v1852 = vmul.f32 %v1818, %v1846
    %v1853 = vmul.f32 %v1820, %v1847
    %v1854 = vmul.f32 %v1822, %v1848
    %v1855 = vmul.f32 %v1824, %v1849
    %v1856 = vmul.f32 %v1826, %v1850
    %1857 = vst [vmem:[#allocation1] ss:$9 sm:$0xff] %v1126
    %s1858 = scalar_lea.vmem [#allocation1], 1
    %1859 = vst [vmem:[%s1858] ss:$9 sm:$0xff] %v1145
    %s1860 = scalar_lea.vmem [#allocation1], 2
    %1861 = vst [vmem:[%s1860] ss:$9 sm:$0xff] %v1146
    %s1862 = scalar_lea.vmem [#allocation1], 3
    %1863 = vst [vmem:[%s1862] ss:$9 sm:$0xff] %v1147
    %s1864 = scalar_lea.vmem [#allocation1], 4
    %1865 = vst [vmem:[%s1864] ss:$9 sm:$0xff] %v1148
    %s1866 = scalar_lea.vmem [#allocation1], 5
    %1867 = vst [vmem:[%s1866] ss:$9 sm:$0xff] %v1149
    %s1868 = scalar_lea.vmem [#allocation1], 6
    %1869 = vst [vmem:[%s1868] ss:$9 sm:$0xff] %v1150
    %s1870 = scalar_lea.vmem [#allocation1], 7
    %1871 = vst [vmem:[%s1870] ss:$9 sm:$0xff] %v1151
    %v1872 = vld [vmem:[#allocation1] sm:$0xff]
    %1873 = vst [vmem:[#allocation1] ss:$9 sm:$0xff] %v1129
    %1874 = vst [vmem:[%s1858] ss:$9 sm:$0xff] %v1152
    %1875 = vst [vmem:[%s1860] ss:$9 sm:$0xff] %v1153
    %1876 = vst [vmem:[%s1862] ss:$9 sm:$0xff] %v1154
    %1877 = vst [vmem:[%s1864] ss:$9 sm:$0xff] %v1155
    %1878 = vst [vmem:[%s1866] ss:$9 sm:$0xff] %v1156
    %1879 = vst [vmem:[%s1868] ss:$9 sm:$0xff] %v1157
    %1880 = vst [vmem:[%s1870] ss:$9 sm:$0xff] %v1158
    %v1881 = vld [vmem:[#allocation1] sm:$0xff]
    %1882 = vst [vmem:[#allocation1] ss:$9 sm:$0xff] %v1132
    %v1883 = vld [vmem:[#allocation1] sm:$0xff]
    %1884 = vrot.lane.b32.xlu0 %v1872, 56
    %v1885 = vpop.permute.xlu0 %1884
    %1886 = vrot.lane.b32.xlu0 %v1881, 56
    %v1887 = vpop.permute.xlu0 %1886
    %1888 = vrot.lane.b32.xlu0 %v1883, 56
    %v1889 = vpop.permute.xlu0 %1888
    %v1893 = vsel %vm1371, %v1851, 0
    %v1896 = vsel %vm1371, %v1852, 0
    %v1899 = vsel %vm1371, %v1853, 0
    %v1901 = vsel %vm339, %v1889, 0
    %1903 = vmatpush.msra.mxu0 0.0
    %1904 = vmatpush.msra.mxu0 0.0
    %1905 = vmatpush.msra.mxu0 0.0
    %1906 = vmatpush.msra.mxu0 0.0
    %1907 = vmatpush.msra.mxu0 0.0
    %1908 = vmatpush.msra.mxu0 0.0
    %1909 = vmatpush.msra.mxu0 0.0
    %1910 = vmatpush.msra.mxu0 0.0
    %1911 = vmatpush.msra.mxu0 0.0
    %1912 = vmatpush.msra.mxu0 0.0
    %1913 = vmatpush.msra.mxu0 0.0
    %1914 = vmatpush.msra.mxu0 0.0
    %1915 = vmatpush.msra.mxu0 0.0
    %1916 = vmatpush.msra.mxu0 %v1901
    %1917 = vmatpush.msra.mxu0 %v1887
    %1918 = vmatpush.msra.mxu0 %v1885
    %1919 = vmatmul.f32.gmra.mxu0 %v1893
    %v1920 = vpop.f32.mrf.mxu0
    %v1921 = vadd.f32 0.0, %v1920
    %1922 = vmatmul.f32.gmra.mxu0 %v1896
    %v1923 = vpop.f32.mrf.mxu0
    %v1924 = vadd.f32 0.0, %v1923
    %1925 = vmatmul.f32.gmra.mxu0 %v1899
    %v1926 = vpop.f32.mrf.mxu0
    %v1927 = vadd.f32 0.0, %v1926
    %1928 = vdwg.mxu0
    %1929 = vst [vmem:[#allocation1] ss:$9 sm:$0xff] %v1159
    %s1930 = scalar_lea.vmem [#allocation1], 1
    %1931 = vst [vmem:[%s1930] ss:$9 sm:$0xff] %v1160
    %s1932 = scalar_lea.vmem [#allocation1], 2
    %1933 = vst [vmem:[%s1932] ss:$9 sm:$0xff] %v1161
    %s1934 = scalar_lea.vmem [#allocation1], 3
    %1935 = vst [vmem:[%s1934] ss:$9 sm:$0xff] %v1162
    %s1936 = scalar_lea.vmem [#allocation1], 4
    %1937 = vst [vmem:[%s1936] ss:$9 sm:$0xff] %v1163
    %s1938 = scalar_lea.vmem [#allocation1], 5
    %1939 = vst [vmem:[%s1938] ss:$9 sm:$0xff] %v1164
    %s1940 = scalar_lea.vmem [#allocation1], 6
    %1941 = vst [vmem:[%s1940] ss:$9 sm:$0xff] %v1165
    %s1942 = scalar_lea.vmem [#allocation1], 7
    %1943 = vst [vmem:[%s1942] ss:$9 sm:$0xff] %v1135
    %v1944 = vld [vmem:[#allocation1] sm:$0xff]
    %1945 = vst [vmem:[#allocation1] ss:$9 sm:$0xff] %v1166
    %1946 = vst [vmem:[%s1930] ss:$9 sm:$0xff] %v1167
    %1947 = vst [vmem:[%s1932] ss:$9 sm:$0xff] %v1168
    %1948 = vst [vmem:[%s1934] ss:$9 sm:$0xff] %v1169
    %1949 = vst [vmem:[%s1936] ss:$9 sm:$0xff] %v1170
    %1950 = vst [vmem:[%s1938] ss:$9 sm:$0xff] %v1171
    %1951 = vst [vmem:[%s1940] ss:$9 sm:$0xff] %v1172
    %1952 = vst [vmem:[%s1942] ss:$9 sm:$0xff] %v1138
    %v1953 = vld [vmem:[#allocation1] sm:$0xff]
    %1954 = vst [vmem:[#allocation1] ss:$9 sm:$0xff] %v1173
    %v1955 = vld [vmem:[#allocation1] sm:$0xff]
    %1956 = vrot.lane.b32.xlu0 %v1944, 56
    %v1957 = vpop.permute.xlu0 %1956
    %1958 = vrot.lane.b32.xlu0 %v1953, 56
    %v1959 = vpop.permute.xlu0 %1958
    %1960 = vrot.lane.b32.xlu0 %v1955, 56
    %v1961 = vpop.permute.xlu0 %1960
    %v1965 = vsel %vm1371, %v1854, 0
    %v1968 = vsel %vm1371, %v1855, 0
    %v1971 = vsel %vm1371, %v1856, 0
    %v1973 = vsel %vm339, %v1961, 0
    %1975 = vmatpush.msra.mxu0 0.0
    %1976 = vmatpush.msra.mxu0 0.0
    %1977 = vmatpush.msra.mxu0 0.0
    %1978 = vmatpush.msra.mxu0 0.0
    %1979 = vmatpush.msra.mxu0 0.0
    %1980 = vmatpush.msra.mxu0 0.0
    %1981 = vmatpush.msra.mxu0 0.0
    %1982 = vmatpush.msra.mxu0 0.0
    %1983 = vmatpush.msra.mxu0 0.0
    %1984 = vmatpush.msra.mxu0 0.0
    %1985 = vmatpush.msra.mxu0 0.0
    %1986 = vmatpush.msra.mxu0 0.0
    %1987 = vmatpush.msra.mxu0 0.0
    %1988 = vmatpush.msra.mxu0 %v1973
    %1989 = vmatpush.msra.mxu0 %v1959
    %1990 = vmatpush.msra.mxu0 %v1957
    %1991 = vmatmul.f32.gmra.mxu0 %v1965
    %v1992 = vpop.f32.mrf.mxu0
    %v1993 = vadd.f32 0.0, %v1992
    %1994 = vmatmul.f32.gmra.mxu0 %v1968
    %v1995 = vpop.f32.mrf.mxu0
    %v1996 = vadd.f32 0.0, %v1995
    %1997 = vmatmul.f32.gmra.mxu0 %v1971
    %v1998 = vpop.f32.mrf.mxu0
    %v1999 = vadd.f32 0.0, %v1998
    %2000 = vdwg.mxu0
    %2001 = vst [vmem:[#allocation1] ss:$9 sm:$0xff] %v1126
    %s2002 = scalar_lea.vmem [#allocation1], 1
    %2003 = vst [vmem:[%s2002] ss:$9 sm:$0xff] %v1145
    %s2004 = scalar_lea.vmem [#allocation1], 2
    %2005 = vst [vmem:[%s2004] ss:$9 sm:$0xff] %v1146
    %s2006 = scalar_lea.vmem [#allocation1], 3
    %2007 = vst [vmem:[%s2006] ss:$9 sm:$0xff] %v1147
    %s2008 = scalar_lea.vmem [#allocation1], 4
    %2009 = vst [vmem:[%s2008] ss:$9 sm:$0xff] %v1148
    %s2010 = scalar_lea.vmem [#allocation1], 5
    %2011 = vst [vmem:[%s2010] ss:$9 sm:$0xff] %v1149
    %s2012 = scalar_lea.vmem [#allocation1], 6
    %2013 = vst [vmem:[%s2012] ss:$9 sm:$0xff] %v1150
    %s2014 = scalar_lea.vmem [#allocation1], 7
    %2015 = vst [vmem:[%s2014] ss:$9 sm:$0xff] %v1151
    %v2016 = vld [vmem:[#allocation1] sm:$0xff]
    %2017 = vst [vmem:[#allocation1] ss:$9 sm:$0xff] %v1129
    %2018 = vst [vmem:[%s2002] ss:$9 sm:$0xff] %v1152
    %2019 = vst [vmem:[%s2004] ss:$9 sm:$0xff] %v1153
    %2020 = vst [vmem:[%s2006] ss:$9 sm:$0xff] %v1154
    %2021 = vst [vmem:[%s2008] ss:$9 sm:$0xff] %v1155
    %2022 = vst [vmem:[%s2010] ss:$9 sm:$0xff] %v1156
    %2023 = vst [vmem:[%s2012] ss:$9 sm:$0xff] %v1157
    %2024 = vst [vmem:[%s2014] ss:$9 sm:$0xff] %v1158
    %v2025 = vld [vmem:[#allocation1] sm:$0xff]
    %2026 = vst [vmem:[#allocation1] ss:$9 sm:$0xff] %v1132
    %v2027 = vld [vmem:[#allocation1] sm:$0xff]
    %2028 = vrot.lane.b32.xlu0 %v2016, 112
    %v2029 = vpop.permute.xlu0 %2028
    %2030 = vrot.lane.b32.xlu0 %v2025, 112
    %v2031 = vpop.permute.xlu0 %2030
    %2032 = vrot.lane.b32.xlu0 %v2027, 112
    %v2033 = vpop.permute.xlu0 %2032
    %2034 = vst [vmem:[#allocation1] ss:$9 sm:$0xff] %v1126
    %s2035 = scalar_lea.vmem [#allocation1], 1
    %2036 = vst [vmem:[%s2035] ss:$9 sm:$0xff] %v1145
    %s2037 = scalar_lea.vmem [#allocation1], 2
    %2038 = vst [vmem:[%s2037] ss:$9 sm:$0xff] %v1146
    %s2039 = scalar_lea.vmem [#allocation1], 3
    %2040 = vst [vmem:[%s2039] ss:$9 sm:$0xff] %v1147
    %s2041 = scalar_lea.vmem [#allocation1], 4
    %2042 = vst [vmem:[%s2041] ss:$9 sm:$0xff] %v1148
    %s2043 = scalar_lea.vmem [#allocation1], 5
    %2044 = vst [vmem:[%s2043] ss:$9 sm:$0xff] %v1149
    %s2045 = scalar_lea.vmem [#allocation1], 6
    %2046 = vst [vmem:[%s2045] ss:$9 sm:$0xff] %v1150
    %s2047 = scalar_lea.vmem [#allocation1], 7
    %2048 = vst [vmem:[%s2047] ss:$9 sm:$0xff] %v1151
    %v2049 = vld [vmem:[#allocation1] sm:$0xff]
    %2050 = vst [vmem:[#allocation1] ss:$9 sm:$0xff] %v1129
    %2051 = vst [vmem:[%s2035] ss:$9 sm:$0xff] %v1152
    %2052 = vst [vmem:[%s2037] ss:$9 sm:$0xff] %v1153
    %2053 = vst [vmem:[%s2039] ss:$9 sm:$0xff] %v1154
    %2054 = vst [vmem:[%s2041] ss:$9 sm:$0xff] %v1155
    %2055 = vst [vmem:[%s2043] ss:$9 sm:$0xff] %v1156
    %2056 = vst [vmem:[%s2045] ss:$9 sm:$0xff] %v1157
    %2057 = vst [vmem:[%s2047] ss:$9 sm:$0xff] %v1158
    %v2058 = vld [vmem:[#allocation1] sm:$0xff]
    %2059 = vst [vmem:[#allocation1] ss:$9 sm:$0xff] %v1132
    %v2060 = vld [vmem:[#allocation1] sm:$0xff]
    %2061 = vrot.lane.b32.xlu0 %v2049, 80
    %v2062 = vpop.permute.xlu0 %2061
    %2063 = vrot.lane.b32.xlu0 %v2058, 80
    %v2064 = vpop.permute.xlu0 %2063
    %2065 = vrot.lane.b32.xlu0 %v2060, 80
    %v2066 = vpop.permute.xlu0 %2065
    %v2067 = vsel %vm1234, %v2029, 0
    %v2069 = vsel %vm1234, %v2031, 0
    %v2071 = vsel %vm1234, %v2033, 0
    %v2073 = vsel %vm1234, %v2062, 0
    %v2075 = vsel %vm1234, %v2064, 0
    %v2077 = vsel %vm1234, %v2066, 0
    %2079 = vmatpush.xpose.msra.mxu0 0.0
    %2080 = vmatpush.xpose.msra.mxu0 0.0
    %2081 = vmatpush.xpose.msra.mxu0 0.0
    %2082 = vmatpush.xpose.msra.mxu0 0.0
    %2083 = vmatpush.xpose.msra.mxu0 0.0
    %2084 = vmatpush.xpose.msra.mxu0 0.0
    %2085 = vmatpush.xpose.msra.mxu0 0.0
    %2086 = vmatpush.xpose.msra.mxu0 0.0
    %2087 = vmatpush.xpose.msra.mxu0 0.0
    %2088 = vmatpush.xpose.msra.mxu0 0.0
    %2089 = vmatpush.xpose.msra.mxu0 0.0
    %2090 = vmatpush.xpose.msra.mxu0 0.0
    %2091 = vmatpush.xpose.msra.mxu0 0.0
    %2092 = vmatpush.xpose.msra.mxu0 %v2077
    %2093 = vmatpush.xpose.msra.mxu0 %v2075
    %2094 = vmatpush.xpose.msra.mxu0 %v2073
    %2095 = vmatmul.f32.gmra.mxu0 %v2067
    %v2096 = vpop.f32.mrf.mxu0
    %v2097 = vadd.f32 %v421, %v2096
    %2098 = vmatmul.f32.gmra.mxu0 %v2069
    %v2099 = vpop.f32.mrf.mxu0
    %v2100 = vadd.f32 %v422, %v2099
    %2101 = vmatmul.f32.gmra.mxu0 %v2071
    %v2102 = vpop.f32.mrf.mxu0
    %v2103 = vadd.f32 %v423, %v2102
    %2104 = vdwg.mxu0
    %2105 = vst [vmem:[#allocation1] ss:$9 sm:$0xff] %v1159
    %s2106 = scalar_lea.vmem [#allocation1], 1
    %2107 = vst [vmem:[%s2106] ss:$9 sm:$0xff] %v1160
    %s2108 = scalar_lea.vmem [#allocation1], 2
    %2109 = vst [vmem:[%s2108] ss:$9 sm:$0xff] %v1161
    %s2110 = scalar_lea.vmem [#allocation1], 3
    %2111 = vst [vmem:[%s2110] ss:$9 sm:$0xff] %v1162
    %s2112 = scalar_lea.vmem [#allocation1], 4
    %2113 = vst [vmem:[%s2112] ss:$9 sm:$0xff] %v1163
    %s2114 = scalar_lea.vmem [#allocation1], 5
    %2115 = vst [vmem:[%s2114] ss:$9 sm:$0xff] %v1164
    %s2116 = scalar_lea.vmem [#allocation1], 6
    %2117 = vst [vmem:[%s2116] ss:$9 sm:$0xff] %v1165
    %s2118 = scalar_lea.vmem [#allocation1], 7
    %2119 = vst [vmem:[%s2118] ss:$9 sm:$0xff] %v1135
    %v2120 = vld [vmem:[#allocation1] sm:$0xff]
    %2121 = vst [vmem:[#allocation1] ss:$9 sm:$0xff] %v1166
    %2122 = vst [vmem:[%s2106] ss:$9 sm:$0xff] %v1167
    %2123 = vst [vmem:[%s2108] ss:$9 sm:$0xff] %v1168
    %2124 = vst [vmem:[%s2110] ss:$9 sm:$0xff] %v1169
    %2125 = vst [vmem:[%s2112] ss:$9 sm:$0xff] %v1170
    %2126 = vst [vmem:[%s2114] ss:$9 sm:$0xff] %v1171
    %2127 = vst [vmem:[%s2116] ss:$9 sm:$0xff] %v1172
    %2128 = vst [vmem:[%s2118] ss:$9 sm:$0xff] %v1138
    %v2129 = vld [vmem:[#allocation1] sm:$0xff]
    %2130 = vst [vmem:[#allocation1] ss:$9 sm:$0xff] %v1173
    %v2131 = vld [vmem:[#allocation1] sm:$0xff]
    %2132 = vrot.lane.b32.xlu0 %v2120, 112
    %v2133 = vpop.permute.xlu0 %2132
    %2134 = vrot.lane.b32.xlu0 %v2129, 112
    %v2135 = vpop.permute.xlu0 %2134
    %2136 = vrot.lane.b32.xlu0 %v2131, 112
    %v2137 = vpop.permute.xlu0 %2136
    %2138 = vst [vmem:[#allocation1] ss:$9 sm:$0xff] %v1159
    %s2139 = scalar_lea.vmem [#allocation1], 1
    %2140 = vst [vmem:[%s2139] ss:$9 sm:$0xff] %v1160
    %s2141 = scalar_lea.vmem [#allocation1], 2
    %2142 = vst [vmem:[%s2141] ss:$9 sm:$0xff] %v1161
    %s2143 = scalar_lea.vmem [#allocation1], 3
    %2144 = vst [vmem:[%s2143] ss:$9 sm:$0xff] %v1162
    %s2145 = scalar_lea.vmem [#allocation1], 4
    %2146 = vst [vmem:[%s2145] ss:$9 sm:$0xff] %v1163
    %s2147 = scalar_lea.vmem [#allocation1], 5
    %2148 = vst [vmem:[%s2147] ss:$9 sm:$0xff] %v1164
    %s2149 = scalar_lea.vmem [#allocation1], 6
    %2150 = vst [vmem:[%s2149] ss:$9 sm:$0xff] %v1165
    %s2151 = scalar_lea.vmem [#allocation1], 7
    %2152 = vst [vmem:[%s2151] ss:$9 sm:$0xff] %v1135
    %v2153 = vld [vmem:[#allocation1] sm:$0xff]
    %2154 = vst [vmem:[#allocation1] ss:$9 sm:$0xff] %v1166
    %2155 = vst [vmem:[%s2139] ss:$9 sm:$0xff] %v1167
    %2156 = vst [vmem:[%s2141] ss:$9 sm:$0xff] %v1168
    %2157 = vst [vmem:[%s2143] ss:$9 sm:$0xff] %v1169
    %2158 = vst [vmem:[%s2145] ss:$9 sm:$0xff] %v1170
    %2159 = vst [vmem:[%s2147] ss:$9 sm:$0xff] %v1171
    %2160 = vst [vmem:[%s2149] ss:$9 sm:$0xff] %v1172
    %2161 = vst [vmem:[%s2151] ss:$9 sm:$0xff] %v1138
    %v2162 = vld [vmem:[#allocation1] sm:$0xff]
    %2163 = vst [vmem:[#allocation1] ss:$9 sm:$0xff] %v1173
    %v2164 = vld [vmem:[#allocation1] sm:$0xff]
    %2165 = vrot.lane.b32.xlu0 %v2153, 80
    %v2166 = vpop.permute.xlu0 %2165
    %2167 = vrot.lane.b32.xlu0 %v2162, 80
    %v2168 = vpop.permute.xlu0 %2167
    %2169 = vrot.lane.b32.xlu0 %v2164, 80
    %v2170 = vpop.permute.xlu0 %2169
    %v2171 = vsel %vm1234, %v2133, 0
    %v2173 = vsel %vm1234, %v2135, 0
    %v2175 = vsel %vm1234, %v2137, 0
    %v2177 = vsel %vm1234, %v2166, 0
    %v2179 = vsel %vm1234, %v2168, 0
    %v2181 = vsel %vm1234, %v2170, 0
    %2183 = vmatpush.xpose.msra.mxu0 0.0
    %2184 = vmatpush.xpose.msra.mxu0 0.0
    %2185 = vmatpush.xpose.msra.mxu0 0.0
    %2186 = vmatpush.xpose.msra.mxu0 0.0
    %2187 = vmatpush.xpose.msra.mxu0 0.0
    %2188 = vmatpush.xpose.msra.mxu0 0.0
    %2189 = vmatpush.xpose.msra.mxu0 0.0
    %2190 = vmatpush.xpose.msra.mxu0 0.0
    %2191 = vmatpush.xpose.msra.mxu0 0.0
    %2192 = vmatpush.xpose.msra.mxu0 0.0
    %2193 = vmatpush.xpose.msra.mxu0 0.0
    %2194 = vmatpush.xpose.msra.mxu0 0.0
    %2195 = vmatpush.xpose.msra.mxu0 0.0
    %2196 = vmatpush.xpose.msra.mxu0 %v2181
    %2197 = vmatpush.xpose.msra.mxu0 %v2179
    %2198 = vmatpush.xpose.msra.mxu0 %v2177
    %2199 = vmatmul.f32.gmra.mxu0 %v2171
    %v2200 = vpop.f32.mrf.mxu0
    %v2201 = vadd.f32 %v421, %v2200
    %2202 = vmatmul.f32.gmra.mxu0 %v2173
    %v2203 = vpop.f32.mrf.mxu0
    %v2204 = vadd.f32 %v422, %v2203
    %2205 = vmatmul.f32.gmra.mxu0 %v2175
    %v2206 = vpop.f32.mrf.mxu0
    %v2207 = vadd.f32 %v423, %v2206
    %2208 = vdwg.mxu0
    %v2209 = vsel %vm1371, %v2097, -inf
    %2210 = vmax.xlane.f32.xlu0 %v2209
    %v2211 = vpop.xlane.xlu0 %2210
    %v2212 = vsel %vm1371, %v2100, -inf
    %2213 = vmax.xlane.f32.xlu0 %v2212
    %v2214 = vpop.xlane.xlu0 %2213
    %v2215 = vsel %vm1378, %v2103, -inf
    %2216 = vmax.xlane.f32.xlu0 %v2215
    %v2217 = vpop.xlane.xlu0 %2216
    %v2218 = vsel %vm1371, %v2201, -inf
    %2219 = vmax.xlane.f32.xlu0 %v2218
    %v2220 = vpop.xlane.xlu0 %2219
    %v2221 = vsel %vm1371, %v2204, -inf
    %2222 = vmax.xlane.f32.xlu0 %v2221
    %v2223 = vpop.xlane.xlu0 %2222
    %v2224 = vsel %vm1378, %v2207, -inf
    %2225 = vmax.xlane.f32.xlu0 %v2224
    %v2226 = vpop.xlane.xlu0 %2225
    %v2227 = vsub.f32 %v2097, %v2211
    %v2228 = vsub.f32 %v2100, %v2214
    %v2229 = vsub.f32 %v2103, %v2217
    %v2230 = vsub.f32 %v2201, %v2220
    %v2231 = vsub.f32 %v2204, %v2223
    %v2232 = vsub.f32 %v2207, %v2226
    %v2233 = vmul.f32 %v2227, 1.442695
    %v2234 = vpow.pop %v2233
    %v2235 = vmul.f32 %v2228, 1.442695
    %v2236 = vpow.pop %v2235
    %v2237 = vmul.f32 %v2229, 1.442695
    %v2238 = vpow.pop %v2237
    %v2239 = vmul.f32 %v2230, 1.442695
    %v2240 = vpow.pop %v2239
    %v2241 = vmul.f32 %v2231, 1.442695
    %v2242 = vpow.pop %v2241
    %v2243 = vmul.f32 %v2232, 1.442695
    %v2244 = vpow.pop %v2243
    %v2245 = vsel %vm1371, %v2234, 0.0
    %2246 = vadd.xlane.f32.xlu0 %v2245
    %v2247 = vpop.xlane.xlu0 %2246
    %v2248 = vsel %vm1371, %v2236, 0.0
    %2249 = vadd.xlane.f32.xlu0 %v2248
    %v2250 = vpop.xlane.xlu0 %2249
    %v2251 = vsel %vm1378, %v2238, 0.0
    %2252 = vadd.xlane.f32.xlu0 %v2251
    %v2253 = vpop.xlane.xlu0 %2252
    %v2254 = vsel %vm1371, %v2240, 0.0
    %2255 = vadd.xlane.f32.xlu0 %v2254
    %v2256 = vpop.xlane.xlu0 %2255
    %v2257 = vsel %vm1371, %v2242, 0.0
    %2258 = vadd.xlane.f32.xlu0 %v2257
    %v2259 = vpop.xlane.xlu0 %2258
    %v2260 = vsel %vm1378, %v2244, 0.0
    %2261 = vadd.xlane.f32.xlu0 %v2260
    %v2262 = vpop.xlane.xlu0 %2261
    %v2263 = vrcp.pop %v2247
    %v2264 = vrcp.pop %v2250
    %v2265 = vrcp.pop %v2253
    %v2266 = vrcp.pop %v2256
    %v2267 = vrcp.pop %v2259
    %v2268 = vrcp.pop %v2262
    %v2269 = vmul.f32 %v2234, %v2263
    %v2270 = vmul.f32 %v2236, %v2264
    %v2271 = vmul.f32 %v2238, %v2265
    %v2272 = vmul.f32 %v2240, %v2266
    %v2273 = vmul.f32 %v2242, %v2267
    %v2274 = vmul.f32 %v2244, %v2268
    %2275 = vst [vmem:[#allocation1] ss:$9 sm:$0xff] %v1126
    %s2276 = scalar_lea.vmem [#allocation1], 1
    %2277 = vst [vmem:[%s2276] ss:$9 sm:$0xff] %v1145
    %s2278 = scalar_lea.vmem [#allocation1], 2
    %2279 = vst [vmem:[%s2278] ss:$9 sm:$0xff] %v1146
    %s2280 = scalar_lea.vmem [#allocation1], 3
    %2281 = vst [vmem:[%s2280] ss:$9 sm:$0xff] %v1147
    %s2282 = scalar_lea.vmem [#allocation1], 4
    %2283 = vst [vmem:[%s2282] ss:$9 sm:$0xff] %v1148
    %s2284 = scalar_lea.vmem [#allocation1], 5
    %2285 = vst [vmem:[%s2284] ss:$9 sm:$0xff] %v1149
    %s2286 = scalar_lea.vmem [#allocation1], 6
    %2287 = vst [vmem:[%s2286] ss:$9 sm:$0xff] %v1150
    %s2288 = scalar_lea.vmem [#allocation1], 7
    %2289 = vst [vmem:[%s2288] ss:$9 sm:$0xff] %v1151
    %v2290 = vld [vmem:[#allocation1] sm:$0xff]
    %2291 = vst [vmem:[#allocation1] ss:$9 sm:$0xff] %v1129
    %2292 = vst [vmem:[%s2276] ss:$9 sm:$0xff] %v1152
    %2293 = vst [vmem:[%s2278] ss:$9 sm:$0xff] %v1153
    %2294 = vst [vmem:[%s2280] ss:$9 sm:$0xff] %v1154
    %2295 = vst [vmem:[%s2282] ss:$9 sm:$0xff] %v1155
    %2296 = vst [vmem:[%s2284] ss:$9 sm:$0xff] %v1156
    %2297 = vst [vmem:[%s2286] ss:$9 sm:$0xff] %v1157
    %2298 = vst [vmem:[%s2288] ss:$9 sm:$0xff] %v1158
    %v2299 = vld [vmem:[#allocation1] sm:$0xff]
    %2300 = vst [vmem:[#allocation1] ss:$9 sm:$0xff] %v1132
    %v2301 = vld [vmem:[#allocation1] sm:$0xff]
    %2302 = vrot.lane.b32.xlu0 %v2290, 48
    %v2303 = vpop.permute.xlu0 %2302
    %2304 = vrot.lane.b32.xlu0 %v2299, 48
    %v2305 = vpop.permute.xlu0 %2304
    %2306 = vrot.lane.b32.xlu0 %v2301, 48
    %v2307 = vpop.permute.xlu0 %2306
    %v2311 = vsel %vm1371, %v2269, 0
    %v2314 = vsel %vm1371, %v2270, 0
    %v2317 = vsel %vm1371, %v2271, 0
    %v2319 = vsel %vm339, %v2307, 0
    %2321 = vmatpush.msra.mxu0 0.0
    %2322 = vmatpush.msra.mxu0 0.0
    %2323 = vmatpush.msra.mxu0 0.0
    %2324 = vmatpush.msra.mxu0 0.0
    %2325 = vmatpush.msra.mxu0 0.0
    %2326 = vmatpush.msra.mxu0 0.0
    %2327 = vmatpush.msra.mxu0 0.0
    %2328 = vmatpush.msra.mxu0 0.0
    %2329 = vmatpush.msra.mxu0 0.0
    %2330 = vmatpush.msra.mxu0 0.0
    %2331 = vmatpush.msra.mxu0 0.0
    %2332 = vmatpush.msra.mxu0 0.0
    %2333 = vmatpush.msra.mxu0 0.0
    %2334 = vmatpush.msra.mxu0 %v2319
    %2335 = vmatpush.msra.mxu0 %v2305
    %2336 = vmatpush.msra.mxu0 %v2303
    %2337 = vmatmul.f32.gmra.mxu0 %v2311
    %v2338 = vpop.f32.mrf.mxu0
    %v2339 = vadd.f32 0.0, %v2338
    %2340 = vmatmul.f32.gmra.mxu0 %v2314
    %v2341 = vpop.f32.mrf.mxu0
    %v2342 = vadd.f32 0.0, %v2341
    %2343 = vmatmul.f32.gmra.mxu0 %v2317
    %v2344 = vpop.f32.mrf.mxu0
    %v2345 = vadd.f32 0.0, %v2344
    %2346 = vdwg.mxu0
    %2347 = vst [vmem:[#allocation1] ss:$9 sm:$0xff] %v1159
    %s2348 = scalar_lea.vmem [#allocation1], 1
    %2349 = vst [vmem:[%s2348] ss:$9 sm:$0xff] %v1160
    %s2350 = scalar_lea.vmem [#allocation1], 2
    %2351 = vst [vmem:[%s2350] ss:$9 sm:$0xff] %v1161
    %s2352 = scalar_lea.vmem [#allocation1], 3
    %2353 = vst [vmem:[%s2352] ss:$9 sm:$0xff] %v1162
    %s2354 = scalar_lea.vmem [#allocation1], 4
    %2355 = vst [vmem:[%s2354] ss:$9 sm:$0xff] %v1163
    %s2356 = scalar_lea.vmem [#allocation1], 5
    %2357 = vst [vmem:[%s2356] ss:$9 sm:$0xff] %v1164
    %s2358 = scalar_lea.vmem [#allocation1], 6
    %2359 = vst [vmem:[%s2358] ss:$9 sm:$0xff] %v1165
    %s2360 = scalar_lea.vmem [#allocation1], 7
    %2361 = vst [vmem:[%s2360] ss:$9 sm:$0xff] %v1135
    %v2362 = vld [vmem:[#allocation1] sm:$0xff]
    %2363 = vst [vmem:[#allocation1] ss:$9 sm:$0xff] %v1166
    %2364 = vst [vmem:[%s2348] ss:$9 sm:$0xff] %v1167
    %2365 = vst [vmem:[%s2350] ss:$9 sm:$0xff] %v1168
    %2366 = vst [vmem:[%s2352] ss:$9 sm:$0xff] %v1169
    %2367 = vst [vmem:[%s2354] ss:$9 sm:$0xff] %v1170
    %2368 = vst [vmem:[%s2356] ss:$9 sm:$0xff] %v1171
    %2369 = vst [vmem:[%s2358] ss:$9 sm:$0xff] %v1172
    %2370 = vst [vmem:[%s2360] ss:$9 sm:$0xff] %v1138
    %v2371 = vld [vmem:[#allocation1] sm:$0xff]
    %2372 = vst [vmem:[#allocation1] ss:$9 sm:$0xff] %v1173
    %v2373 = vld [vmem:[#allocation1] sm:$0xff]
    %2374 = vrot.lane.b32.xlu0 %v2362, 48
    %v2375 = vpop.permute.xlu0 %2374
    %2376 = vrot.lane.b32.xlu0 %v2371, 48
    %v2377 = vpop.permute.xlu0 %2376
    %2378 = vrot.lane.b32.xlu0 %v2373, 48
    %v2379 = vpop.permute.xlu0 %2378
    %v2383 = vsel %vm1371, %v2272, 0
    %v2386 = vsel %vm1371, %v2273, 0
    %v2389 = vsel %vm1371, %v2274, 0
    %v2391 = vsel %vm339, %v2379, 0
    %2393 = vmatpush.msra.mxu0 0.0
    %2394 = vmatpush.msra.mxu0 0.0
    %2395 = vmatpush.msra.mxu0 0.0
    %2396 = vmatpush.msra.mxu0 0.0
    %2397 = vmatpush.msra.mxu0 0.0
    %2398 = vmatpush.msra.mxu0 0.0
    %2399 = vmatpush.msra.mxu0 0.0
    %2400 = vmatpush.msra.mxu0 0.0
    %2401 = vmatpush.msra.mxu0 0.0
    %2402 = vmatpush.msra.mxu0 0.0
    %2403 = vmatpush.msra.mxu0 0.0
    %2404 = vmatpush.msra.mxu0 0.0
    %2405 = vmatpush.msra.mxu0 0.0
    %2406 = vmatpush.msra.mxu0 %v2391
    %2407 = vmatpush.msra.mxu0 %v2377
    %2408 = vmatpush.msra.mxu0 %v2375
    %2409 = vmatmul.f32.gmra.mxu0 %v2383
    %v2410 = vpop.f32.mrf.mxu0
    %v2411 = vadd.f32 0.0, %v2410
    %2412 = vmatmul.f32.gmra.mxu0 %v2386
    %v2413 = vpop.f32.mrf.mxu0
    %v2414 = vadd.f32 0.0, %v2413
    %2415 = vmatmul.f32.gmra.mxu0 %v2389
    %v2416 = vpop.f32.mrf.mxu0
    %v2417 = vadd.f32 0.0, %v2416
    %2418 = vdwg.mxu0
    %2419 = vst [vmem:[#allocation1] ss:$9 sm:$0xff] %v1126
    %s2420 = scalar_lea.vmem [#allocation1], 1
    %2421 = vst [vmem:[%s2420] ss:$9 sm:$0xff] %v1145
    %s2422 = scalar_lea.vmem [#allocation1], 2
    %2423 = vst [vmem:[%s2422] ss:$9 sm:$0xff] %v1146
    %s2424 = scalar_lea.vmem [#allocation1], 3
    %2425 = vst [vmem:[%s2424] ss:$9 sm:$0xff] %v1147
    %s2426 = scalar_lea.vmem [#allocation1], 4
    %2427 = vst [vmem:[%s2426] ss:$9 sm:$0xff] %v1148
    %s2428 = scalar_lea.vmem [#allocation1], 5
    %2429 = vst [vmem:[%s2428] ss:$9 sm:$0xff] %v1149
    %s2430 = scalar_lea.vmem [#allocation1], 6
    %2431 = vst [vmem:[%s2430] ss:$9 sm:$0xff] %v1150
    %s2432 = scalar_lea.vmem [#allocation1], 7
    %2433 = vst [vmem:[%s2432] ss:$9 sm:$0xff] %v1151
    %v2434 = vld [vmem:[#allocation1] sm:$0xff]
    %2435 = vst [vmem:[#allocation1] ss:$9 sm:$0xff] %v1129
    %2436 = vst [vmem:[%s2420] ss:$9 sm:$0xff] %v1152
    %2437 = vst [vmem:[%s2422] ss:$9 sm:$0xff] %v1153
    %2438 = vst [vmem:[%s2424] ss:$9 sm:$0xff] %v1154
    %2439 = vst [vmem:[%s2426] ss:$9 sm:$0xff] %v1155
    %2440 = vst [vmem:[%s2428] ss:$9 sm:$0xff] %v1156
    %2441 = vst [vmem:[%s2430] ss:$9 sm:$0xff] %v1157
    %2442 = vst [vmem:[%s2432] ss:$9 sm:$0xff] %v1158
    %v2443 = vld [vmem:[#allocation1] sm:$0xff]
    %2444 = vst [vmem:[#allocation1] ss:$9 sm:$0xff] %v1132
    %v2445 = vld [vmem:[#allocation1] sm:$0xff]
    %2446 = vrot.lane.b32.xlu0 %v2434, 104
    %v2447 = vpop.permute.xlu0 %2446
    %2448 = vrot.lane.b32.xlu0 %v2443, 104
    %v2449 = vpop.permute.xlu0 %2448
    %2450 = vrot.lane.b32.xlu0 %v2445, 104
    %v2451 = vpop.permute.xlu0 %2450
    %2452 = vst [vmem:[#allocation1] ss:$9 sm:$0xff] %v1126
    %s2453 = scalar_lea.vmem [#allocation1], 1
    %2454 = vst [vmem:[%s2453] ss:$9 sm:$0xff] %v1145
    %s2455 = scalar_lea.vmem [#allocation1], 2
    %2456 = vst [vmem:[%s2455] ss:$9 sm:$0xff] %v1146
    %s2457 = scalar_lea.vmem [#allocation1], 3
    %2458 = vst [vmem:[%s2457] ss:$9 sm:$0xff] %v1147
    %s2459 = scalar_lea.vmem [#allocation1], 4
    %2460 = vst [vmem:[%s2459] ss:$9 sm:$0xff] %v1148
    %s2461 = scalar_lea.vmem [#allocation1], 5
    %2462 = vst [vmem:[%s2461] ss:$9 sm:$0xff] %v1149
    %s2463 = scalar_lea.vmem [#allocation1], 6
    %2464 = vst [vmem:[%s2463] ss:$9 sm:$0xff] %v1150
    %s2465 = scalar_lea.vmem [#allocation1], 7
    %2466 = vst [vmem:[%s2465] ss:$9 sm:$0xff] %v1151
    %v2467 = vld [vmem:[#allocation1] sm:$0xff]
    %2468 = vst [vmem:[#allocation1] ss:$9 sm:$0xff] %v1129
    %2469 = vst [vmem:[%s2453] ss:$9 sm:$0xff] %v1152
    %2470 = vst [vmem:[%s2455] ss:$9 sm:$0xff] %v1153
    %2471 = vst [vmem:[%s2457] ss:$9 sm:$0xff] %v1154
    %2472 = vst [vmem:[%s2459] ss:$9 sm:$0xff] %v1155
    %2473 = vst [vmem:[%s2461] ss:$9 sm:$0xff] %v1156
    %2474 = vst [vmem:[%s2463] ss:$9 sm:$0xff] %v1157
    %2475 = vst [vmem:[%s2465] ss:$9 sm:$0xff] %v1158
    %v2476 = vld [vmem:[#allocation1] sm:$0xff]
    %2477 = vst [vmem:[#allocation1] ss:$9 sm:$0xff] %v1132
    %v2478 = vld [vmem:[#allocation1] sm:$0xff]
    %2479 = vrot.lane.b32.xlu0 %v2467, 72
    %v2480 = vpop.permute.xlu0 %2479
    %2481 = vrot.lane.b32.xlu0 %v2476, 72
    %v2482 = vpop.permute.xlu0 %2481
    %2483 = vrot.lane.b32.xlu0 %v2478, 72
    %v2484 = vpop.permute.xlu0 %2483
    %v2485 = vsel %vm1234, %v2447, 0
    %v2487 = vsel %vm1234, %v2449, 0
    %v2489 = vsel %vm1234, %v2451, 0
    %v2491 = vsel %vm1234, %v2480, 0
    %v2493 = vsel %vm1234, %v2482, 0
    %v2495 = vsel %vm1234, %v2484, 0
    %2497 = vmatpush.xpose.msra.mxu0 0.0
    %2498 = vmatpush.xpose.msra.mxu0 0.0
    %2499 = vmatpush.xpose.msra.mxu0 0.0
    %2500 = vmatpush.xpose.msra.mxu0 0.0
    %2501 = vmatpush.xpose.msra.mxu0 0.0
    %2502 = vmatpush.xpose.msra.mxu0 0.0
    %2503 = vmatpush.xpose.msra.mxu0 0.0
    %2504 = vmatpush.xpose.msra.mxu0 0.0
    %2505 = vmatpush.xpose.msra.mxu0 0.0
    %2506 = vmatpush.xpose.msra.mxu0 0.0
    %2507 = vmatpush.xpose.msra.mxu0 0.0
    %2508 = vmatpush.xpose.msra.mxu0 0.0
    %2509 = vmatpush.xpose.msra.mxu0 0.0
    %2510 = vmatpush.xpose.msra.mxu0 %v2495
    %2511 = vmatpush.xpose.msra.mxu0 %v2493
    %2512 = vmatpush.xpose.msra.mxu0 %v2491
    %2513 = vmatmul.f32.gmra.mxu0 %v2485
    %v2514 = vpop.f32.mrf.mxu0
    %v2515 = vadd.f32 %v421, %v2514
    %2516 = vmatmul.f32.gmra.mxu0 %v2487
    %v2517 = vpop.f32.mrf.mxu0
    %v2518 = vadd.f32 %v422, %v2517
    %2519 = vmatmul.f32.gmra.mxu0 %v2489
    %v2520 = vpop.f32.mrf.mxu0
    %v2521 = vadd.f32 %v423, %v2520
    %2522 = vdwg.mxu0
    %2523 = vst [vmem:[#allocation1] ss:$9 sm:$0xff] %v1159
    %s2524 = scalar_lea.vmem [#allocation1], 1
    %2525 = vst [vmem:[%s2524] ss:$9 sm:$0xff] %v1160
    %s2526 = scalar_lea.vmem [#allocation1], 2
    %2527 = vst [vmem:[%s2526] ss:$9 sm:$0xff] %v1161
    %s2528 = scalar_lea.vmem [#allocation1], 3
    %2529 = vst [vmem:[%s2528] ss:$9 sm:$0xff] %v1162
    %s2530 = scalar_lea.vmem [#allocation1], 4
    %2531 = vst [vmem:[%s2530] ss:$9 sm:$0xff] %v1163
    %s2532 = scalar_lea.vmem [#allocation1], 5
    %2533 = vst [vmem:[%s2532] ss:$9 sm:$0xff] %v1164
    %s2534 = scalar_lea.vmem [#allocation1], 6
    %2535 = vst [vmem:[%s2534] ss:$9 sm:$0xff] %v1165
    %s2536 = scalar_lea.vmem [#allocation1], 7
    %2537 = vst [vmem:[%s2536] ss:$9 sm:$0xff] %v1135
    %v2538 = vld [vmem:[#allocation1] sm:$0xff]
    %2539 = vst [vmem:[#allocation1] ss:$9 sm:$0xff] %v1166
    %2540 = vst [vmem:[%s2524] ss:$9 sm:$0xff] %v1167
    %2541 = vst [vmem:[%s2526] ss:$9 sm:$0xff] %v1168
    %2542 = vst [vmem:[%s2528] ss:$9 sm:$0xff] %v1169
    %2543 = vst [vmem:[%s2530] ss:$9 sm:$0xff] %v1170
    %2544 = vst [vmem:[%s2532] ss:$9 sm:$0xff] %v1171
    %2545 = vst [vmem:[%s2534] ss:$9 sm:$0xff] %v1172
    %2546 = vst [vmem:[%s2536] ss:$9 sm:$0xff] %v1138
    %v2547 = vld [vmem:[#allocation1] sm:$0xff]
    %2548 = vst [vmem:[#allocation1] ss:$9 sm:$0xff] %v1173
    %v2549 = vld [vmem:[#allocation1] sm:$0xff]
    %2550 = vrot.lane.b32.xlu0 %v2538, 104
    %v2551 = vpop.permute.xlu0 %2550
    %2552 = vrot.lane.b32.xlu0 %v2547, 104
    %v2553 = vpop.permute.xlu0 %2552
    %2554 = vrot.lane.b32.xlu0 %v2549, 104
    %v2555 = vpop.permute.xlu0 %2554
    %2556 = vst [vmem:[#allocation1] ss:$9 sm:$0xff] %v1159
    %s2557 = scalar_lea.vmem [#allocation1], 1
    %2558 = vst [vmem:[%s2557] ss:$9 sm:$0xff] %v1160
    %s2559 = scalar_lea.vmem [#allocation1], 2
    %2560 = vst [vmem:[%s2559] ss:$9 sm:$0xff] %v1161
    %s2561 = scalar_lea.vmem [#allocation1], 3
    %2562 = vst [vmem:[%s2561] ss:$9 sm:$0xff] %v1162
    %s2563 = scalar_lea.vmem [#allocation1], 4
    %2564 = vst [vmem:[%s2563] ss:$9 sm:$0xff] %v1163
    %s2565 = scalar_lea.vmem [#allocation1], 5
    %2566 = vst [vmem:[%s2565] ss:$9 sm:$0xff] %v1164
    %s2567 = scalar_lea.vmem [#allocation1], 6
    %2568 = vst [vmem:[%s2567] ss:$9 sm:$0xff] %v1165
    %s2569 = scalar_lea.vmem [#allocation1], 7
    %2570 = vst [vmem:[%s2569] ss:$9 sm:$0xff] %v1135
    %v2571 = vld [vmem:[#allocation1] sm:$0xff]
    %2572 = vst [vmem:[#allocation1] ss:$9 sm:$0xff] %v1166
    %2573 = vst [vmem:[%s2557] ss:$9 sm:$0xff] %v1167
    %2574 = vst [vmem:[%s2559] ss:$9 sm:$0xff] %v1168
    %2575 = vst [vmem:[%s2561] ss:$9 sm:$0xff] %v1169
    %2576 = vst [vmem:[%s2563] ss:$9 sm:$0xff] %v1170
    %2577 = vst [vmem:[%s2565] ss:$9 sm:$0xff] %v1171
    %2578 = vst [vmem:[%s2567] ss:$9 sm:$0xff] %v1172
    %2579 = vst [vmem:[%s2569] ss:$9 sm:$0xff] %v1138
    %v2580 = vld [vmem:[#allocation1] sm:$0xff]
    %2581 = vst [vmem:[#allocation1] ss:$9 sm:$0xff] %v1173
    %v2582 = vld [vmem:[#allocation1] sm:$0xff]
    %2583 = vrot.lane.b32.xlu0 %v2571, 72
    %v2584 = vpop.permute.xlu0 %2583
    %2585 = vrot.lane.b32.xlu0 %v2580, 72
    %v2586 = vpop.permute.xlu0 %2585
    %2587 = vrot.lane.b32.xlu0 %v2582, 72
    %v2588 = vpop.permute.xlu0 %2587
    %v2589 = vsel %vm1234, %v2551, 0
    %v2591 = vsel %vm1234, %v2553, 0
    %v2593 = vsel %vm1234, %v2555, 0
    %v2595 = vsel %vm1234, %v2584, 0
    %v2597 = vsel %vm1234, %v2586, 0
    %v2599 = vsel %vm1234, %v2588, 0
    %2601 = vmatpush.xpose.msra.mxu0 0.0
    %2602 = vmatpush.xpose.msra.mxu0 0.0
    %2603 = vmatpush.xpose.msra.mxu0 0.0
    %2604 = vmatpush.xpose.msra.mxu0 0.0
    %2605 = vmatpush.xpose.msra.mxu0 0.0
    %2606 = vmatpush.xpose.msra.mxu0 0.0
    %2607 = vmatpush.xpose.msra.mxu0 0.0
    %2608 = vmatpush.xpose.msra.mxu0 0.0
    %2609 = vmatpush.xpose.msra.mxu0 0.0
    %2610 = vmatpush.xpose.msra.mxu0 0.0
    %2611 = vmatpush.xpose.msra.mxu0 0.0
    %2612 = vmatpush.xpose.msra.mxu0 0.0
    %2613 = vmatpush.xpose.msra.mxu0 0.0
    %2614 = vmatpush.xpose.msra.mxu0 %v2599
    %2615 = vmatpush.xpose.msra.mxu0 %v2597
    %2616 = vmatpush.xpose.msra.mxu0 %v2595
    %2617 = vmatmul.f32.gmra.mxu0 %v2589
    %v2618 = vpop.f32.mrf.mxu0
    %v2619 = vadd.f32 %v421, %v2618
    %2620 = vmatmul.f32.gmra.mxu0 %v2591
    %v2621 = vpop.f32.mrf.mxu0
    %v2622 = vadd.f32 %v422, %v2621
    %2623 = vmatmul.f32.gmra.mxu0 %v2593
    %v2624 = vpop.f32.mrf.mxu0
    %v2625 = vadd.f32 %v423, %v2624
    %2626 = vdwg.mxu0
    %v2627 = vsel %vm1371, %v2515, -inf
    %2628 = vmax.xlane.f32.xlu0 %v2627
    %v2629 = vpop.xlane.xlu0 %2628
    %v2630 = vsel %vm1371, %v2518, -inf
    %2631 = vmax.xlane.f32.xlu0 %v2630
    %v2632 = vpop.xlane.xlu0 %2631
    %v2633 = vsel %vm1378, %v2521, -inf
    %2634 = vmax.xlane.f32.xlu0 %v2633
    %v2635 = vpop.xlane.xlu0 %2634
    %v2636 = vsel %vm1371, %v2619, -inf
    %2637 = vmax.xlane.f32.xlu0 %v2636
    %v2638 = vpop.xlane.xlu0 %2637
    %v2639 = vsel %vm1371, %v2622, -inf
    %2640 = vmax.xlane.f32.xlu0 %v2639
    %v2641 = vpop.xlane.xlu0 %2640
    %v2642 = vsel %vm1378, %v2625, -inf
    %2643 = vmax.xlane.f32.xlu0 %v2642
    %v2644 = vpop.xlane.xlu0 %2643
    %v2645 = vsub.f32 %v2515, %v2629
    %v2646 = vsub.f32 %v2518, %v2632
    %v2647 = vsub.f32 %v2521, %v2635
    %v2648 = vsub.f32 %v2619, %v2638
    %v2649 = vsub.f32 %v2622, %v2641
    %v2650 = vsub.f32 %v2625, %v2644
    %v2651 = vmul.f32 %v2645, 1.442695
    %v2652 = vpow.pop %v2651
    %v2653 = vmul.f32 %v2646, 1.442695
    %v2654 = vpow.pop %v2653
    %v2655 = vmul.f32 %v2647, 1.442695
    %v2656 = vpow.pop %v2655
    %v2657 = vmul.f32 %v2648, 1.442695
    %v2658 = vpow.pop %v2657
    %v2659 = vmul.f32 %v2649, 1.442695
    %v2660 = vpow.pop %v2659
    %v2661 = vmul.f32 %v2650, 1.442695
    %v2662 = vpow.pop %v2661
    %v2663 = vsel %vm1371, %v2652, 0.0
    %2664 = vadd.xlane.f32.xlu0 %v2663
    %v2665 = vpop.xlane.xlu0 %2664
    %v2666 = vsel %vm1371, %v2654, 0.0
    %2667 = vadd.xlane.f32.xlu0 %v2666
    %v2668 = vpop.xlane.xlu0 %2667
    %v2669 = vsel %vm1378, %v2656, 0.0
    %2670 = vadd.xlane.f32.xlu0 %v2669
    %v2671 = vpop.xlane.xlu0 %2670
    %v2672 = vsel %vm1371, %v2658, 0.0
    %2673 = vadd.xlane.f32.xlu0 %v2672
    %v2674 = vpop.xlane.xlu0 %2673
    %v2675 = vsel %vm1371, %v2660, 0.0
    %2676 = vadd.xlane.f32.xlu0 %v2675
    %v2677 = vpop.xlane.xlu0 %2676
    %v2678 = vsel %vm1378, %v2662, 0.0
    %2679 = vadd.xlane.f32.xlu0 %v2678
    %v2680 = vpop.xlane.xlu0 %2679
    %v2681 = vrcp.pop %v2665
    %v2682 = vrcp.pop %v2668
    %v2683 = vrcp.pop %v2671
    %v2684 = vrcp.pop %v2674
    %v2685 = vrcp.pop %v2677
    %v2686 = vrcp.pop %v2680
    %v2687 = vmul.f32 %v2652, %v2681
    %v2688 = vmul.f32 %v2654, %v2682
    %v2689 = vmul.f32 %v2656, %v2683
    %v2690 = vmul.f32 %v2658, %v2684
    %v2691 = vmul.f32 %v2660, %v2685
    %v2692 = vmul.f32 %v2662, %v2686
    %2693 = vst [vmem:[#allocation1] ss:$9 sm:$0xff] %v1126
    %s2694 = scalar_lea.vmem [#allocation1], 1
    %2695 = vst [vmem:[%s2694] ss:$9 sm:$0xff] %v1145
    %s2696 = scalar_lea.vmem [#allocation1], 2
    %2697 = vst [vmem:[%s2696] ss:$9 sm:$0xff] %v1146
    %s2698 = scalar_lea.vmem [#allocation1], 3
    %2699 = vst [vmem:[%s2698] ss:$9 sm:$0xff] %v1147
    %s2700 = scalar_lea.vmem [#allocation1], 4
    %2701 = vst [vmem:[%s2700] ss:$9 sm:$0xff] %v1148
    %s2702 = scalar_lea.vmem [#allocation1], 5
    %2703 = vst [vmem:[%s2702] ss:$9 sm:$0xff] %v1149
    %s2704 = scalar_lea.vmem [#allocation1], 6
    %2705 = vst [vmem:[%s2704] ss:$9 sm:$0xff] %v1150
    %s2706 = scalar_lea.vmem [#allocation1], 7
    %2707 = vst [vmem:[%s2706] ss:$9 sm:$0xff] %v1151
    %v2708 = vld [vmem:[#allocation1] sm:$0xff]
    %2709 = vst [vmem:[#allocation1] ss:$9 sm:$0xff] %v1129
    %2710 = vst [vmem:[%s2694] ss:$9 sm:$0xff] %v1152
    %2711 = vst [vmem:[%s2696] ss:$9 sm:$0xff] %v1153
    %2712 = vst [vmem:[%s2698] ss:$9 sm:$0xff] %v1154
    %2713 = vst [vmem:[%s2700] ss:$9 sm:$0xff] %v1155
    %2714 = vst [vmem:[%s2702] ss:$9 sm:$0xff] %v1156
    %2715 = vst [vmem:[%s2704] ss:$9 sm:$0xff] %v1157
    %2716 = vst [vmem:[%s2706] ss:$9 sm:$0xff] %v1158
    %v2717 = vld [vmem:[#allocation1] sm:$0xff]
    %2718 = vst [vmem:[#allocation1] ss:$9 sm:$0xff] %v1132
    %v2719 = vld [vmem:[#allocation1] sm:$0xff]
    %2720 = vrot.lane.b32.xlu0 %v2708, 40
    %v2721 = vpop.permute.xlu0 %2720
    %2722 = vrot.lane.b32.xlu0 %v2717, 40
    %v2723 = vpop.permute.xlu0 %2722
    %2724 = vrot.lane.b32.xlu0 %v2719, 40
    %v2725 = vpop.permute.xlu0 %2724
    %v2729 = vsel %vm1371, %v2687, 0
    %v2732 = vsel %vm1371, %v2688, 0
    %v2735 = vsel %vm1371, %v2689, 0
    %v2737 = vsel %vm339, %v2725, 0
    %2739 = vmatpush.msra.mxu0 0.0
    %2740 = vmatpush.msra.mxu0 0.0
    %2741 = vmatpush.msra.mxu0 0.0
    %2742 = vmatpush.msra.mxu0 0.0
    %2743 = vmatpush.msra.mxu0 0.0
    %2744 = vmatpush.msra.mxu0 0.0
    %2745 = vmatpush.msra.mxu0 0.0
    %2746 = vmatpush.msra.mxu0 0.0
    %2747 = vmatpush.msra.mxu0 0.0
    %2748 = vmatpush.msra.mxu0 0.0
    %2749 = vmatpush.msra.mxu0 0.0
    %2750 = vmatpush.msra.mxu0 0.0
    %2751 = vmatpush.msra.mxu0 0.0
    %2752 = vmatpush.msra.mxu0 %v2737
    %2753 = vmatpush.msra.mxu0 %v2723
    %2754 = vmatpush.msra.mxu0 %v2721
    %2755 = vmatmul.f32.gmra.mxu0 %v2729
    %v2756 = vpop.f32.mrf.mxu0
    %v2757 = vadd.f32 0.0, %v2756
    %2758 = vmatmul.f32.gmra.mxu0 %v2732
    %v2759 = vpop.f32.mrf.mxu0
    %v2760 = vadd.f32 0.0, %v2759
    %2761 = vmatmul.f32.gmra.mxu0 %v2735
    %v2762 = vpop.f32.mrf.mxu0
    %v2763 = vadd.f32 0.0, %v2762
    %2764 = vdwg.mxu0
    %2765 = vst [vmem:[#allocation1] ss:$9 sm:$0xff] %v1159
    %s2766 = scalar_lea.vmem [#allocation1], 1
    %2767 = vst [vmem:[%s2766] ss:$9 sm:$0xff] %v1160
    %s2768 = scalar_lea.vmem [#allocation1], 2
    %2769 = vst [vmem:[%s2768] ss:$9 sm:$0xff] %v1161
    %s2770 = scalar_lea.vmem [#allocation1], 3
    %2771 = vst [vmem:[%s2770] ss:$9 sm:$0xff] %v1162
    %s2772 = scalar_lea.vmem [#allocation1], 4
    %2773 = vst [vmem:[%s2772] ss:$9 sm:$0xff] %v1163
    %s2774 = scalar_lea.vmem [#allocation1], 5
    %2775 = vst [vmem:[%s2774] ss:$9 sm:$0xff] %v1164
    %s2776 = scalar_lea.vmem [#allocation1], 6
    %2777 = vst [vmem:[%s2776] ss:$9 sm:$0xff] %v1165
    %s2778 = scalar_lea.vmem [#allocation1], 7
    %2779 = vst [vmem:[%s2778] ss:$9 sm:$0xff] %v1135
    %v2780 = vld [vmem:[#allocation1] sm:$0xff]
    %2781 = vst [vmem:[#allocation1] ss:$9 sm:$0xff] %v1166
    %2782 = vst [vmem:[%s2766] ss:$9 sm:$0xff] %v1167
    %2783 = vst [vmem:[%s2768] ss:$9 sm:$0xff] %v1168
    %2784 = vst [vmem:[%s2770] ss:$9 sm:$0xff] %v1169
    %2785 = vst [vmem:[%s2772] ss:$9 sm:$0xff] %v1170
    %2786 = vst [vmem:[%s2774] ss:$9 sm:$0xff] %v1171
    %2787 = vst [vmem:[%s2776] ss:$9 sm:$0xff] %v1172
    %2788 = vst [vmem:[%s2778] ss:$9 sm:$0xff] %v1138
    %v2789 = vld [vmem:[#allocation1] sm:$0xff]
    %2790 = vst [vmem:[#allocation1] ss:$9 sm:$0xff] %v1173
    %v2791 = vld [vmem:[#allocation1] sm:$0xff]
    %2792 = vrot.lane.b32.xlu0 %v2780, 40
    %v2793 = vpop.permute.xlu0 %2792
    %2794 = vrot.lane.b32.xlu0 %v2789, 40
    %v2795 = vpop.permute.xlu0 %2794
    %2796 = vrot.lane.b32.xlu0 %v2791, 40
    %v2797 = vpop.permute.xlu0 %2796
    %v2801 = vsel %vm1371, %v2690, 0
    %v2804 = vsel %vm1371, %v2691, 0
    %v2807 = vsel %vm1371, %v2692, 0
    %v2809 = vsel %vm339, %v2797, 0
    %2811 = vmatpush.msra.mxu0 0.0
    %2812 = vmatpush.msra.mxu0 0.0
    %2813 = vmatpush.msra.mxu0 0.0
    %2814 = vmatpush.msra.mxu0 0.0
    %2815 = vmatpush.msra.mxu0 0.0
    %2816 = vmatpush.msra.mxu0 0.0
    %2817 = vmatpush.msra.mxu0 0.0
    %2818 = vmatpush.msra.mxu0 0.0
    %2819 = vmatpush.msra.mxu0 0.0
    %2820 = vmatpush.msra.mxu0 0.0
    %2821 = vmatpush.msra.mxu0 0.0
    %2822 = vmatpush.msra.mxu0 0.0
    %2823 = vmatpush.msra.mxu0 0.0
    %2824 = vmatpush.msra.mxu0 %v2809
    %2825 = vmatpush.msra.mxu0 %v2795
    %2826 = vmatpush.msra.mxu0 %v2793
    %2827 = vmatmul.f32.gmra.mxu0 %v2801
    %v2828 = vpop.f32.mrf.mxu0
    %v2829 = vadd.f32 0.0, %v2828
    %2830 = vmatmul.f32.gmra.mxu0 %v2804
    %v2831 = vpop.f32.mrf.mxu0
    %v2832 = vadd.f32 0.0, %v2831
    %2833 = vmatmul.f32.gmra.mxu0 %v2807
    %v2834 = vpop.f32.mrf.mxu0
    %v2835 = vadd.f32 0.0, %v2834
    %2836 = vdwg.mxu0
    %2843 = vrot.lane.b32.xlu0 %v1921, 8
    %v2844 = vpop.permute.xlu0 %2843
    %2845 = vrot.lane.b32.xlu0 %v1924, 8
    %v2846 = vpop.permute.xlu0 %2845
    %2847 = vrot.lane.b32.xlu0 %v1927, 8
    %v2848 = vpop.permute.xlu0 %2847
    %2849 = vrot.lane.b32.xlu0 %v1993, 8
    %v2850 = vpop.permute.xlu0 %2849
    %2851 = vrot.lane.b32.xlu0 %v1996, 8
    %v2852 = vpop.permute.xlu0 %2851
    %2853 = vrot.lane.b32.xlu0 %v1999, 8
    %v2854 = vpop.permute.xlu0 %2853
    %2867 = vrot.lane.b32.xlu0 %v2339, 16
    %v2868 = vpop.permute.xlu0 %2867
    %2869 = vrot.lane.b32.xlu0 %v2342, 16
    %v2870 = vpop.permute.xlu0 %2869
    %2871 = vrot.lane.b32.xlu0 %v2345, 16
    %v2872 = vpop.permute.xlu0 %2871
    %2873 = vrot.lane.b32.xlu0 %v2411, 16
    %v2874 = vpop.permute.xlu0 %2873
    %2875 = vrot.lane.b32.xlu0 %v2414, 16
    %v2876 = vpop.permute.xlu0 %2875
    %2877 = vrot.lane.b32.xlu0 %v2417, 16
    %v2878 = vpop.permute.xlu0 %2877
    %2891 = vrot.lane.b32.xlu0 %v2757, 24
    %v2892 = vpop.permute.xlu0 %2891
    %2893 = vrot.lane.b32.xlu0 %v2760, 24
    %v2894 = vpop.permute.xlu0 %2893
    %2895 = vrot.lane.b32.xlu0 %v2763, 24
    %v2896 = vpop.permute.xlu0 %2895
    %2897 = vrot.lane.b32.xlu0 %v2829, 24
    %v2898 = vpop.permute.xlu0 %2897
    %2899 = vrot.lane.b32.xlu0 %v2832, 24
    %v2900 = vpop.permute.xlu0 %2899
    %2901 = vrot.lane.b32.xlu0 %v2835, 24
    %v2902 = vpop.permute.xlu0 %2901
    %v2909 = vsel %vm1234, %v1503, %v2844
    %v2910 = vsel %vm1234, %v1506, %v2846
    %v2911 = vsel %vm1234, %v1509, %v2848
    %v2912 = vsel %vm1234, %v1575, %v2850
    %v2913 = vsel %vm1234, %v1578, %v2852
    %v2914 = vsel %vm1234, %v1581, %v2854
    %vm2915 = vcmask 130048
    %v2916 = vsel %vm2915, %v2909, %v2868
    %v2917 = vsel %vm2915, %v2910, %v2870
    %v2918 = vsel %vm2915, %v2911, %v2872
    %v2919 = vsel %vm2915, %v2912, %v2874
    %v2920 = vsel %vm2915, %v2913, %v2876
    %v2921 = vsel %vm2915, %v2914, %v2878
    %vm2922 = vcmask 195584
    %v2923 = vsel %vm2922, %v2916, %v2892
    %v2924 = vsel %vm2922, %v2917, %v2894
    %v2925 = vsel %vm2922, %v2918, %v2896
    %v2926 = vsel %vm2922, %v2919, %v2898
    %v2927 = vsel %vm2922, %v2920, %v2900
    %v2928 = vsel %vm2922, %v2921, %v2902
    %v2935 = vrot.slane %v2923, 1
    %v2936 = vrot.slane %v2923, 2
    %v2937 = vrot.slane %v2923, 3
    %v2938 = vrot.slane %v2923, 4
    %v2939 = vrot.slane %v2923, 5
    %v2940 = vrot.slane %v2923, 6
    %v2941 = vrot.slane %v2923, 7
    %v2942 = vrot.slane %v2924, 1
    %v2943 = vrot.slane %v2924, 2
    %v2944 = vrot.slane %v2924, 3
    %v2945 = vrot.slane %v2924, 4
    %v2946 = vrot.slane %v2924, 5
    %v2947 = vrot.slane %v2924, 6
    %v2948 = vrot.slane %v2924, 7
    %v2949 = vrot.slane %v2926, 1
    %v2950 = vrot.slane %v2926, 2
    %v2951 = vrot.slane %v2926, 3
    %v2952 = vrot.slane %v2926, 4
    %v2953 = vrot.slane %v2926, 5
    %v2954 = vrot.slane %v2926, 6
    %v2955 = vrot.slane %v2926, 7
    %v2956 = vrot.slane %v2927, 1
    %v2957 = vrot.slane %v2927, 2
    %v2958 = vrot.slane %v2927, 3
    %v2959 = vrot.slane %v2927, 4
    %v2960 = vrot.slane %v2927, 5
    %v2961 = vrot.slane %v2927, 6
    %v2962 = vrot.slane %v2927, 7
    %v2963 = vld [vmem:[%s10] sm:$0xff]
    %v2964 = vld [vmem:[%s10 + $0x8] sm:$0xff]
    %v2965 = vld [vmem:[%s10 + $0x10] sm:$0xff]
    %v2966 = vld [vmem:[%s10 + $0x18] sm:$0xff]
    %2967 = vst [vmem:[#allocation1] ss:$9 sm:$0xff] %v2923
    %s2968 = scalar_lea.vmem [#allocation1], 1
    %2969 = vst [vmem:[%s2968] ss:$9 sm:$0xff] %v2935
    %s2970 = scalar_lea.vmem [#allocation1], 2
    %2971 = vst [vmem:[%s2970] ss:$9 sm:$0xff] %v2936
    %s2972 = scalar_lea.vmem [#allocation1], 3
    %2973 = vst [vmem:[%s2972] ss:$9 sm:$0xff] %v2937
    %s2974 = scalar_lea.vmem [#allocation1], 4
    %2975 = vst [vmem:[%s2974] ss:$9 sm:$0xff] %v2938
    %s2976 = scalar_lea.vmem [#allocation1], 5
    %2977 = vst [vmem:[%s2976] ss:$9 sm:$0xff] %v2939
    %s2978 = scalar_lea.vmem [#allocation1], 6
    %2979 = vst [vmem:[%s2978] ss:$9 sm:$0xff] %v2940
    %s2980 = scalar_lea.vmem [#allocation1], 7
    %2981 = vst [vmem:[%s2980] ss:$9 sm:$0xff] %v2941
    %v2982 = vld [vmem:[#allocation1] sm:$0xff]
    %2983 = vst [vmem:[#allocation1] ss:$9 sm:$0xff] %v2924
    %2984 = vst [vmem:[%s2968] ss:$9 sm:$0xff] %v2942
    %2985 = vst [vmem:[%s2970] ss:$9 sm:$0xff] %v2943
    %2986 = vst [vmem:[%s2972] ss:$9 sm:$0xff] %v2944
    %2987 = vst [vmem:[%s2974] ss:$9 sm:$0xff] %v2945
    %2988 = vst [vmem:[%s2976] ss:$9 sm:$0xff] %v2946
    %2989 = vst [vmem:[%s2978] ss:$9 sm:$0xff] %v2947
    %2990 = vst [vmem:[%s2980] ss:$9 sm:$0xff] %v2948
    %v2991 = vld [vmem:[#allocation1] sm:$0xff]
    %2992 = vst [vmem:[#allocation1] ss:$9 sm:$0xff] %v2925
    %2993 = vst [vmem:[%s2968] ss:$9 sm:$0xff] %v2926
    %2994 = vst [vmem:[%s2970] ss:$9 sm:$0xff] %v2949
    %2995 = vst [vmem:[%s2972] ss:$9 sm:$0xff] %v2950
    %2996 = vst [vmem:[%s2974] ss:$9 sm:$0xff] %v2951
    %2997 = vst [vmem:[%s2976] ss:$9 sm:$0xff] %v2952
    %2998 = vst [vmem:[%s2978] ss:$9 sm:$0xff] %v2953
    %2999 = vst [vmem:[%s2980] ss:$9 sm:$0xff] %v2954
    %v3000 = vld [vmem:[#allocation1] sm:$0xff]
    %3001 = vst [vmem:[#allocation1] ss:$9 sm:$0xff] %v2955
    %3002 = vst [vmem:[%s2968] ss:$9 sm:$0xff] %v2927
    %3003 = vst [vmem:[%s2970] ss:$9 sm:$0xff] %v2956
    %3004 = vst [vmem:[%s2972] ss:$9 sm:$0xff] %v2957
    %3005 = vst [vmem:[%s2974] ss:$9 sm:$0xff] %v2958
    %3006 = vst [vmem:[%s2976] ss:$9 sm:$0xff] %v2959
    %3007 = vst [vmem:[%s2978] ss:$9 sm:$0xff] %v2960
    %3008 = vst [vmem:[%s2980] ss:$9 sm:$0xff] %v2961
    %v3009 = vld [vmem:[#allocation1] sm:$0xff]
    %3010 = vst [vmem:[#allocation1] ss:$9 sm:$0xff] %v2962
    %3011 = vst [vmem:[%s2968] ss:$9 sm:$0xff] %v2928
    %v3012 = vld [vmem:[#allocation1] sm:$0xff]
    %v3013 = vsel %vm477, %v2982, 0
    %v3015 = vsel %vm477, %v2991, 0
    %v3017 = vsel %vm477, %v3000, 0
    %v3019 = vsel %vm477, %v3009, 0
    %v3021 = vsel %vm477, %v3012, 0
    %3023 = vmatpush.msra.mxu0 0.0
    %3024 = vmatpush.msra.mxu0 0.0
    %3025 = vmatpush.msra.mxu0 0.0
    %3026 = vmatpush.msra.mxu0 0.0
    %3027 = vmatpush.msra.mxu0 0.0
    %3028 = vmatpush.msra.mxu0 0.0
    %3029 = vmatpush.msra.mxu0 0.0
    %3030 = vmatpush.msra.mxu0 0.0
    %3031 = vmatpush.msra.mxu0 0.0
    %3032 = vmatpush.msra.mxu0 0.0
    %3033 = vmatpush.msra.mxu0 0.0
    %3034 = vmatpush.msra.mxu0 0.0
    %3035 = vmatpush.msra.mxu0 %v2966
    %3036 = vmatpush.msra.mxu0 %v2965
    %3037 = vmatpush.msra.mxu0 %v2964
    %3038 = vmatpush.msra.mxu0 %v2963
    %3039 = vmatmul.f32.gmra.mxu0 %v3013
    %v3040 = vpop.f32.mrf.mxu0
    %v3041 = vadd.f32 0.0, %v3040
    %3042 = vmatmul.f32.gmra.mxu0 %v3015
    %v3043 = vpop.f32.mrf.mxu0
    %v3044 = vadd.f32 0.0, %v3043
    %3045 = vmatmul.f32.gmra.mxu0 %v3017
    %v3046 = vpop.f32.mrf.mxu0
    %v3047 = vadd.f32 0.0, %v3046
    %3048 = vmatmul.f32.gmra.mxu0 %v3019
    %v3049 = vpop.f32.mrf.mxu0
    %v3050 = vadd.f32 0.0, %v3049
    %3051 = vmatmul.f32.gmra.mxu0 %v3021
    %v3052 = vpop.f32.mrf.mxu0
    %v3053 = vadd.f32 0.0, %v3052
    %3054 = vdwg.mxu0
    %v3060 = vrot.slane %v3041, 1
    %v3061 = vrot.slane %v3041, 2
    %v3062 = vrot.slane %v3041, 3
    %v3063 = vrot.slane %v3041, 4
    %v3064 = vrot.slane %v3041, 5
    %v3065 = vrot.slane %v3041, 6
    %v3066 = vrot.slane %v3041, 7
    %v3067 = vrot.slane %v3044, 1
    %v3068 = vrot.slane %v3044, 2
    %v3069 = vrot.slane %v3044, 3
    %v3070 = vrot.slane %v3044, 4
    %v3071 = vrot.slane %v3044, 5
    %v3072 = vrot.slane %v3044, 6
    %v3073 = vrot.slane %v3044, 7
    %v3074 = vrot.slane %v3047, 1
    %v3075 = vrot.slane %v3047, 2
    %v3076 = vrot.slane %v3047, 3
    %v3077 = vrot.slane %v3047, 4
    %v3078 = vrot.slane %v3047, 5
    %v3079 = vrot.slane %v3047, 6
    %v3080 = vrot.slane %v3047, 7
    %v3081 = vrot.slane %v3050, 1
    %v3082 = vrot.slane %v3050, 2
    %v3083 = vrot.slane %v3050, 3
    %v3084 = vrot.slane %v3050, 4
    %v3085 = vrot.slane %v3050, 5
    %v3086 = vrot.slane %v3050, 6
    %v3087 = vrot.slane %v3050, 7
    %v3088 = vrot.slane %v3053, 1
    %v3118 = vadd.f32 %v352, %v3041
    %v3119 = vadd.f32 %v356, %v3060
    %v3120 = vadd.f32 %v357, %v3061
    %v3121 = vadd.f32 %v358, %v3062
    %v3122 = vadd.f32 %v359, %v3063
    %v3123 = vadd.f32 %v360, %v3064
    %v3124 = vadd.f32 %v361, %v3065
    %v3125 = vadd.f32 %v362, %v3066
    %v3126 = vadd.f32 %v342, %v3044
    %v3127 = vadd.f32 %v363, %v3067
    %v3128 = vadd.f32 %v364, %v3068
    %v3129 = vadd.f32 %v365, %v3069
    %v3130 = vadd.f32 %v366, %v3070
    %v3131 = vadd.f32 %v367, %v3071
    %v3132 = vadd.f32 %v368, %v3072
    %v3133 = vadd.f32 %v369, %v3073
    %v3134 = vadd.f32 %v341, %v3047
    %v3135 = vadd.f32 %v353, %v3074
    %v3136 = vadd.f32 %v370, %v3075
    %v3137 = vadd.f32 %v371, %v3076
    %v3138 = vadd.f32 %v372, %v3077
    %v3139 = vadd.f32 %v373, %v3078
    %v3140 = vadd.f32 %v374, %v3079
    %v3141 = vadd.f32 %v375, %v3080
    %v3142 = vadd.f32 %v376, %v3050
    %v3143 = vadd.f32 %v345, %v3081
    %v3144 = vadd.f32 %v377, %v3082
    %v3145 = vadd.f32 %v378, %v3083
    %v3146 = vadd.f32 %v379, %v3084
    %v3147 = vadd.f32 %v380, %v3085
    %v3148 = vadd.f32 %v381, %v3086
    %v3149 = vadd.f32 %v382, %v3087
    %v3150 = vadd.f32 %v383, %v3053
    %v3151 = vadd.f32 %v344, %v3088
    %v3152 = vld [vmem:[%s11] sm:$0x1]
    %v3153 = vperm.slane %v3152, 0
    %v3155 = vrot.slane %v3153, 1
    %v3156 = vrot.slane %v3153, 2
    %v3157 = vrot.slane %v3153, 3
    %v3158 = vrot.slane %v3153, 4
    %v3159 = vrot.slane %v3153, 5
    %v3160 = vrot.slane %v3153, 6
    %v3161 = vrot.slane %v3153, 7
    %v3169 = vadd.f32 %v3118, %v3153
    %v3170 = vadd.f32 %v3119, %v3155
    %v3171 = vadd.f32 %v3120, %v3156
    %v3172 = vadd.f32 %v3121, %v3157
    %v3173 = vadd.f32 %v3122, %v3158
    %v3174 = vadd.f32 %v3123, %v3159
    %v3175 = vadd.f32 %v3124, %v3160
    %v3176 = vadd.f32 %v3125, %v3161
    %v3177 = vadd.f32 %v3126, %v3153
    %v3178 = vadd.f32 %v3127, %v3155
    %v3179 = vadd.f32 %v3128, %v3156
    %v3180 = vadd.f32 %v3129, %v3157
    %v3181 = vadd.f32 %v3130, %v3158
    %v3182 = vadd.f32 %v3131, %v3159
    %v3183 = vadd.f32 %v3132, %v3160
    %v3184 = vadd.f32 %v3133, %v3161
    %v3185 = vadd.f32 %v3134, %v3153
    %v3186 = vadd.f32 %v3135, %v3155
    %v3187 = vadd.f32 %v3136, %v3156
    %v3188 = vadd.f32 %v3137, %v3157
    %v3189 = vadd.f32 %v3138, %v3158
    %v3190 = vadd.f32 %v3139, %v3159
    %v3191 = vadd.f32 %v3140, %v3160
    %v3192 = vadd.f32 %v3141, %v3161
    %v3193 = vadd.f32 %v3142, %v3153
    %v3194 = vadd.f32 %v3143, %v3155
    %v3195 = vadd.f32 %v3144, %v3156
    %v3196 = vadd.f32 %v3145, %v3157
    %v3197 = vadd.f32 %v3146, %v3158
    %v3198 = vadd.f32 %v3147, %v3159
    %v3199 = vadd.f32 %v3148, %v3160
    %v3200 = vadd.f32 %v3149, %v3161
    %v3201 = vadd.f32 %v3150, %v3153
    %v3202 = vadd.f32 %v3151, %v3155
    %v3203 = vld [vmem:[%s12] sm:$0x1]
    %v3204 = vld [vmem:[%s13] sm:$0x1]
    %3239 = vst [vmem:[#allocation1] ss:$9 sm:$0xff] %v3169
    %s3240 = scalar_lea.vmem [#allocation1], 1
    %3241 = vst [vmem:[%s3240] ss:$9 sm:$0xff] %v3170
    %s3242 = scalar_lea.vmem [#allocation1], 2
    %3243 = vst [vmem:[%s3242] ss:$9 sm:$0xff] %v3171
    %s3244 = scalar_lea.vmem [#allocation1], 3
    %3245 = vst [vmem:[%s3244] ss:$9 sm:$0xff] %v3172
    %s3246 = scalar_lea.vmem [#allocation1], 4
    %3247 = vst [vmem:[%s3246] ss:$9 sm:$0xff] %v3173
    %s3248 = scalar_lea.vmem [#allocation1], 5
    %3249 = vst [vmem:[%s3248] ss:$9 sm:$0xff] %v3174
    %s3250 = scalar_lea.vmem [#allocation1], 6
    %3251 = vst [vmem:[%s3250] ss:$9 sm:$0xff] %v3175
    %s3252 = scalar_lea.vmem [#allocation1], 7
    %3253 = vst [vmem:[%s3252] ss:$9 sm:$0xff] %v3176
    %v3254 = vld [vmem:[#allocation1] sm:$0xff]
    %3255 = vst [vmem:[#allocation1] ss:$9 sm:$0xff] %v3177
    %3256 = vst [vmem:[%s3240] ss:$9 sm:$0xff] %v3178
    %3257 = vst [vmem:[%s3242] ss:$9 sm:$0xff] %v3179
    %3258 = vst [vmem:[%s3244] ss:$9 sm:$0xff] %v3180
    %3259 = vst [vmem:[%s3246] ss:$9 sm:$0xff] %v3181
    %3260 = vst [vmem:[%s3248] ss:$9 sm:$0xff] %v3182
    %3261 = vst [vmem:[%s3250] ss:$9 sm:$0xff] %v3183
    %3262 = vst [vmem:[%s3252] ss:$9 sm:$0xff] %v3184
    %v3263 = vld [vmem:[#allocation1] sm:$0xff]
    %3264 = vst [vmem:[#allocation1] ss:$9 sm:$0xff] %v3185
    %3265 = vst [vmem:[%s3240] ss:$9 sm:$0xff] %v3186
    %3266 = vst [vmem:[%s3242] ss:$9 sm:$0xff] %v3187
    %3267 = vst [vmem:[%s3244] ss:$9 sm:$0xff] %v3188
    %3268 = vst [vmem:[%s3246] ss:$9 sm:$0xff] %v3189
    %3269 = vst [vmem:[%s3248] ss:$9 sm:$0xff] %v3190
    %3270 = vst [vmem:[%s3250] ss:$9 sm:$0xff] %v3191
    %3271 = vst [vmem:[%s3252] ss:$9 sm:$0xff] %v3192
    %v3272 = vld [vmem:[#allocation1] sm:$0xff]
    %3273 = vst [vmem:[#allocation1] ss:$9 sm:$0xff] %v3193
    %3274 = vst [vmem:[%s3240] ss:$9 sm:$0xff] %v3194
    %3275 = vst [vmem:[%s3242] ss:$9 sm:$0xff] %v3195
    %3276 = vst [vmem:[%s3244] ss:$9 sm:$0xff] %v3196
    %3277 = vst [vmem:[%s3246] ss:$9 sm:$0xff] %v3197
    %3278 = vst [vmem:[%s3248] ss:$9 sm:$0xff] %v3198
    %3279 = vst [vmem:[%s3250] ss:$9 sm:$0xff] %v3199
    %3280 = vst [vmem:[%s3252] ss:$9 sm:$0xff] %v3200
    %v3281 = vld [vmem:[#allocation1] sm:$0xff]
    %3282 = vst [vmem:[#allocation1] ss:$9 sm:$0xff] %v3201
    %3283 = vst [vmem:[%s3240] ss:$9 sm:$0xff] %v3202
    %v3284 = vld [vmem:[#allocation1] sm:$0xff]
    %v3290 = vsel %vm477, %v3254, 0.0
    %3291 = vadd.xlane.f32.xlu0 %v3290
    %v3292 = vpop.xlane.xlu0 %3291
    %v3293 = vsel %vm477, %v3263, 0.0
    %3294 = vadd.xlane.f32.xlu0 %v3293
    %v3295 = vpop.xlane.xlu0 %3294
    %v3296 = vsel %vm477, %v3272, 0.0
    %3297 = vadd.xlane.f32.xlu0 %v3296
    %v3298 = vpop.xlane.xlu0 %3297
    %v3299 = vsel %vm477, %v3281, 0.0
    %3300 = vadd.xlane.f32.xlu0 %v3299
    %v3301 = vpop.xlane.xlu0 %3300
    %v3302 = vsel %vm490, %v3284, 0.0
    %3303 = vadd.xlane.f32.xlu0 %v3302
    %v3304 = vpop.xlane.xlu0 %3303
    %v3305 = vmul.f32 %v3292, %v500
    %v3306 = vmul.f32 %v3295, %v500
    %v3307 = vmul.f32 %v3298, %v500
    %v3308 = vmul.f32 %v3301, %v500
    %v3309 = vmul.f32 %v3304, %v500
    %v3315 = vperm.slane %v3305, 0
    %v3316 = vperm.slane %v3305, 1
    %v3317 = vperm.slane %v3305, 2
    %v3318 = vperm.slane %v3305, 3
    %v3319 = vperm.slane %v3305, 4
    %v3320 = vperm.slane %v3305, 5
    %v3321 = vperm.slane %v3305, 6
    %v3322 = vperm.slane %v3305, 7
    %v3323 = vperm.slane %v3306, 0
    %v3324 = vperm.slane %v3306, 1
    %v3325 = vperm.slane %v3306, 2
    %v3326 = vperm.slane %v3306, 3
    %v3327 = vperm.slane %v3306, 4
    %v3328 = vperm.slane %v3306, 5
    %v3329 = vperm.slane %v3306, 6
    %v3330 = vperm.slane %v3306, 7
    %v3331 = vperm.slane %v3307, 0
    %v3332 = vperm.slane %v3307, 1
    %v3333 = vperm.slane %v3307, 2
    %v3334 = vperm.slane %v3307, 3
    %v3335 = vperm.slane %v3307, 4
    %v3336 = vperm.slane %v3307, 5
    %v3337 = vperm.slane %v3307, 6
    %v3338 = vperm.slane %v3307, 7
    %v3339 = vperm.slane %v3308, 0
    %v3340 = vperm.slane %v3308, 1
    %v3341 = vperm.slane %v3308, 2
    %v3342 = vperm.slane %v3308, 3
    %v3343 = vperm.slane %v3308, 4
    %v3344 = vperm.slane %v3308, 5
    %v3345 = vperm.slane %v3308, 6
    %v3346 = vperm.slane %v3308, 7
    %v3347 = vperm.slane %v3309, 0
    %v3348 = vperm.slane %v3309, 1
    %v3383 = vsub.f32 %v3169, %v3315
    %v3384 = vsub.f32 %v3170, %v3316
    %v3385 = vsub.f32 %v3171, %v3317
    %v3386 = vsub.f32 %v3172, %v3318
    %v3387 = vsub.f32 %v3173, %v3319
    %v3388 = vsub.f32 %v3174, %v3320
    %v3389 = vsub.f32 %v3175, %v3321
    %v3390 = vsub.f32 %v3176, %v3322
    %v3391 = vsub.f32 %v3177, %v3323
    %v3392 = vsub.f32 %v3178, %v3324
    %v3393 = vsub.f32 %v3179, %v3325
    %v3394 = vsub.f32 %v3180, %v3326
    %v3395 = vsub.f32 %v3181, %v3327
    %v3396 = vsub.f32 %v3182, %v3328
    %v3397 = vsub.f32 %v3183, %v3329
    %v3398 = vsub.f32 %v3184, %v3330
    %v3399 = vsub.f32 %v3185, %v3331
    %v3400 = vsub.f32 %v3186, %v3332
    %v3401 = vsub.f32 %v3187, %v3333
    %v3402 = vsub.f32 %v3188, %v3334
    %v3403 = vsub.f32 %v3189, %v3335
    %v3404 = vsub.f32 %v3190, %v3336
    %v3405 = vsub.f32 %v3191, %v3337
    %v3406 = vsub.f32 %v3192, %v3338
    %v3407 = vsub.f32 %v3193, %v3339
    %v3408 = vsub.f32 %v3194, %v3340
    %v3409 = vsub.f32 %v3195, %v3341
    %v3410 = vsub.f32 %v3196, %v3342
    %v3411 = vsub.f32 %v3197, %v3343
    %v3412 = vsub.f32 %v3198, %v3344
    %v3413 = vsub.f32 %v3199, %v3345
    %v3414 = vsub.f32 %v3200, %v3346
    %v3415 = vsub.f32 %v3201, %v3347
    %v3416 = vsub.f32 %v3202, %v3348
    %v3417 = vmul.f32 %v3383, %v3383
    %v3418 = vmul.f32 %v3384, %v3384
    %v3419 = vmul.f32 %v3385, %v3385
    %v3420 = vmul.f32 %v3386, %v3386
    %v3421 = vmul.f32 %v3387, %v3387
    %v3422 = vmul.f32 %v3388, %v3388
    %v3423 = vmul.f32 %v3389, %v3389
    %v3424 = vmul.f32 %v3390, %v3390
    %v3425 = vmul.f32 %v3391, %v3391
    %v3426 = vmul.f32 %v3392, %v3392
    %v3427 = vmul.f32 %v3393, %v3393
    %v3428 = vmul.f32 %v3394, %v3394
    %v3429 = vmul.f32 %v3395, %v3395
    %v3430 = vmul.f32 %v3396, %v3396
    %v3431 = vmul.f32 %v3397, %v3397
    %v3432 = vmul.f32 %v3398, %v3398
    %v3433 = vmul.f32 %v3399, %v3399
    %v3434 = vmul.f32 %v3400, %v3400
    %v3435 = vmul.f32 %v3401, %v3401
    %v3436 = vmul.f32 %v3402, %v3402
    %v3437 = vmul.f32 %v3403, %v3403
    %v3438 = vmul.f32 %v3404, %v3404
    %v3439 = vmul.f32 %v3405, %v3405
    %v3440 = vmul.f32 %v3406, %v3406
    %v3441 = vmul.f32 %v3407, %v3407
    %v3442 = vmul.f32 %v3408, %v3408
    %v3443 = vmul.f32 %v3409, %v3409
    %v3444 = vmul.f32 %v3410, %v3410
    %v3445 = vmul.f32 %v3411, %v3411
    %v3446 = vmul.f32 %v3412, %v3412
    %v3447 = vmul.f32 %v3413, %v3413
    %v3448 = vmul.f32 %v3414, %v3414
    %v3449 = vmul.f32 %v3415, %v3415
    %v3450 = vmul.f32 %v3416, %v3416
    %3485 = vst [vmem:[#allocation1] ss:$9 sm:$0xff] %v3417
    %s3486 = scalar_lea.vmem [#allocation1], 1
    %3487 = vst [vmem:[%s3486] ss:$9 sm:$0xff] %v3418
    %s3488 = scalar_lea.vmem [#allocation1], 2
    %3489 = vst [vmem:[%s3488] ss:$9 sm:$0xff] %v3419
    %s3490 = scalar_lea.vmem [#allocation1], 3
    %3491 = vst [vmem:[%s3490] ss:$9 sm:$0xff] %v3420
    %s3492 = scalar_lea.vmem [#allocation1], 4
    %3493 = vst [vmem:[%s3492] ss:$9 sm:$0xff] %v3421
    %s3494 = scalar_lea.vmem [#allocation1], 5
    %3495 = vst [vmem:[%s3494] ss:$9 sm:$0xff] %v3422
    %s3496 = scalar_lea.vmem [#allocation1], 6
    %3497 = vst [vmem:[%s3496] ss:$9 sm:$0xff] %v3423
    %s3498 = scalar_lea.vmem [#allocation1], 7
    %3499 = vst [vmem:[%s3498] ss:$9 sm:$0xff] %v3424
    %v3500 = vld [vmem:[#allocation1] sm:$0xff]
    %3501 = vst [vmem:[#allocation1] ss:$9 sm:$0xff] %v3425
    %3502 = vst [vmem:[%s3486] ss:$9 sm:$0xff] %v3426
    %3503 = vst [vmem:[%s3488] ss:$9 sm:$0xff] %v3427
    %3504 = vst [vmem:[%s3490] ss:$9 sm:$0xff] %v3428
    %3505 = vst [vmem:[%s3492] ss:$9 sm:$0xff] %v3429
    %3506 = vst [vmem:[%s3494] ss:$9 sm:$0xff] %v3430
    %3507 = vst [vmem:[%s3496] ss:$9 sm:$0xff] %v3431
    %3508 = vst [vmem:[%s3498] ss:$9 sm:$0xff] %v3432
    %v3509 = vld [vmem:[#allocation1] sm:$0xff]
    %3510 = vst [vmem:[#allocation1] ss:$9 sm:$0xff] %v3433
    %3511 = vst [vmem:[%s3486] ss:$9 sm:$0xff] %v3434
    %3512 = vst [vmem:[%s3488] ss:$9 sm:$0xff] %v3435
    %3513 = vst [vmem:[%s3490] ss:$9 sm:$0xff] %v3436
    %3514 = vst [vmem:[%s3492] ss:$9 sm:$0xff] %v3437
    %3515 = vst [vmem:[%s3494] ss:$9 sm:$0xff] %v3438
    %3516 = vst [vmem:[%s3496] ss:$9 sm:$0xff] %v3439
    %3517 = vst [vmem:[%s3498] ss:$9 sm:$0xff] %v3440
    %v3518 = vld [vmem:[#allocation1] sm:$0xff]
    %3519 = vst [vmem:[#allocation1] ss:$9 sm:$0xff] %v3441
    %3520 = vst [vmem:[%s3486] ss:$9 sm:$0xff] %v3442
    %3521 = vst [vmem:[%s3488] ss:$9 sm:$0xff] %v3443
    %3522 = vst [vmem:[%s3490] ss:$9 sm:$0xff] %v3444
    %3523 = vst [vmem:[%s3492] ss:$9 sm:$0xff] %v3445
    %3524 = vst [vmem:[%s3494] ss:$9 sm:$0xff] %v3446
    %3525 = vst [vmem:[%s3496] ss:$9 sm:$0xff] %v3447
    %3526 = vst [vmem:[%s3498] ss:$9 sm:$0xff] %v3448
    %v3527 = vld [vmem:[#allocation1] sm:$0xff]
    %3528 = vst [vmem:[#allocation1] ss:$9 sm:$0xff] %v3449
    %3529 = vst [vmem:[%s3486] ss:$9 sm:$0xff] %v3450
    %v3530 = vld [vmem:[#allocation1] sm:$0xff]
    %v3536 = vsel %vm477, %v3500, 0.0
    %3537 = vadd.xlane.f32.xlu0 %v3536
    %v3538 = vpop.xlane.xlu0 %3537
    %v3539 = vsel %vm477, %v3509, 0.0
    %3540 = vadd.xlane.f32.xlu0 %v3539
    %v3541 = vpop.xlane.xlu0 %3540
    %v3542 = vsel %vm477, %v3518, 0.0
    %3543 = vadd.xlane.f32.xlu0 %v3542
    %v3544 = vpop.xlane.xlu0 %3543
    %v3545 = vsel %vm477, %v3527, 0.0
    %3546 = vadd.xlane.f32.xlu0 %v3545
    %v3547 = vpop.xlane.xlu0 %3546
    %v3548 = vsel %vm490, %v3530, 0.0
    %3549 = vadd.xlane.f32.xlu0 %v3548
    %v3550 = vpop.xlane.xlu0 %3549
    %v3551 = vmul.f32 %v3538, %v500
    %v3552 = vmul.f32 %v3541, %v500
    %v3553 = vmul.f32 %v3544, %v500
    %v3554 = vmul.f32 %v3547, %v500
    %v3555 = vmul.f32 %v3550, %v500
    %v3556 = vadd.f32 %v3551, 1e-05
    %v3557 = vadd.f32 %v3552, 1e-05
    %v3558 = vadd.f32 %v3553, 1e-05
    %v3559 = vadd.f32 %v3554, 1e-05
    %v3560 = vadd.f32 %v3555, 1e-05
    %v3561 = vrsqrt.pop %v3556
    %v3562 = vmul.f32 %v3561, %v3556
    %v3563 = vmul.f32 %v3562, %v3561
    %v3564 = vmul.f32 0.5, %v3563
    %v3565 = vsub.f32 1.5, %v3564
    %v3566 = vmul.f32 %v3561, %v3565
    %vm3567 = vweird.f32 %v3556
    %vm3568 = vweird.f32 %v3561
    %vm3569 = vmor %vm3567, %vm3568
    %v3570 = vsel %vm3569, %v3561, %v3566
    %v3571 = vrsqrt.pop %v3557
    %v3572 = vmul.f32 %v3571, %v3557
    %v3573 = vmul.f32 %v3572, %v3571
    %v3574 = vmul.f32 0.5, %v3573
    %v3575 = vsub.f32 1.5, %v3574
    %v3576 = vmul.f32 %v3571, %v3575
    %vm3577 = vweird.f32 %v3557
    %vm3578 = vweird.f32 %v3571
    %vm3579 = vmor %vm3577, %vm3578
    %v3580 = vsel %vm3579, %v3571, %v3576
    %v3581 = vrsqrt.pop %v3558
    %v3582 = vmul.f32 %v3581, %v3558
    %v3583 = vmul.f32 %v3582, %v3581
    %v3584 = vmul.f32 0.5, %v3583
    %v3585 = vsub.f32 1.5, %v3584
    %v3586 = vmul.f32 %v3581, %v3585
    %vm3587 = vweird.f32 %v3558
    %vm3588 = vweird.f32 %v3581
    %vm3589 = vmor %vm3587, %vm3588
    %v3590 = vsel %vm3589, %v3581, %v3586
    %v3591 = vrsqrt.pop %v3559
    %v3592 = vmul.f32 %v3591, %v3559
    %v3593 = vmul.f32 %v3592, %v3591
    %v3594 = vmul.f32 0.5, %v3593
    %v3595 = vsub.f32 1.5, %v3594
    %v3596 = vmul.f32 %v3591, %v3595
    %vm3597 = vweird.f32 %v3559
    %vm3598 = vweird.f32 %v3591
    %vm3599 = vmor %vm3597, %vm3598
    %v3600 = vsel %vm3599, %v3591, %v3596
    %v3601 = vrsqrt.pop %v3560
    %v3602 = vmul.f32 %v3601, %v3560
    %v3603 = vmul.f32 %v3602, %v3601
    %v3604 = vmul.f32 0.5, %v3603
    %v3605 = vsub.f32 1.5, %v3604
    %v3606 = vmul.f32 %v3601, %v3605
    %vm3607 = vweird.f32 %v3560
    %vm3608 = vweird.f32 %v3601
    %vm3609 = vmor %vm3607, %vm3608
    %v3610 = vsel %vm3609, %v3601, %v3606
    %v3616 = vperm.slane %v3570, 0
    %v3617 = vperm.slane %v3570, 1
    %v3618 = vperm.slane %v3570, 2
    %v3619 = vperm.slane %v3570, 3
    %v3620 = vperm.slane %v3570, 4
    %v3621 = vperm.slane %v3570, 5
    %v3622 = vperm.slane %v3570, 6
    %v3623 = vperm.slane %v3570, 7
    %v3624 = vperm.slane %v3580, 0
    %v3625 = vperm.slane %v3580, 1
    %v3626 = vperm.slane %v3580, 2
    %v3627 = vperm.slane %v3580, 3
    %v3628 = vperm.slane %v3580, 4
    %v3629 = vperm.slane %v3580, 5
    %v3630 = vperm.slane %v3580, 6
    %v3631 = vperm.slane %v3580, 7
    %v3632 = vperm.slane %v3590, 0
    %v3633 = vperm.slane %v3590, 1
    %v3634 = vperm.slane %v3590, 2
    %v3635 = vperm.slane %v3590, 3
    %v3636 = vperm.slane %v3590, 4
    %v3637 = vperm.slane %v3590, 5
    %v3638 = vperm.slane %v3590, 6
    %v3639 = vperm.slane %v3590, 7
    %v3640 = vperm.slane %v3600, 0
    %v3641 = vperm.slane %v3600, 1
    %v3642 = vperm.slane %v3600, 2
    %v3643 = vperm.slane %v3600, 3
    %v3644 = vperm.slane %v3600, 4
    %v3645 = vperm.slane %v3600, 5
    %v3646 = vperm.slane %v3600, 6
    %v3647 = vperm.slane %v3600, 7
    %v3648 = vperm.slane %v3610, 0
    %v3649 = vperm.slane %v3610, 1
    %v3684 = vmul.f32 %v3383, %v3616
    %v3685 = vmul.f32 %v3384, %v3617
    %v3686 = vmul.f32 %v3385, %v3618
    %v3687 = vmul.f32 %v3386, %v3619
    %v3688 = vmul.f32 %v3387, %v3620
    %v3689 = vmul.f32 %v3388, %v3621
    %v3690 = vmul.f32 %v3389, %v3622
    %v3691 = vmul.f32 %v3390, %v3623
    %v3692 = vmul.f32 %v3391, %v3624
    %v3693 = vmul.f32 %v3392, %v3625
    %v3694 = vmul.f32 %v3393, %v3626
    %v3695 = vmul.f32 %v3394, %v3627
    %v3696 = vmul.f32 %v3395, %v3628
    %v3697 = vmul.f32 %v3396, %v3629
    %v3698 = vmul.f32 %v3397, %v3630
    %v3699 = vmul.f32 %v3398, %v3631
    %v3700 = vmul.f32 %v3399, %v3632
    %v3701 = vmul.f32 %v3400, %v3633
    %v3702 = vmul.f32 %v3401, %v3634
    %v3703 = vmul.f32 %v3402, %v3635
    %v3704 = vmul.f32 %v3403, %v3636
    %v3705 = vmul.f32 %v3404, %v3637
    %v3706 = vmul.f32 %v3405, %v3638
    %v3707 = vmul.f32 %v3406, %v3639
    %v3708 = vmul.f32 %v3407, %v3640
    %v3709 = vmul.f32 %v3408, %v3641
    %v3710 = vmul.f32 %v3409, %v3642
    %v3711 = vmul.f32 %v3410, %v3643
    %v3712 = vmul.f32 %v3411, %v3644
    %v3713 = vmul.f32 %v3412, %v3645
    %v3714 = vmul.f32 %v3413, %v3646
    %v3715 = vmul.f32 %v3414, %v3647
    %v3716 = vmul.f32 %v3415, %v3648
    %v3717 = vmul.f32 %v3416, %v3649
    %v3718 = vperm.slane %v3203, 0
    %v3720 = vrot.slane %v3718, 1
    %v3721 = vrot.slane %v3718, 2
    %v3722 = vrot.slane %v3718, 3
    %v3723 = vrot.slane %v3718, 4
    %v3724 = vrot.slane %v3718, 5
    %v3725 = vrot.slane %v3718, 6
    %v3726 = vrot.slane %v3718, 7
    %v3734 = vmul.f32 %v3684, %v3718
    %v3735 = vmul.f32 %v3685, %v3720
    %v3736 = vmul.f32 %v3686, %v3721
    %v3737 = vmul.f32 %v3687, %v3722
    %v3738 = vmul.f32 %v3688, %v3723
    %v3739 = vmul.f32 %v3689, %v3724
    %v3740 = vmul.f32 %v3690, %v3725
    %v3741 = vmul.f32 %v3691, %v3726
    %v3742 = vmul.f32 %v3692, %v3718
    %v3743 = vmul.f32 %v3693, %v3720
    %v3744 = vmul.f32 %v3694, %v3721
    %v3745 = vmul.f32 %v3695, %v3722
    %v3746 = vmul.f32 %v3696, %v3723
    %v3747 = vmul.f32 %v3697, %v3724
    %v3748 = vmul.f32 %v3698, %v3725
    %v3749 = vmul.f32 %v3699, %v3726
    %v3750 = vmul.f32 %v3700, %v3718
    %v3751 = vmul.f32 %v3701, %v3720
    %v3752 = vmul.f32 %v3702, %v3721
    %v3753 = vmul.f32 %v3703, %v3722
    %v3754 = vmul.f32 %v3704, %v3723
    %v3755 = vmul.f32 %v3705, %v3724
    %v3756 = vmul.f32 %v3706, %v3725
    %v3757 = vmul.f32 %v3707, %v3726
    %v3758 = vmul.f32 %v3708, %v3718
    %v3759 = vmul.f32 %v3709, %v3720
    %v3760 = vmul.f32 %v3710, %v3721
    %v3761 = vmul.f32 %v3711, %v3722
    %v3762 = vmul.f32 %v3712, %v3723
    %v3763 = vmul.f32 %v3713, %v3724
    %v3764 = vmul.f32 %v3714, %v3725
    %v3765 = vmul.f32 %v3715, %v3726
    %v3766 = vmul.f32 %v3716, %v3718
    %v3767 = vmul.f32 %v3717, %v3720
    %v3768 = vperm.slane %v3204, 0
    %v3770 = vrot.slane %v3768, 1
    %v3771 = vrot.slane %v3768, 2
    %v3772 = vrot.slane %v3768, 3
    %v3773 = vrot.slane %v3768, 4
    %v3774 = vrot.slane %v3768, 5
    %v3775 = vrot.slane %v3768, 6
    %v3776 = vrot.slane %v3768, 7
    %v3784 = vadd.f32 %v3734, %v3768
    %v3785 = vadd.f32 %v3735, %v3770
    %v3786 = vadd.f32 %v3736, %v3771
    %v3787 = vadd.f32 %v3737, %v3772
    %v3788 = vadd.f32 %v3738, %v3773
    %v3789 = vadd.f32 %v3739, %v3774
    %v3790 = vadd.f32 %v3740, %v3775
    %v3791 = vadd.f32 %v3741, %v3776
    %v3792 = vadd.f32 %v3742, %v3768
    %v3793 = vadd.f32 %v3743, %v3770
    %v3794 = vadd.f32 %v3744, %v3771
    %v3795 = vadd.f32 %v3745, %v3772
    %v3796 = vadd.f32 %v3746, %v3773
    %v3797 = vadd.f32 %v3747, %v3774
    %v3798 = vadd.f32 %v3748, %v3775
    %v3799 = vadd.f32 %v3749, %v3776
    %v3800 = vadd.f32 %v3750, %v3768
    %v3801 = vadd.f32 %v3751, %v3770
    %v3802 = vadd.f32 %v3752, %v3771
    %v3803 = vadd.f32 %v3753, %v3772
    %v3804 = vadd.f32 %v3754, %v3773
    %v3805 = vadd.f32 %v3755, %v3774
    %v3806 = vadd.f32 %v3756, %v3775
    %v3807 = vadd.f32 %v3757, %v3776
    %v3808 = vadd.f32 %v3758, %v3768
    %v3809 = vadd.f32 %v3759, %v3770
    %v3810 = vadd.f32 %v3760, %v3771
    %v3811 = vadd.f32 %v3761, %v3772
    %v3812 = vadd.f32 %v3762, %v3773
    %v3813 = vadd.f32 %v3763, %v3774
    %v3814 = vadd.f32 %v3764, %v3775
    %v3815 = vadd.f32 %v3765, %v3776
    %v3816 = vadd.f32 %v3766, %v3768
    %v3817 = vadd.f32 %v3767, %v3770
    %v3818 = vld [vmem:[%s14] sm:$0xff]
    %v3819 = vld [vmem:[%s14 + $0x8] sm:$0xff]
    %v3820 = vld [vmem:[%s14 + $0x10] sm:$0xff]
    %v3821 = vld [vmem:[%s14 + $0x18] sm:$0xff]
    %v3822 = vld [vmem:[%s15] sm:$0x1]
    %v3823 = vperm.slane %v3822, 0
    %3858 = vst [vmem:[#allocation1] ss:$9 sm:$0xff] %v3784
    %s3859 = scalar_lea.vmem [#allocation1], 1
    %3860 = vst [vmem:[%s3859] ss:$9 sm:$0xff] %v3785
    %s3861 = scalar_lea.vmem [#allocation1], 2
    %3862 = vst [vmem:[%s3861] ss:$9 sm:$0xff] %v3786
    %s3863 = scalar_lea.vmem [#allocation1], 3
    %3864 = vst [vmem:[%s3863] ss:$9 sm:$0xff] %v3787
    %s3865 = scalar_lea.vmem [#allocation1], 4
    %3866 = vst [vmem:[%s3865] ss:$9 sm:$0xff] %v3788
    %s3867 = scalar_lea.vmem [#allocation1], 5
    %3868 = vst [vmem:[%s3867] ss:$9 sm:$0xff] %v3789
    %s3869 = scalar_lea.vmem [#allocation1], 6
    %3870 = vst [vmem:[%s3869] ss:$9 sm:$0xff] %v3790
    %s3871 = scalar_lea.vmem [#allocation1], 7
    %3872 = vst [vmem:[%s3871] ss:$9 sm:$0xff] %v3791
    %v3873 = vld [vmem:[#allocation1] sm:$0xff]
    %3874 = vst [vmem:[#allocation1] ss:$9 sm:$0xff] %v3792
    %3875 = vst [vmem:[%s3859] ss:$9 sm:$0xff] %v3793
    %3876 = vst [vmem:[%s3861] ss:$9 sm:$0xff] %v3794
    %3877 = vst [vmem:[%s3863] ss:$9 sm:$0xff] %v3795
    %3878 = vst [vmem:[%s3865] ss:$9 sm:$0xff] %v3796
    %3879 = vst [vmem:[%s3867] ss:$9 sm:$0xff] %v3797
    %3880 = vst [vmem:[%s3869] ss:$9 sm:$0xff] %v3798
    %3881 = vst [vmem:[%s3871] ss:$9 sm:$0xff] %v3799
    %v3882 = vld [vmem:[#allocation1] sm:$0xff]
    %3883 = vst [vmem:[#allocation1] ss:$9 sm:$0xff] %v3800
    %3884 = vst [vmem:[%s3859] ss:$9 sm:$0xff] %v3801
    %3885 = vst [vmem:[%s3861] ss:$9 sm:$0xff] %v3802
    %3886 = vst [vmem:[%s3863] ss:$9 sm:$0xff] %v3803
    %3887 = vst [vmem:[%s3865] ss:$9 sm:$0xff] %v3804
    %3888 = vst [vmem:[%s3867] ss:$9 sm:$0xff] %v3805
    %3889 = vst [vmem:[%s3869] ss:$9 sm:$0xff] %v3806
    %3890 = vst [vmem:[%s3871] ss:$9 sm:$0xff] %v3807
    %v3891 = vld [vmem:[#allocation1] sm:$0xff]
    %3892 = vst [vmem:[#allocation1] ss:$9 sm:$0xff] %v3808
    %3893 = vst [vmem:[%s3859] ss:$9 sm:$0xff] %v3809
    %3894 = vst [vmem:[%s3861] ss:$9 sm:$0xff] %v3810
    %3895 = vst [vmem:[%s3863] ss:$9 sm:$0xff] %v3811
    %3896 = vst [vmem:[%s3865] ss:$9 sm:$0xff] %v3812
    %3897 = vst [vmem:[%s3867] ss:$9 sm:$0xff] %v3813
    %3898 = vst [vmem:[%s3869] ss:$9 sm:$0xff] %v3814
    %3899 = vst [vmem:[%s3871] ss:$9 sm:$0xff] %v3815
    %v3900 = vld [vmem:[#allocation1] sm:$0xff]
    %3901 = vst [vmem:[#allocation1] ss:$9 sm:$0xff] %v3816
    %3902 = vst [vmem:[%s3859] ss:$9 sm:$0xff] %v3817
    %v3903 = vld [vmem:[#allocation1] sm:$0xff]
    %v3904 = vsel %vm477, %v3873, 0
    %v3906 = vsel %vm477, %v3882, 0
    %v3908 = vsel %vm477, %v3891, 0
    %v3910 = vsel %vm477, %v3900, 0
    %v3912 = vsel %vm477, %v3903, 0
    %3914 = vmatpush.msra.mxu0 0.0
    %3915 = vmatpush.msra.mxu0 0.0
    %3916 = vmatpush.msra.mxu0 0.0
    %3917 = vmatpush.msra.mxu0 0.0
    %3918 = vmatpush.msra.mxu0 0.0
    %3919 = vmatpush.msra.mxu0 0.0
    %3920 = vmatpush.msra.mxu0 0.0
    %3921 = vmatpush.msra.mxu0 0.0
    %3922 = vmatpush.msra.mxu0 0.0
    %3923 = vmatpush.msra.mxu0 0.0
    %3924 = vmatpush.msra.mxu0 0.0
    %3925 = vmatpush.msra.mxu0 0.0
    %3926 = vmatpush.msra.mxu0 %v3821
    %3927 = vmatpush.msra.mxu0 %v3820
    %3928 = vmatpush.msra.mxu0 %v3819
    %3929 = vmatpush.msra.mxu0 %v3818
    %3930 = vmatmul.f32.gmra.mxu0 %v3904
    %v3931 = vpop.f32.mrf.mxu0
    %v3932 = vadd.f32 %v3823, %v3931
    %3933 = vmatmul.f32.gmra.mxu0 %v3906
    %v3934 = vpop.f32.mrf.mxu0
    %v3935 = vadd.f32 %v3823, %v3934
    %3936 = vmatmul.f32.gmra.mxu0 %v3908
    %v3937 = vpop.f32.mrf.mxu0
    %v3938 = vadd.f32 %v3823, %v3937
    %3939 = vmatmul.f32.gmra.mxu0 %v3910
    %v3940 = vpop.f32.mrf.mxu0
    %v3941 = vadd.f32 %v3823, %v3940
    %3942 = vmatmul.f32.gmra.mxu0 %v3912
    %v3943 = vpop.f32.mrf.mxu0
    %v3944 = vadd.f32 %v3823, %v3943
    %3945 = vdwg.mxu0
    %v3946 = vmul.f32 %v3932, 0.5
    %v3947 = vmul.f32 %v3935, 0.5
    %v3948 = vmul.f32 %v3938, 0.5
    %v3949 = vmul.f32 %v3941, 0.5
    %v3950 = vmul.f32 %v3944, 0.5
    %v3951 = vmul.f32 %v3932, 0.044715
    %v3952 = vmul.f32 %v3935, 0.044715
    %v3953 = vmul.f32 %v3938, 0.044715
    %v3954 = vmul.f32 %v3941, 0.044715
    %v3955 = vmul.f32 %v3944, 0.044715
    %v3956 = vmul.f32 %v3951, %v3932
    %v3957 = vmul.f32 %v3952, %v3935
    %v3958 = vmul.f32 %v3953, %v3938
    %v3959 = vmul.f32 %v3954, %v3941
    %v3960 = vmul.f32 %v3955, %v3944
    %v3961 = vmul.f32 %v3956, %v3932
    %v3962 = vmul.f32 %v3957, %v3935
    %v3963 = vmul.f32 %v3958, %v3938
    %v3964 = vmul.f32 %v3959, %v3941
    %v3965 = vmul.f32 %v3960, %v3944
    %v3966 = vadd.f32 %v3932, %v3961
    %v3967 = vadd.f32 %v3935, %v3962
    %v3968 = vadd.f32 %v3938, %v3963
    %v3969 = vadd.f32 %v3941, %v3964
    %v3970 = vadd.f32 %v3944, %v3965
    %v3971 = vmul.f32 %v3966, 0.7978846
    %v3972 = vmul.f32 %v3967, 0.7978846
    %v3973 = vmul.f32 %v3968, 0.7978846
    %v3974 = vmul.f32 %v3969, 0.7978846
    %v3975 = vmul.f32 %v3970, 0.7978846
    %v3976 = vtanh.pop %v3971
    %v3977 = vtanh.pop %v3972
    %v3978 = vtanh.pop %v3973
    %v3979 = vtanh.pop %v3974
    %v3980 = vtanh.pop %v3975
    %v3981 = vadd.f32 %v3976, 1.0
    %v3982 = vadd.f32 %v3977, 1.0
    %v3983 = vadd.f32 %v3978, 1.0
    %v3984 = vadd.f32 %v3979, 1.0
    %v3985 = vadd.f32 %v3980, 1.0
    %v3986 = vmul.f32 %v3946, %v3981
    %v3987 = vmul.f32 %v3947, %v3982
    %v3988 = vmul.f32 %v3948, %v3983
    %v3989 = vmul.f32 %v3949, %v3984
    %v3990 = vmul.f32 %v3950, %v3985
    %v3991 = vld [vmem:[%s16] sm:$0xff]
    %v3992 = vld [vmem:[%s16 + $0x8] sm:$0xff]
    %v3993 = vld [vmem:[%s16 + $0x10] sm:$0xff]
    %v3994 = vld [vmem:[%s16 + $0x18] sm:$0xff]
    %v3995 = vld [vmem:[%s16 + $0x20] sm:$0xff]
    %v3996 = vld [vmem:[%s16 + $0x28] sm:$0xff]
    %v3997 = vld [vmem:[%s16 + $0x30] sm:$0xff]
    %v3998 = vld [vmem:[%s16 + $0x38] sm:$0xff]
    %vm3999 = vcmask 523264
    %v4001 = vsel %vm3999, %v3986, 0
    %v4004 = vsel %vm3999, %v3987, 0
    %v4007 = vsel %vm3999, %v3988, 0
    %v4010 = vsel %vm3999, %v3989, 0
    %v4013 = vsel %vm3999, %v3990, 0
    %4015 = vmatpush.msra.mxu0 0.0
    %4016 = vmatpush.msra.mxu0 0.0
    %4017 = vmatpush.msra.mxu0 0.0
    %4018 = vmatpush.msra.mxu0 0.0
    %4019 = vmatpush.msra.mxu0 0.0
    %4020 = vmatpush.msra.mxu0 0.0
    %4021 = vmatpush.msra.mxu0 0.0
    %4022 = vmatpush.msra.mxu0 0.0
    %4023 = vmatpush.msra.mxu0 %v3998
    %4024 = vmatpush.msra.mxu0 %v3997
    %4025 = vmatpush.msra.mxu0 %v3996
    %4026 = vmatpush.msra.mxu0 %v3995
    %4027 = vmatpush.msra.mxu0 %v3994
    %4028 = vmatpush.msra.mxu0 %v3993
    %4029 = vmatpush.msra.mxu0 %v3992
    %4030 = vmatpush.msra.mxu0 %v3991
    %4031 = vmatmul.f32.gmra.mxu0 %v4001
    %v4032 = vpop.f32.mrf.mxu0
    %v4033 = vadd.f32 0.0, %v4032
    %4034 = vmatmul.f32.gmra.mxu0 %v4004
    %v4035 = vpop.f32.mrf.mxu0
    %v4036 = vadd.f32 0.0, %v4035
    %4037 = vmatmul.f32.gmra.mxu0 %v4007
    %v4038 = vpop.f32.mrf.mxu0
    %v4039 = vadd.f32 0.0, %v4038
    %4040 = vmatmul.f32.gmra.mxu0 %v4010
    %v4041 = vpop.f32.mrf.mxu0
    %v4042 = vadd.f32 0.0, %v4041
    %4043 = vmatmul.f32.gmra.mxu0 %v4013
    %v4044 = vpop.f32.mrf.mxu0
    %v4045 = vadd.f32 0.0, %v4044
    %4046 = vdwg.mxu0
    %v4052 = vrot.slane %v4033, 1
    %v4053 = vrot.slane %v4033, 2
    %v4054 = vrot.slane %v4033, 3
    %v4055 = vrot.slane %v4033, 4
    %v4056 = vrot.slane %v4033, 5
    %v4057 = vrot.slane %v4033, 6
    %v4058 = vrot.slane %v4033, 7
    %v4059 = vrot.slane %v4036, 1
    %v4060 = vrot.slane %v4036, 2
    %v4061 = vrot.slane %v4036, 3
    %v4062 = vrot.slane %v4036, 4
    %v4063 = vrot.slane %v4036, 5
    %v4064 = vrot.slane %v4036, 6
    %v4065 = vrot.slane %v4036, 7
    %v4066 = vrot.slane %v4039, 1
    %v4067 = vrot.slane %v4039, 2
    %v4068 = vrot.slane %v4039, 3
    %v4069 = vrot.slane %v4039, 4
    %v4070 = vrot.slane %v4039, 5
    %v4071 = vrot.slane %v4039, 6
    %v4072 = vrot.slane %v4039, 7
    %v4073 = vrot.slane %v4042, 1
    %v4074 = vrot.slane %v4042, 2
    %v4075 = vrot.slane %v4042, 3
    %v4076 = vrot.slane %v4042, 4
    %v4077 = vrot.slane %v4042, 5
    %v4078 = vrot.slane %v4042, 6
    %v4079 = vrot.slane %v4042, 7
    %v4080 = vrot.slane %v4045, 1
    %v4110 = vadd.f32 %v3169, %v4033
    %v4111 = vadd.f32 %v3170, %v4052
    %v4112 = vadd.f32 %v3171, %v4053
    %v4113 = vadd.f32 %v3172, %v4054
    %v4114 = vadd.f32 %v3173, %v4055
    %v4115 = vadd.f32 %v3174, %v4056
    %v4116 = vadd.f32 %v3175, %v4057
    %v4117 = vadd.f32 %v3176, %v4058
    %v4118 = vadd.f32 %v3177, %v4036
    %v4119 = vadd.f32 %v3178, %v4059
    %v4120 = vadd.f32 %v3179, %v4060
    %v4121 = vadd.f32 %v3180, %v4061
    %v4122 = vadd.f32 %v3181, %v4062
    %v4123 = vadd.f32 %v3182, %v4063
    %v4124 = vadd.f32 %v3183, %v4064
    %v4125 = vadd.f32 %v3184, %v4065
    %v4126 = vadd.f32 %v3185, %v4039
    %v4127 = vadd.f32 %v3186, %v4066
    %v4128 = vadd.f32 %v3187, %v4067
    %v4129 = vadd.f32 %v3188, %v4068
    %v4130 = vadd.f32 %v3189, %v4069
    %v4131 = vadd.f32 %v3190, %v4070
    %v4132 = vadd.f32 %v3191, %v4071
    %v4133 = vadd.f32 %v3192, %v4072
    %v4134 = vadd.f32 %v3193, %v4042
    %v4135 = vadd.f32 %v3194, %v4073
    %v4136 = vadd.f32 %v3195, %v4074
    %v4137 = vadd.f32 %v3196, %v4075
    %v4138 = vadd.f32 %v3197, %v4076
    %v4139 = vadd.f32 %v3198, %v4077
    %v4140 = vadd.f32 %v3199, %v4078
    %v4141 = vadd.f32 %v3200, %v4079
    %v4142 = vadd.f32 %v3201, %v4045
    %v4143 = vadd.f32 %v3202, %v4080
    %v4144 = vld [vmem:[%s17] sm:$0x1]
    %v4145 = vperm.slane %v4144, 0
    %v4147 = vrot.slane %v4145, 1
    %v4148 = vrot.slane %v4145, 2
    %v4149 = vrot.slane %v4145, 3
    %v4150 = vrot.slane %v4145, 4
    %v4151 = vrot.slane %v4145, 5
    %v4152 = vrot.slane %v4145, 6
    %v4153 = vrot.slane %v4145, 7
    %v4161 = vadd.f32 %v4110, %v4145
    %v4162 = vadd.f32 %v4111, %v4147
    %v4163 = vadd.f32 %v4112, %v4148
    %v4164 = vadd.f32 %v4113, %v4149
    %v4165 = vadd.f32 %v4114, %v4150
    %v4166 = vadd.f32 %v4115, %v4151
    %v4167 = vadd.f32 %v4116, %v4152
    %v4168 = vadd.f32 %v4117, %v4153
    %v4169 = vadd.f32 %v4118, %v4145
    %v4170 = vadd.f32 %v4119, %v4147
    %v4171 = vadd.f32 %v4120, %v4148
    %v4172 = vadd.f32 %v4121, %v4149
    %v4173 = vadd.f32 %v4122, %v4150
    %v4174 = vadd.f32 %v4123, %v4151
    %v4175 = vadd.f32 %v4124, %v4152
    %v4176 = vadd.f32 %v4125, %v4153
    %v4177 = vadd.f32 %v4126, %v4145
    %v4178 = vadd.f32 %v4127, %v4147
    %v4179 = vadd.f32 %v4128, %v4148
    %v4180 = vadd.f32 %v4129, %v4149
    %v4181 = vadd.f32 %v4130, %v4150
    %v4182 = vadd.f32 %v4131, %v4151
    %v4183 = vadd.f32 %v4132, %v4152
    %v4184 = vadd.f32 %v4133, %v4153
    %v4185 = vadd.f32 %v4134, %v4145
    %v4186 = vadd.f32 %v4135, %v4147
    %v4187 = vadd.f32 %v4136, %v4148
    %v4188 = vadd.f32 %v4137, %v4149
    %v4189 = vadd.f32 %v4138, %v4150
    %v4190 = vadd.f32 %v4139, %v4151
    %v4191 = vadd.f32 %v4140, %v4152
    %v4192 = vadd.f32 %v4141, %v4153
    %v4193 = vadd.f32 %v4142, %v4145
    %v4194 = vadd.f32 %v4143, %v4147
    %v4195 = vld [vmem:[%s7 + $0x1] sm:$0x1]
    %v4196 = vld [vmem:[%s8 + $0x1] sm:$0x1]
    %4231 = vst [vmem:[#allocation1] ss:$9 sm:$0xff] %v4161
    %s4232 = scalar_lea.vmem [#allocation1], 1
    %4233 = vst [vmem:[%s4232] ss:$9 sm:$0xff] %v4162
    %s4234 = scalar_lea.vmem [#allocation1], 2
    %4235 = vst [vmem:[%s4234] ss:$9 sm:$0xff] %v4163
    %s4236 = scalar_lea.vmem [#allocation1], 3
    %4237 = vst [vmem:[%s4236] ss:$9 sm:$0xff] %v4164
    %s4238 = scalar_lea.vmem [#allocation1], 4
    %4239 = vst [vmem:[%s4238] ss:$9 sm:$0xff] %v4165
    %s4240 = scalar_lea.vmem [#allocation1], 5
    %4241 = vst [vmem:[%s4240] ss:$9 sm:$0xff] %v4166
    %s4242 = scalar_lea.vmem [#allocation1], 6
    %4243 = vst [vmem:[%s4242] ss:$9 sm:$0xff] %v4167
    %s4244 = scalar_lea.vmem [#allocation1], 7
    %4245 = vst [vmem:[%s4244] ss:$9 sm:$0xff] %v4168
    %v4246 = vld [vmem:[#allocation1] sm:$0xff]
    %4247 = vst [vmem:[#allocation1] ss:$9 sm:$0xff] %v4169
    %4248 = vst [vmem:[%s4232] ss:$9 sm:$0xff] %v4170
    %4249 = vst [vmem:[%s4234] ss:$9 sm:$0xff] %v4171
    %4250 = vst [vmem:[%s4236] ss:$9 sm:$0xff] %v4172
    %4251 = vst [vmem:[%s4238] ss:$9 sm:$0xff] %v4173
    %4252 = vst [vmem:[%s4240] ss:$9 sm:$0xff] %v4174
    %4253 = vst [vmem:[%s4242] ss:$9 sm:$0xff] %v4175
    %4254 = vst [vmem:[%s4244] ss:$9 sm:$0xff] %v4176
    %v4255 = vld [vmem:[#allocation1] sm:$0xff]
    %4256 = vst [vmem:[#allocation1] ss:$9 sm:$0xff] %v4177
    %4257 = vst [vmem:[%s4232] ss:$9 sm:$0xff] %v4178
    %4258 = vst [vmem:[%s4234] ss:$9 sm:$0xff] %v4179
    %4259 = vst [vmem:[%s4236] ss:$9 sm:$0xff] %v4180
    %4260 = vst [vmem:[%s4238] ss:$9 sm:$0xff] %v4181
    %4261 = vst [vmem:[%s4240] ss:$9 sm:$0xff] %v4182
    %4262 = vst [vmem:[%s4242] ss:$9 sm:$0xff] %v4183
    %4263 = vst [vmem:[%s4244] ss:$9 sm:$0xff] %v4184
    %v4264 = vld [vmem:[#allocation1] sm:$0xff]
    %4265 = vst [vmem:[#allocation1] ss:$9 sm:$0xff] %v4185
    %4266 = vst [vmem:[%s4232] ss:$9 sm:$0xff] %v4186
    %4267 = vst [vmem:[%s4234] ss:$9 sm:$0xff] %v4187
    %4268 = vst [vmem:[%s4236] ss:$9 sm:$0xff] %v4188
    %4269 = vst [vmem:[%s4238] ss:$9 sm:$0xff] %v4189
    %4270 = vst [vmem:[%s4240] ss:$9 sm:$0xff] %v4190
    %4271 = vst [vmem:[%s4242] ss:$9 sm:$0xff] %v4191
    %4272 = vst [vmem:[%s4244] ss:$9 sm:$0xff] %v4192
    %v4273 = vld [vmem:[#allocation1] sm:$0xff]
    %4274 = vst [vmem:[#allocation1] ss:$9 sm:$0xff] %v4193
    %4275 = vst [vmem:[%s4232] ss:$9 sm:$0xff] %v4194
    %v4276 = vld [vmem:[#allocation1] sm:$0xff]
    %v4282 = vsel %vm477, %v4246, 0.0
    %4283 = vadd.xlane.f32.xlu0 %v4282
    %v4284 = vpop.xlane.xlu0 %4283
    %v4285 = vsel %vm477, %v4255, 0.0
    %4286 = vadd.xlane.f32.xlu0 %v4285
    %v4287 = vpop.xlane.xlu0 %4286
    %v4288 = vsel %vm477, %v4264, 0.0
    %4289 = vadd.xlane.f32.xlu0 %v4288
    %v4290 = vpop.xlane.xlu0 %4289
    %v4291 = vsel %vm477, %v4273, 0.0
    %4292 = vadd.xlane.f32.xlu0 %v4291
    %v4293 = vpop.xlane.xlu0 %4292
    %v4294 = vsel %vm490, %v4276, 0.0
    %4295 = vadd.xlane.f32.xlu0 %v4294
    %v4296 = vpop.xlane.xlu0 %4295
    %v4297 = vmul.f32 %v4284, %v500
    %v4298 = vmul.f32 %v4287, %v500
    %v4299 = vmul.f32 %v4290, %v500
    %v4300 = vmul.f32 %v4293, %v500
    %v4301 = vmul.f32 %v4296, %v500
    %v4307 = vperm.slane %v4297, 0
    %v4308 = vperm.slane %v4297, 1
    %v4309 = vperm.slane %v4297, 2
    %v4310 = vperm.slane %v4297, 3
    %v4311 = vperm.slane %v4297, 4
    %v4312 = vperm.slane %v4297, 5
    %v4313 = vperm.slane %v4297, 6
    %v4314 = vperm.slane %v4297, 7
    %v4315 = vperm.slane %v4298, 0
    %v4316 = vperm.slane %v4298, 1
    %v4317 = vperm.slane %v4298, 2
    %v4318 = vperm.slane %v4298, 3
    %v4319 = vperm.slane %v4298, 4
    %v4320 = vperm.slane %v4298, 5
    %v4321 = vperm.slane %v4298, 6
    %v4322 = vperm.slane %v4298, 7
    %v4323 = vperm.slane %v4299, 0
    %v4324 = vperm.slane %v4299, 1
    %v4325 = vperm.slane %v4299, 2
    %v4326 = vperm.slane %v4299, 3
    %v4327 = vperm.slane %v4299, 4
    %v4328 = vperm.slane %v4299, 5
    %v4329 = vperm.slane %v4299, 6
    %v4330 = vperm.slane %v4299, 7
    %v4331 = vperm.slane %v4300, 0
    %v4332 = vperm.slane %v4300, 1
    %v4333 = vperm.slane %v4300, 2
    %v4334 = vperm.slane %v4300, 3
    %v4335 = vperm.slane %v4300, 4
    %v4336 = vperm.slane %v4300, 5
    %v4337 = vperm.slane %v4300, 6
    %v4338 = vperm.slane %v4300, 7
    %v4339 = vperm.slane %v4301, 0
    %v4340 = vperm.slane %v4301, 1
    %v4375 = vsub.f32 %v4161, %v4307
    %v4376 = vsub.f32 %v4162, %v4308
    %v4377 = vsub.f32 %v4163, %v4309
    %v4378 = vsub.f32 %v4164, %v4310
    %v4379 = vsub.f32 %v4165, %v4311
    %v4380 = vsub.f32 %v4166, %v4312
    %v4381 = vsub.f32 %v4167, %v4313
    %v4382 = vsub.f32 %v4168, %v4314
    %v4383 = vsub.f32 %v4169, %v4315
    %v4384 = vsub.f32 %v4170, %v4316
    %v4385 = vsub.f32 %v4171, %v4317
    %v4386 = vsub.f32 %v4172, %v4318
    %v4387 = vsub.f32 %v4173, %v4319
    %v4388 = vsub.f32 %v4174, %v4320
    %v4389 = vsub.f32 %v4175, %v4321
    %v4390 = vsub.f32 %v4176, %v4322
    %v4391 = vsub.f32 %v4177, %v4323
    %v4392 = vsub.f32 %v4178, %v4324
    %v4393 = vsub.f32 %v4179, %v4325
    %v4394 = vsub.f32 %v4180, %v4326
    %v4395 = vsub.f32 %v4181, %v4327
    %v4396 = vsub.f32 %v4182, %v4328
    %v4397 = vsub.f32 %v4183, %v4329
    %v4398 = vsub.f32 %v4184, %v4330
    %v4399 = vsub.f32 %v4185, %v4331
    %v4400 = vsub.f32 %v4186, %v4332
    %v4401 = vsub.f32 %v4187, %v4333
    %v4402 = vsub.f32 %v4188, %v4334
    %v4403 = vsub.f32 %v4189, %v4335
    %v4404 = vsub.f32 %v4190, %v4336
    %v4405 = vsub.f32 %v4191, %v4337
    %v4406 = vsub.f32 %v4192, %v4338
    %v4407 = vsub.f32 %v4193, %v4339
    %v4408 = vsub.f32 %v4194, %v4340
    %v4409 = vmul.f32 %v4375, %v4375
    %v4410 = vmul.f32 %v4376, %v4376
    %v4411 = vmul.f32 %v4377, %v4377
    %v4412 = vmul.f32 %v4378, %v4378
    %v4413 = vmul.f32 %v4379, %v4379
    %v4414 = vmul.f32 %v4380, %v4380
    %v4415 = vmul.f32 %v4381, %v4381
    %v4416 = vmul.f32 %v4382, %v4382
    %v4417 = vmul.f32 %v4383, %v4383
    %v4418 = vmul.f32 %v4384, %v4384
    %v4419 = vmul.f32 %v4385, %v4385
    %v4420 = vmul.f32 %v4386, %v4386
    %v4421 = vmul.f32 %v4387, %v4387
    %v4422 = vmul.f32 %v4388, %v4388
    %v4423 = vmul.f32 %v4389, %v4389
    %v4424 = vmul.f32 %v4390, %v4390
    %v4425 = vmul.f32 %v4391, %v4391
    %v4426 = vmul.f32 %v4392, %v4392
    %v4427 = vmul.f32 %v4393, %v4393
    %v4428 = vmul.f32 %v4394, %v4394
    %v4429 = vmul.f32 %v4395, %v4395
    %v4430 = vmul.f32 %v4396, %v4396
    %v4431 = vmul.f32 %v4397, %v4397
    %v4432 = vmul.f32 %v4398, %v4398
    %v4433 = vmul.f32 %v4399, %v4399
    %v4434 = vmul.f32 %v4400, %v4400
    %v4435 = vmul.f32 %v4401, %v4401
    %v4436 = vmul.f32 %v4402, %v4402
    %v4437 = vmul.f32 %v4403, %v4403
    %v4438 = vmul.f32 %v4404, %v4404
    %v4439 = vmul.f32 %v4405, %v4405
    %v4440 = vmul.f32 %v4406, %v4406
    %v4441 = vmul.f32 %v4407, %v4407
    %v4442 = vmul.f32 %v4408, %v4408
    %4477 = vst [vmem:[#allocation1] ss:$9 sm:$0xff] %v4409
    %s4478 = scalar_lea.vmem [#allocation1], 1
    %4479 = vst [vmem:[%s4478] ss:$9 sm:$0xff] %v4410
    %s4480 = scalar_lea.vmem [#allocation1], 2
    %4481 = vst [vmem:[%s4480] ss:$9 sm:$0xff] %v4411
    %s4482 = scalar_lea.vmem [#allocation1], 3
    %4483 = vst [vmem:[%s4482] ss:$9 sm:$0xff] %v4412
    %s4484 = scalar_lea.vmem [#allocation1], 4
    %4485 = vst [vmem:[%s4484] ss:$9 sm:$0xff] %v4413
    %s4486 = scalar_lea.vmem [#allocation1], 5
    %4487 = vst [vmem:[%s4486] ss:$9 sm:$0xff] %v4414
    %s4488 = scalar_lea.vmem [#allocation1], 6
    %4489 = vst [vmem:[%s4488] ss:$9 sm:$0xff] %v4415
    %s4490 = scalar_lea.vmem [#allocation1], 7
    %4491 = vst [vmem:[%s4490] ss:$9 sm:$0xff] %v4416
    %v4492 = vld [vmem:[#allocation1] sm:$0xff]
    %4493 = vst [vmem:[#allocation1] ss:$9 sm:$0xff] %v4417
    %4494 = vst [vmem:[%s4478] ss:$9 sm:$0xff] %v4418
    %4495 = vst [vmem:[%s4480] ss:$9 sm:$0xff] %v4419
    %4496 = vst [vmem:[%s4482] ss:$9 sm:$0xff] %v4420
    %4497 = vst [vmem:[%s4484] ss:$9 sm:$0xff] %v4421
    %4498 = vst [vmem:[%s4486] ss:$9 sm:$0xff] %v4422
    %4499 = vst [vmem:[%s4488] ss:$9 sm:$0xff] %v4423
    %4500 = vst [vmem:[%s4490] ss:$9 sm:$0xff] %v4424
    %v4501 = vld [vmem:[#allocation1] sm:$0xff]
    %4502 = vst [vmem:[#allocation1] ss:$9 sm:$0xff] %v4425
    %4503 = vst [vmem:[%s4478] ss:$9 sm:$0xff] %v4426
    %4504 = vst [vmem:[%s4480] ss:$9 sm:$0xff] %v4427
    %4505 = vst [vmem:[%s4482] ss:$9 sm:$0xff] %v4428
    %4506 = vst [vmem:[%s4484] ss:$9 sm:$0xff] %v4429
    %4507 = vst [vmem:[%s4486] ss:$9 sm:$0xff] %v4430
    %4508 = vst [vmem:[%s4488] ss:$9 sm:$0xff] %v4431
    %4509 = vst [vmem:[%s4490] ss:$9 sm:$0xff] %v4432
    %v4510 = vld [vmem:[#allocation1] sm:$0xff]
    %4511 = vst [vmem:[#allocation1] ss:$9 sm:$0xff] %v4433
    %4512 = vst [vmem:[%s4478] ss:$9 sm:$0xff] %v4434
    %4513 = vst [vmem:[%s4480] ss:$9 sm:$0xff] %v4435
    %4514 = vst [vmem:[%s4482] ss:$9 sm:$0xff] %v4436
    %4515 = vst [vmem:[%s4484] ss:$9 sm:$0xff] %v4437
    %4516 = vst [vmem:[%s4486] ss:$9 sm:$0xff] %v4438
    %4517 = vst [vmem:[%s4488] ss:$9 sm:$0xff] %v4439
    %4518 = vst [vmem:[%s4490] ss:$9 sm:$0xff] %v4440
    %v4519 = vld [vmem:[#allocation1] sm:$0xff]
    %4520 = vst [vmem:[#allocation1] ss:$9 sm:$0xff] %v4441
    %4521 = vst [vmem:[%s4478] ss:$9 sm:$0xff] %v4442
    %v4522 = vld [vmem:[#allocation1] sm:$0xff]
    %v4528 = vsel %vm477, %v4492, 0.0
    %4529 = vadd.xlane.f32.xlu0 %v4528
    %v4530 = vpop.xlane.xlu0 %4529
    %v4531 = vsel %vm477, %v4501, 0.0
    %4532 = vadd.xlane.f32.xlu0 %v4531
    %v4533 = vpop.xlane.xlu0 %4532
    %v4534 = vsel %vm477, %v4510, 0.0
    %4535 = vadd.xlane.f32.xlu0 %v4534
    %v4536 = vpop.xlane.xlu0 %4535
    %v4537 = vsel %vm477, %v4519, 0.0
    %4538 = vadd.xlane.f32.xlu0 %v4537
    %v4539 = vpop.xlane.xlu0 %4538
    %v4540 = vsel %vm490, %v4522, 0.0
    %4541 = vadd.xlane.f32.xlu0 %v4540
    %v4542 = vpop.xlane.xlu0 %4541
    %v4543 = vmul.f32 %v4530, %v500
    %v4544 = vmul.f32 %v4533, %v500
    %v4545 = vmul.f32 %v4536, %v500
    %v4546 = vmul.f32 %v4539, %v500
    %v4547 = vmul.f32 %v4542, %v500
    %v4548 = vadd.f32 %v4543, 1e-05
    %v4549 = vadd.f32 %v4544, 1e-05
    %v4550 = vadd.f32 %v4545, 1e-05
    %v4551 = vadd.f32 %v4546, 1e-05
    %v4552 = vadd.f32 %v4547, 1e-05
    %v4553 = vrsqrt.pop %v4548
    %v4554 = vmul.f32 %v4553, %v4548
    %v4555 = vmul.f32 %v4554, %v4553
    %v4556 = vmul.f32 0.5, %v4555
    %v4557 = vsub.f32 1.5, %v4556
    %v4558 = vmul.f32 %v4553, %v4557
    %vm4559 = vweird.f32 %v4548
    %vm4560 = vweird.f32 %v4553
    %vm4561 = vmor %vm4559, %vm4560
    %v4562 = vsel %vm4561, %v4553, %v4558
    %v4563 = vrsqrt.pop %v4549
    %v4564 = vmul.f32 %v4563, %v4549
    %v4565 = vmul.f32 %v4564, %v4563
    %v4566 = vmul.f32 0.5, %v4565
    %v4567 = vsub.f32 1.5, %v4566
    %v4568 = vmul.f32 %v4563, %v4567
    %vm4569 = vweird.f32 %v4549
    %vm4570 = vweird.f32 %v4563
    %vm4571 = vmor %vm4569, %vm4570
    %v4572 = vsel %vm4571, %v4563, %v4568
    %v4573 = vrsqrt.pop %v4550
    %v4574 = vmul.f32 %v4573, %v4550
    %v4575 = vmul.f32 %v4574, %v4573
    %v4576 = vmul.f32 0.5, %v4575
    %v4577 = vsub.f32 1.5, %v4576
    %v4578 = vmul.f32 %v4573, %v4577
    %vm4579 = vweird.f32 %v4550
    %vm4580 = vweird.f32 %v4573
    %vm4581 = vmor %vm4579, %vm4580
    %v4582 = vsel %vm4581, %v4573, %v4578
    %v4583 = vrsqrt.pop %v4551
    %v4584 = vmul.f32 %v4583, %v4551
    %v4585 = vmul.f32 %v4584, %v4583
    %v4586 = vmul.f32 0.5, %v4585
    %v4587 = vsub.f32 1.5, %v4586
    %v4588 = vmul.f32 %v4583, %v4587
    %vm4589 = vweird.f32 %v4551
    %vm4590 = vweird.f32 %v4583
    %vm4591 = vmor %vm4589, %vm4590
    %v4592 = vsel %vm4591, %v4583, %v4588
    %v4593 = vrsqrt.pop %v4552
    %v4594 = vmul.f32 %v4593, %v4552
    %v4595 = vmul.f32 %v4594, %v4593
    %v4596 = vmul.f32 0.5, %v4595
    %v4597 = vsub.f32 1.5, %v4596
    %v4598 = vmul.f32 %v4593, %v4597
    %vm4599 = vweird.f32 %v4552
    %vm4600 = vweird.f32 %v4593
    %vm4601 = vmor %vm4599, %vm4600
    %v4602 = vsel %vm4601, %v4593, %v4598
    %v4608 = vperm.slane %v4562, 0
    %v4609 = vperm.slane %v4562, 1
    %v4610 = vperm.slane %v4562, 2
    %v4611 = vperm.slane %v4562, 3
    %v4612 = vperm.slane %v4562, 4
    %v4613 = vperm.slane %v4562, 5
    %v4614 = vperm.slane %v4562, 6
    %v4615 = vperm.slane %v4562, 7
    %v4616 = vperm.slane %v4572, 0
    %v4617 = vperm.slane %v4572, 1
    %v4618 = vperm.slane %v4572, 2
    %v4619 = vperm.slane %v4572, 3
    %v4620 = vperm.slane %v4572, 4
    %v4621 = vperm.slane %v4572, 5
    %v4622 = vperm.slane %v4572, 6
    %v4623 = vperm.slane %v4572, 7
    %v4624 = vperm.slane %v4582, 0
    %v4625 = vperm.slane %v4582, 1
    %v4626 = vperm.slane %v4582, 2
    %v4627 = vperm.slane %v4582, 3
    %v4628 = vperm.slane %v4582, 4
    %v4629 = vperm.slane %v4582, 5
    %v4630 = vperm.slane %v4582, 6
    %v4631 = vperm.slane %v4582, 7
    %v4632 = vperm.slane %v4592, 0
    %v4633 = vperm.slane %v4592, 1
    %v4634 = vperm.slane %v4592, 2
    %v4635 = vperm.slane %v4592, 3
    %v4636 = vperm.slane %v4592, 4
    %v4637 = vperm.slane %v4592, 5
    %v4638 = vperm.slane %v4592, 6
    %v4639 = vperm.slane %v4592, 7
    %v4640 = vperm.slane %v4602, 0
    %v4641 = vperm.slane %v4602, 1
    %v4676 = vmul.f32 %v4375, %v4608
    %v4677 = vmul.f32 %v4376, %v4609
    %v4678 = vmul.f32 %v4377, %v4610
    %v4679 = vmul.f32 %v4378, %v4611
    %v4680 = vmul.f32 %v4379, %v4612
    %v4681 = vmul.f32 %v4380, %v4613
    %v4682 = vmul.f32 %v4381, %v4614
    %v4683 = vmul.f32 %v4382, %v4615
    %v4684 = vmul.f32 %v4383, %v4616
    %v4685 = vmul.f32 %v4384, %v4617
    %v4686 = vmul.f32 %v4385, %v4618
    %v4687 = vmul.f32 %v4386, %v4619
    %v4688 = vmul.f32 %v4387, %v4620
    %v4689 = vmul.f32 %v4388, %v4621
    %v4690 = vmul.f32 %v4389, %v4622
    %v4691 = vmul.f32 %v4390, %v4623
    %v4692 = vmul.f32 %v4391, %v4624
    %v4693 = vmul.f32 %v4392, %v4625
    %v4694 = vmul.f32 %v4393, %v4626
    %v4695 = vmul.f32 %v4394, %v4627
    %v4696 = vmul.f32 %v4395, %v4628
    %v4697 = vmul.f32 %v4396, %v4629
    %v4698 = vmul.f32 %v4397, %v4630
    %v4699 = vmul.f32 %v4398, %v4631
    %v4700 = vmul.f32 %v4399, %v4632
    %v4701 = vmul.f32 %v4400, %v4633
    %v4702 = vmul.f32 %v4401, %v4634
    %v4703 = vmul.f32 %v4402, %v4635
    %v4704 = vmul.f32 %v4403, %v4636
    %v4705 = vmul.f32 %v4404, %v4637
    %v4706 = vmul.f32 %v4405, %v4638
    %v4707 = vmul.f32 %v4406, %v4639
    %v4708 = vmul.f32 %v4407, %v4640
    %v4709 = vmul.f32 %v4408, %v4641
    %v4710 = vperm.slane %v4195, 0
    %v4712 = vrot.slane %v4710, 1
    %v4713 = vrot.slane %v4710, 2
    %v4714 = vrot.slane %v4710, 3
    %v4715 = vrot.slane %v4710, 4
    %v4716 = vrot.slane %v4710, 5
    %v4717 = vrot.slane %v4710, 6
    %v4718 = vrot.slane %v4710, 7
    %v4726 = vmul.f32 %v4676, %v4710
    %v4727 = vmul.f32 %v4677, %v4712
    %v4728 = vmul.f32 %v4678, %v4713
    %v4729 = vmul.f32 %v4679, %v4714
    %v4730 = vmul.f32 %v4680, %v4715
    %v4731 = vmul.f32 %v4681, %v4716
    %v4732 = vmul.f32 %v4682, %v4717
    %v4733 = vmul.f32 %v4683, %v4718
    %v4734 = vmul.f32 %v4684, %v4710
    %v4735 = vmul.f32 %v4685, %v4712
    %v4736 = vmul.f32 %v4686, %v4713
    %v4737 = vmul.f32 %v4687, %v4714
    %v4738 = vmul.f32 %v4688, %v4715
    %v4739 = vmul.f32 %v4689, %v4716
    %v4740 = vmul.f32 %v4690, %v4717
    %v4741 = vmul.f32 %v4691, %v4718
    %v4742 = vmul.f32 %v4692, %v4710
    %v4743 = vmul.f32 %v4693, %v4712
    %v4744 = vmul.f32 %v4694, %v4713
    %v4745 = vmul.f32 %v4695, %v4714
    %v4746 = vmul.f32 %v4696, %v4715
    %v4747 = vmul.f32 %v4697, %v4716
    %v4748 = vmul.f32 %v4698, %v4717
    %v4749 = vmul.f32 %v4699, %v4718
    %v4750 = vmul.f32 %v4700, %v4710
    %v4751 = vmul.f32 %v4701, %v4712
    %v4752 = vmul.f32 %v4702, %v4713
    %v4753 = vmul.f32 %v4703, %v4714
    %v4754 = vmul.f32 %v4704, %v4715
    %v4755 = vmul.f32 %v4705, %v4716
    %v4756 = vmul.f32 %v4706, %v4717
    %v4757 = vmul.f32 %v4707, %v4718
    %v4758 = vmul.f32 %v4708, %v4710
    %v4759 = vmul.f32 %v4709, %v4712
    %v4760 = vperm.slane %v4196, 0
    %v4762 = vrot.slane %v4760, 1
    %v4763 = vrot.slane %v4760, 2
    %v4764 = vrot.slane %v4760, 3
    %v4765 = vrot.slane %v4760, 4
    %v4766 = vrot.slane %v4760, 5
    %v4767 = vrot.slane %v4760, 6
    %v4768 = vrot.slane %v4760, 7
    %v4776 = vadd.f32 %v4726, %v4760
    %v4777 = vadd.f32 %v4727, %v4762
    %v4778 = vadd.f32 %v4728, %v4763
    %v4779 = vadd.f32 %v4729, %v4764
    %v4780 = vadd.f32 %v4730, %v4765
    %v4781 = vadd.f32 %v4731, %v4766
    %v4782 = vadd.f32 %v4732, %v4767
    %v4783 = vadd.f32 %v4733, %v4768
    %v4784 = vadd.f32 %v4734, %v4760
    %v4785 = vadd.f32 %v4735, %v4762
    %v4786 = vadd.f32 %v4736, %v4763
    %v4787 = vadd.f32 %v4737, %v4764
    %v4788 = vadd.f32 %v4738, %v4765
    %v4789 = vadd.f32 %v4739, %v4766
    %v4790 = vadd.f32 %v4740, %v4767
    %v4791 = vadd.f32 %v4741, %v4768
    %v4792 = vadd.f32 %v4742, %v4760
    %v4793 = vadd.f32 %v4743, %v4762
    %v4794 = vadd.f32 %v4744, %v4763
    %v4795 = vadd.f32 %v4745, %v4764
    %v4796 = vadd.f32 %v4746, %v4765
    %v4797 = vadd.f32 %v4747, %v4766
    %v4798 = vadd.f32 %v4748, %v4767
    %v4799 = vadd.f32 %v4749, %v4768
    %v4800 = vadd.f32 %v4750, %v4760
    %v4801 = vadd.f32 %v4751, %v4762
    %v4802 = vadd.f32 %v4752, %v4763
    %v4803 = vadd.f32 %v4753, %v4764
    %v4804 = vadd.f32 %v4754, %v4765
    %v4805 = vadd.f32 %v4755, %v4766
    %v4806 = vadd.f32 %v4756, %v4767
    %v4807 = vadd.f32 %v4757, %v4768
    %v4808 = vadd.f32 %v4758, %v4760
    %v4809 = vadd.f32 %v4759, %v4762
    %s4810 = scalar_lea.vmem %s9, 32
    %v4811 = vld [vmem:[%s4810] sm:$0xff]
    %v4812 = vld [vmem:[%s4810 + $0x8] sm:$0xff]
    %v4813 = vld [vmem:[%s4810 + $0x10] sm:$0xff]
    %v4814 = vld [vmem:[%s4810 + $0x18] sm:$0xff]
    %4849 = vst [vmem:[#allocation1] ss:$9 sm:$0xff] %v4776
    %s4850 = scalar_lea.vmem [#allocation1], 1
    %4851 = vst [vmem:[%s4850] ss:$9 sm:$0xff] %v4777
    %s4852 = scalar_lea.vmem [#allocation1], 2
    %4853 = vst [vmem:[%s4852] ss:$9 sm:$0xff] %v4778
    %s4854 = scalar_lea.vmem [#allocation1], 3
    %4855 = vst [vmem:[%s4854] ss:$9 sm:$0xff] %v4779
    %s4856 = scalar_lea.vmem [#allocation1], 4
    %4857 = vst [vmem:[%s4856] ss:$9 sm:$0xff] %v4780
    %s4858 = scalar_lea.vmem [#allocation1], 5
    %4859 = vst [vmem:[%s4858] ss:$9 sm:$0xff] %v4781
    %s4860 = scalar_lea.vmem [#allocation1], 6
    %4861 = vst [vmem:[%s4860] ss:$9 sm:$0xff] %v4782
    %s4862 = scalar_lea.vmem [#allocation1], 7
    %4863 = vst [vmem:[%s4862] ss:$9 sm:$0xff] %v4783
    %v4864 = vld [vmem:[#allocation1] sm:$0xff]
    %4865 = vst [vmem:[#allocation1] ss:$9 sm:$0xff] %v4784
    %4866 = vst [vmem:[%s4850] ss:$9 sm:$0xff] %v4785
    %4867 = vst [vmem:[%s4852] ss:$9 sm:$0xff] %v4786
    %4868 = vst [vmem:[%s4854] ss:$9 sm:$0xff] %v4787
    %4869 = vst [vmem:[%s4856] ss:$9 sm:$0xff] %v4788
    %4870 = vst [vmem:[%s4858] ss:$9 sm:$0xff] %v4789
    %4871 = vst [vmem:[%s4860] ss:$9 sm:$0xff] %v4790
    %4872 = vst [vmem:[%s4862] ss:$9 sm:$0xff] %v4791
    %v4873 = vld [vmem:[#allocation1] sm:$0xff]
    %4874 = vst [vmem:[#allocation1] ss:$9 sm:$0xff] %v4792
    %4875 = vst [vmem:[%s4850] ss:$9 sm:$0xff] %v4793
    %4876 = vst [vmem:[%s4852] ss:$9 sm:$0xff] %v4794
    %4877 = vst [vmem:[%s4854] ss:$9 sm:$0xff] %v4795
    %4878 = vst [vmem:[%s4856] ss:$9 sm:$0xff] %v4796
    %4879 = vst [vmem:[%s4858] ss:$9 sm:$0xff] %v4797
    %4880 = vst [vmem:[%s4860] ss:$9 sm:$0xff] %v4798
    %4881 = vst [vmem:[%s4862] ss:$9 sm:$0xff] %v4799
    %v4882 = vld [vmem:[#allocation1] sm:$0xff]
    %4883 = vst [vmem:[#allocation1] ss:$9 sm:$0xff] %v4800
    %4884 = vst [vmem:[%s4850] ss:$9 sm:$0xff] %v4801
    %4885 = vst [vmem:[%s4852] ss:$9 sm:$0xff] %v4802
    %4886 = vst [vmem:[%s4854] ss:$9 sm:$0xff] %v4803
    %4887 = vst [vmem:[%s4856] ss:$9 sm:$0xff] %v4804
    %4888 = vst [vmem:[%s4858] ss:$9 sm:$0xff] %v4805
    %4889 = vst [vmem:[%s4860] ss:$9 sm:$0xff] %v4806
    %4890 = vst [vmem:[%s4862] ss:$9 sm:$0xff] %v4807
    %v4891 = vld [vmem:[#allocation1] sm:$0xff]
    %4892 = vst [vmem:[#allocation1] ss:$9 sm:$0xff] %v4808
    %4893 = vst [vmem:[%s4850] ss:$9 sm:$0xff] %v4809
    %v4894 = vld [vmem:[#allocation1] sm:$0xff]
    %v4895 = vsel %vm477, %v4864, 0
    %v4897 = vsel %vm477, %v4873, 0
    %v4899 = vsel %vm477, %v4882, 0
    %v4901 = vsel %vm477, %v4891, 0
    %v4903 = vsel %vm477, %v4894, 0
    %4905 = vmatpush.msra.mxu0 0.0
    %4906 = vmatpush.msra.mxu0 0.0
    %4907 = vmatpush.msra.mxu0 0.0
    %4908 = vmatpush.msra.mxu0 0.0
    %4909 = vmatpush.msra.mxu0 0.0
    %4910 = vmatpush.msra.mxu0 0.0
    %4911 = vmatpush.msra.mxu0 0.0
    %4912 = vmatpush.msra.mxu0 0.0
    %4913 = vmatpush.msra.mxu0 0.0
    %4914 = vmatpush.msra.mxu0 0.0
    %4915 = vmatpush.msra.mxu0 0.0
    %4916 = vmatpush.msra.mxu0 0.0
    %4917 = vmatpush.msra.mxu0 %v4814
    %4918 = vmatpush.msra.mxu0 %v4813
    %4919 = vmatpush.msra.mxu0 %v4812
    %4920 = vmatpush.msra.mxu0 %v4811
    %4921 = vmatmul.f32.gmra.mxu0 %v4895
    %v4922 = vpop.f32.mrf.mxu0
    %v4923 = vadd.f32 0.0, %v4922
    %4924 = vmatmul.f32.gmra.mxu0 %v4897
    %v4925 = vpop.f32.mrf.mxu0
    %v4926 = vadd.f32 0.0, %v4925
    %4927 = vmatmul.f32.gmra.mxu0 %v4899
    %v4928 = vpop.f32.mrf.mxu0
    %v4929 = vadd.f32 0.0, %v4928
    %4930 = vmatmul.f32.gmra.mxu0 %v4901
    %v4931 = vpop.f32.mrf.mxu0
    %v4932 = vadd.f32 0.0, %v4931
    %4933 = vmatmul.f32.gmra.mxu0 %v4903
    %v4934 = vpop.f32.mrf.mxu0
    %v4935 = vadd.f32 0.0, %v4934
    %4936 = vdwg.mxu0
    %v4942 = vrot.slane %v4923, 1
    %v4943 = vrot.slane %v4923, 2
    %v4944 = vrot.slane %v4923, 3
    %v4945 = vrot.slane %v4923, 4
    %v4946 = vrot.slane %v4923, 5
    %v4947 = vrot.slane %v4923, 6
    %v4948 = vrot.slane %v4923, 7
    %v4949 = vrot.slane %v4926, 1
    %v4950 = vrot.slane %v4926, 2
    %v4951 = vrot.slane %v4926, 3
    %v4952 = vrot.slane %v4926, 4
    %v4953 = vrot.slane %v4926, 5
    %v4954 = vrot.slane %v4926, 6
    %v4955 = vrot.slane %v4926, 7
    %v4956 = vrot.slane %v4929, 1
    %v4957 = vrot.slane %v4929, 2
    %v4958 = vrot.slane %v4929, 3
    %v4959 = vrot.slane %v4929, 4
    %v4960 = vrot.slane %v4929, 5
    %v4961 = vrot.slane %v4929, 6
    %v4962 = vrot.slane %v4929, 7
    %v4963 = vrot.slane %v4932, 1
    %v4964 = vrot.slane %v4932, 2
    %v4965 = vrot.slane %v4932, 3
    %v4966 = vrot.slane %v4932, 4
    %v4967 = vrot.slane %v4932, 5
    %v4968 = vrot.slane %v4932, 6
    %v4969 = vrot.slane %v4932, 7
    %v4970 = vrot.slane %v4935, 1
    %4971 = vst [vmem:[#allocation1] ss:$9 sm:$0xff] %v4923
    %s4972 = scalar_lea.vmem [#allocation1], 1
    %4973 = vst [vmem:[%s4972] ss:$9 sm:$0xff] %v4942
    %s4974 = scalar_lea.vmem [#allocation1], 2
    %4975 = vst [vmem:[%s4974] ss:$9 sm:$0xff] %v4943
    %s4976 = scalar_lea.vmem [#allocation1], 3
    %4977 = vst [vmem:[%s4976] ss:$9 sm:$0xff] %v4944
    %s4978 = scalar_lea.vmem [#allocation1], 4
    %4979 = vst [vmem:[%s4978] ss:$9 sm:$0xff] %v4945
    %s4980 = scalar_lea.vmem [#allocation1], 5
    %4981 = vst [vmem:[%s4980] ss:$9 sm:$0xff] %v4946
    %s4982 = scalar_lea.vmem [#allocation1], 6
    %4983 = vst [vmem:[%s4982] ss:$9 sm:$0xff] %v4947
    %s4984 = scalar_lea.vmem [#allocation1], 7
    %4985 = vst [vmem:[%s4984] ss:$9 sm:$0xff] %v4948
    %v4986 = vld [vmem:[#allocation1] sm:$0xff]
    %4987 = vst [vmem:[#allocation1] ss:$9 sm:$0xff] %v4926
    %4988 = vst [vmem:[%s4972] ss:$9 sm:$0xff] %v4949
    %4989 = vst [vmem:[%s4974] ss:$9 sm:$0xff] %v4950
    %4990 = vst [vmem:[%s4976] ss:$9 sm:$0xff] %v4951
    %4991 = vst [vmem:[%s4978] ss:$9 sm:$0xff] %v4952
    %4992 = vst [vmem:[%s4980] ss:$9 sm:$0xff] %v4953
    %4993 = vst [vmem:[%s4982] ss:$9 sm:$0xff] %v4954
    %4994 = vst [vmem:[%s4984] ss:$9 sm:$0xff] %v4955
    %v4995 = vld [vmem:[#allocation1] sm:$0xff]
    %4996 = vst [vmem:[#allocation1] ss:$9 sm:$0xff] %v4929
    %v4997 = vld [vmem:[#allocation1] sm:$0xff]
    %4998 = vst [vmem:[#allocation1] ss:$9 sm:$0xff] %v4923
    %s4999 = scalar_lea.vmem [#allocation1], 1
    %5000 = vst [vmem:[%s4999] ss:$9 sm:$0xff] %v4942
    %s5001 = scalar_lea.vmem [#allocation1], 2
    %5002 = vst [vmem:[%s5001] ss:$9 sm:$0xff] %v4943
    %s5003 = scalar_lea.vmem [#allocation1], 3
    %5004 = vst [vmem:[%s5003] ss:$9 sm:$0xff] %v4944
    %s5005 = scalar_lea.vmem [#allocation1], 4
    %5006 = vst [vmem:[%s5005] ss:$9 sm:$0xff] %v4945
    %s5007 = scalar_lea.vmem [#allocation1], 5
    %5008 = vst [vmem:[%s5007] ss:$9 sm:$0xff] %v4946
    %s5009 = scalar_lea.vmem [#allocation1], 6
    %5010 = vst [vmem:[%s5009] ss:$9 sm:$0xff] %v4947
    %s5011 = scalar_lea.vmem [#allocation1], 7
    %5012 = vst [vmem:[%s5011] ss:$9 sm:$0xff] %v4948
    %v5013 = vld [vmem:[#allocation1] sm:$0xff]
    %5014 = vst [vmem:[#allocation1] ss:$9 sm:$0xff] %v4926
    %5015 = vst [vmem:[%s4999] ss:$9 sm:$0xff] %v4949
    %5016 = vst [vmem:[%s5001] ss:$9 sm:$0xff] %v4950
    %5017 = vst [vmem:[%s5003] ss:$9 sm:$0xff] %v4951
    %5018 = vst [vmem:[%s5005] ss:$9 sm:$0xff] %v4952
    %5019 = vst [vmem:[%s5007] ss:$9 sm:$0xff] %v4953
    %5020 = vst [vmem:[%s5009] ss:$9 sm:$0xff] %v4954
    %5021 = vst [vmem:[%s5011] ss:$9 sm:$0xff] %v4955
    %v5022 = vld [vmem:[#allocation1] sm:$0xff]
    %5023 = vst [vmem:[#allocation1] ss:$9 sm:$0xff] %v4929
    %v5024 = vld [vmem:[#allocation1] sm:$0xff]
    %5025 = vrot.lane.b32.xlu0 %v5013, 96
    %v5026 = vpop.permute.xlu0 %5025
    %5027 = vrot.lane.b32.xlu0 %v5022, 96
    %v5028 = vpop.permute.xlu0 %5027
    %5029 = vrot.lane.b32.xlu0 %v5024, 96
    %v5030 = vpop.permute.xlu0 %5029
    %v5031 = vsel %vm1234, %v4986, 0
    %v5033 = vsel %vm1234, %v4995, 0
    %v5035 = vsel %vm1234, %v4997, 0
    %v5037 = vsel %vm1234, %v5026, 0
    %v5039 = vsel %vm1234, %v5028, 0
    %v5041 = vsel %vm1234, %v5030, 0
    %5043 = vmatpush.xpose.msra.mxu0 0.0
    %5044 = vmatpush.xpose.msra.mxu0 0.0
    %5045 = vmatpush.xpose.msra.mxu0 0.0
    %5046 = vmatpush.xpose.msra.mxu0 0.0
    %5047 = vmatpush.xpose.msra.mxu0 0.0
    %5048 = vmatpush.xpose.msra.mxu0 0.0
    %5049 = vmatpush.xpose.msra.mxu0 0.0
    %5050 = vmatpush.xpose.msra.mxu0 0.0
    %5051 = vmatpush.xpose.msra.mxu0 0.0
    %5052 = vmatpush.xpose.msra.mxu0 0.0
    %5053 = vmatpush.xpose.msra.mxu0 0.0
    %5054 = vmatpush.xpose.msra.mxu0 0.0
    %5055 = vmatpush.xpose.msra.mxu0 0.0
    %5056 = vmatpush.xpose.msra.mxu0 %v5041
    %5057 = vmatpush.xpose.msra.mxu0 %v5039
    %5058 = vmatpush.xpose.msra.mxu0 %v5037
    %5059 = vmatmul.f32.gmra.mxu0 %v5031
    %v5060 = vpop.f32.mrf.mxu0
    %v5061 = vadd.f32 %v421, %v5060
    %5062 = vmatmul.f32.gmra.mxu0 %v5033
    %v5063 = vpop.f32.mrf.mxu0
    %v5064 = vadd.f32 %v422, %v5063
    %5065 = vmatmul.f32.gmra.mxu0 %v5035
    %v5066 = vpop.f32.mrf.mxu0
    %v5067 = vadd.f32 %v423, %v5066
    %5068 = vdwg.mxu0
    %5069 = vst [vmem:[#allocation1] ss:$9 sm:$0xff] %v4956
    %s5070 = scalar_lea.vmem [#allocation1], 1
    %5071 = vst [vmem:[%s5070] ss:$9 sm:$0xff] %v4957
    %s5072 = scalar_lea.vmem [#allocation1], 2
    %5073 = vst [vmem:[%s5072] ss:$9 sm:$0xff] %v4958
    %s5074 = scalar_lea.vmem [#allocation1], 3
    %5075 = vst [vmem:[%s5074] ss:$9 sm:$0xff] %v4959
    %s5076 = scalar_lea.vmem [#allocation1], 4
    %5077 = vst [vmem:[%s5076] ss:$9 sm:$0xff] %v4960
    %s5078 = scalar_lea.vmem [#allocation1], 5
    %5079 = vst [vmem:[%s5078] ss:$9 sm:$0xff] %v4961
    %s5080 = scalar_lea.vmem [#allocation1], 6
    %5081 = vst [vmem:[%s5080] ss:$9 sm:$0xff] %v4962
    %s5082 = scalar_lea.vmem [#allocation1], 7
    %5083 = vst [vmem:[%s5082] ss:$9 sm:$0xff] %v4932
    %v5084 = vld [vmem:[#allocation1] sm:$0xff]
    %5085 = vst [vmem:[#allocation1] ss:$9 sm:$0xff] %v4963
    %5086 = vst [vmem:[%s5070] ss:$9 sm:$0xff] %v4964
    %5087 = vst [vmem:[%s5072] ss:$9 sm:$0xff] %v4965
    %5088 = vst [vmem:[%s5074] ss:$9 sm:$0xff] %v4966
    %5089 = vst [vmem:[%s5076] ss:$9 sm:$0xff] %v4967
    %5090 = vst [vmem:[%s5078] ss:$9 sm:$0xff] %v4968
    %5091 = vst [vmem:[%s5080] ss:$9 sm:$0xff] %v4969
    %5092 = vst [vmem:[%s5082] ss:$9 sm:$0xff] %v4935
    %v5093 = vld [vmem:[#allocation1] sm:$0xff]
    %5094 = vst [vmem:[#allocation1] ss:$9 sm:$0xff] %v4970
    %v5095 = vld [vmem:[#allocation1] sm:$0xff]
    %5096 = vst [vmem:[#allocation1] ss:$9 sm:$0xff] %v4956
    %s5097 = scalar_lea.vmem [#allocation1], 1
    %5098 = vst [vmem:[%s5097] ss:$9 sm:$0xff] %v4957
    %s5099 = scalar_lea.vmem [#allocation1], 2
    %5100 = vst [vmem:[%s5099] ss:$9 sm:$0xff] %v4958
    %s5101 = scalar_lea.vmem [#allocation1], 3
    %5102 = vst [vmem:[%s5101] ss:$9 sm:$0xff] %v4959
    %s5103 = scalar_lea.vmem [#allocation1], 4
    %5104 = vst [vmem:[%s5103] ss:$9 sm:$0xff] %v4960
    %s5105 = scalar_lea.vmem [#allocation1], 5
    %5106 = vst [vmem:[%s5105] ss:$9 sm:$0xff] %v4961
    %s5107 = scalar_lea.vmem [#allocation1], 6
    %5108 = vst [vmem:[%s5107] ss:$9 sm:$0xff] %v4962
    %s5109 = scalar_lea.vmem [#allocation1], 7
    %5110 = vst [vmem:[%s5109] ss:$9 sm:$0xff] %v4932
    %v5111 = vld [vmem:[#allocation1] sm:$0xff]
    %5112 = vst [vmem:[#allocation1] ss:$9 sm:$0xff] %v4963
    %5113 = vst [vmem:[%s5097] ss:$9 sm:$0xff] %v4964
    %5114 = vst [vmem:[%s5099] ss:$9 sm:$0xff] %v4965
    %5115 = vst [vmem:[%s5101] ss:$9 sm:$0xff] %v4966
    %5116 = vst [vmem:[%s5103] ss:$9 sm:$0xff] %v4967
    %5117 = vst [vmem:[%s5105] ss:$9 sm:$0xff] %v4968
    %5118 = vst [vmem:[%s5107] ss:$9 sm:$0xff] %v4969
    %5119 = vst [vmem:[%s5109] ss:$9 sm:$0xff] %v4935
    %v5120 = vld [vmem:[#allocation1] sm:$0xff]
    %5121 = vst [vmem:[#allocation1] ss:$9 sm:$0xff] %v4970
    %v5122 = vld [vmem:[#allocation1] sm:$0xff]
    %5123 = vrot.lane.b32.xlu0 %v5111, 96
    %v5124 = vpop.permute.xlu0 %5123
    %5125 = vrot.lane.b32.xlu0 %v5120, 96
    %v5126 = vpop.permute.xlu0 %5125
    %5127 = vrot.lane.b32.xlu0 %v5122, 96
    %v5128 = vpop.permute.xlu0 %5127
    %v5129 = vsel %vm1234, %v5084, 0
    %v5131 = vsel %vm1234, %v5093, 0
    %v5133 = vsel %vm1234, %v5095, 0
    %v5135 = vsel %vm1234, %v5124, 0
    %v5137 = vsel %vm1234, %v5126, 0
    %v5139 = vsel %vm1234, %v5128, 0
    %5141 = vmatpush.xpose.msra.mxu0 0.0
    %5142 = vmatpush.xpose.msra.mxu0 0.0
    %5143 = vmatpush.xpose.msra.mxu0 0.0
    %5144 = vmatpush.xpose.msra.mxu0 0.0
    %5145 = vmatpush.xpose.msra.mxu0 0.0
    %5146 = vmatpush.xpose.msra.mxu0 0.0
    %5147 = vmatpush.xpose.msra.mxu0 0.0
    %5148 = vmatpush.xpose.msra.mxu0 0.0
    %5149 = vmatpush.xpose.msra.mxu0 0.0
    %5150 = vmatpush.xpose.msra.mxu0 0.0
    %5151 = vmatpush.xpose.msra.mxu0 0.0
    %5152 = vmatpush.xpose.msra.mxu0 0.0
    %5153 = vmatpush.xpose.msra.mxu0 0.0
    %5154 = vmatpush.xpose.msra.mxu0 %v5139
    %5155 = vmatpush.xpose.msra.mxu0 %v5137
    %5156 = vmatpush.xpose.msra.mxu0 %v5135
    %5157 = vmatmul.f32.gmra.mxu0 %v5129
    %v5158 = vpop.f32.mrf.mxu0
    %v5159 = vadd.f32 %v421, %v5158
    %5160 = vmatmul.f32.gmra.mxu0 %v5131
    %v5161 = vpop.f32.mrf.mxu0
    %v5162 = vadd.f32 %v422, %v5161
    %5163 = vmatmul.f32.gmra.mxu0 %v5133
    %v5164 = vpop.f32.mrf.mxu0
    %v5165 = vadd.f32 %v423, %v5164
    %5166 = vdwg.mxu0
    %v5167 = vsel %vm1371, %v5061, -inf
    %5168 = vmax.xlane.f32.xlu0 %v5167
    %v5169 = vpop.xlane.xlu0 %5168
    %v5170 = vsel %vm1371, %v5064, -inf
    %5171 = vmax.xlane.f32.xlu0 %v5170
    %v5172 = vpop.xlane.xlu0 %5171
    %v5173 = vsel %vm1378, %v5067, -inf
    %5174 = vmax.xlane.f32.xlu0 %v5173
    %v5175 = vpop.xlane.xlu0 %5174
    %v5176 = vsel %vm1371, %v5159, -inf
    %5177 = vmax.xlane.f32.xlu0 %v5176
    %v5178 = vpop.xlane.xlu0 %5177
    %v5179 = vsel %vm1371, %v5162, -inf
    %5180 = vmax.xlane.f32.xlu0 %v5179
    %v5181 = vpop.xlane.xlu0 %5180
    %v5182 = vsel %vm1378, %v5165, -inf
    %5183 = vmax.xlane.f32.xlu0 %v5182
    %v5184 = vpop.xlane.xlu0 %5183
    %v5185 = vsub.f32 %v5061, %v5169
    %v5186 = vsub.f32 %v5064, %v5172
    %v5187 = vsub.f32 %v5067, %v5175
    %v5188 = vsub.f32 %v5159, %v5178
    %v5189 = vsub.f32 %v5162, %v5181
    %v5190 = vsub.f32 %v5165, %v5184
    %v5191 = vmul.f32 %v5185, 1.442695
    %v5192 = vpow.pop %v5191
    %v5193 = vmul.f32 %v5186, 1.442695
    %v5194 = vpow.pop %v5193
    %v5195 = vmul.f32 %v5187, 1.442695
    %v5196 = vpow.pop %v5195
    %v5197 = vmul.f32 %v5188, 1.442695
    %v5198 = vpow.pop %v5197
    %v5199 = vmul.f32 %v5189, 1.442695
    %v5200 = vpow.pop %v5199
    %v5201 = vmul.f32 %v5190, 1.442695
    %v5202 = vpow.pop %v5201
    %v5203 = vsel %vm1371, %v5192, 0.0
    %5204 = vadd.xlane.f32.xlu0 %v5203
    %v5205 = vpop.xlane.xlu0 %5204
    %v5206 = vsel %vm1371, %v5194, 0.0
    %5207 = vadd.xlane.f32.xlu0 %v5206
    %v5208 = vpop.xlane.xlu0 %5207
    %v5209 = vsel %vm1378, %v5196, 0.0
    %5210 = vadd.xlane.f32.xlu0 %v5209
    %v5211 = vpop.xlane.xlu0 %5210
    %v5212 = vsel %vm1371, %v5198, 0.0
    %5213 = vadd.xlane.f32.xlu0 %v5212
    %v5214 = vpop.xlane.xlu0 %5213
    %v5215 = vsel %vm1371, %v5200, 0.0
    %5216 = vadd.xlane.f32.xlu0 %v5215
    %v5217 = vpop.xlane.xlu0 %5216
    %v5218 = vsel %vm1378, %v5202, 0.0
    %5219 = vadd.xlane.f32.xlu0 %v5218
    %v5220 = vpop.xlane.xlu0 %5219
    %v5221 = vrcp.pop %v5205
    %v5222 = vrcp.pop %v5208
    %v5223 = vrcp.pop %v5211
    %v5224 = vrcp.pop %v5214
    %v5225 = vrcp.pop %v5217
    %v5226 = vrcp.pop %v5220
    %v5227 = vmul.f32 %v5192, %v5221
    %v5228 = vmul.f32 %v5194, %v5222
    %v5229 = vmul.f32 %v5196, %v5223
    %v5230 = vmul.f32 %v5198, %v5224
    %v5231 = vmul.f32 %v5200, %v5225
    %v5232 = vmul.f32 %v5202, %v5226
    %5233 = vst [vmem:[#allocation1] ss:$9 sm:$0xff] %v4923
    %s5234 = scalar_lea.vmem [#allocation1], 1
    %5235 = vst [vmem:[%s5234] ss:$9 sm:$0xff] %v4942
    %s5236 = scalar_lea.vmem [#allocation1], 2
    %5237 = vst [vmem:[%s5236] ss:$9 sm:$0xff] %v4943
    %s5238 = scalar_lea.vmem [#allocation1], 3
    %5239 = vst [vmem:[%s5238] ss:$9 sm:$0xff] %v4944
    %s5240 = scalar_lea.vmem [#allocation1], 4
    %5241 = vst [vmem:[%s5240] ss:$9 sm:$0xff] %v4945
    %s5242 = scalar_lea.vmem [#allocation1], 5
    %5243 = vst [vmem:[%s5242] ss:$9 sm:$0xff] %v4946
    %s5244 = scalar_lea.vmem [#allocation1], 6
    %5245 = vst [vmem:[%s5244] ss:$9 sm:$0xff] %v4947
    %s5246 = scalar_lea.vmem [#allocation1], 7
    %5247 = vst [vmem:[%s5246] ss:$9 sm:$0xff] %v4948
    %v5248 = vld [vmem:[#allocation1] sm:$0xff]
    %5249 = vst [vmem:[#allocation1] ss:$9 sm:$0xff] %v4926
    %5250 = vst [vmem:[%s5234] ss:$9 sm:$0xff] %v4949
    %5251 = vst [vmem:[%s5236] ss:$9 sm:$0xff] %v4950
    %5252 = vst [vmem:[%s5238] ss:$9 sm:$0xff] %v4951
    %5253 = vst [vmem:[%s5240] ss:$9 sm:$0xff] %v4952
    %5254 = vst [vmem:[%s5242] ss:$9 sm:$0xff] %v4953
    %5255 = vst [vmem:[%s5244] ss:$9 sm:$0xff] %v4954
    %5256 = vst [vmem:[%s5246] ss:$9 sm:$0xff] %v4955
    %v5257 = vld [vmem:[#allocation1] sm:$0xff]
    %5258 = vst [vmem:[#allocation1] ss:$9 sm:$0xff] %v4929
    %v5259 = vld [vmem:[#allocation1] sm:$0xff]
    %5260 = vrot.lane.b32.xlu0 %v5248, 64
    %v5261 = vpop.permute.xlu0 %5260
    %5262 = vrot.lane.b32.xlu0 %v5257, 64
    %v5263 = vpop.permute.xlu0 %5262
    %5264 = vrot.lane.b32.xlu0 %v5259, 64
    %v5265 = vpop.permute.xlu0 %5264
    %v5269 = vsel %vm1371, %v5227, 0
    %v5272 = vsel %vm1371, %v5228, 0
    %v5275 = vsel %vm1371, %v5229, 0
    %v5277 = vsel %vm339, %v5265, 0
    %5279 = vmatpush.msra.mxu0 0.0
    %5280 = vmatpush.msra.mxu0 0.0
    %5281 = vmatpush.msra.mxu0 0.0
    %5282 = vmatpush.msra.mxu0 0.0
    %5283 = vmatpush.msra.mxu0 0.0
    %5284 = vmatpush.msra.mxu0 0.0
    %5285 = vmatpush.msra.mxu0 0.0
    %5286 = vmatpush.msra.mxu0 0.0
    %5287 = vmatpush.msra.mxu0 0.0
    %5288 = vmatpush.msra.mxu0 0.0
    %5289 = vmatpush.msra.mxu0 0.0
    %5290 = vmatpush.msra.mxu0 0.0
    %5291 = vmatpush.msra.mxu0 0.0
    %5292 = vmatpush.msra.mxu0 %v5277
    %5293 = vmatpush.msra.mxu0 %v5263
    %5294 = vmatpush.msra.mxu0 %v5261
    %5295 = vmatmul.f32.gmra.mxu0 %v5269
    %v5296 = vpop.f32.mrf.mxu0
    %v5297 = vadd.f32 0.0, %v5296
    %5298 = vmatmul.f32.gmra.mxu0 %v5272
    %v5299 = vpop.f32.mrf.mxu0
    %v5300 = vadd.f32 0.0, %v5299
    %5301 = vmatmul.f32.gmra.mxu0 %v5275
    %v5302 = vpop.f32.mrf.mxu0
    %v5303 = vadd.f32 0.0, %v5302
    %5304 = vdwg.mxu0
    %5305 = vst [vmem:[#allocation1] ss:$9 sm:$0xff] %v4956
    %s5306 = scalar_lea.vmem [#allocation1], 1
    %5307 = vst [vmem:[%s5306] ss:$9 sm:$0xff] %v4957
    %s5308 = scalar_lea.vmem [#allocation1], 2
    %5309 = vst [vmem:[%s5308] ss:$9 sm:$0xff] %v4958
    %s5310 = scalar_lea.vmem [#allocation1], 3
    %5311 = vst [vmem:[%s5310] ss:$9 sm:$0xff] %v4959
    %s5312 = scalar_lea.vmem [#allocation1], 4
    %5313 = vst [vmem:[%s5312] ss:$9 sm:$0xff] %v4960
    %s5314 = scalar_lea.vmem [#allocation1], 5
    %5315 = vst [vmem:[%s5314] ss:$9 sm:$0xff] %v4961
    %s5316 = scalar_lea.vmem [#allocation1], 6
    %5317 = vst [vmem:[%s5316] ss:$9 sm:$0xff] %v4962
    %s5318 = scalar_lea.vmem [#allocation1], 7
    %5319 = vst [vmem:[%s5318] ss:$9 sm:$0xff] %v4932
    %v5320 = vld [vmem:[#allocation1] sm:$0xff]
    %5321 = vst [vmem:[#allocation1] ss:$9 sm:$0xff] %v4963
    %5322 = vst [vmem:[%s5306] ss:$9 sm:$0xff] %v4964
    %5323 = vst [vmem:[%s5308] ss:$9 sm:$0xff] %v4965
    %5324 = vst [vmem:[%s5310] ss:$9 sm:$0xff] %v4966
    %5325 = vst [vmem:[%s5312] ss:$9 sm:$0xff] %v4967
    %5326 = vst [vmem:[%s5314] ss:$9 sm:$0xff] %v4968
    %5327 = vst [vmem:[%s5316] ss:$9 sm:$0xff] %v4969
    %5328 = vst [vmem:[%s5318] ss:$9 sm:$0xff] %v4935
    %v5329 = vld [vmem:[#allocation1] sm:$0xff]
    %5330 = vst [vmem:[#allocation1] ss:$9 sm:$0xff] %v4970
    %v5331 = vld [vmem:[#allocation1] sm:$0xff]
    %5332 = vrot.lane.b32.xlu0 %v5320, 64
    %v5333 = vpop.permute.xlu0 %5332
    %5334 = vrot.lane.b32.xlu0 %v5329, 64
    %v5335 = vpop.permute.xlu0 %5334
    %5336 = vrot.lane.b32.xlu0 %v5331, 64
    %v5337 = vpop.permute.xlu0 %5336
    %v5341 = vsel %vm1371, %v5230, 0
    %v5344 = vsel %vm1371, %v5231, 0
    %v5347 = vsel %vm1371, %v5232, 0
    %v5349 = vsel %vm339, %v5337, 0
    %5351 = vmatpush.msra.mxu0 0.0
    %5352 = vmatpush.msra.mxu0 0.0
    %5353 = vmatpush.msra.mxu0 0.0
    %5354 = vmatpush.msra.mxu0 0.0
    %5355 = vmatpush.msra.mxu0 0.0
    %5356 = vmatpush.msra.mxu0 0.0
    %5357 = vmatpush.msra.mxu0 0.0
    %5358 = vmatpush.msra.mxu0 0.0
    %5359 = vmatpush.msra.mxu0 0.0
    %5360 = vmatpush.msra.mxu0 0.0
    %5361 = vmatpush.msra.mxu0 0.0
    %5362 = vmatpush.msra.mxu0 0.0
    %5363 = vmatpush.msra.mxu0 0.0
    %5364 = vmatpush.msra.mxu0 %v5349
    %5365 = vmatpush.msra.mxu0 %v5335
    %5366 = vmatpush.msra.mxu0 %v5333
    %5367 = vmatmul.f32.gmra.mxu0 %v5341
    %v5368 = vpop.f32.mrf.mxu0
    %v5369 = vadd.f32 0.0, %v5368
    %5370 = vmatmul.f32.gmra.mxu0 %v5344
    %v5371 = vpop.f32.mrf.mxu0
    %v5372 = vadd.f32 0.0, %v5371
    %5373 = vmatmul.f32.gmra.mxu0 %v5347
    %v5374 = vpop.f32.mrf.mxu0
    %v5375 = vadd.f32 0.0, %v5374
    %5376 = vdwg.mxu0
    %5377 = vst [vmem:[#allocation1] ss:$9 sm:$0xff] %v4923
    %s5378 = scalar_lea.vmem [#allocation1], 1
    %5379 = vst [vmem:[%s5378] ss:$9 sm:$0xff] %v4942
    %s5380 = scalar_lea.vmem [#allocation1], 2
    %5381 = vst [vmem:[%s5380] ss:$9 sm:$0xff] %v4943
    %s5382 = scalar_lea.vmem [#allocation1], 3
    %5383 = vst [vmem:[%s5382] ss:$9 sm:$0xff] %v4944
    %s5384 = scalar_lea.vmem [#allocation1], 4
    %5385 = vst [vmem:[%s5384] ss:$9 sm:$0xff] %v4945
    %s5386 = scalar_lea.vmem [#allocation1], 5
    %5387 = vst [vmem:[%s5386] ss:$9 sm:$0xff] %v4946
    %s5388 = scalar_lea.vmem [#allocation1], 6
    %5389 = vst [vmem:[%s5388] ss:$9 sm:$0xff] %v4947
    %s5390 = scalar_lea.vmem [#allocation1], 7
    %5391 = vst [vmem:[%s5390] ss:$9 sm:$0xff] %v4948
    %v5392 = vld [vmem:[#allocation1] sm:$0xff]
    %5393 = vst [vmem:[#allocation1] ss:$9 sm:$0xff] %v4926
    %5394 = vst [vmem:[%s5378] ss:$9 sm:$0xff] %v4949
    %5395 = vst [vmem:[%s5380] ss:$9 sm:$0xff] %v4950
    %5396 = vst [vmem:[%s5382] ss:$9 sm:$0xff] %v4951
    %5397 = vst [vmem:[%s5384] ss:$9 sm:$0xff] %v4952
    %5398 = vst [vmem:[%s5386] ss:$9 sm:$0xff] %v4953
    %5399 = vst [vmem:[%s5388] ss:$9 sm:$0xff] %v4954
    %5400 = vst [vmem:[%s5390] ss:$9 sm:$0xff] %v4955
    %v5401 = vld [vmem:[#allocation1] sm:$0xff]
    %5402 = vst [vmem:[#allocation1] ss:$9 sm:$0xff] %v4929
    %v5403 = vld [vmem:[#allocation1] sm:$0xff]
    %5404 = vrot.lane.b32.xlu0 %v5392, 120
    %v5405 = vpop.permute.xlu0 %5404
    %5406 = vrot.lane.b32.xlu0 %v5401, 120
    %v5407 = vpop.permute.xlu0 %5406
    %5408 = vrot.lane.b32.xlu0 %v5403, 120
    %v5409 = vpop.permute.xlu0 %5408
    %5410 = vst [vmem:[#allocation1] ss:$9 sm:$0xff] %v4923
    %s5411 = scalar_lea.vmem [#allocation1], 1
    %5412 = vst [vmem:[%s5411] ss:$9 sm:$0xff] %v4942
    %s5413 = scalar_lea.vmem [#allocation1], 2
    %5414 = vst [vmem:[%s5413] ss:$9 sm:$0xff] %v4943
    %s5415 = scalar_lea.vmem [#allocation1], 3
    %5416 = vst [vmem:[%s5415] ss:$9 sm:$0xff] %v4944
    %s5417 = scalar_lea.vmem [#allocation1], 4
    %5418 = vst [vmem:[%s5417] ss:$9 sm:$0xff] %v4945
    %s5419 = scalar_lea.vmem [#allocation1], 5
    %5420 = vst [vmem:[%s5419] ss:$9 sm:$0xff] %v4946
    %s5421 = scalar_lea.vmem [#allocation1], 6
    %5422 = vst [vmem:[%s5421] ss:$9 sm:$0xff] %v4947
    %s5423 = scalar_lea.vmem [#allocation1], 7
    %5424 = vst [vmem:[%s5423] ss:$9 sm:$0xff] %v4948
    %v5425 = vld [vmem:[#allocation1] sm:$0xff]
    %5426 = vst [vmem:[#allocation1] ss:$9 sm:$0xff] %v4926
    %5427 = vst [vmem:[%s5411] ss:$9 sm:$0xff] %v4949
    %5428 = vst [vmem:[%s5413] ss:$9 sm:$0xff] %v4950
    %5429 = vst [vmem:[%s5415] ss:$9 sm:$0xff] %v4951
    %5430 = vst [vmem:[%s5417] ss:$9 sm:$0xff] %v4952
    %5431 = vst [vmem:[%s5419] ss:$9 sm:$0xff] %v4953
    %5432 = vst [vmem:[%s5421] ss:$9 sm:$0xff] %v4954
    %5433 = vst [vmem:[%s5423] ss:$9 sm:$0xff] %v4955
    %v5434 = vld [vmem:[#allocation1] sm:$0xff]
    %5435 = vst [vmem:[#allocation1] ss:$9 sm:$0xff] %v4929
    %v5436 = vld [vmem:[#allocation1] sm:$0xff]
    %5437 = vrot.lane.b32.xlu0 %v5425, 88
    %v5438 = vpop.permute.xlu0 %5437
    %5439 = vrot.lane.b32.xlu0 %v5434, 88
    %v5440 = vpop.permute.xlu0 %5439
    %5441 = vrot.lane.b32.xlu0 %v5436, 88
    %v5442 = vpop.permute.xlu0 %5441
    %v5443 = vsel %vm1234, %v5405, 0
    %v5445 = vsel %vm1234, %v5407, 0
    %v5447 = vsel %vm1234, %v5409, 0
    %v5449 = vsel %vm1234, %v5438, 0
    %v5451 = vsel %vm1234, %v5440, 0
    %v5453 = vsel %vm1234, %v5442, 0
    %5455 = vmatpush.xpose.msra.mxu0 0.0
    %5456 = vmatpush.xpose.msra.mxu0 0.0
    %5457 = vmatpush.xpose.msra.mxu0 0.0
    %5458 = vmatpush.xpose.msra.mxu0 0.0
    %5459 = vmatpush.xpose.msra.mxu0 0.0
    %5460 = vmatpush.xpose.msra.mxu0 0.0
    %5461 = vmatpush.xpose.msra.mxu0 0.0
    %5462 = vmatpush.xpose.msra.mxu0 0.0
    %5463 = vmatpush.xpose.msra.mxu0 0.0
    %5464 = vmatpush.xpose.msra.mxu0 0.0
    %5465 = vmatpush.xpose.msra.mxu0 0.0
    %5466 = vmatpush.xpose.msra.mxu0 0.0
    %5467 = vmatpush.xpose.msra.mxu0 0.0
    %5468 = vmatpush.xpose.msra.mxu0 %v5453
    %5469 = vmatpush.xpose.msra.mxu0 %v5451
    %5470 = vmatpush.xpose.msra.mxu0 %v5449
    %5471 = vmatmul.f32.gmra.mxu0 %v5443
    %v5472 = vpop.f32.mrf.mxu0
    %v5473 = vadd.f32 %v421, %v5472
    %5474 = vmatmul.f32.gmra.mxu0 %v5445
    %v5475 = vpop.f32.mrf.mxu0
    %v5476 = vadd.f32 %v422, %v5475
    %5477 = vmatmul.f32.gmra.mxu0 %v5447
    %v5478 = vpop.f32.mrf.mxu0
    %v5479 = vadd.f32 %v423, %v5478
    %5480 = vdwg.mxu0
    %5481 = vst [vmem:[#allocation1] ss:$9 sm:$0xff] %v4956
    %s5482 = scalar_lea.vmem [#allocation1], 1
    %5483 = vst [vmem:[%s5482] ss:$9 sm:$0xff] %v4957
    %s5484 = scalar_lea.vmem [#allocation1], 2
    %5485 = vst [vmem:[%s5484] ss:$9 sm:$0xff] %v4958
    %s5486 = scalar_lea.vmem [#allocation1], 3
    %5487 = vst [vmem:[%s5486] ss:$9 sm:$0xff] %v4959
    %s5488 = scalar_lea.vmem [#allocation1], 4
    %5489 = vst [vmem:[%s5488] ss:$9 sm:$0xff] %v4960
    %s5490 = scalar_lea.vmem [#allocation1], 5
    %5491 = vst [vmem:[%s5490] ss:$9 sm:$0xff] %v4961
    %s5492 = scalar_lea.vmem [#allocation1], 6
    %5493 = vst [vmem:[%s5492] ss:$9 sm:$0xff] %v4962
    %s5494 = scalar_lea.vmem [#allocation1], 7
    %5495 = vst [vmem:[%s5494] ss:$9 sm:$0xff] %v4932
    %v5496 = vld [vmem:[#allocation1] sm:$0xff]
    %5497 = vst [vmem:[#allocation1] ss:$9 sm:$0xff] %v4963
    %5498 = vst [vmem:[%s5482] ss:$9 sm:$0xff] %v4964
    %5499 = vst [vmem:[%s5484] ss:$9 sm:$0xff] %v4965
    %5500 = vst [vmem:[%s5486] ss:$9 sm:$0xff] %v4966
    %5501 = vst [vmem:[%s5488] ss:$9 sm:$0xff] %v4967
    %5502 = vst [vmem:[%s5490] ss:$9 sm:$0xff] %v4968
    %5503 = vst [vmem:[%s5492] ss:$9 sm:$0xff] %v4969
    %5504 = vst [vmem:[%s5494] ss:$9 sm:$0xff] %v4935
    %v5505 = vld [vmem:[#allocation1] sm:$0xff]
    %5506 = vst [vmem:[#allocation1] ss:$9 sm:$0xff] %v4970
    %v5507 = vld [vmem:[#allocation1] sm:$0xff]
    %5508 = vrot.lane.b32.xlu0 %v5496, 120
    %v5509 = vpop.permute.xlu0 %5508
    %5510 = vrot.lane.b32.xlu0 %v5505, 120
    %v5511 = vpop.permute.xlu0 %5510
    %5512 = vrot.lane.b32.xlu0 %v5507, 120
    %v5513 = vpop.permute.xlu0 %5512
    %5514 = vst [vmem:[#allocation1] ss:$9 sm:$0xff] %v4956
    %s5515 = scalar_lea.vmem [#allocation1], 1
    %5516 = vst [vmem:[%s5515] ss:$9 sm:$0xff] %v4957
    %s5517 = scalar_lea.vmem [#allocation1], 2
    %5518 = vst [vmem:[%s5517] ss:$9 sm:$0xff] %v4958
    %s5519 = scalar_lea.vmem [#allocation1], 3
    %5520 = vst [vmem:[%s5519] ss:$9 sm:$0xff] %v4959
    %s5521 = scalar_lea.vmem [#allocation1], 4
    %5522 = vst [vmem:[%s5521] ss:$9 sm:$0xff] %v4960
    %s5523 = scalar_lea.vmem [#allocation1], 5
    %5524 = vst [vmem:[%s5523] ss:$9 sm:$0xff] %v4961
    %s5525 = scalar_lea.vmem [#allocation1], 6
    %5526 = vst [vmem:[%s5525] ss:$9 sm:$0xff] %v4962
    %s5527 = scalar_lea.vmem [#allocation1], 7
    %5528 = vst [vmem:[%s5527] ss:$9 sm:$0xff] %v4932
    %v5529 = vld [vmem:[#allocation1] sm:$0xff]
    %5530 = vst [vmem:[#allocation1] ss:$9 sm:$0xff] %v4963
    %5531 = vst [vmem:[%s5515] ss:$9 sm:$0xff] %v4964
    %5532 = vst [vmem:[%s5517] ss:$9 sm:$0xff] %v4965
    %5533 = vst [vmem:[%s5519] ss:$9 sm:$0xff] %v4966
    %5534 = vst [vmem:[%s5521] ss:$9 sm:$0xff] %v4967
    %5535 = vst [vmem:[%s5523] ss:$9 sm:$0xff] %v4968
    %5536 = vst [vmem:[%s5525] ss:$9 sm:$0xff] %v4969
    %5537 = vst [vmem:[%s5527] ss:$9 sm:$0xff] %v4935
    %v5538 = vld [vmem:[#allocation1] sm:$0xff]
    %5539 = vst [vmem:[#allocation1] ss:$9 sm:$0xff] %v4970
    %v5540 = vld [vmem:[#allocation1] sm:$0xff]
    %5541 = vrot.lane.b32.xlu0 %v5529, 88
    %v5542 = vpop.permute.xlu0 %5541
    %5543 = vrot.lane.b32.xlu0 %v5538, 88
    %v5544 = vpop.permute.xlu0 %5543
    %5545 = vrot.lane.b32.xlu0 %v5540, 88
    %v5546 = vpop.permute.xlu0 %5545
    %v5547 = vsel %vm1234, %v5509, 0
    %v5549 = vsel %vm1234, %v5511, 0
    %v5551 = vsel %vm1234, %v5513, 0
    %v5553 = vsel %vm1234, %v5542, 0
    %v5555 = vsel %vm1234, %v5544, 0
    %v5557 = vsel %vm1234, %v5546, 0
    %5559 = vmatpush.xpose.msra.mxu0 0.0
    %5560 = vmatpush.xpose.msra.mxu0 0.0
    %5561 = vmatpush.xpose.msra.mxu0 0.0
    %5562 = vmatpush.xpose.msra.mxu0 0.0
    %5563 = vmatpush.xpose.msra.mxu0 0.0
    %5564 = vmatpush.xpose.msra.mxu0 0.0
    %5565 = vmatpush.xpose.msra.mxu0 0.0
    %5566 = vmatpush.xpose.msra.mxu0 0.0
    %5567 = vmatpush.xpose.msra.mxu0 0.0
    %5568 = vmatpush.xpose.msra.mxu0 0.0
    %5569 = vmatpush.xpose.msra.mxu0 0.0
    %5570 = vmatpush.xpose.msra.mxu0 0.0
    %5571 = vmatpush.xpose.msra.mxu0 0.0
    %5572 = vmatpush.xpose.msra.mxu0 %v5557
    %5573 = vmatpush.xpose.msra.mxu0 %v5555
    %5574 = vmatpush.xpose.msra.mxu0 %v5553
    %5575 = vmatmul.f32.gmra.mxu0 %v5547
    %v5576 = vpop.f32.mrf.mxu0
    %v5577 = vadd.f32 %v421, %v5576
    %5578 = vmatmul.f32.gmra.mxu0 %v5549
    %v5579 = vpop.f32.mrf.mxu0
    %v5580 = vadd.f32 %v422, %v5579
    %5581 = vmatmul.f32.gmra.mxu0 %v5551
    %v5582 = vpop.f32.mrf.mxu0
    %v5583 = vadd.f32 %v423, %v5582
    %5584 = vdwg.mxu0
    %v5585 = vsel %vm1371, %v5473, -inf
    %5586 = vmax.xlane.f32.xlu0 %v5585
    %v5587 = vpop.xlane.xlu0 %5586
    %v5588 = vsel %vm1371, %v5476, -inf
    %5589 = vmax.xlane.f32.xlu0 %v5588
    %v5590 = vpop.xlane.xlu0 %5589
    %v5591 = vsel %vm1378, %v5479, -inf
    %5592 = vmax.xlane.f32.xlu0 %v5591
    %v5593 = vpop.xlane.xlu0 %5592
    %v5594 = vsel %vm1371, %v5577, -inf
    %5595 = vmax.xlane.f32.xlu0 %v5594
    %v5596 = vpop.xlane.xlu0 %5595
    %v5597 = vsel %vm1371, %v5580, -inf
    %5598 = vmax.xlane.f32.xlu0 %v5597
    %v5599 = vpop.xlane.xlu0 %5598
    %v5600 = vsel %vm1378, %v5583, -inf
    %5601 = vmax.xlane.f32.xlu0 %v5600
    %v5602 = vpop.xlane.xlu0 %5601
    %v5603 = vsub.f32 %v5473, %v5587
    %v5604 = vsub.f32 %v5476, %v5590
    %v5605 = vsub.f32 %v5479, %v5593
    %v5606 = vsub.f32 %v5577, %v5596
    %v5607 = vsub.f32 %v5580, %v5599
    %v5608 = vsub.f32 %v5583, %v5602
    %v5609 = vmul.f32 %v5603, 1.442695
    %v5610 = vpow.pop %v5609
    %v5611 = vmul.f32 %v5604, 1.442695
    %v5612 = vpow.pop %v5611
    %v5613 = vmul.f32 %v5605, 1.442695
    %v5614 = vpow.pop %v5613
    %v5615 = vmul.f32 %v5606, 1.442695
    %v5616 = vpow.pop %v5615
    %v5617 = vmul.f32 %v5607, 1.442695
    %v5618 = vpow.pop %v5617
    %v5619 = vmul.f32 %v5608, 1.442695
    %v5620 = vpow.pop %v5619
    %v5621 = vsel %vm1371, %v5610, 0.0
    %5622 = vadd.xlane.f32.xlu0 %v5621
    %v5623 = vpop.xlane.xlu0 %5622
    %v5624 = vsel %vm1371, %v5612, 0.0
    %5625 = vadd.xlane.f32.xlu0 %v5624
    %v5626 = vpop.xlane.xlu0 %5625
    %v5627 = vsel %vm1378, %v5614, 0.0
    %5628 = vadd.xlane.f32.xlu0 %v5627
    %v5629 = vpop.xlane.xlu0 %5628
    %v5630 = vsel %vm1371, %v5616, 0.0
    %5631 = vadd.xlane.f32.xlu0 %v5630
    %v5632 = vpop.xlane.xlu0 %5631
    %v5633 = vsel %vm1371, %v5618, 0.0
    %5634 = vadd.xlane.f32.xlu0 %v5633
    %v5635 = vpop.xlane.xlu0 %5634
    %v5636 = vsel %vm1378, %v5620, 0.0
    %5637 = vadd.xlane.f32.xlu0 %v5636
    %v5638 = vpop.xlane.xlu0 %5637
    %v5639 = vrcp.pop %v5623
    %v5640 = vrcp.pop %v5626
    %v5641 = vrcp.pop %v5629
    %v5642 = vrcp.pop %v5632
    %v5643 = vrcp.pop %v5635
    %v5644 = vrcp.pop %v5638
    %v5645 = vmul.f32 %v5610, %v5639
    %v5646 = vmul.f32 %v5612, %v5640
    %v5647 = vmul.f32 %v5614, %v5641
    %v5648 = vmul.f32 %v5616, %v5642
    %v5649 = vmul.f32 %v5618, %v5643
    %v5650 = vmul.f32 %v5620, %v5644
    %5651 = vst [vmem:[#allocation1] ss:$9 sm:$0xff] %v4923
    %s5652 = scalar_lea.vmem [#allocation1], 1
    %5653 = vst [vmem:[%s5652] ss:$9 sm:$0xff] %v4942
    %s5654 = scalar_lea.vmem [#allocation1], 2
    %5655 = vst [vmem:[%s5654] ss:$9 sm:$0xff] %v4943
    %s5656 = scalar_lea.vmem [#allocation1], 3
    %5657 = vst [vmem:[%s5656] ss:$9 sm:$0xff] %v4944
    %s5658 = scalar_lea.vmem [#allocation1], 4
    %5659 = vst [vmem:[%s5658] ss:$9 sm:$0xff] %v4945
    %s5660 = scalar_lea.vmem [#allocation1], 5
    %5661 = vst [vmem:[%s5660] ss:$9 sm:$0xff] %v4946
    %s5662 = scalar_lea.vmem [#allocation1], 6
    %5663 = vst [vmem:[%s5662] ss:$9 sm:$0xff] %v4947
    %s5664 = scalar_lea.vmem [#allocation1], 7
    %5665 = vst [vmem:[%s5664] ss:$9 sm:$0xff] %v4948
    %v5666 = vld [vmem:[#allocation1] sm:$0xff]
    %5667 = vst [vmem:[#allocation1] ss:$9 sm:$0xff] %v4926
    %5668 = vst [vmem:[%s5652] ss:$9 sm:$0xff] %v4949
    %5669 = vst [vmem:[%s5654] ss:$9 sm:$0xff] %v4950
    %5670 = vst [vmem:[%s5656] ss:$9 sm:$0xff] %v4951
    %5671 = vst [vmem:[%s5658] ss:$9 sm:$0xff] %v4952
    %5672 = vst [vmem:[%s5660] ss:$9 sm:$0xff] %v4953
    %5673 = vst [vmem:[%s5662] ss:$9 sm:$0xff] %v4954
    %5674 = vst [vmem:[%s5664] ss:$9 sm:$0xff] %v4955
    %v5675 = vld [vmem:[#allocation1] sm:$0xff]
    %5676 = vst [vmem:[#allocation1] ss:$9 sm:$0xff] %v4929
    %v5677 = vld [vmem:[#allocation1] sm:$0xff]
    %5678 = vrot.lane.b32.xlu0 %v5666, 56
    %v5679 = vpop.permute.xlu0 %5678
    %5680 = vrot.lane.b32.xlu0 %v5675, 56
    %v5681 = vpop.permute.xlu0 %5680
    %5682 = vrot.lane.b32.xlu0 %v5677, 56
    %v5683 = vpop.permute.xlu0 %5682
    %v5687 = vsel %vm1371, %v5645, 0
    %v5690 = vsel %vm1371, %v5646, 0
    %v5693 = vsel %vm1371, %v5647, 0
    %v5695 = vsel %vm339, %v5683, 0
    %5697 = vmatpush.msra.mxu0 0.0
    %5698 = vmatpush.msra.mxu0 0.0
    %5699 = vmatpush.msra.mxu0 0.0
    %5700 = vmatpush.msra.mxu0 0.0
    %5701 = vmatpush.msra.mxu0 0.0
    %5702 = vmatpush.msra.mxu0 0.0
    %5703 = vmatpush.msra.mxu0 0.0
    %5704 = vmatpush.msra.mxu0 0.0
    %5705 = vmatpush.msra.mxu0 0.0
    %5706 = vmatpush.msra.mxu0 0.0
    %5707 = vmatpush.msra.mxu0 0.0
    %5708 = vmatpush.msra.mxu0 0.0
    %5709 = vmatpush.msra.mxu0 0.0
    %5710 = vmatpush.msra.mxu0 %v5695
    %5711 = vmatpush.msra.mxu0 %v5681
    %5712 = vmatpush.msra.mxu0 %v5679
    %5713 = vmatmul.f32.gmra.mxu0 %v5687
    %v5714 = vpop.f32.mrf.mxu0
    %v5715 = vadd.f32 0.0, %v5714
    %5716 = vmatmul.f32.gmra.mxu0 %v5690
    %v5717 = vpop.f32.mrf.mxu0
    %v5718 = vadd.f32 0.0, %v5717
    %5719 = vmatmul.f32.gmra.mxu0 %v5693
    %v5720 = vpop.f32.mrf.mxu0
    %v5721 = vadd.f32 0.0, %v5720
    %5722 = vdwg.mxu0
    %5723 = vst [vmem:[#allocation1] ss:$9 sm:$0xff] %v4956
    %s5724 = scalar_lea.vmem [#allocation1], 1
    %5725 = vst [vmem:[%s5724] ss:$9 sm:$0xff] %v4957
    %s5726 = scalar_lea.vmem [#allocation1], 2
    %5727 = vst [vmem:[%s5726] ss:$9 sm:$0xff] %v4958
    %s5728 = scalar_lea.vmem [#allocation1], 3
    %5729 = vst [vmem:[%s5728] ss:$9 sm:$0xff] %v4959
    %s5730 = scalar_lea.vmem [#allocation1], 4
    %5731 = vst [vmem:[%s5730] ss:$9 sm:$0xff] %v4960
    %s5732 = scalar_lea.vmem [#allocation1], 5
    %5733 = vst [vmem:[%s5732] ss:$9 sm:$0xff] %v4961
    %s5734 = scalar_lea.vmem [#allocation1], 6
    %5735 = vst [vmem:[%s5734] ss:$9 sm:$0xff] %v4962
    %s5736 = scalar_lea.vmem [#allocation1], 7
    %5737 = vst [vmem:[%s5736] ss:$9 sm:$0xff] %v4932
    %v5738 = vld [vmem:[#allocation1] sm:$0xff]
    %5739 = vst [vmem:[#allocation1] ss:$9 sm:$0xff] %v4963
    %5740 = vst [vmem:[%s5724] ss:$9 sm:$0xff] %v4964
    %5741 = vst [vmem:[%s5726] ss:$9 sm:$0xff] %v4965
    %5742 = vst [vmem:[%s5728] ss:$9 sm:$0xff] %v4966
    %5743 = vst [vmem:[%s5730] ss:$9 sm:$0xff] %v4967
    %5744 = vst [vmem:[%s5732] ss:$9 sm:$0xff] %v4968
    %5745 = vst [vmem:[%s5734] ss:$9 sm:$0xff] %v4969
    %5746 = vst [vmem:[%s5736] ss:$9 sm:$0xff] %v4935
    %v5747 = vld [vmem:[#allocation1] sm:$0xff]
    %5748 = vst [vmem:[#allocation1] ss:$9 sm:$0xff] %v4970
    %v5749 = vld [vmem:[#allocation1] sm:$0xff]
    %5750 = vrot.lane.b32.xlu0 %v5738, 56
    %v5751 = vpop.permute.xlu0 %5750
    %5752 = vrot.lane.b32.xlu0 %v5747, 56
    %v5753 = vpop.permute.xlu0 %5752
    %5754 = vrot.lane.b32.xlu0 %v5749, 56
    %v5755 = vpop.permute.xlu0 %5754
    %v5759 = vsel %vm1371, %v5648, 0
    %v5762 = vsel %vm1371, %v5649, 0
    %v5765 = vsel %vm1371, %v5650, 0
    %v5767 = vsel %vm339, %v5755, 0
    %5769 = vmatpush.msra.mxu0 0.0
    %5770 = vmatpush.msra.mxu0 0.0
    %5771 = vmatpush.msra.mxu0 0.0
    %5772 = vmatpush.msra.mxu0 0.0
    %5773 = vmatpush.msra.mxu0 0.0
    %5774 = vmatpush.msra.mxu0 0.0
    %5775 = vmatpush.msra.mxu0 0.0
    %5776 = vmatpush.msra.mxu0 0.0
    %5777 = vmatpush.msra.mxu0 0.0
    %5778 = vmatpush.msra.mxu0 0.0
    %5779 = vmatpush.msra.mxu0 0.0
    %5780 = vmatpush.msra.mxu0 0.0
    %5781 = vmatpush.msra.mxu0 0.0
    %5782 = vmatpush.msra.mxu0 %v5767
    %5783 = vmatpush.msra.mxu0 %v5753
    %5784 = vmatpush.msra.mxu0 %v5751
    %5785 = vmatmul.f32.gmra.mxu0 %v5759
    %v5786 = vpop.f32.mrf.mxu0
    %v5787 = vadd.f32 0.0, %v5786
    %5788 = vmatmul.f32.gmra.mxu0 %v5762
    %v5789 = vpop.f32.mrf.mxu0
    %v5790 = vadd.f32 0.0, %v5789
    %5791 = vmatmul.f32.gmra.mxu0 %v5765
    %v5792 = vpop.f32.mrf.mxu0
    %v5793 = vadd.f32 0.0, %v5792
    %5794 = vdwg.mxu0
    %5795 = vst [vmem:[#allocation1] ss:$9 sm:$0xff] %v4923
    %s5796 = scalar_lea.vmem [#allocation1], 1
    %5797 = vst [vmem:[%s5796] ss:$9 sm:$0xff] %v4942
    %s5798 = scalar_lea.vmem [#allocation1], 2
    %5799 = vst [vmem:[%s5798] ss:$9 sm:$0xff] %v4943
    %s5800 = scalar_lea.vmem [#allocation1], 3
    %5801 = vst [vmem:[%s5800] ss:$9 sm:$0xff] %v4944
    %s5802 = scalar_lea.vmem [#allocation1], 4
    %5803 = vst [vmem:[%s5802] ss:$9 sm:$0xff] %v4945
    %s5804 = scalar_lea.vmem [#allocation1], 5
    %5805 = vst [vmem:[%s5804] ss:$9 sm:$0xff] %v4946
    %s5806 = scalar_lea.vmem [#allocation1], 6
    %5807 = vst [vmem:[%s5806] ss:$9 sm:$0xff] %v4947
    %s5808 = scalar_lea.vmem [#allocation1], 7
    %5809 = vst [vmem:[%s5808] ss:$9 sm:$0xff] %v4948
    %v5810 = vld [vmem:[#allocation1] sm:$0xff]
    %5811 = vst [vmem:[#allocation1] ss:$9 sm:$0xff] %v4926
    %5812 = vst [vmem:[%s5796] ss:$9 sm:$0xff] %v4949
    %5813 = vst [vmem:[%s5798] ss:$9 sm:$0xff] %v4950
    %5814 = vst [vmem:[%s5800] ss:$9 sm:$0xff] %v4951
    %5815 = vst [vmem:[%s5802] ss:$9 sm:$0xff] %v4952
    %5816 = vst [vmem:[%s5804] ss:$9 sm:$0xff] %v4953
    %5817 = vst [vmem:[%s5806] ss:$9 sm:$0xff] %v4954
    %5818 = vst [vmem:[%s5808] ss:$9 sm:$0xff] %v4955
    %v5819 = vld [vmem:[#allocation1] sm:$0xff]
    %5820 = vst [vmem:[#allocation1] ss:$9 sm:$0xff] %v4929
    %v5821 = vld [vmem:[#allocation1] sm:$0xff]
    %5822 = vrot.lane.b32.xlu0 %v5810, 112
    %v5823 = vpop.permute.xlu0 %5822
    %5824 = vrot.lane.b32.xlu0 %v5819, 112
    %v5825 = vpop.permute.xlu0 %5824
    %5826 = vrot.lane.b32.xlu0 %v5821, 112
    %v5827 = vpop.permute.xlu0 %5826
    %5828 = vst [vmem:[#allocation1] ss:$9 sm:$0xff] %v4923
    %s5829 = scalar_lea.vmem [#allocation1], 1
    %5830 = vst [vmem:[%s5829] ss:$9 sm:$0xff] %v4942
    %s5831 = scalar_lea.vmem [#allocation1], 2
    %5832 = vst [vmem:[%s5831] ss:$9 sm:$0xff] %v4943
    %s5833 = scalar_lea.vmem [#allocation1], 3
    %5834 = vst [vmem:[%s5833] ss:$9 sm:$0xff] %v4944
    %s5835 = scalar_lea.vmem [#allocation1], 4
    %5836 = vst [vmem:[%s5835] ss:$9 sm:$0xff] %v4945
    %s5837 = scalar_lea.vmem [#allocation1], 5
    %5838 = vst [vmem:[%s5837] ss:$9 sm:$0xff] %v4946
    %s5839 = scalar_lea.vmem [#allocation1], 6
    %5840 = vst [vmem:[%s5839] ss:$9 sm:$0xff] %v4947
    %s5841 = scalar_lea.vmem [#allocation1], 7
    %5842 = vst [vmem:[%s5841] ss:$9 sm:$0xff] %v4948
    %v5843 = vld [vmem:[#allocation1] sm:$0xff]
    %5844 = vst [vmem:[#allocation1] ss:$9 sm:$0xff] %v4926
    %5845 = vst [vmem:[%s5829] ss:$9 sm:$0xff] %v4949
    %5846 = vst [vmem:[%s5831] ss:$9 sm:$0xff] %v4950
    %5847 = vst [vmem:[%s5833] ss:$9 sm:$0xff] %v4951
    %5848 = vst [vmem:[%s5835] ss:$9 sm:$0xff] %v4952
    %5849 = vst [vmem:[%s5837] ss:$9 sm:$0xff] %v4953
    %5850 = vst [vmem:[%s5839] ss:$9 sm:$0xff] %v4954
    %5851 = vst [vmem:[%s5841] ss:$9 sm:$0xff] %v4955
    %v5852 = vld [vmem:[#allocation1] sm:$0xff]
    %5853 = vst [vmem:[#allocation1] ss:$9 sm:$0xff] %v4929
    %v5854 = vld [vmem:[#allocation1] sm:$0xff]
    %5855 = vrot.lane.b32.xlu0 %v5843, 80
    %v5856 = vpop.permute.xlu0 %5855
    %5857 = vrot.lane.b32.xlu0 %v5852, 80
    %v5858 = vpop.permute.xlu0 %5857
    %5859 = vrot.lane.b32.xlu0 %v5854, 80
    %v5860 = vpop.permute.xlu0 %5859
    %v5861 = vsel %vm1234, %v5823, 0
    %v5863 = vsel %vm1234, %v5825, 0
    %v5865 = vsel %vm1234, %v5827, 0
    %v5867 = vsel %vm1234, %v5856, 0
    %v5869 = vsel %vm1234, %v5858, 0
    %v5871 = vsel %vm1234, %v5860, 0
    %5873 = vmatpush.xpose.msra.mxu0 0.0
    %5874 = vmatpush.xpose.msra.mxu0 0.0
    %5875 = vmatpush.xpose.msra.mxu0 0.0
    %5876 = vmatpush.xpose.msra.mxu0 0.0
    %5877 = vmatpush.xpose.msra.mxu0 0.0
    %5878 = vmatpush.xpose.msra.mxu0 0.0
    %5879 = vmatpush.xpose.msra.mxu0 0.0
    %5880 = vmatpush.xpose.msra.mxu0 0.0
    %5881 = vmatpush.xpose.msra.mxu0 0.0
    %5882 = vmatpush.xpose.msra.mxu0 0.0
    %5883 = vmatpush.xpose.msra.mxu0 0.0
    %5884 = vmatpush.xpose.msra.mxu0 0.0
    %5885 = vmatpush.xpose.msra.mxu0 0.0
    %5886 = vmatpush.xpose.msra.mxu0 %v5871
    %5887 = vmatpush.xpose.msra.mxu0 %v5869
    %5888 = vmatpush.xpose.msra.mxu0 %v5867
    %5889 = vmatmul.f32.gmra.mxu0 %v5861
    %v5890 = vpop.f32.mrf.mxu0
    %v5891 = vadd.f32 %v421, %v5890
    %5892 = vmatmul.f32.gmra.mxu0 %v5863
    %v5893 = vpop.f32.mrf.mxu0
    %v5894 = vadd.f32 %v422, %v5893
    %5895 = vmatmul.f32.gmra.mxu0 %v5865
    %v5896 = vpop.f32.mrf.mxu0
    %v5897 = vadd.f32 %v423, %v5896
    %5898 = vdwg.mxu0
    %5899 = vst [vmem:[#allocation1] ss:$9 sm:$0xff] %v4956
    %s5900 = scalar_lea.vmem [#allocation1], 1
    %5901 = vst [vmem:[%s5900] ss:$9 sm:$0xff] %v4957
    %s5902 = scalar_lea.vmem [#allocation1], 2
    %5903 = vst [vmem:[%s5902] ss:$9 sm:$0xff] %v4958
    %s5904 = scalar_lea.vmem [#allocation1], 3
    %5905 = vst [vmem:[%s5904] ss:$9 sm:$0xff] %v4959
    %s5906 = scalar_lea.vmem [#allocation1], 4
    %5907 = vst [vmem:[%s5906] ss:$9 sm:$0xff] %v4960
    %s5908 = scalar_lea.vmem [#allocation1], 5
    %5909 = vst [vmem:[%s5908] ss:$9 sm:$0xff] %v4961
    %s5910 = scalar_lea.vmem [#allocation1], 6
    %5911 = vst [vmem:[%s5910] ss:$9 sm:$0xff] %v4962
    %s5912 = scalar_lea.vmem [#allocation1], 7
    %5913 = vst [vmem:[%s5912] ss:$9 sm:$0xff] %v4932
    %v5914 = vld [vmem:[#allocation1] sm:$0xff]
    %5915 = vst [vmem:[#allocation1] ss:$9 sm:$0xff] %v4963
    %5916 = vst [vmem:[%s5900] ss:$9 sm:$0xff] %v4964
    %5917 = vst [vmem:[%s5902] ss:$9 sm:$0xff] %v4965
    %5918 = vst [vmem:[%s5904] ss:$9 sm:$0xff] %v4966
    %5919 = vst [vmem:[%s5906] ss:$9 sm:$0xff] %v4967
    %5920 = vst [vmem:[%s5908] ss:$9 sm:$0xff] %v4968
    %5921 = vst [vmem:[%s5910] ss:$9 sm:$0xff] %v4969
    %5922 = vst [vmem:[%s5912] ss:$9 sm:$0xff] %v4935
    %v5923 = vld [vmem:[#allocation1] sm:$0xff]
    %5924 = vst [vmem:[#allocation1] ss:$9 sm:$0xff] %v4970
    %v5925 = vld [vmem:[#allocation1] sm:$0xff]
    %5926 = vrot.lane.b32.xlu0 %v5914, 112
    %v5927 = vpop.permute.xlu0 %5926
    %5928 = vrot.lane.b32.xlu0 %v5923, 112
    %v5929 = vpop.permute.xlu0 %5928
    %5930 = vrot.lane.b32.xlu0 %v5925, 112
    %v5931 = vpop.permute.xlu0 %5930
    %5932 = vst [vmem:[#allocation1] ss:$9 sm:$0xff] %v4956
    %s5933 = scalar_lea.vmem [#allocation1], 1
    %5934 = vst [vmem:[%s5933] ss:$9 sm:$0xff] %v4957
    %s5935 = scalar_lea.vmem [#allocation1], 2
    %5936 = vst [vmem:[%s5935] ss:$9 sm:$0xff] %v4958
    %s5937 = scalar_lea.vmem [#allocation1], 3
    %5938 = vst [vmem:[%s5937] ss:$9 sm:$0xff] %v4959
    %s5939 = scalar_lea.vmem [#allocation1], 4
    %5940 = vst [vmem:[%s5939] ss:$9 sm:$0xff] %v4960
    %s5941 = scalar_lea.vmem [#allocation1], 5
    %5942 = vst [vmem:[%s5941] ss:$9 sm:$0xff] %v4961
    %s5943 = scalar_lea.vmem [#allocation1], 6
    %5944 = vst [vmem:[%s5943] ss:$9 sm:$0xff] %v4962
    %s5945 = scalar_lea.vmem [#allocation1], 7
    %5946 = vst [vmem:[%s5945] ss:$9 sm:$0xff] %v4932
    %v5947 = vld [vmem:[#allocation1] sm:$0xff]
    %5948 = vst [vmem:[#allocation1] ss:$9 sm:$0xff] %v4963
    %5949 = vst [vmem:[%s5933] ss:$9 sm:$0xff] %v4964
    %5950 = vst [vmem:[%s5935] ss:$9 sm:$0xff] %v4965
    %5951 = vst [vmem:[%s5937] ss:$9 sm:$0xff] %v4966
    %5952 = vst [vmem:[%s5939] ss:$9 sm:$0xff] %v4967
    %5953 = vst [vmem:[%s5941] ss:$9 sm:$0xff] %v4968
    %5954 = vst [vmem:[%s5943] ss:$9 sm:$0xff] %v4969
    %5955 = vst [vmem:[%s5945] ss:$9 sm:$0xff] %v4935
    %v5956 = vld [vmem:[#allocation1] sm:$0xff]
    %5957 = vst [vmem:[#allocation1] ss:$9 sm:$0xff] %v4970
    %v5958 = vld [vmem:[#allocation1] sm:$0xff]
    %5959 = vrot.lane.b32.xlu0 %v5947, 80
    %v5960 = vpop.permute.xlu0 %5959
    %5961 = vrot.lane.b32.xlu0 %v5956, 80
    %v5962 = vpop.permute.xlu0 %5961
    %5963 = vrot.lane.b32.xlu0 %v5958, 80
    %v5964 = vpop.permute.xlu0 %5963
    %v5965 = vsel %vm1234, %v5927, 0
    %v5967 = vsel %vm1234, %v5929, 0
    %v5969 = vsel %vm1234, %v5931, 0
    %v5971 = vsel %vm1234, %v5960, 0
    %v5973 = vsel %vm1234, %v5962, 0
    %v5975 = vsel %vm1234, %v5964, 0
    %5977 = vmatpush.xpose.msra.mxu0 0.0
    %5978 = vmatpush.xpose.msra.mxu0 0.0
    %5979 = vmatpush.xpose.msra.mxu0 0.0
    %5980 = vmatpush.xpose.msra.mxu0 0.0
    %5981 = vmatpush.xpose.msra.mxu0 0.0
    %5982 = vmatpush.xpose.msra.mxu0 0.0
    %5983 = vmatpush.xpose.msra.mxu0 0.0
    %5984 = vmatpush.xpose.msra.mxu0 0.0
    %5985 = vmatpush.xpose.msra.mxu0 0.0
    %5986 = vmatpush.xpose.msra.mxu0 0.0
    %5987 = vmatpush.xpose.msra.mxu0 0.0
    %5988 = vmatpush.xpose.msra.mxu0 0.0
    %5989 = vmatpush.xpose.msra.mxu0 0.0
    %5990 = vmatpush.xpose.msra.mxu0 %v5975
    %5991 = vmatpush.xpose.msra.mxu0 %v5973
    %5992 = vmatpush.xpose.msra.mxu0 %v5971
    %5993 = vmatmul.f32.gmra.mxu0 %v5965
    %v5994 = vpop.f32.mrf.mxu0
    %v5995 = vadd.f32 %v421, %v5994
    %5996 = vmatmul.f32.gmra.mxu0 %v5967
    %v5997 = vpop.f32.mrf.mxu0
    %v5998 = vadd.f32 %v422, %v5997
    %5999 = vmatmul.f32.gmra.mxu0 %v5969
    %v6000 = vpop.f32.mrf.mxu0
    %v6001 = vadd.f32 %v423, %v6000
    %6002 = vdwg.mxu0
    %v6003 = vsel %vm1371, %v5891, -inf
    %6004 = vmax.xlane.f32.xlu0 %v6003
    %v6005 = vpop.xlane.xlu0 %6004
    %v6006 = vsel %vm1371, %v5894, -inf
    %6007 = vmax.xlane.f32.xlu0 %v6006
    %v6008 = vpop.xlane.xlu0 %6007
    %v6009 = vsel %vm1378, %v5897, -inf
    %6010 = vmax.xlane.f32.xlu0 %v6009
    %v6011 = vpop.xlane.xlu0 %6010
    %v6012 = vsel %vm1371, %v5995, -inf
    %6013 = vmax.xlane.f32.xlu0 %v6012
    %v6014 = vpop.xlane.xlu0 %6013
    %v6015 = vsel %vm1371, %v5998, -inf
    %6016 = vmax.xlane.f32.xlu0 %v6015
    %v6017 = vpop.xlane.xlu0 %6016
    %v6018 = vsel %vm1378, %v6001, -inf
    %6019 = vmax.xlane.f32.xlu0 %v6018
    %v6020 = vpop.xlane.xlu0 %6019
    %v6021 = vsub.f32 %v5891, %v6005
    %v6022 = vsub.f32 %v5894, %v6008
    %v6023 = vsub.f32 %v5897, %v6011
    %v6024 = vsub.f32 %v5995, %v6014
    %v6025 = vsub.f32 %v5998, %v6017
    %v6026 = vsub.f32 %v6001, %v6020
    %v6027 = vmul.f32 %v6021, 1.442695
    %v6028 = vpow.pop %v6027
    %v6029 = vmul.f32 %v6022, 1.442695
    %v6030 = vpow.pop %v6029
    %v6031 = vmul.f32 %v6023, 1.442695
    %v6032 = vpow.pop %v6031
    %v6033 = vmul.f32 %v6024, 1.442695
    %v6034 = vpow.pop %v6033
    %v6035 = vmul.f32 %v6025, 1.442695
    %v6036 = vpow.pop %v6035
    %v6037 = vmul.f32 %v6026, 1.442695
    %v6038 = vpow.pop %v6037
    %v6039 = vsel %vm1371, %v6028, 0.0
    %6040 = vadd.xlane.f32.xlu0 %v6039
    %v6041 = vpop.xlane.xlu0 %6040
    %v6042 = vsel %vm1371, %v6030, 0.0
    %6043 = vadd.xlane.f32.xlu0 %v6042
    %v6044 = vpop.xlane.xlu0 %6043
    %v6045 = vsel %vm1378, %v6032, 0.0
    %6046 = vadd.xlane.f32.xlu0 %v6045
    %v6047 = vpop.xlane.xlu0 %6046
    %v6048 = vsel %vm1371, %v6034, 0.0
    %6049 = vadd.xlane.f32.xlu0 %v6048
    %v6050 = vpop.xlane.xlu0 %6049
    %v6051 = vsel %vm1371, %v6036, 0.0
    %6052 = vadd.xlane.f32.xlu0 %v6051
    %v6053 = vpop.xlane.xlu0 %6052
    %v6054 = vsel %vm1378, %v6038, 0.0
    %6055 = vadd.xlane.f32.xlu0 %v6054
    %v6056 = vpop.xlane.xlu0 %6055
    %v6057 = vrcp.pop %v6041
    %v6058 = vrcp.pop %v6044
    %v6059 = vrcp.pop %v6047
    %v6060 = vrcp.pop %v6050
    %v6061 = vrcp.pop %v6053
    %v6062 = vrcp.pop %v6056
    %v6063 = vmul.f32 %v6028, %v6057
    %v6064 = vmul.f32 %v6030, %v6058
    %v6065 = vmul.f32 %v6032, %v6059
    %v6066 = vmul.f32 %v6034, %v6060
    %v6067 = vmul.f32 %v6036, %v6061
    %v6068 = vmul.f32 %v6038, %v6062
    %6069 = vst [vmem:[#allocation1] ss:$9 sm:$0xff] %v4923
    %s6070 = scalar_lea.vmem [#allocation1], 1
    %6071 = vst [vmem:[%s6070] ss:$9 sm:$0xff] %v4942
    %s6072 = scalar_lea.vmem [#allocation1], 2
    %6073 = vst [vmem:[%s6072] ss:$9 sm:$0xff] %v4943
    %s6074 = scalar_lea.vmem [#allocation1], 3
    %6075 = vst [vmem:[%s6074] ss:$9 sm:$0xff] %v4944
    %s6076 = scalar_lea.vmem [#allocation1], 4
    %6077 = vst [vmem:[%s6076] ss:$9 sm:$0xff] %v4945
    %s6078 = scalar_lea.vmem [#allocation1], 5
    %6079 = vst [vmem:[%s6078] ss:$9 sm:$0xff] %v4946
    %s6080 = scalar_lea.vmem [#allocation1], 6
    %6081 = vst [vmem:[%s6080] ss:$9 sm:$0xff] %v4947
    %s6082 = scalar_lea.vmem [#allocation1], 7
    %6083 = vst [vmem:[%s6082] ss:$9 sm:$0xff] %v4948
    %v6084 = vld [vmem:[#allocation1] sm:$0xff]
    %6085 = vst [vmem:[#allocation1] ss:$9 sm:$0xff] %v4926
    %6086 = vst [vmem:[%s6070] ss:$9 sm:$0xff] %v4949
    %6087 = vst [vmem:[%s6072] ss:$9 sm:$0xff] %v4950
    %6088 = vst [vmem:[%s6074] ss:$9 sm:$0xff] %v4951
    %6089 = vst [vmem:[%s6076] ss:$9 sm:$0xff] %v4952
    %6090 = vst [vmem:[%s6078] ss:$9 sm:$0xff] %v4953
    %6091 = vst [vmem:[%s6080] ss:$9 sm:$0xff] %v4954
    %6092 = vst [vmem:[%s6082] ss:$9 sm:$0xff] %v4955
    %v6093 = vld [vmem:[#allocation1] sm:$0xff]
    %6094 = vst [vmem:[#allocation1] ss:$9 sm:$0xff] %v4929
    %v6095 = vld [vmem:[#allocation1] sm:$0xff]
    %6096 = vrot.lane.b32.xlu0 %v6084, 48
    %v6097 = vpop.permute.xlu0 %6096
    %6098 = vrot.lane.b32.xlu0 %v6093, 48
    %v6099 = vpop.permute.xlu0 %6098
    %6100 = vrot.lane.b32.xlu0 %v6095, 48
    %v6101 = vpop.permute.xlu0 %6100
    %v6105 = vsel %vm1371, %v6063, 0
    %v6108 = vsel %vm1371, %v6064, 0
    %v6111 = vsel %vm1371, %v6065, 0
    %v6113 = vsel %vm339, %v6101, 0
    %6115 = vmatpush.msra.mxu0 0.0
    %6116 = vmatpush.msra.mxu0 0.0
    %6117 = vmatpush.msra.mxu0 0.0
    %6118 = vmatpush.msra.mxu0 0.0
    %6119 = vmatpush.msra.mxu0 0.0
    %6120 = vmatpush.msra.mxu0 0.0
    %6121 = vmatpush.msra.mxu0 0.0
    %6122 = vmatpush.msra.mxu0 0.0
    %6123 = vmatpush.msra.mxu0 0.0
    %6124 = vmatpush.msra.mxu0 0.0
    %6125 = vmatpush.msra.mxu0 0.0
    %6126 = vmatpush.msra.mxu0 0.0
    %6127 = vmatpush.msra.mxu0 0.0
    %6128 = vmatpush.msra.mxu0 %v6113
    %6129 = vmatpush.msra.mxu0 %v6099
    %6130 = vmatpush.msra.mxu0 %v6097
    %6131 = vmatmul.f32.gmra.mxu0 %v6105
    %v6132 = vpop.f32.mrf.mxu0
    %v6133 = vadd.f32 0.0, %v6132
    %6134 = vmatmul.f32.gmra.mxu0 %v6108
    %v6135 = vpop.f32.mrf.mxu0
    %v6136 = vadd.f32 0.0, %v6135
    %6137 = vmatmul.f32.gmra.mxu0 %v6111
    %v6138 = vpop.f32.mrf.mxu0
    %v6139 = vadd.f32 0.0, %v6138
    %6140 = vdwg.mxu0
    %6141 = vst [vmem:[#allocation1] ss:$9 sm:$0xff] %v4956
    %s6142 = scalar_lea.vmem [#allocation1], 1
    %6143 = vst [vmem:[%s6142] ss:$9 sm:$0xff] %v4957
    %s6144 = scalar_lea.vmem [#allocation1], 2
    %6145 = vst [vmem:[%s6144] ss:$9 sm:$0xff] %v4958
    %s6146 = scalar_lea.vmem [#allocation1], 3
    %6147 = vst [vmem:[%s6146] ss:$9 sm:$0xff] %v4959
    %s6148 = scalar_lea.vmem [#allocation1], 4
    %6149 = vst [vmem:[%s6148] ss:$9 sm:$0xff] %v4960
    %s6150 = scalar_lea.vmem [#allocation1], 5
    %6151 = vst [vmem:[%s6150] ss:$9 sm:$0xff] %v4961
    %s6152 = scalar_lea.vmem [#allocation1], 6
    %6153 = vst [vmem:[%s6152] ss:$9 sm:$0xff] %v4962
    %s6154 = scalar_lea.vmem [#allocation1], 7
    %6155 = vst [vmem:[%s6154] ss:$9 sm:$0xff] %v4932
    %v6156 = vld [vmem:[#allocation1] sm:$0xff]
    %6157 = vst [vmem:[#allocation1] ss:$9 sm:$0xff] %v4963
    %6158 = vst [vmem:[%s6142] ss:$9 sm:$0xff] %v4964
    %6159 = vst [vmem:[%s6144] ss:$9 sm:$0xff] %v4965
    %6160 = vst [vmem:[%s6146] ss:$9 sm:$0xff] %v4966
    %6161 = vst [vmem:[%s6148] ss:$9 sm:$0xff] %v4967
    %6162 = vst [vmem:[%s6150] ss:$9 sm:$0xff] %v4968
    %6163 = vst [vmem:[%s6152] ss:$9 sm:$0xff] %v4969
    %6164 = vst [vmem:[%s6154] ss:$9 sm:$0xff] %v4935
    %v6165 = vld [vmem:[#allocation1] sm:$0xff]
    %6166 = vst [vmem:[#allocation1] ss:$9 sm:$0xff] %v4970
    %v6167 = vld [vmem:[#allocation1] sm:$0xff]
    %6168 = vrot.lane.b32.xlu0 %v6156, 48
    %v6169 = vpop.permute.xlu0 %6168
    %6170 = vrot.lane.b32.xlu0 %v6165, 48
    %v6171 = vpop.permute.xlu0 %6170
    %6172 = vrot.lane.b32.xlu0 %v6167, 48
    %v6173 = vpop.permute.xlu0 %6172
    %v6177 = vsel %vm1371, %v6066, 0
    %v6180 = vsel %vm1371, %v6067, 0
    %v6183 = vsel %vm1371, %v6068, 0
    %v6185 = vsel %vm339, %v6173, 0
    %6187 = vmatpush.msra.mxu0 0.0
    %6188 = vmatpush.msra.mxu0 0.0
    %6189 = vmatpush.msra.mxu0 0.0
    %6190 = vmatpush.msra.mxu0 0.0
    %6191 = vmatpush.msra.mxu0 0.0
    %6192 = vmatpush.msra.mxu0 0.0
    %6193 = vmatpush.msra.mxu0 0.0
    %6194 = vmatpush.msra.mxu0 0.0
    %6195 = vmatpush.msra.mxu0 0.0
    %6196 = vmatpush.msra.mxu0 0.0
    %6197 = vmatpush.msra.mxu0 0.0
    %6198 = vmatpush.msra.mxu0 0.0
    %6199 = vmatpush.msra.mxu0 0.0
    %6200 = vmatpush.msra.mxu0 %v6185
    %6201 = vmatpush.msra.mxu0 %v6171
    %6202 = vmatpush.msra.mxu0 %v6169
    %6203 = vmatmul.f32.gmra.mxu0 %v6177
    %v6204 = vpop.f32.mrf.mxu0
    %v6205 = vadd.f32 0.0, %v6204
    %6206 = vmatmul.f32.gmra.mxu0 %v6180
    %v6207 = vpop.f32.mrf.mxu0
    %v6208 = vadd.f32 0.0, %v6207
    %6209 = vmatmul.f32.gmra.mxu0 %v6183
    %v6210 = vpop.f32.mrf.mxu0
    %v6211 = vadd.f32 0.0, %v6210
    %6212 = vdwg.mxu0
    %6213 = vst [vmem:[#allocation1] ss:$9 sm:$0xff] %v4923
    %s6214 = scalar_lea.vmem [#allocation1], 1
    %6215 = vst [vmem:[%s6214] ss:$9 sm:$0xff] %v4942
    %s6216 = scalar_lea.vmem [#allocation1], 2
    %6217 = vst [vmem:[%s6216] ss:$9 sm:$0xff] %v4943
    %s6218 = scalar_lea.vmem [#allocation1], 3
    %6219 = vst [vmem:[%s6218] ss:$9 sm:$0xff] %v4944
    %s6220 = scalar_lea.vmem [#allocation1], 4
    %6221 = vst [vmem:[%s6220] ss:$9 sm:$0xff] %v4945
    %s6222 = scalar_lea.vmem [#allocation1], 5
    %6223 = vst [vmem:[%s6222] ss:$9 sm:$0xff] %v4946
    %s6224 = scalar_lea.vmem [#allocation1], 6
    %6225 = vst [vmem:[%s6224] ss:$9 sm:$0xff] %v4947
    %s6226 = scalar_lea.vmem [#allocation1], 7
    %6227 = vst [vmem:[%s6226] ss:$9 sm:$0xff] %v4948
    %v6228 = vld [vmem:[#allocation1] sm:$0xff]
    %6229 = vst [vmem:[#allocation1] ss:$9 sm:$0xff] %v4926
    %6230 = vst [vmem:[%s6214] ss:$9 sm:$0xff] %v4949
    %6231 = vst [vmem:[%s6216] ss:$9 sm:$0xff] %v4950
    %6232 = vst [vmem:[%s6218] ss:$9 sm:$0xff] %v4951
    %6233 = vst [vmem:[%s6220] ss:$9 sm:$0xff] %v4952
    %6234 = vst [vmem:[%s6222] ss:$9 sm:$0xff] %v4953
    %6235 = vst [vmem:[%s6224] ss:$9 sm:$0xff] %v4954
    %6236 = vst [vmem:[%s6226] ss:$9 sm:$0xff] %v4955
    %v6237 = vld [vmem:[#allocation1] sm:$0xff]
    %6238 = vst [vmem:[#allocation1] ss:$9 sm:$0xff] %v4929
    %v6239 = vld [vmem:[#allocation1] sm:$0xff]
    %6240 = vrot.lane.b32.xlu0 %v6228, 104
    %v6241 = vpop.permute.xlu0 %6240
    %6242 = vrot.lane.b32.xlu0 %v6237, 104
    %v6243 = vpop.permute.xlu0 %6242
    %6244 = vrot.lane.b32.xlu0 %v6239, 104
    %v6245 = vpop.permute.xlu0 %6244
    %6246 = vst [vmem:[#allocation1] ss:$9 sm:$0xff] %v4923
    %s6247 = scalar_lea.vmem [#allocation1], 1
    %6248 = vst [vmem:[%s6247] ss:$9 sm:$0xff] %v4942
    %s6249 = scalar_lea.vmem [#allocation1], 2
    %6250 = vst [vmem:[%s6249] ss:$9 sm:$0xff] %v4943
    %s6251 = scalar_lea.vmem [#allocation1], 3
    %6252 = vst [vmem:[%s6251] ss:$9 sm:$0xff] %v4944
    %s6253 = scalar_lea.vmem [#allocation1], 4
    %6254 = vst [vmem:[%s6253] ss:$9 sm:$0xff] %v4945
    %s6255 = scalar_lea.vmem [#allocation1], 5
    %6256 = vst [vmem:[%s6255] ss:$9 sm:$0xff] %v4946
    %s6257 = scalar_lea.vmem [#allocation1], 6
    %6258 = vst [vmem:[%s6257] ss:$9 sm:$0xff] %v4947
    %s6259 = scalar_lea.vmem [#allocation1], 7
    %6260 = vst [vmem:[%s6259] ss:$9 sm:$0xff] %v4948
    %v6261 = vld [vmem:[#allocation1] sm:$0xff]
    %6262 = vst [vmem:[#allocation1] ss:$9 sm:$0xff] %v4926
    %6263 = vst [vmem:[%s6247] ss:$9 sm:$0xff] %v4949
    %6264 = vst [vmem:[%s6249] ss:$9 sm:$0xff] %v4950
    %6265 = vst [vmem:[%s6251] ss:$9 sm:$0xff] %v4951
    %6266 = vst [vmem:[%s6253] ss:$9 sm:$0xff] %v4952
    %6267 = vst [vmem:[%s6255] ss:$9 sm:$0xff] %v4953
    %6268 = vst [vmem:[%s6257] ss:$9 sm:$0xff] %v4954
    %6269 = vst [vmem:[%s6259] ss:$9 sm:$0xff] %v4955
    %v6270 = vld [vmem:[#allocation1] sm:$0xff]
    %6271 = vst [vmem:[#allocation1] ss:$9 sm:$0xff] %v4929
    %v6272 = vld [vmem:[#allocation1] sm:$0xff]
    %6273 = vrot.lane.b32.xlu0 %v6261, 72
    %v6274 = vpop.permute.xlu0 %6273
    %6275 = vrot.lane.b32.xlu0 %v6270, 72
    %v6276 = vpop.permute.xlu0 %6275
    %6277 = vrot.lane.b32.xlu0 %v6272, 72
    %v6278 = vpop.permute.xlu0 %6277
    %v6279 = vsel %vm1234, %v6241, 0
    %v6281 = vsel %vm1234, %v6243, 0
    %v6283 = vsel %vm1234, %v6245, 0
    %v6285 = vsel %vm1234, %v6274, 0
    %v6287 = vsel %vm1234, %v6276, 0
    %v6289 = vsel %vm1234, %v6278, 0
    %6291 = vmatpush.xpose.msra.mxu0 0.0
    %6292 = vmatpush.xpose.msra.mxu0 0.0
    %6293 = vmatpush.xpose.msra.mxu0 0.0
    %6294 = vmatpush.xpose.msra.mxu0 0.0
    %6295 = vmatpush.xpose.msra.mxu0 0.0
    %6296 = vmatpush.xpose.msra.mxu0 0.0
    %6297 = vmatpush.xpose.msra.mxu0 0.0
    %6298 = vmatpush.xpose.msra.mxu0 0.0
    %6299 = vmatpush.xpose.msra.mxu0 0.0
    %6300 = vmatpush.xpose.msra.mxu0 0.0
    %6301 = vmatpush.xpose.msra.mxu0 0.0
    %6302 = vmatpush.xpose.msra.mxu0 0.0
    %6303 = vmatpush.xpose.msra.mxu0 0.0
    %6304 = vmatpush.xpose.msra.mxu0 %v6289
    %6305 = vmatpush.xpose.msra.mxu0 %v6287
    %6306 = vmatpush.xpose.msra.mxu0 %v6285
    %6307 = vmatmul.f32.gmra.mxu0 %v6279
    %v6308 = vpop.f32.mrf.mxu0
    %v6309 = vadd.f32 %v421, %v6308
    %6310 = vmatmul.f32.gmra.mxu0 %v6281
    %v6311 = vpop.f32.mrf.mxu0
    %v6312 = vadd.f32 %v422, %v6311
    %6313 = vmatmul.f32.gmra.mxu0 %v6283
    %v6314 = vpop.f32.mrf.mxu0
    %v6315 = vadd.f32 %v423, %v6314
    %6316 = vdwg.mxu0
    %6317 = vst [vmem:[#allocation1] ss:$9 sm:$0xff] %v4956
    %s6318 = scalar_lea.vmem [#allocation1], 1
    %6319 = vst [vmem:[%s6318] ss:$9 sm:$0xff] %v4957
    %s6320 = scalar_lea.vmem [#allocation1], 2
    %6321 = vst [vmem:[%s6320] ss:$9 sm:$0xff] %v4958
    %s6322 = scalar_lea.vmem [#allocation1], 3
    %6323 = vst [vmem:[%s6322] ss:$9 sm:$0xff] %v4959
    %s6324 = scalar_lea.vmem [#allocation1], 4
    %6325 = vst [vmem:[%s6324] ss:$9 sm:$0xff] %v4960
    %s6326 = scalar_lea.vmem [#allocation1], 5
    %6327 = vst [vmem:[%s6326] ss:$9 sm:$0xff] %v4961
    %s6328 = scalar_lea.vmem [#allocation1], 6
    %6329 = vst [vmem:[%s6328] ss:$9 sm:$0xff] %v4962
    %s6330 = scalar_lea.vmem [#allocation1], 7
    %6331 = vst [vmem:[%s6330] ss:$9 sm:$0xff] %v4932
    %v6332 = vld [vmem:[#allocation1] sm:$0xff]
    %6333 = vst [vmem:[#allocation1] ss:$9 sm:$0xff] %v4963
    %6334 = vst [vmem:[%s6318] ss:$9 sm:$0xff] %v4964
    %6335 = vst [vmem:[%s6320] ss:$9 sm:$0xff] %v4965
    %6336 = vst [vmem:[%s6322] ss:$9 sm:$0xff] %v4966
    %6337 = vst [vmem:[%s6324] ss:$9 sm:$0xff] %v4967
    %6338 = vst [vmem:[%s6326] ss:$9 sm:$0xff] %v4968
    %6339 = vst [vmem:[%s6328] ss:$9 sm:$0xff] %v4969
    %6340 = vst [vmem:[%s6330] ss:$9 sm:$0xff] %v4935
    %v6341 = vld [vmem:[#allocation1] sm:$0xff]
    %6342 = vst [vmem:[#allocation1] ss:$9 sm:$0xff] %v4970
    %v6343 = vld [vmem:[#allocation1] sm:$0xff]
    %6344 = vrot.lane.b32.xlu0 %v6332, 104
    %v6345 = vpop.permute.xlu0 %6344
    %6346 = vrot.lane.b32.xlu0 %v6341, 104
    %v6347 = vpop.permute.xlu0 %6346
    %6348 = vrot.lane.b32.xlu0 %v6343, 104
    %v6349 = vpop.permute.xlu0 %6348
    %6350 = vst [vmem:[#allocation1] ss:$9 sm:$0xff] %v4956
    %s6351 = scalar_lea.vmem [#allocation1], 1
    %6352 = vst [vmem:[%s6351] ss:$9 sm:$0xff] %v4957
    %s6353 = scalar_lea.vmem [#allocation1], 2
    %6354 = vst [vmem:[%s6353] ss:$9 sm:$0xff] %v4958
    %s6355 = scalar_lea.vmem [#allocation1], 3
    %6356 = vst [vmem:[%s6355] ss:$9 sm:$0xff] %v4959
    %s6357 = scalar_lea.vmem [#allocation1], 4
    %6358 = vst [vmem:[%s6357] ss:$9 sm:$0xff] %v4960
    %s6359 = scalar_lea.vmem [#allocation1], 5
    %6360 = vst [vmem:[%s6359] ss:$9 sm:$0xff] %v4961
    %s6361 = scalar_lea.vmem [#allocation1], 6
    %6362 = vst [vmem:[%s6361] ss:$9 sm:$0xff] %v4962
    %s6363 = scalar_lea.vmem [#allocation1], 7
    %6364 = vst [vmem:[%s6363] ss:$9 sm:$0xff] %v4932
    %v6365 = vld [vmem:[#allocation1] sm:$0xff]
    %6366 = vst [vmem:[#allocation1] ss:$9 sm:$0xff] %v4963
    %6367 = vst [vmem:[%s6351] ss:$9 sm:$0xff] %v4964
    %6368 = vst [vmem:[%s6353] ss:$9 sm:$0xff] %v4965
    %6369 = vst [vmem:[%s6355] ss:$9 sm:$0xff] %v4966
    %6370 = vst [vmem:[%s6357] ss:$9 sm:$0xff] %v4967
    %6371 = vst [vmem:[%s6359] ss:$9 sm:$0xff] %v4968
    %6372 = vst [vmem:[%s6361] ss:$9 sm:$0xff] %v4969
    %6373 = vst [vmem:[%s6363] ss:$9 sm:$0xff] %v4935
    %v6374 = vld [vmem:[#allocation1] sm:$0xff]
    %6375 = vst [vmem:[#allocation1] ss:$9 sm:$0xff] %v4970
    %v6376 = vld [vmem:[#allocation1] sm:$0xff]
    %6377 = vrot.lane.b32.xlu0 %v6365, 72
    %v6378 = vpop.permute.xlu0 %6377
    %6379 = vrot.lane.b32.xlu0 %v6374, 72
    %v6380 = vpop.permute.xlu0 %6379
    %6381 = vrot.lane.b32.xlu0 %v6376, 72
    %v6382 = vpop.permute.xlu0 %6381
    %v6383 = vsel %vm1234, %v6345, 0
    %v6385 = vsel %vm1234, %v6347, 0
    %v6387 = vsel %vm1234, %v6349, 0
    %v6389 = vsel %vm1234, %v6378, 0
    %v6391 = vsel %vm1234, %v6380, 0
    %v6393 = vsel %vm1234, %v6382, 0
    %6395 = vmatpush.xpose.msra.mxu0 0.0
    %6396 = vmatpush.xpose.msra.mxu0 0.0
    %6397 = vmatpush.xpose.msra.mxu0 0.0
    %6398 = vmatpush.xpose.msra.mxu0 0.0
    %6399 = vmatpush.xpose.msra.mxu0 0.0
    %6400 = vmatpush.xpose.msra.mxu0 0.0
    %6401 = vmatpush.xpose.msra.mxu0 0.0
    %6402 = vmatpush.xpose.msra.mxu0 0.0
    %6403 = vmatpush.xpose.msra.mxu0 0.0
    %6404 = vmatpush.xpose.msra.mxu0 0.0
    %6405 = vmatpush.xpose.msra.mxu0 0.0
    %6406 = vmatpush.xpose.msra.mxu0 0.0
    %6407 = vmatpush.xpose.msra.mxu0 0.0
    %6408 = vmatpush.xpose.msra.mxu0 %v6393
    %6409 = vmatpush.xpose.msra.mxu0 %v6391
    %6410 = vmatpush.xpose.msra.mxu0 %v6389
    %6411 = vmatmul.f32.gmra.mxu0 %v6383
    %v6412 = vpop.f32.mrf.mxu0
    %v6413 = vadd.f32 %v421, %v6412
    %6414 = vmatmul.f32.gmra.mxu0 %v6385
    %v6415 = vpop.f32.mrf.mxu0
    %v6416 = vadd.f32 %v422, %v6415
    %6417 = vmatmul.f32.gmra.mxu0 %v6387
    %v6418 = vpop.f32.mrf.mxu0
    %v6419 = vadd.f32 %v423, %v6418
    %6420 = vdwg.mxu0
    %v6421 = vsel %vm1371, %v6309, -inf
    %6422 = vmax.xlane.f32.xlu0 %v6421
    %v6423 = vpop.xlane.xlu0 %6422
    %v6424 = vsel %vm1371, %v6312, -inf
    %6425 = vmax.xlane.f32.xlu0 %v6424
    %v6426 = vpop.xlane.xlu0 %6425
    %v6427 = vsel %vm1378, %v6315, -inf
    %6428 = vmax.xlane.f32.xlu0 %v6427
    %v6429 = vpop.xlane.xlu0 %6428
    %v6430 = vsel %vm1371, %v6413, -inf
    %6431 = vmax.xlane.f32.xlu0 %v6430
    %v6432 = vpop.xlane.xlu0 %6431
    %v6433 = vsel %vm1371, %v6416, -inf
    %6434 = vmax.xlane.f32.xlu0 %v6433
    %v6435 = vpop.xlane.xlu0 %6434
    %v6436 = vsel %vm1378, %v6419, -inf
    %6437 = vmax.xlane.f32.xlu0 %v6436
    %v6438 = vpop.xlane.xlu0 %6437
    %v6439 = vsub.f32 %v6309, %v6423
    %v6440 = vsub.f32 %v6312, %v6426
    %v6441 = vsub.f32 %v6315, %v6429
    %v6442 = vsub.f32 %v6413, %v6432
    %v6443 = vsub.f32 %v6416, %v6435
    %v6444 = vsub.f32 %v6419, %v6438
    %v6445 = vmul.f32 %v6439, 1.442695
    %v6446 = vpow.pop %v6445
    %v6447 = vmul.f32 %v6440, 1.442695
    %v6448 = vpow.pop %v6447
    %v6449 = vmul.f32 %v6441, 1.442695
    %v6450 = vpow.pop %v6449
    %v6451 = vmul.f32 %v6442, 1.442695
    %v6452 = vpow.pop %v6451
    %v6453 = vmul.f32 %v6443, 1.442695
    %v6454 = vpow.pop %v6453
    %v6455 = vmul.f32 %v6444, 1.442695
    %v6456 = vpow.pop %v6455
    %v6457 = vsel %vm1371, %v6446, 0.0
    %6458 = vadd.xlane.f32.xlu0 %v6457
    %v6459 = vpop.xlane.xlu0 %6458
    %v6460 = vsel %vm1371, %v6448, 0.0
    %6461 = vadd.xlane.f32.xlu0 %v6460
    %v6462 = vpop.xlane.xlu0 %6461
    %v6463 = vsel %vm1378, %v6450, 0.0
    %6464 = vadd.xlane.f32.xlu0 %v6463
    %v6465 = vpop.xlane.xlu0 %6464
    %v6466 = vsel %vm1371, %v6452, 0.0
    %6467 = vadd.xlane.f32.xlu0 %v6466
    %v6468 = vpop.xlane.xlu0 %6467
    %v6469 = vsel %vm1371, %v6454, 0.0
    %6470 = vadd.xlane.f32.xlu0 %v6469
    %v6471 = vpop.xlane.xlu0 %6470
    %v6472 = vsel %vm1378, %v6456, 0.0
    %6473 = vadd.xlane.f32.xlu0 %v6472
    %v6474 = vpop.xlane.xlu0 %6473
    %v6475 = vrcp.pop %v6459
    %v6476 = vrcp.pop %v6462
    %v6477 = vrcp.pop %v6465
    %v6478 = vrcp.pop %v6468
    %v6479 = vrcp.pop %v6471
    %v6480 = vrcp.pop %v6474
    %v6481 = vmul.f32 %v6446, %v6475
    %v6482 = vmul.f32 %v6448, %v6476
    %v6483 = vmul.f32 %v6450, %v6477
    %v6484 = vmul.f32 %v6452, %v6478
    %v6485 = vmul.f32 %v6454, %v6479
    %v6486 = vmul.f32 %v6456, %v6480
    %6487 = vst [vmem:[#allocation1] ss:$9 sm:$0xff] %v4923
    %s6488 = scalar_lea.vmem [#allocation1], 1
    %6489 = vst [vmem:[%s6488] ss:$9 sm:$0xff] %v4942
    %s6490 = scalar_lea.vmem [#allocation1], 2
    %6491 = vst [vmem:[%s6490] ss:$9 sm:$0xff] %v4943
    %s6492 = scalar_lea.vmem [#allocation1], 3
    %6493 = vst [vmem:[%s6492] ss:$9 sm:$0xff] %v4944
    %s6494 = scalar_lea.vmem [#allocation1], 4
    %6495 = vst [vmem:[%s6494] ss:$9 sm:$0xff] %v4945
    %s6496 = scalar_lea.vmem [#allocation1], 5
    %6497 = vst [vmem:[%s6496] ss:$9 sm:$0xff] %v4946
    %s6498 = scalar_lea.vmem [#allocation1], 6
    %6499 = vst [vmem:[%s6498] ss:$9 sm:$0xff] %v4947
    %s6500 = scalar_lea.vmem [#allocation1], 7
    %6501 = vst [vmem:[%s6500] ss:$9 sm:$0xff] %v4948
    %v6502 = vld [vmem:[#allocation1] sm:$0xff]
    %6503 = vst [vmem:[#allocation1] ss:$9 sm:$0xff] %v4926
    %6504 = vst [vmem:[%s6488] ss:$9 sm:$0xff] %v4949
    %6505 = vst [vmem:[%s6490] ss:$9 sm:$0xff] %v4950
    %6506 = vst [vmem:[%s6492] ss:$9 sm:$0xff] %v4951
    %6507 = vst [vmem:[%s6494] ss:$9 sm:$0xff] %v4952
    %6508 = vst [vmem:[%s6496] ss:$9 sm:$0xff] %v4953
    %6509 = vst [vmem:[%s6498] ss:$9 sm:$0xff] %v4954
    %6510 = vst [vmem:[%s6500] ss:$9 sm:$0xff] %v4955
    %v6511 = vld [vmem:[#allocation1] sm:$0xff]
    %6512 = vst [vmem:[#allocation1] ss:$9 sm:$0xff] %v4929
    %v6513 = vld [vmem:[#allocation1] sm:$0xff]
    %6514 = vrot.lane.b32.xlu0 %v6502, 40
    %v6515 = vpop.permute.xlu0 %6514
    %6516 = vrot.lane.b32.xlu0 %v6511, 40
    %v6517 = vpop.permute.xlu0 %6516
    %6518 = vrot.lane.b32.xlu0 %v6513, 40
    %v6519 = vpop.permute.xlu0 %6518
    %v6523 = vsel %vm1371, %v6481, 0
    %v6526 = vsel %vm1371, %v6482, 0
    %v6529 = vsel %vm1371, %v6483, 0
    %v6531 = vsel %vm339, %v6519, 0
    %6533 = vmatpush.msra.mxu0 0.0
    %6534 = vmatpush.msra.mxu0 0.0
    %6535 = vmatpush.msra.mxu0 0.0
    %6536 = vmatpush.msra.mxu0 0.0
    %6537 = vmatpush.msra.mxu0 0.0
    %6538 = vmatpush.msra.mxu0 0.0
    %6539 = vmatpush.msra.mxu0 0.0
    %6540 = vmatpush.msra.mxu0 0.0
    %6541 = vmatpush.msra.mxu0 0.0
    %6542 = vmatpush.msra.mxu0 0.0
    %6543 = vmatpush.msra.mxu0 0.0
    %6544 = vmatpush.msra.mxu0 0.0
    %6545 = vmatpush.msra.mxu0 0.0
    %6546 = vmatpush.msra.mxu0 %v6531
    %6547 = vmatpush.msra.mxu0 %v6517
    %6548 = vmatpush.msra.mxu0 %v6515
    %6549 = vmatmul.f32.gmra.mxu0 %v6523
    %v6550 = vpop.f32.mrf.mxu0
    %v6551 = vadd.f32 0.0, %v6550
    %6552 = vmatmul.f32.gmra.mxu0 %v6526
    %v6553 = vpop.f32.mrf.mxu0
    %v6554 = vadd.f32 0.0, %v6553
    %6555 = vmatmul.f32.gmra.mxu0 %v6529
    %v6556 = vpop.f32.mrf.mxu0
    %v6557 = vadd.f32 0.0, %v6556
    %6558 = vdwg.mxu0
    %6559 = vst [vmem:[#allocation1] ss:$9 sm:$0xff] %v4956
    %s6560 = scalar_lea.vmem [#allocation1], 1
    %6561 = vst [vmem:[%s6560] ss:$9 sm:$0xff] %v4957
    %s6562 = scalar_lea.vmem [#allocation1], 2
    %6563 = vst [vmem:[%s6562] ss:$9 sm:$0xff] %v4958
    %s6564 = scalar_lea.vmem [#allocation1], 3
    %6565 = vst [vmem:[%s6564] ss:$9 sm:$0xff] %v4959
    %s6566 = scalar_lea.vmem [#allocation1], 4
    %6567 = vst [vmem:[%s6566] ss:$9 sm:$0xff] %v4960
    %s6568 = scalar_lea.vmem [#allocation1], 5
    %6569 = vst [vmem:[%s6568] ss:$9 sm:$0xff] %v4961
    %s6570 = scalar_lea.vmem [#allocation1], 6
    %6571 = vst [vmem:[%s6570] ss:$9 sm:$0xff] %v4962
    %s6572 = scalar_lea.vmem [#allocation1], 7
    %6573 = vst [vmem:[%s6572] ss:$9 sm:$0xff] %v4932
    %v6574 = vld [vmem:[#allocation1] sm:$0xff]
    %6575 = vst [vmem:[#allocation1] ss:$9 sm:$0xff] %v4963
    %6576 = vst [vmem:[%s6560] ss:$9 sm:$0xff] %v4964
    %6577 = vst [vmem:[%s6562] ss:$9 sm:$0xff] %v4965
    %6578 = vst [vmem:[%s6564] ss:$9 sm:$0xff] %v4966
    %6579 = vst [vmem:[%s6566] ss:$9 sm:$0xff] %v4967
    %6580 = vst [vmem:[%s6568] ss:$9 sm:$0xff] %v4968
    %6581 = vst [vmem:[%s6570] ss:$9 sm:$0xff] %v4969
    %6582 = vst [vmem:[%s6572] ss:$9 sm:$0xff] %v4935
    %v6583 = vld [vmem:[#allocation1] sm:$0xff]
    %6584 = vst [vmem:[#allocation1] ss:$9 sm:$0xff] %v4970
    %v6585 = vld [vmem:[#allocation1] sm:$0xff]
    %6586 = vrot.lane.b32.xlu0 %v6574, 40
    %v6587 = vpop.permute.xlu0 %6586
    %6588 = vrot.lane.b32.xlu0 %v6583, 40
    %v6589 = vpop.permute.xlu0 %6588
    %6590 = vrot.lane.b32.xlu0 %v6585, 40
    %v6591 = vpop.permute.xlu0 %6590
    %v6595 = vsel %vm1371, %v6484, 0
    %v6598 = vsel %vm1371, %v6485, 0
    %v6601 = vsel %vm1371, %v6486, 0
    %v6603 = vsel %vm339, %v6591, 0
    %6605 = vmatpush.msra.mxu0 0.0
    %6606 = vmatpush.msra.mxu0 0.0
    %6607 = vmatpush.msra.mxu0 0.0
    %6608 = vmatpush.msra.mxu0 0.0
    %6609 = vmatpush.msra.mxu0 0.0
    %6610 = vmatpush.msra.mxu0 0.0
    %6611 = vmatpush.msra.mxu0 0.0
    %6612 = vmatpush.msra.mxu0 0.0
    %6613 = vmatpush.msra.mxu0 0.0
    %6614 = vmatpush.msra.mxu0 0.0
    %6615 = vmatpush.msra.mxu0 0.0
    %6616 = vmatpush.msra.mxu0 0.0
    %6617 = vmatpush.msra.mxu0 0.0
    %6618 = vmatpush.msra.mxu0 %v6603
    %6619 = vmatpush.msra.mxu0 %v6589
    %6620 = vmatpush.msra.mxu0 %v6587
    %6621 = vmatmul.f32.gmra.mxu0 %v6595
    %v6622 = vpop.f32.mrf.mxu0
    %v6623 = vadd.f32 0.0, %v6622
    %6624 = vmatmul.f32.gmra.mxu0 %v6598
    %v6625 = vpop.f32.mrf.mxu0
    %v6626 = vadd.f32 0.0, %v6625
    %6627 = vmatmul.f32.gmra.mxu0 %v6601
    %v6628 = vpop.f32.mrf.mxu0
    %v6629 = vadd.f32 0.0, %v6628
    %6630 = vdwg.mxu0
    %6637 = vrot.lane.b32.xlu0 %v5715, 8
    %v6638 = vpop.permute.xlu0 %6637
    %6639 = vrot.lane.b32.xlu0 %v5718, 8
    %v6640 = vpop.permute.xlu0 %6639
    %6641 = vrot.lane.b32.xlu0 %v5721, 8
    %v6642 = vpop.permute.xlu0 %6641
    %6643 = vrot.lane.b32.xlu0 %v5787, 8
    %v6644 = vpop.permute.xlu0 %6643
    %6645 = vrot.lane.b32.xlu0 %v5790, 8
    %v6646 = vpop.permute.xlu0 %6645
    %6647 = vrot.lane.b32.xlu0 %v5793, 8
    %v6648 = vpop.permute.xlu0 %6647
    %6661 = vrot.lane.b32.xlu0 %v6133, 16
    %v6662 = vpop.permute.xlu0 %6661
    %6663 = vrot.lane.b32.xlu0 %v6136, 16
    %v6664 = vpop.permute.xlu0 %6663
    %6665 = vrot.lane.b32.xlu0 %v6139, 16
    %v6666 = vpop.permute.xlu0 %6665
    %6667 = vrot.lane.b32.xlu0 %v6205, 16
    %v6668 = vpop.permute.xlu0 %6667
    %6669 = vrot.lane.b32.xlu0 %v6208, 16
    %v6670 = vpop.permute.xlu0 %6669
    %6671 = vrot.lane.b32.xlu0 %v6211, 16
    %v6672 = vpop.permute.xlu0 %6671
    %6685 = vrot.lane.b32.xlu0 %v6551, 24
    %v6686 = vpop.permute.xlu0 %6685
    %6687 = vrot.lane.b32.xlu0 %v6554, 24
    %v6688 = vpop.permute.xlu0 %6687
    %6689 = vrot.lane.b32.xlu0 %v6557, 24
    %v6690 = vpop.permute.xlu0 %6689
    %6691 = vrot.lane.b32.xlu0 %v6623, 24
    %v6692 = vpop.permute.xlu0 %6691
    %6693 = vrot.lane.b32.xlu0 %v6626, 24
    %v6694 = vpop.permute.xlu0 %6693
    %6695 = vrot.lane.b32.xlu0 %v6629, 24
    %v6696 = vpop.permute.xlu0 %6695
    %v6703 = vsel %vm1234, %v5297, %v6638
    %v6704 = vsel %vm1234, %v5300, %v6640
    %v6705 = vsel %vm1234, %v5303, %v6642
    %v6706 = vsel %vm1234, %v5369, %v6644
    %v6707 = vsel %vm1234, %v5372, %v6646
    %v6708 = vsel %vm1234, %v5375, %v6648
    %v6709 = vsel %vm2915, %v6703, %v6662
    %v6710 = vsel %vm2915, %v6704, %v6664
    %v6711 = vsel %vm2915, %v6705, %v6666
    %v6712 = vsel %vm2915, %v6706, %v6668
    %v6713 = vsel %vm2915, %v6707, %v6670
    %v6714 = vsel %vm2915, %v6708, %v6672
    %v6715 = vsel %vm2922, %v6709, %v6686
    %v6716 = vsel %vm2922, %v6710, %v6688
    %v6717 = vsel %vm2922, %v6711, %v6690
    %v6718 = vsel %vm2922, %v6712, %v6692
    %v6719 = vsel %vm2922, %v6713, %v6694
    %v6720 = vsel %vm2922, %v6714, %v6696
    %v6727 = vrot.slane %v6715, 1
    %v6728 = vrot.slane %v6715, 2
    %v6729 = vrot.slane %v6715, 3
    %v6730 = vrot.slane %v6715, 4
    %v6731 = vrot.slane %v6715, 5
    %v6732 = vrot.slane %v6715, 6
    %v6733 = vrot.slane %v6715, 7
    %v6734 = vrot.slane %v6716, 1
    %v6735 = vrot.slane %v6716, 2
    %v6736 = vrot.slane %v6716, 3
    %v6737 = vrot.slane %v6716, 4
    %v6738 = vrot.slane %v6716, 5
    %v6739 = vrot.slane %v6716, 6
    %v6740 = vrot.slane %v6716, 7
    %v6741 = vrot.slane %v6718, 1
    %v6742 = vrot.slane %v6718, 2
    %v6743 = vrot.slane %v6718, 3
    %v6744 = vrot.slane %v6718, 4
    %v6745 = vrot.slane %v6718, 5
    %v6746 = vrot.slane %v6718, 6
    %v6747 = vrot.slane %v6718, 7
    %v6748 = vrot.slane %v6719, 1
    %v6749 = vrot.slane %v6719, 2
    %v6750 = vrot.slane %v6719, 3
    %v6751 = vrot.slane %v6719, 4
    %v6752 = vrot.slane %v6719, 5
    %v6753 = vrot.slane %v6719, 6
    %v6754 = vrot.slane %v6719, 7
    %s6755 = scalar_lea.vmem %s10, 32
    %v6756 = vld [vmem:[%s6755] sm:$0xff]
    %v6757 = vld [vmem:[%s6755 + $0x8] sm:$0xff]
    %v6758 = vld [vmem:[%s6755 + $0x10] sm:$0xff]
    %v6759 = vld [vmem:[%s6755 + $0x18] sm:$0xff]
    %6760 = vst [vmem:[#allocation1] ss:$9 sm:$0xff] %v6715
    %s6761 = scalar_lea.vmem [#allocation1], 1
    %6762 = vst [vmem:[%s6761] ss:$9 sm:$0xff] %v6727
    %s6763 = scalar_lea.vmem [#allocation1], 2
    %6764 = vst [vmem:[%s6763] ss:$9 sm:$0xff] %v6728
    %s6765 = scalar_lea.vmem [#allocation1], 3
    %6766 = vst [vmem:[%s6765] ss:$9 sm:$0xff] %v6729
    %s6767 = scalar_lea.vmem [#allocation1], 4
    %6768 = vst [vmem:[%s6767] ss:$9 sm:$0xff] %v6730
    %s6769 = scalar_lea.vmem [#allocation1], 5
    %6770 = vst [vmem:[%s6769] ss:$9 sm:$0xff] %v6731
    %s6771 = scalar_lea.vmem [#allocation1], 6
    %6772 = vst [vmem:[%s6771] ss:$9 sm:$0xff] %v6732
    %s6773 = scalar_lea.vmem [#allocation1], 7
    %6774 = vst [vmem:[%s6773] ss:$9 sm:$0xff] %v6733
    %v6775 = vld [vmem:[#allocation1] sm:$0xff]
    %6776 = vst [vmem:[#allocation1] ss:$9 sm:$0xff] %v6716
    %6777 = vst [vmem:[%s6761] ss:$9 sm:$0xff] %v6734
    %6778 = vst [vmem:[%s6763] ss:$9 sm:$0xff] %v6735
    %6779 = vst [vmem:[%s6765] ss:$9 sm:$0xff] %v6736
    %6780 = vst [vmem:[%s6767] ss:$9 sm:$0xff] %v6737
    %6781 = vst [vmem:[%s6769] ss:$9 sm:$0xff] %v6738
    %6782 = vst [vmem:[%s6771] ss:$9 sm:$0xff] %v6739
    %6783 = vst [vmem:[%s6773] ss:$9 sm:$0xff] %v6740
    %v6784 = vld [vmem:[#allocation1] sm:$0xff]
    %6785 = vst [vmem:[#allocation1] ss:$9 sm:$0xff] %v6717
    %6786 = vst [vmem:[%s6761] ss:$9 sm:$0xff] %v6718
    %6787 = vst [vmem:[%s6763] ss:$9 sm:$0xff] %v6741
    %6788 = vst [vmem:[%s6765] ss:$9 sm:$0xff] %v6742
    %6789 = vst [vmem:[%s6767] ss:$9 sm:$0xff] %v6743
    %6790 = vst [vmem:[%s6769] ss:$9 sm:$0xff] %v6744
    %6791 = vst [vmem:[%s6771] ss:$9 sm:$0xff] %v6745
    %6792 = vst [vmem:[%s6773] ss:$9 sm:$0xff] %v6746
    %v6793 = vld [vmem:[#allocation1] sm:$0xff]
    %6794 = vst [vmem:[#allocation1] ss:$9 sm:$0xff] %v6747
    %6795 = vst [vmem:[%s6761] ss:$9 sm:$0xff] %v6719
    %6796 = vst [vmem:[%s6763] ss:$9 sm:$0xff] %v6748
    %6797 = vst [vmem:[%s6765] ss:$9 sm:$0xff] %v6749
    %6798 = vst [vmem:[%s6767] ss:$9 sm:$0xff] %v6750
    %6799 = vst [vmem:[%s6769] ss:$9 sm:$0xff] %v6751
    %6800 = vst [vmem:[%s6771] ss:$9 sm:$0xff] %v6752
    %6801 = vst [vmem:[%s6773] ss:$9 sm:$0xff] %v6753
    %v6802 = vld [vmem:[#allocation1] sm:$0xff]
    %6803 = vst [vmem:[#allocation1] ss:$9 sm:$0xff] %v6754
    %6804 = vst [vmem:[%s6761] ss:$9 sm:$0xff] %v6720
    %v6805 = vld [vmem:[#allocation1] sm:$0xff]
    %v6806 = vsel %vm477, %v6775, 0
    %v6808 = vsel %vm477, %v6784, 0
    %v6810 = vsel %vm477, %v6793, 0
    %v6812 = vsel %vm477, %v6802, 0
    %v6814 = vsel %vm477, %v6805, 0
    %6816 = vmatpush.msra.mxu0 0.0
    %6817 = vmatpush.msra.mxu0 0.0
    %6818 = vmatpush.msra.mxu0 0.0
    %6819 = vmatpush.msra.mxu0 0.0
    %6820 = vmatpush.msra.mxu0 0.0
    %6821 = vmatpush.msra.mxu0 0.0
    %6822 = vmatpush.msra.mxu0 0.0
    %6823 = vmatpush.msra.mxu0 0.0
    %6824 = vmatpush.msra.mxu0 0.0
    %6825 = vmatpush.msra.mxu0 0.0
    %6826 = vmatpush.msra.mxu0 0.0
    %6827 = vmatpush.msra.mxu0 0.0
    %6828 = vmatpush.msra.mxu0 %v6759
    %6829 = vmatpush.msra.mxu0 %v6758
    %6830 = vmatpush.msra.mxu0 %v6757
    %6831 = vmatpush.msra.mxu0 %v6756
    %6832 = vmatmul.f32.gmra.mxu0 %v6806
    %v6833 = vpop.f32.mrf.mxu0
    %v6834 = vadd.f32 0.0, %v6833
    %6835 = vmatmul.f32.gmra.mxu0 %v6808
    %v6836 = vpop.f32.mrf.mxu0
    %v6837 = vadd.f32 0.0, %v6836
    %6838 = vmatmul.f32.gmra.mxu0 %v6810
    %v6839 = vpop.f32.mrf.mxu0
    %v6840 = vadd.f32 0.0, %v6839
    %6841 = vmatmul.f32.gmra.mxu0 %v6812
    %v6842 = vpop.f32.mrf.mxu0
    %v6843 = vadd.f32 0.0, %v6842
    %6844 = vmatmul.f32.gmra.mxu0 %v6814
    %v6845 = vpop.f32.mrf.mxu0
    %v6846 = vadd.f32 0.0, %v6845
    %6847 = vdwg.mxu0
    %v6853 = vrot.slane %v6834, 1
    %v6854 = vrot.slane %v6834, 2
    %v6855 = vrot.slane %v6834, 3
    %v6856 = vrot.slane %v6834, 4
    %v6857 = vrot.slane %v6834, 5
    %v6858 = vrot.slane %v6834, 6
    %v6859 = vrot.slane %v6834, 7
    %v6860 = vrot.slane %v6837, 1
    %v6861 = vrot.slane %v6837, 2
    %v6862 = vrot.slane %v6837, 3
    %v6863 = vrot.slane %v6837, 4
    %v6864 = vrot.slane %v6837, 5
    %v6865 = vrot.slane %v6837, 6
    %v6866 = vrot.slane %v6837, 7
    %v6867 = vrot.slane %v6840, 1
    %v6868 = vrot.slane %v6840, 2
    %v6869 = vrot.slane %v6840, 3
    %v6870 = vrot.slane %v6840, 4
    %v6871 = vrot.slane %v6840, 5
    %v6872 = vrot.slane %v6840, 6
    %v6873 = vrot.slane %v6840, 7
    %v6874 = vrot.slane %v6843, 1
    %v6875 = vrot.slane %v6843, 2
    %v6876 = vrot.slane %v6843, 3
    %v6877 = vrot.slane %v6843, 4
    %v6878 = vrot.slane %v6843, 5
    %v6879 = vrot.slane %v6843, 6
    %v6880 = vrot.slane %v6843, 7
    %v6881 = vrot.slane %v6846, 1
    %v6911 = vadd.f32 %v4161, %v6834
    %v6912 = vadd.f32 %v4162, %v6853
    %v6913 = vadd.f32 %v4163, %v6854
    %v6914 = vadd.f32 %v4164, %v6855
    %v6915 = vadd.f32 %v4165, %v6856
    %v6916 = vadd.f32 %v4166, %v6857
    %v6917 = vadd.f32 %v4167, %v6858
    %v6918 = vadd.f32 %v4168, %v6859
    %v6919 = vadd.f32 %v4169, %v6837
    %v6920 = vadd.f32 %v4170, %v6860
    %v6921 = vadd.f32 %v4171, %v6861
    %v6922 = vadd.f32 %v4172, %v6862
    %v6923 = vadd.f32 %v4173, %v6863
    %v6924 = vadd.f32 %v4174, %v6864
    %v6925 = vadd.f32 %v4175, %v6865
    %v6926 = vadd.f32 %v4176, %v6866
    %v6927 = vadd.f32 %v4177, %v6840
    %v6928 = vadd.f32 %v4178, %v6867
    %v6929 = vadd.f32 %v4179, %v6868
    %v6930 = vadd.f32 %v4180, %v6869
    %v6931 = vadd.f32 %v4181, %v6870
    %v6932 = vadd.f32 %v4182, %v6871
    %v6933 = vadd.f32 %v4183, %v6872
    %v6934 = vadd.f32 %v4184, %v6873
    %v6935 = vadd.f32 %v4185, %v6843
    %v6936 = vadd.f32 %v4186, %v6874
    %v6937 = vadd.f32 %v4187, %v6875
    %v6938 = vadd.f32 %v4188, %v6876
    %v6939 = vadd.f32 %v4189, %v6877
    %v6940 = vadd.f32 %v4190, %v6878
    %v6941 = vadd.f32 %v4191, %v6879
    %v6942 = vadd.f32 %v4192, %v6880
    %v6943 = vadd.f32 %v4193, %v6846
    %v6944 = vadd.f32 %v4194, %v6881
    %v6945 = vld [vmem:[%s11 + $0x1] sm:$0x1]
    %v6946 = vperm.slane %v6945, 0
    %v6948 = vrot.slane %v6946, 1
    %v6949 = vrot.slane %v6946, 2
    %v6950 = vrot.slane %v6946, 3
    %v6951 = vrot.slane %v6946, 4
    %v6952 = vrot.slane %v6946, 5
    %v6953 = vrot.slane %v6946, 6
    %v6954 = vrot.slane %v6946, 7
    %v6962 = vadd.f32 %v6911, %v6946
    %v6963 = vadd.f32 %v6912, %v6948
    %v6964 = vadd.f32 %v6913, %v6949
    %v6965 = vadd.f32 %v6914, %v6950
    %v6966 = vadd.f32 %v6915, %v6951
    %v6967 = vadd.f32 %v6916, %v6952
    %v6968 = vadd.f32 %v6917, %v6953
    %v6969 = vadd.f32 %v6918, %v6954
    %v6970 = vadd.f32 %v6919, %v6946
    %v6971 = vadd.f32 %v6920, %v6948
    %v6972 = vadd.f32 %v6921, %v6949
    %v6973 = vadd.f32 %v6922, %v6950
    %v6974 = vadd.f32 %v6923, %v6951
    %v6975 = vadd.f32 %v6924, %v6952
    %v6976 = vadd.f32 %v6925, %v6953
    %v6977 = vadd.f32 %v6926, %v6954
    %v6978 = vadd.f32 %v6927, %v6946
    %v6979 = vadd.f32 %v6928, %v6948
    %v6980 = vadd.f32 %v6929, %v6949
    %v6981 = vadd.f32 %v6930, %v6950
    %v6982 = vadd.f32 %v6931, %v6951
    %v6983 = vadd.f32 %v6932, %v6952
    %v6984 = vadd.f32 %v6933, %v6953
    %v6985 = vadd.f32 %v6934, %v6954
    %v6986 = vadd.f32 %v6935, %v6946
    %v6987 = vadd.f32 %v6936, %v6948
    %v6988 = vadd.f32 %v6937, %v6949
    %v6989 = vadd.f32 %v6938, %v6950
    %v6990 = vadd.f32 %v6939, %v6951
    %v6991 = vadd.f32 %v6940, %v6952
    %v6992 = vadd.f32 %v6941, %v6953
    %v6993 = vadd.f32 %v6942, %v6954
    %v6994 = vadd.f32 %v6943, %v6946
    %v6995 = vadd.f32 %v6944, %v6948
    %v6996 = vld [vmem:[%s12 + $0x1] sm:$0x1]
    %v6997 = vld [vmem:[%s13 + $0x1] sm:$0x1]
    %7032 = vst [vmem:[#allocation1] ss:$9 sm:$0xff] %v6962
    %s7033 = scalar_lea.vmem [#allocation1], 1
    %7034 = vst [vmem:[%s7033] ss:$9 sm:$0xff] %v6963
    %s7035 = scalar_lea.vmem [#allocation1], 2
    %7036 = vst [vmem:[%s7035] ss:$9 sm:$0xff] %v6964
    %s7037 = scalar_lea.vmem [#allocation1], 3
    %7038 = vst [vmem:[%s7037] ss:$9 sm:$0xff] %v6965
    %s7039 = scalar_lea.vmem [#allocation1], 4
    %7040 = vst [vmem:[%s7039] ss:$9 sm:$0xff] %v6966
    %s7041 = scalar_lea.vmem [#allocation1], 5
    %7042 = vst [vmem:[%s7041] ss:$9 sm:$0xff] %v6967
    %s7043 = scalar_lea.vmem [#allocation1], 6
    %7044 = vst [vmem:[%s7043] ss:$9 sm:$0xff] %v6968
    %s7045 = scalar_lea.vmem [#allocation1], 7
    %7046 = vst [vmem:[%s7045] ss:$9 sm:$0xff] %v6969
    %v7047 = vld [vmem:[#allocation1] sm:$0xff]
    %7048 = vst [vmem:[#allocation1] ss:$9 sm:$0xff] %v6970
    %7049 = vst [vmem:[%s7033] ss:$9 sm:$0xff] %v6971
    %7050 = vst [vmem:[%s7035] ss:$9 sm:$0xff] %v6972
    %7051 = vst [vmem:[%s7037] ss:$9 sm:$0xff] %v6973
    %7052 = vst [vmem:[%s7039] ss:$9 sm:$0xff] %v6974
    %7053 = vst [vmem:[%s7041] ss:$9 sm:$0xff] %v6975
    %7054 = vst [vmem:[%s7043] ss:$9 sm:$0xff] %v6976
    %7055 = vst [vmem:[%s7045] ss:$9 sm:$0xff] %v6977
    %v7056 = vld [vmem:[#allocation1] sm:$0xff]
    %7057 = vst [vmem:[#allocation1] ss:$9 sm:$0xff] %v6978
    %7058 = vst [vmem:[%s7033] ss:$9 sm:$0xff] %v6979
    %7059 = vst [vmem:[%s7035] ss:$9 sm:$0xff] %v6980
    %7060 = vst [vmem:[%s7037] ss:$9 sm:$0xff] %v6981
    %7061 = vst [vmem:[%s7039] ss:$9 sm:$0xff] %v6982
    %7062 = vst [vmem:[%s7041] ss:$9 sm:$0xff] %v6983
    %7063 = vst [vmem:[%s7043] ss:$9 sm:$0xff] %v6984
    %7064 = vst [vmem:[%s7045] ss:$9 sm:$0xff] %v6985
    %v7065 = vld [vmem:[#allocation1] sm:$0xff]
    %7066 = vst [vmem:[#allocation1] ss:$9 sm:$0xff] %v6986
    %7067 = vst [vmem:[%s7033] ss:$9 sm:$0xff] %v6987
    %7068 = vst [vmem:[%s7035] ss:$9 sm:$0xff] %v6988
    %7069 = vst [vmem:[%s7037] ss:$9 sm:$0xff] %v6989
    %7070 = vst [vmem:[%s7039] ss:$9 sm:$0xff] %v6990
    %7071 = vst [vmem:[%s7041] ss:$9 sm:$0xff] %v6991
    %7072 = vst [vmem:[%s7043] ss:$9 sm:$0xff] %v6992
    %7073 = vst [vmem:[%s7045] ss:$9 sm:$0xff] %v6993
    %v7074 = vld [vmem:[#allocation1] sm:$0xff]
    %7075 = vst [vmem:[#allocation1] ss:$9 sm:$0xff] %v6994
    %7076 = vst [vmem:[%s7033] ss:$9 sm:$0xff] %v6995
    %v7077 = vld [vmem:[#allocation1] sm:$0xff]
    %v7083 = vsel %vm477, %v7047, 0.0
    %7084 = vadd.xlane.f32.xlu0 %v7083
    %v7085 = vpop.xlane.xlu0 %7084
    %v7086 = vsel %vm477, %v7056, 0.0
    %7087 = vadd.xlane.f32.xlu0 %v7086
    %v7088 = vpop.xlane.xlu0 %7087
    %v7089 = vsel %vm477, %v7065, 0.0
    %7090 = vadd.xlane.f32.xlu0 %v7089
    %v7091 = vpop.xlane.xlu0 %7090
    %v7092 = vsel %vm477, %v7074, 0.0
    %7093 = vadd.xlane.f32.xlu0 %v7092
    %v7094 = vpop.xlane.xlu0 %7093
    %v7095 = vsel %vm490, %v7077, 0.0
    %7096 = vadd.xlane.f32.xlu0 %v7095
    %v7097 = vpop.xlane.xlu0 %7096
    %v7098 = vmul.f32 %v7085, %v500
    %v7099 = vmul.f32 %v7088, %v500
    %v7100 = vmul.f32 %v7091, %v500
    %v7101 = vmul.f32 %v7094, %v500
    %v7102 = vmul.f32 %v7097, %v500
    %v7108 = vperm.slane %v7098, 0
    %v7109 = vperm.slane %v7098, 1
    %v7110 = vperm.slane %v7098, 2
    %v7111 = vperm.slane %v7098, 3
    %v7112 = vperm.slane %v7098, 4
    %v7113 = vperm.slane %v7098, 5
    %v7114 = vperm.slane %v7098, 6
    %v7115 = vperm.slane %v7098, 7
    %v7116 = vperm.slane %v7099, 0
    %v7117 = vperm.slane %v7099, 1
    %v7118 = vperm.slane %v7099, 2
    %v7119 = vperm.slane %v7099, 3
    %v7120 = vperm.slane %v7099, 4
    %v7121 = vperm.slane %v7099, 5
    %v7122 = vperm.slane %v7099, 6
    %v7123 = vperm.slane %v7099, 7
    %v7124 = vperm.slane %v7100, 0
    %v7125 = vperm.slane %v7100, 1
    %v7126 = vperm.slane %v7100, 2
    %v7127 = vperm.slane %v7100, 3
    %v7128 = vperm.slane %v7100, 4
    %v7129 = vperm.slane %v7100, 5
    %v7130 = vperm.slane %v7100, 6
    %v7131 = vperm.slane %v7100, 7
    %v7132 = vperm.slane %v7101, 0
    %v7133 = vperm.slane %v7101, 1
    %v7134 = vperm.slane %v7101, 2
    %v7135 = vperm.slane %v7101, 3
    %v7136 = vperm.slane %v7101, 4
    %v7137 = vperm.slane %v7101, 5
    %v7138 = vperm.slane %v7101, 6
    %v7139 = vperm.slane %v7101, 7
    %v7140 = vperm.slane %v7102, 0
    %v7141 = vperm.slane %v7102, 1
    %v7176 = vsub.f32 %v6962, %v7108
    %v7177 = vsub.f32 %v6963, %v7109
    %v7178 = vsub.f32 %v6964, %v7110
    %v7179 = vsub.f32 %v6965, %v7111
    %v7180 = vsub.f32 %v6966, %v7112
    %v7181 = vsub.f32 %v6967, %v7113
    %v7182 = vsub.f32 %v6968, %v7114
    %v7183 = vsub.f32 %v6969, %v7115
    %v7184 = vsub.f32 %v6970, %v7116
    %v7185 = vsub.f32 %v6971, %v7117
    %v7186 = vsub.f32 %v6972, %v7118
    %v7187 = vsub.f32 %v6973, %v7119
    %v7188 = vsub.f32 %v6974, %v7120
    %v7189 = vsub.f32 %v6975, %v7121
    %v7190 = vsub.f32 %v6976, %v7122
    %v7191 = vsub.f32 %v6977, %v7123
    %v7192 = vsub.f32 %v6978, %v7124
    %v7193 = vsub.f32 %v6979, %v7125
    %v7194 = vsub.f32 %v6980, %v7126
    %v7195 = vsub.f32 %v6981, %v7127
    %v7196 = vsub.f32 %v6982, %v7128
    %v7197 = vsub.f32 %v6983, %v7129
    %v7198 = vsub.f32 %v6984, %v7130
    %v7199 = vsub.f32 %v6985, %v7131
    %v7200 = vsub.f32 %v6986, %v7132
    %v7201 = vsub.f32 %v6987, %v7133
    %v7202 = vsub.f32 %v6988, %v7134
    %v7203 = vsub.f32 %v6989, %v7135
    %v7204 = vsub.f32 %v6990, %v7136
    %v7205 = vsub.f32 %v6991, %v7137
    %v7206 = vsub.f32 %v6992, %v7138
    %v7207 = vsub.f32 %v6993, %v7139
    %v7208 = vsub.f32 %v6994, %v7140
    %v7209 = vsub.f32 %v6995, %v7141
    %v7210 = vmul.f32 %v7176, %v7176
    %v7211 = vmul.f32 %v7177, %v7177
    %v7212 = vmul.f32 %v7178, %v7178
    %v7213 = vmul.f32 %v7179, %v7179
    %v7214 = vmul.f32 %v7180, %v7180
    %v7215 = vmul.f32 %v7181, %v7181
    %v7216 = vmul.f32 %v7182, %v7182
    %v7217 = vmul.f32 %v7183, %v7183
    %v7218 = vmul.f32 %v7184, %v7184
    %v7219 = vmul.f32 %v7185, %v7185
    %v7220 = vmul.f32 %v7186, %v7186
    %v7221 = vmul.f32 %v7187, %v7187
    %v7222 = vmul.f32 %v7188, %v7188
    %v7223 = vmul.f32 %v7189, %v7189
    %v7224 = vmul.f32 %v7190, %v7190
    %v7225 = vmul.f32 %v7191, %v7191
    %v7226 = vmul.f32 %v7192, %v7192
    %v7227 = vmul.f32 %v7193, %v7193
    %v7228 = vmul.f32 %v7194, %v7194
    %v7229 = vmul.f32 %v7195, %v7195
    %v7230 = vmul.f32 %v7196, %v7196
    %v7231 = vmul.f32 %v7197, %v7197
    %v7232 = vmul.f32 %v7198, %v7198
    %v7233 = vmul.f32 %v7199, %v7199
    %v7234 = vmul.f32 %v7200, %v7200
    %v7235 = vmul.f32 %v7201, %v7201
    %v7236 = vmul.f32 %v7202, %v7202
    %v7237 = vmul.f32 %v7203, %v7203
    %v7238 = vmul.f32 %v7204, %v7204
    %v7239 = vmul.f32 %v7205, %v7205
    %v7240 = vmul.f32 %v7206, %v7206
    %v7241 = vmul.f32 %v7207, %v7207
    %v7242 = vmul.f32 %v7208, %v7208
    %v7243 = vmul.f32 %v7209, %v7209
    %7278 = vst [vmem:[#allocation1] ss:$9 sm:$0xff] %v7210
    %s7279 = scalar_lea.vmem [#allocation1], 1
    %7280 = vst [vmem:[%s7279] ss:$9 sm:$0xff] %v7211
    %s7281 = scalar_lea.vmem [#allocation1], 2
    %7282 = vst [vmem:[%s7281] ss:$9 sm:$0xff] %v7212
    %s7283 = scalar_lea.vmem [#allocation1], 3
    %7284 = vst [vmem:[%s7283] ss:$9 sm:$0xff] %v7213
    %s7285 = scalar_lea.vmem [#allocation1], 4
    %7286 = vst [vmem:[%s7285] ss:$9 sm:$0xff] %v7214
    %s7287 = scalar_lea.vmem [#allocation1], 5
    %7288 = vst [vmem:[%s7287] ss:$9 sm:$0xff] %v7215
    %s7289 = scalar_lea.vmem [#allocation1], 6
    %7290 = vst [vmem:[%s7289] ss:$9 sm:$0xff] %v7216
    %s7291 = scalar_lea.vmem [#allocation1], 7
    %7292 = vst [vmem:[%s7291] ss:$9 sm:$0xff] %v7217
    %v7293 = vld [vmem:[#allocation1] sm:$0xff]
    %7294 = vst [vmem:[#allocation1] ss:$9 sm:$0xff] %v7218
    %7295 = vst [vmem:[%s7279] ss:$9 sm:$0xff] %v7219
    %7296 = vst [vmem:[%s7281] ss:$9 sm:$0xff] %v7220
    %7297 = vst [vmem:[%s7283] ss:$9 sm:$0xff] %v7221
    %7298 = vst [vmem:[%s7285] ss:$9 sm:$0xff] %v7222
    %7299 = vst [vmem:[%s7287] ss:$9 sm:$0xff] %v7223
    %7300 = vst [vmem:[%s7289] ss:$9 sm:$0xff] %v7224
    %7301 = vst [vmem:[%s7291] ss:$9 sm:$0xff] %v7225
    %v7302 = vld [vmem:[#allocation1] sm:$0xff]
    %7303 = vst [vmem:[#allocation1] ss:$9 sm:$0xff] %v7226
    %7304 = vst [vmem:[%s7279] ss:$9 sm:$0xff] %v7227
    %7305 = vst [vmem:[%s7281] ss:$9 sm:$0xff] %v7228
    %7306 = vst [vmem:[%s7283] ss:$9 sm:$0xff] %v7229
    %7307 = vst [vmem:[%s7285] ss:$9 sm:$0xff] %v7230
    %7308 = vst [vmem:[%s7287] ss:$9 sm:$0xff] %v7231
    %7309 = vst [vmem:[%s7289] ss:$9 sm:$0xff] %v7232
    %7310 = vst [vmem:[%s7291] ss:$9 sm:$0xff] %v7233
    %v7311 = vld [vmem:[#allocation1] sm:$0xff]
    %7312 = vst [vmem:[#allocation1] ss:$9 sm:$0xff] %v7234
    %7313 = vst [vmem:[%s7279] ss:$9 sm:$0xff] %v7235
    %7314 = vst [vmem:[%s7281] ss:$9 sm:$0xff] %v7236
    %7315 = vst [vmem:[%s7283] ss:$9 sm:$0xff] %v7237
    %7316 = vst [vmem:[%s7285] ss:$9 sm:$0xff] %v7238
    %7317 = vst [vmem:[%s7287] ss:$9 sm:$0xff] %v7239
    %7318 = vst [vmem:[%s7289] ss:$9 sm:$0xff] %v7240
    %7319 = vst [vmem:[%s7291] ss:$9 sm:$0xff] %v7241
    %v7320 = vld [vmem:[#allocation1] sm:$0xff]
    %7321 = vst [vmem:[#allocation1] ss:$9 sm:$0xff] %v7242
    %7322 = vst [vmem:[%s7279] ss:$9 sm:$0xff] %v7243
    %v7323 = vld [vmem:[#allocation1] sm:$0xff]
    %v7329 = vsel %vm477, %v7293, 0.0
    %7330 = vadd.xlane.f32.xlu0 %v7329
    %v7331 = vpop.xlane.xlu0 %7330
    %v7332 = vsel %vm477, %v7302, 0.0
    %7333 = vadd.xlane.f32.xlu0 %v7332
    %v7334 = vpop.xlane.xlu0 %7333
    %v7335 = vsel %vm477, %v7311, 0.0
    %7336 = vadd.xlane.f32.xlu0 %v7335
    %v7337 = vpop.xlane.xlu0 %7336
    %v7338 = vsel %vm477, %v7320, 0.0
    %7339 = vadd.xlane.f32.xlu0 %v7338
    %v7340 = vpop.xlane.xlu0 %7339
    %v7341 = vsel %vm490, %v7323, 0.0
    %7342 = vadd.xlane.f32.xlu0 %v7341
    %v7343 = vpop.xlane.xlu0 %7342
    %v7344 = vmul.f32 %v7331, %v500
    %v7345 = vmul.f32 %v7334, %v500
    %v7346 = vmul.f32 %v7337, %v500
    %v7347 = vmul.f32 %v7340, %v500
    %v7348 = vmul.f32 %v7343, %v500
    %v7349 = vadd.f32 %v7344, 1e-05
    %v7350 = vadd.f32 %v7345, 1e-05
    %v7351 = vadd.f32 %v7346, 1e-05
    %v7352 = vadd.f32 %v7347, 1e-05
    %v7353 = vadd.f32 %v7348, 1e-05
    %v7354 = vrsqrt.pop %v7349
    %v7355 = vmul.f32 %v7354, %v7349
    %v7356 = vmul.f32 %v7355, %v7354
    %v7357 = vmul.f32 0.5, %v7356
    %v7358 = vsub.f32 1.5, %v7357
    %v7359 = vmul.f32 %v7354, %v7358
    %vm7360 = vweird.f32 %v7349
    %vm7361 = vweird.f32 %v7354
    %vm7362 = vmor %vm7360, %vm7361
    %v7363 = vsel %vm7362, %v7354, %v7359
    %v7364 = vrsqrt.pop %v7350
    %v7365 = vmul.f32 %v7364, %v7350
    %v7366 = vmul.f32 %v7365, %v7364
    %v7367 = vmul.f32 0.5, %v7366
    %v7368 = vsub.f32 1.5, %v7367
    %v7369 = vmul.f32 %v7364, %v7368
    %vm7370 = vweird.f32 %v7350
    %vm7371 = vweird.f32 %v7364
    %vm7372 = vmor %vm7370, %vm7371
    %v7373 = vsel %vm7372, %v7364, %v7369
    %v7374 = vrsqrt.pop %v7351
    %v7375 = vmul.f32 %v7374, %v7351
    %v7376 = vmul.f32 %v7375, %v7374
    %v7377 = vmul.f32 0.5, %v7376
    %v7378 = vsub.f32 1.5, %v7377
    %v7379 = vmul.f32 %v7374, %v7378
    %vm7380 = vweird.f32 %v7351
    %vm7381 = vweird.f32 %v7374
    %vm7382 = vmor %vm7380, %vm7381
    %v7383 = vsel %vm7382, %v7374, %v7379
    %v7384 = vrsqrt.pop %v7352
    %v7385 = vmul.f32 %v7384, %v7352
    %v7386 = vmul.f32 %v7385, %v7384
    %v7387 = vmul.f32 0.5, %v7386
    %v7388 = vsub.f32 1.5, %v7387
    %v7389 = vmul.f32 %v7384, %v7388
    %vm7390 = vweird.f32 %v7352
    %vm7391 = vweird.f32 %v7384
    %vm7392 = vmor %vm7390, %vm7391
    %v7393 = vsel %vm7392, %v7384, %v7389
    %v7394 = vrsqrt.pop %v7353
    %v7395 = vmul.f32 %v7394, %v7353
    %v7396 = vmul.f32 %v7395, %v7394
    %v7397 = vmul.f32 0.5, %v7396
    %v7398 = vsub.f32 1.5, %v7397
    %v7399 = vmul.f32 %v7394, %v7398
    %vm7400 = vweird.f32 %v7353
    %vm7401 = vweird.f32 %v7394
    %vm7402 = vmor %vm7400, %vm7401
    %v7403 = vsel %vm7402, %v7394, %v7399
    %v7409 = vperm.slane %v7363, 0
    %v7410 = vperm.slane %v7363, 1
    %v7411 = vperm.slane %v7363, 2
    %v7412 = vperm.slane %v7363, 3
    %v7413 = vperm.slane %v7363, 4
    %v7414 = vperm.slane %v7363, 5
    %v7415 = vperm.slane %v7363, 6
    %v7416 = vperm.slane %v7363, 7
    %v7417 = vperm.slane %v7373, 0
    %v7418 = vperm.slane %v7373, 1
    %v7419 = vperm.slane %v7373, 2
    %v7420 = vperm.slane %v7373, 3
    %v7421 = vperm.slane %v7373, 4
    %v7422 = vperm.slane %v7373, 5
    %v7423 = vperm.slane %v7373, 6
    %v7424 = vperm.slane %v7373, 7
    %v7425 = vperm.slane %v7383, 0
    %v7426 = vperm.slane %v7383, 1
    %v7427 = vperm.slane %v7383, 2
    %v7428 = vperm.slane %v7383, 3
    %v7429 = vperm.slane %v7383, 4
    %v7430 = vperm.slane %v7383, 5
    %v7431 = vperm.slane %v7383, 6
    %v7432 = vperm.slane %v7383, 7
    %v7433 = vperm.slane %v7393, 0
    %v7434 = vperm.slane %v7393, 1
    %v7435 = vperm.slane %v7393, 2
    %v7436 = vperm.slane %v7393, 3
    %v7437 = vperm.slane %v7393, 4
    %v7438 = vperm.slane %v7393, 5
    %v7439 = vperm.slane %v7393, 6
    %v7440 = vperm.slane %v7393, 7
    %v7441 = vperm.slane %v7403, 0
    %v7442 = vperm.slane %v7403, 1
    %v7477 = vmul.f32 %v7176, %v7409
    %v7478 = vmul.f32 %v7177, %v7410
    %v7479 = vmul.f32 %v7178, %v7411
    %v7480 = vmul.f32 %v7179, %v7412
    %v7481 = vmul.f32 %v7180, %v7413
    %v7482 = vmul.f32 %v7181, %v7414
    %v7483 = vmul.f32 %v7182, %v7415
    %v7484 = vmul.f32 %v7183, %v7416
    %v7485 = vmul.f32 %v7184, %v7417
    %v7486 = vmul.f32 %v7185, %v7418
    %v7487 = vmul.f32 %v7186, %v7419
    %v7488 = vmul.f32 %v7187, %v7420
    %v7489 = vmul.f32 %v7188, %v7421
    %v7490 = vmul.f32 %v7189, %v7422
    %v7491 = vmul.f32 %v7190, %v7423
    %v7492 = vmul.f32 %v7191, %v7424
    %v7493 = vmul.f32 %v7192, %v7425
    %v7494 = vmul.f32 %v7193, %v7426
    %v7495 = vmul.f32 %v7194, %v7427
    %v7496 = vmul.f32 %v7195, %v7428
    %v7497 = vmul.f32 %v7196, %v7429
    %v7498 = vmul.f32 %v7197, %v7430
    %v7499 = vmul.f32 %v7198, %v7431
    %v7500 = vmul.f32 %v7199, %v7432
    %v7501 = vmul.f32 %v7200, %v7433
    %v7502 = vmul.f32 %v7201, %v7434
    %v7503 = vmul.f32 %v7202, %v7435
    %v7504 = vmul.f32 %v7203, %v7436
    %v7505 = vmul.f32 %v7204, %v7437
    %v7506 = vmul.f32 %v7205, %v7438
    %v7507 = vmul.f32 %v7206, %v7439
    %v7508 = vmul.f32 %v7207, %v7440
    %v7509 = vmul.f32 %v7208, %v7441
    %v7510 = vmul.f32 %v7209, %v7442
    %v7511 = vperm.slane %v6996, 0
    %v7513 = vrot.slane %v7511, 1
    %v7514 = vrot.slane %v7511, 2
    %v7515 = vrot.slane %v7511, 3
    %v7516 = vrot.slane %v7511, 4
    %v7517 = vrot.slane %v7511, 5
    %v7518 = vrot.slane %v7511, 6
    %v7519 = vrot.slane %v7511, 7
    %v7527 = vmul.f32 %v7477, %v7511
    %v7528 = vmul.f32 %v7478, %v7513
    %v7529 = vmul.f32 %v7479, %v7514
    %v7530 = vmul.f32 %v7480, %v7515
    %v7531 = vmul.f32 %v7481, %v7516
    %v7532 = vmul.f32 %v7482, %v7517
    %v7533 = vmul.f32 %v7483, %v7518
    %v7534 = vmul.f32 %v7484, %v7519
    %v7535 = vmul.f32 %v7485, %v7511
    %v7536 = vmul.f32 %v7486, %v7513
    %v7537 = vmul.f32 %v7487, %v7514
    %v7538 = vmul.f32 %v7488, %v7515
    %v7539 = vmul.f32 %v7489, %v7516
    %v7540 = vmul.f32 %v7490, %v7517
    %v7541 = vmul.f32 %v7491, %v7518
    %v7542 = vmul.f32 %v7492, %v7519
    %v7543 = vmul.f32 %v7493, %v7511
    %v7544 = vmul.f32 %v7494, %v7513
    %v7545 = vmul.f32 %v7495, %v7514
    %v7546 = vmul.f32 %v7496, %v7515
    %v7547 = vmul.f32 %v7497, %v7516
    %v7548 = vmul.f32 %v7498, %v7517
    %v7549 = vmul.f32 %v7499, %v7518
    %v7550 = vmul.f32 %v7500, %v7519
    %v7551 = vmul.f32 %v7501, %v7511
    %v7552 = vmul.f32 %v7502, %v7513
    %v7553 = vmul.f32 %v7503, %v7514
    %v7554 = vmul.f32 %v7504, %v7515
    %v7555 = vmul.f32 %v7505, %v7516
    %v7556 = vmul.f32 %v7506, %v7517
    %v7557 = vmul.f32 %v7507, %v7518
    %v7558 = vmul.f32 %v7508, %v7519
    %v7559 = vmul.f32 %v7509, %v7511
    %v7560 = vmul.f32 %v7510, %v7513
    %v7561 = vperm.slane %v6997, 0
    %v7563 = vrot.slane %v7561, 1
    %v7564 = vrot.slane %v7561, 2
    %v7565 = vrot.slane %v7561, 3
    %v7566 = vrot.slane %v7561, 4
    %v7567 = vrot.slane %v7561, 5
    %v7568 = vrot.slane %v7561, 6
    %v7569 = vrot.slane %v7561, 7
    %v7577 = vadd.f32 %v7527, %v7561
    %v7578 = vadd.f32 %v7528, %v7563
    %v7579 = vadd.f32 %v7529, %v7564
    %v7580 = vadd.f32 %v7530, %v7565
    %v7581 = vadd.f32 %v7531, %v7566
    %v7582 = vadd.f32 %v7532, %v7567
    %v7583 = vadd.f32 %v7533, %v7568
    %v7584 = vadd.f32 %v7534, %v7569
    %v7585 = vadd.f32 %v7535, %v7561
    %v7586 = vadd.f32 %v7536, %v7563
    %v7587 = vadd.f32 %v7537, %v7564
    %v7588 = vadd.f32 %v7538, %v7565
    %v7589 = vadd.f32 %v7539, %v7566
    %v7590 = vadd.f32 %v7540, %v7567
    %v7591 = vadd.f32 %v7541, %v7568
    %v7592 = vadd.f32 %v7542, %v7569
    %v7593 = vadd.f32 %v7543, %v7561
    %v7594 = vadd.f32 %v7544, %v7563
    %v7595 = vadd.f32 %v7545, %v7564
    %v7596 = vadd.f32 %v7546, %v7565
    %v7597 = vadd.f32 %v7547, %v7566
    %v7598 = vadd.f32 %v7548, %v7567
    %v7599 = vadd.f32 %v7549, %v7568
    %v7600 = vadd.f32 %v7550, %v7569
    %v7601 = vadd.f32 %v7551, %v7561
    %v7602 = vadd.f32 %v7552, %v7563
    %v7603 = vadd.f32 %v7553, %v7564
    %v7604 = vadd.f32 %v7554, %v7565
    %v7605 = vadd.f32 %v7555, %v7566
    %v7606 = vadd.f32 %v7556, %v7567
    %v7607 = vadd.f32 %v7557, %v7568
    %v7608 = vadd.f32 %v7558, %v7569
    %v7609 = vadd.f32 %v7559, %v7561
    %v7610 = vadd.f32 %v7560, %v7563
    %s7611 = scalar_lea.vmem %s14, 32
    %v7612 = vld [vmem:[%s7611] sm:$0xff]
    %v7613 = vld [vmem:[%s7611 + $0x8] sm:$0xff]
    %v7614 = vld [vmem:[%s7611 + $0x10] sm:$0xff]
    %v7615 = vld [vmem:[%s7611 + $0x18] sm:$0xff]
    %v7616 = vld [vmem:[%s15 + $0x1] sm:$0x1]
    %v7617 = vperm.slane %v7616, 0
    %7652 = vst [vmem:[#allocation1] ss:$9 sm:$0xff] %v7577
    %s7653 = scalar_lea.vmem [#allocation1], 1
    %7654 = vst [vmem:[%s7653] ss:$9 sm:$0xff] %v7578
    %s7655 = scalar_lea.vmem [#allocation1], 2
    %7656 = vst [vmem:[%s7655] ss:$9 sm:$0xff] %v7579
    %s7657 = scalar_lea.vmem [#allocation1], 3
    %7658 = vst [vmem:[%s7657] ss:$9 sm:$0xff] %v7580
    %s7659 = scalar_lea.vmem [#allocation1], 4
    %7660 = vst [vmem:[%s7659] ss:$9 sm:$0xff] %v7581
    %s7661 = scalar_lea.vmem [#allocation1], 5
    %7662 = vst [vmem:[%s7661] ss:$9 sm:$0xff] %v7582
    %s7663 = scalar_lea.vmem [#allocation1], 6
    %7664 = vst [vmem:[%s7663] ss:$9 sm:$0xff] %v7583
    %s7665 = scalar_lea.vmem [#allocation1], 7
    %7666 = vst [vmem:[%s7665] ss:$9 sm:$0xff] %v7584
    %v7667 = vld [vmem:[#allocation1] sm:$0xff]
    %7668 = vst [vmem:[#allocation1] ss:$9 sm:$0xff] %v7585
    %7669 = vst [vmem:[%s7653] ss:$9 sm:$0xff] %v7586
    %7670 = vst [vmem:[%s7655] ss:$9 sm:$0xff] %v7587
    %7671 = vst [vmem:[%s7657] ss:$9 sm:$0xff] %v7588
    %7672 = vst [vmem:[%s7659] ss:$9 sm:$0xff] %v7589
    %7673 = vst [vmem:[%s7661] ss:$9 sm:$0xff] %v7590
    %7674 = vst [vmem:[%s7663] ss:$9 sm:$0xff] %v7591
    %7675 = vst [vmem:[%s7665] ss:$9 sm:$0xff] %v7592
    %v7676 = vld [vmem:[#allocation1] sm:$0xff]
    %7677 = vst [vmem:[#allocation1] ss:$9 sm:$0xff] %v7593
    %7678 = vst [vmem:[%s7653] ss:$9 sm:$0xff] %v7594
    %7679 = vst [vmem:[%s7655] ss:$9 sm:$0xff] %v7595
    %7680 = vst [vmem:[%s7657] ss:$9 sm:$0xff] %v7596
    %7681 = vst [vmem:[%s7659] ss:$9 sm:$0xff] %v7597
    %7682 = vst [vmem:[%s7661] ss:$9 sm:$0xff] %v7598
    %7683 = vst [vmem:[%s7663] ss:$9 sm:$0xff] %v7599
    %7684 = vst [vmem:[%s7665] ss:$9 sm:$0xff] %v7600
    %v7685 = vld [vmem:[#allocation1] sm:$0xff]
    %7686 = vst [vmem:[#allocation1] ss:$9 sm:$0xff] %v7601
    %7687 = vst [vmem:[%s7653] ss:$9 sm:$0xff] %v7602
    %7688 = vst [vmem:[%s7655] ss:$9 sm:$0xff] %v7603
    %7689 = vst [vmem:[%s7657] ss:$9 sm:$0xff] %v7604
    %7690 = vst [vmem:[%s7659] ss:$9 sm:$0xff] %v7605
    %7691 = vst [vmem:[%s7661] ss:$9 sm:$0xff] %v7606
    %7692 = vst [vmem:[%s7663] ss:$9 sm:$0xff] %v7607
    %7693 = vst [vmem:[%s7665] ss:$9 sm:$0xff] %v7608
    %v7694 = vld [vmem:[#allocation1] sm:$0xff]
    %7695 = vst [vmem:[#allocation1] ss:$9 sm:$0xff] %v7609
    %7696 = vst [vmem:[%s7653] ss:$9 sm:$0xff] %v7610
    %v7697 = vld [vmem:[#allocation1] sm:$0xff]
    %v7698 = vsel %vm477, %v7667, 0
    %v7700 = vsel %vm477, %v7676, 0
    %v7702 = vsel %vm477, %v7685, 0
    %v7704 = vsel %vm477, %v7694, 0
    %v7706 = vsel %vm477, %v7697, 0
    %7708 = vmatpush.msra.mxu0 0.0
    %7709 = vmatpush.msra.mxu0 0.0
    %7710 = vmatpush.msra.mxu0 0.0
    %7711 = vmatpush.msra.mxu0 0.0
    %7712 = vmatpush.msra.mxu0 0.0
    %7713 = vmatpush.msra.mxu0 0.0
    %7714 = vmatpush.msra.mxu0 0.0
    %7715 = vmatpush.msra.mxu0 0.0
    %7716 = vmatpush.msra.mxu0 0.0
    %7717 = vmatpush.msra.mxu0 0.0
    %7718 = vmatpush.msra.mxu0 0.0
    %7719 = vmatpush.msra.mxu0 0.0
    %7720 = vmatpush.msra.mxu0 %v7615
    %7721 = vmatpush.msra.mxu0 %v7614
    %7722 = vmatpush.msra.mxu0 %v7613
    %7723 = vmatpush.msra.mxu0 %v7612
    %7724 = vmatmul.f32.gmra.mxu0 %v7698
    %v7725 = vpop.f32.mrf.mxu0
    %v7726 = vadd.f32 %v7617, %v7725
    %7727 = vmatmul.f32.gmra.mxu0 %v7700
    %v7728 = vpop.f32.mrf.mxu0
    %v7729 = vadd.f32 %v7617, %v7728
    %7730 = vmatmul.f32.gmra.mxu0 %v7702
    %v7731 = vpop.f32.mrf.mxu0
    %v7732 = vadd.f32 %v7617, %v7731
    %7733 = vmatmul.f32.gmra.mxu0 %v7704
    %v7734 = vpop.f32.mrf.mxu0
    %v7735 = vadd.f32 %v7617, %v7734
    %7736 = vmatmul.f32.gmra.mxu0 %v7706
    %v7737 = vpop.f32.mrf.mxu0
    %v7738 = vadd.f32 %v7617, %v7737
    %7739 = vdwg.mxu0
    %v7740 = vmul.f32 %v7726, 0.5
    %v7741 = vmul.f32 %v7729, 0.5
    %v7742 = vmul.f32 %v7732, 0.5
    %v7743 = vmul.f32 %v7735, 0.5
    %v7744 = vmul.f32 %v7738, 0.5
    %v7745 = vmul.f32 %v7726, 0.044715
    %v7746 = vmul.f32 %v7729, 0.044715
    %v7747 = vmul.f32 %v7732, 0.044715
    %v7748 = vmul.f32 %v7735, 0.044715
    %v7749 = vmul.f32 %v7738, 0.044715
    %v7750 = vmul.f32 %v7745, %v7726
    %v7751 = vmul.f32 %v7746, %v7729
    %v7752 = vmul.f32 %v7747, %v7732
    %v7753 = vmul.f32 %v7748, %v7735
    %v7754 = vmul.f32 %v7749, %v7738
    %v7755 = vmul.f32 %v7750, %v7726
    %v7756 = vmul.f32 %v7751, %v7729
    %v7757 = vmul.f32 %v7752, %v7732
    %v7758 = vmul.f32 %v7753, %v7735
    %v7759 = vmul.f32 %v7754, %v7738
    %v7760 = vadd.f32 %v7726, %v7755
    %v7761 = vadd.f32 %v7729, %v7756
    %v7762 = vadd.f32 %v7732, %v7757
    %v7763 = vadd.f32 %v7735, %v7758
    %v7764 = vadd.f32 %v7738, %v7759
    %v7765 = vmul.f32 %v7760, 0.7978846
    %v7766 = vmul.f32 %v7761, 0.7978846
    %v7767 = vmul.f32 %v7762, 0.7978846
    %v7768 = vmul.f32 %v7763, 0.7978846
    %v7769 = vmul.f32 %v7764, 0.7978846
    %v7770 = vtanh.pop %v7765
    %v7771 = vtanh.pop %v7766
    %v7772 = vtanh.pop %v7767
    %v7773 = vtanh.pop %v7768
    %v7774 = vtanh.pop %v7769
    %v7775 = vadd.f32 %v7770, 1.0
    %v7776 = vadd.f32 %v7771, 1.0
    %v7777 = vadd.f32 %v7772, 1.0
    %v7778 = vadd.f32 %v7773, 1.0
    %v7779 = vadd.f32 %v7774, 1.0
    %v7780 = vmul.f32 %v7740, %v7775
    %v7781 = vmul.f32 %v7741, %v7776
    %v7782 = vmul.f32 %v7742, %v7777
    %v7783 = vmul.f32 %v7743, %v7778
    %v7784 = vmul.f32 %v7744, %v7779
    %s7785 = scalar_lea.vmem %s16, 64
    %v7786 = vld [vmem:[%s7785] sm:$0xff]
    %v7787 = vld [vmem:[%s7785 + $0x8] sm:$0xff]
    %v7788 = vld [vmem:[%s7785 + $0x10] sm:$0xff]
    %v7789 = vld [vmem:[%s7785 + $0x18] sm:$0xff]
    %v7790 = vld [vmem:[%s7785 + $0x20] sm:$0xff]
    %v7791 = vld [vmem:[%s7785 + $0x28] sm:$0xff]
    %v7792 = vld [vmem:[%s7785 + $0x30] sm:$0xff]
    %v7793 = vld [vmem:[%s7785 + $0x38] sm:$0xff]
    %v7795 = vsel %vm3999, %v7780, 0
    %v7798 = vsel %vm3999, %v7781, 0
    %v7801 = vsel %vm3999, %v7782, 0
    %v7804 = vsel %vm3999, %v7783, 0
    %v7807 = vsel %vm3999, %v7784, 0
    %7809 = vmatpush.msra.mxu0 0.0
    %7810 = vmatpush.msra.mxu0 0.0
    %7811 = vmatpush.msra.mxu0 0.0
    %7812 = vmatpush.msra.mxu0 0.0
    %7813 = vmatpush.msra.mxu0 0.0
    %7814 = vmatpush.msra.mxu0 0.0
    %7815 = vmatpush.msra.mxu0 0.0
    %7816 = vmatpush.msra.mxu0 0.0
    %7817 = vmatpush.msra.mxu0 %v7793
    %7818 = vmatpush.msra.mxu0 %v7792
    %7819 = vmatpush.msra.mxu0 %v7791
    %7820 = vmatpush.msra.mxu0 %v7790
    %7821 = vmatpush.msra.mxu0 %v7789
    %7822 = vmatpush.msra.mxu0 %v7788
    %7823 = vmatpush.msra.mxu0 %v7787
    %7824 = vmatpush.msra.mxu0 %v7786
    %7825 = vmatmul.f32.gmra.mxu0 %v7795
    %v7826 = vpop.f32.mrf.mxu0
    %v7827 = vadd.f32 0.0, %v7826
    %7828 = vmatmul.f32.gmra.mxu0 %v7798
    %v7829 = vpop.f32.mrf.mxu0
    %7830 = vmatmul.f32.gmra.mxu0 %v7801
    %v7831 = vpop.f32.mrf.mxu0
    %v7832 = vadd.f32 0.0, %v7831
    %7833 = vmatmul.f32.gmra.mxu0 %v7804
    %v7834 = vpop.f32.mrf.mxu0
    %7835 = vmatmul.f32.gmra.mxu0 %v7807
    %v7836 = vpop.f32.mrf.mxu0
    %7837 = vdwg.mxu0
    %v7839 = vrot.slane %v7832, 1
    %v7841 = vadd.f32 %v6962, %v7827
    %v7842 = vadd.f32 %v6979, %v7839
    %v7843 = vld [vmem:[%s17 + $0x1] sm:$0x1]
    %v7844 = vperm.slane %v7843, 0
    %v7846 = vrot.slane %v7844, 1
    %v7848 = vadd.f32 %v7841, %v7844
    %v7849 = vadd.f32 %v7842, %v7846
    %v7850 = vld [vmem:[%s18] sm:$0x1]
    %v7851 = vld [vmem:[%s19] sm:$0x1]
    %7854 = vst [vmem:[#allocation1] ss:$9 sm:$0xff] %v7848
    %s7855 = scalar_lea.vmem [#allocation1], 1
    %7856 = vst [vmem:[%s7855] ss:$9 sm:$0xff] %v7849
    %v7857 = vld [vmem:[#allocation1] sm:$0xff]
    %v7859 = vsel %vm490, %v7857, 0.0
    %7860 = vadd.xlane.f32.xlu0 %v7859
    %v7861 = vpop.xlane.xlu0 %7860
    %v7862 = vmul.f32 %v7861, %v500
    %v7864 = vperm.slane %v7862, 0
    %v7865 = vperm.slane %v7862, 1
    %v7868 = vsub.f32 %v7848, %v7864
    %v7869 = vsub.f32 %v7849, %v7865
    %v7870 = vmul.f32 %v7868, %v7868
    %v7871 = vmul.f32 %v7869, %v7869
    %7874 = vst [vmem:[#allocation1] ss:$9 sm:$0xff] %v7870
    %s7875 = scalar_lea.vmem [#allocation1], 1
    %7876 = vst [vmem:[%s7875] ss:$9 sm:$0xff] %v7871
    %v7877 = vld [vmem:[#allocation1] sm:$0xff]
    %v7879 = vsel %vm490, %v7877, 0.0
    %7880 = vadd.xlane.f32.xlu0 %v7879
    %v7881 = vpop.xlane.xlu0 %7880
    %v7882 = vmul.f32 %v7881, %v500
    %v7883 = vadd.f32 %v7882, 1e-05
    %v7884 = vrsqrt.pop %v7883
    %v7885 = vmul.f32 %v7884, %v7883
    %v7886 = vmul.f32 %v7885, %v7884
    %v7887 = vmul.f32 0.5, %v7886
    %v7888 = vsub.f32 1.5, %v7887
    %v7889 = vmul.f32 %v7884, %v7888
    %vm7890 = vweird.f32 %v7883
    %vm7891 = vweird.f32 %v7884
    %vm7892 = vmor %vm7890, %vm7891
    %v7893 = vsel %vm7892, %v7884, %v7889
    %v7895 = vperm.slane %v7893, 0
    %v7896 = vperm.slane %v7893, 1
    %v7899 = vmul.f32 %v7868, %v7895
    %v7900 = vmul.f32 %v7869, %v7896
    %v7902 = vperm.slane %v7850, 0
    %v7904 = vrot.slane %v7902, 1
    %v7906 = vmul.f32 %v7899, %v7902
    %v7907 = vmul.f32 %v7900, %v7904
    %v7909 = vperm.slane %v7851, 0
    %v7911 = vrot.slane %v7909, 1
    %v7913 = vadd.f32 %v7906, %v7909
    %v7914 = vadd.f32 %v7907, %v7911
    %v7915 = vld [vmem:[%s20] sm:$0xff]
    %v7916 = vld [vmem:[%s20 + $0x8] sm:$0xff]
    %v7917 = vld [vmem:[%s20 + $0x10] sm:$0xff]
    %v7918 = vld [vmem:[%s20 + $0x18] sm:$0xff]
    %v7919 = vld [vmem:[%s21] sm:$0x1]
    %v7921 = vperm.slane %v7919, 0
    %7925 = vst [vmem:[#allocation1] ss:$9 sm:$0xff] %v7913
    %s7926 = scalar_lea.vmem [#allocation1], 1
    %7927 = vst [vmem:[%s7926] ss:$9 sm:$0xff] %v7914
    %v7928 = vld [vmem:[#allocation1] sm:$0xff]
    %v7929 = vsel %vm477, %v7928, 0
    %7931 = vmatpush.msra.mxu0 0.0
    %7932 = vmatpush.msra.mxu0 0.0
    %7933 = vmatpush.msra.mxu0 0.0
    %7934 = vmatpush.msra.mxu0 0.0
    %7935 = vmatpush.msra.mxu0 0.0
    %7936 = vmatpush.msra.mxu0 0.0
    %7937 = vmatpush.msra.mxu0 0.0
    %7938 = vmatpush.msra.mxu0 0.0
    %7939 = vmatpush.msra.mxu0 0.0
    %7940 = vmatpush.msra.mxu0 0.0
    %7941 = vmatpush.msra.mxu0 0.0
    %7942 = vmatpush.msra.mxu0 0.0
    %7943 = vmatpush.msra.mxu0 %v7918
    %7944 = vmatpush.msra.mxu0 %v7917
    %7945 = vmatpush.msra.mxu0 %v7916
    %7946 = vmatpush.msra.mxu0 %v7915
    %7947 = vmatmul.f32.gmra.mxu0 %v7929
    %v7948 = vpop.f32.mrf.mxu0
    %v7949 = vadd.f32 %v7921, %v7948
    %7950 = vdwg.mxu0
    %vm7951 = vcmask 74752
    %7952 = vst.msk [vmem:[#allocation2] sm:$0x3] %vm7951, %v7949
    // Predicated region
    $region90: #{vit_forward.1} parent=1 // pred_check
      _
    $region91: #{vit_forward.1} parent=1 // pred_check_branch
      %7954 = sbr.rel (0) target = $region93
    $region92: #{vit_forward.1} parent=1 // pred_region
      %7956 = vsyncadd [#allocation3], 0
      %s7958 = sshll.u32 [#allocation2], 4
      %s7959 = int_to_ptr.vmem [resolvable:$true] %s7958
      %s7960 = sshll.u32 %s22, 4
      %s7961 = int_to_ptr.hbm [resolvable:$true] %s7960
      %7963 = dma.vmem_to_hbm [thread:$0]  %s7959, 32, %s7961, [#allocation3]
    $region93: #{vit_forward.1} parent=1 // pred_fallthru
      _
    // Predicated region
    $region94: #{vit_forward.1} parent=1 // pred_check
      _
    $region95: #{vit_forward.1} parent=1 // pred_check_branch
      %7965 = sbr.rel (0) target = $region97
    $region96: #{vit_forward.1} parent=1 // pred_region
      %7967 = dma.done [#allocation3], 32
    $region97: #{vit_forward.1} parent=1 // pred_fallthru
      _
    %7968 = vsyncpa [#allocation3], 1

</llo_original>
